<compile_context>
chip_gen: v6e
topology: v6e:2x2x1
jax: 0.10.0
libtpu: 0.0.40
codegen_flags: <defaults>
</compile_context>

<pallas_src>
import functools

import jax
import jax.numpy as jnp
from jax import lax
from jax.experimental import pallas as pl
from jax.experimental.pallas import tpu as pltpu


HIDDEN = 1024   # deberta-v3-large hidden_size (Linear(hidden, 512) is hardcoded)
D1 = 512        # classifier hidden dims (hardcoded in the module)
D2 = 128
LN_EPS = 1e-5   # torch.nn.LayerNorm default eps

_MiB = 1024 * 1024


def _round_up(x, m):
    return ((x + m - 1) // m) * m


def _tpu_generation():
    try:
        kind = jax.devices()[0].device_kind.lower()
    except Exception:
        return "unknown"
    if "v7" in kind or "7x" in kind:
        return "v7x"
    if "v5" in kind or "v6" in kind or "trillium" in kind:
        return "v5e_v6e"
    return "unknown"


# gen -> (default seq_block for the bf16 stream, vmem_limit_bytes, force >=2 batch tiles)
_CHIP_DEFAULTS = {
    # v5e/v5p/v6e: 128 MiB physical VMEM, 1 TC -> big sequence tiles, big vmem cap.
    "v5e_v6e": (1024, 96 * _MiB, False),
    # v7x: 64 MiB VMEM/TC, 2 TCs -> keep emb <= ~8 MiB/buffer, keep both cores busy.
    "v7x":     (512, 48 * _MiB, True),
    "unknown": (256, 48 * _MiB, False),
}


def _layernorm(x, gamma, beta):
    mu = jnp.mean(x, axis=-1, keepdims=True)
    xc = x - mu
    var = jnp.mean(xc * xc, axis=-1, keepdims=True)
    return xc * lax.rsqrt(var + LN_EPS) * gamma + beta


def _gelu_exact(x):
    # torch.nn.GELU() default is the exact (erf) formulation
    return 0.5 * x * (1.0 + lax.erf(x * 0.7071067811865476))


def _cross_encoder_kernel(
    ntiles_ref,                         # SMEM (nbt,) int32 -- scalar prefetch
    mask_ref,                           # (TB, TS, 1) bf16 mask, emb-matching layout
    emb_ref,                            # (TB, TS, H) encoder last_hidden_state (stream)
    den_ref,                            # (TB, 1) clamp(mask.sum(1), 1e-9)
    w1_ref, b1_ref, g1_ref, be1_ref,    # Linear(H,512) + LayerNorm(512)
    w2_ref, b2_ref, g2_ref, be2_ref,    # Linear(512,128) + LayerNorm(128)
    w3t_ref, b3_ref,                    # Linear(128,1): weight^T (1,128), bias (1,1)
    out_ref,                            # (TB, 128) lane-dense sigmoid probs
    acc_ref,                            # VMEM scratch (TB, H) f32 pooled-sum acc
):
    b = pl.program_id(0)
    s = pl.program_id(1)
    ns = pl.num_programs(1)

    @pl.when(s == 0)
    def _init():
        acc_ref[...] = jnp.zeros_like(acc_ref)

    # Skip sequence tiles that are entirely padding for this batch tile.
    @pl.when(s < ntiles_ref[b])
    def _accumulate():
        emb = emb_ref[...].astype(jnp.float32)      # upcast per tile (bf16 stream)
        m = mask_ref[...].astype(jnp.float32)       # (TB, TS, 1) lane-broadcast
        acc_ref[...] += jnp.sum(emb * m, axis=1)    # (TB, H) f32 accumulation

    @pl.when(s == ns - 1)
    def _finalize():
        # masked mean pooling: sum(x*m, 1) / clamp(m.sum(1), 1e-9)
        pooled = acc_ref[...] / den_ref[...]        # (TB, H)

        # classifier: Linear -> LN -> GELU -> (Dropout) -> Linear -> LN -> GELU
        #             -> (Dropout) -> Linear -> sigmoid
        h1 = jnp.dot(pooled, w1_ref[...], preferred_element_type=jnp.float32)
        h1 = _gelu_exact(_layernorm(h1 + b1_ref[...], g1_ref[...], be1_ref[...]))

        h2 = jnp.dot(h1, w2_ref[...], preferred_element_type=jnp.float32)
        h2 = _gelu_exact(_layernorm(h2 + b2_ref[...], g2_ref[...], be2_ref[...]))

        # Linear(128, 1) as a VPU/XLU reduction instead of a full MXU pass.
        logits = jnp.sum(h2 * w3t_ref[...], axis=-1, keepdims=True) + b3_ref[...]
        probs = jax.nn.sigmoid(logits)              # (TB, 1)
        out_ref[...] = jnp.broadcast_to(probs, out_ref.shape)


@functools.partial(
    jax.jit,
    static_argnames=("tb", "ts", "vmem_limit", "stream_dtype", "single_buffer_weights"))
def _forward_impl(token_embeddings, attention_mask, params, *,
                  tb, ts, vmem_limit, stream_dtype, single_buffer_weights):
    B, S, H = token_embeddings.shape
    b_pad = _round_up(B, tb)
    s_pad = _round_up(S, ts)
    nbt = b_pad // tb
    nst = s_pad // ts

    # Stream the embeddings at reduced width (the kernel is HBM-BW bound on this
    # tensor); cast BEFORE padding so padding + DMA both move half the bytes.
    emb = token_embeddings.astype(stream_dtype)
    emb = jnp.pad(emb, ((0, b_pad - B), (0, s_pad - S), (0, 0)))
    mask = jnp.pad(attention_mask.astype(jnp.float32),
                   ((0, b_pad - B), (0, s_pad - S)))

    # Denominator once (matches torch.clamp(mask_expanded.sum(1), min=1e-9)).
    den = jnp.maximum(jnp.sum(mask, axis=1, keepdims=True), 1e-9)        # (b_pad, 1)

    # Number of sequence tiles containing any valid token, per batch tile.
    tile_any = jnp.sum(mask.reshape(nbt, tb, nst, ts), axis=(1, 3)) > 0  # (nbt, nst)
    ntiles = jnp.max(
        jnp.where(tile_any, jnp.arange(1, nst + 1, dtype=jnp.int32)[None, :], 0),
        axis=1)
    ntiles = jnp.maximum(ntiles, 1).astype(jnp.int32)                    # (nbt,)

    # Mask streamed as bf16 (0/1 are exact) -> halves the lane-padded (TB,TS,1) block.
    mask3 = mask.astype(jnp.bfloat16).reshape(b_pad, s_pad, 1)
    w3t = params["w3"].reshape(1, D2)       # lane-dense final weight

    # index maps receive (b, s, ntiles_ref); skipped tiles are clamped so the
    # same block is revisited and no new DMA is issued.
    emb_spec = pl.BlockSpec((tb, ts, H),
                            lambda b, s, nt: (b, jnp.minimum(s, nt[b] - 1), 0))
    mask_spec = pl.BlockSpec((tb, ts, 1),
                             lambda b, s, nt: (b, jnp.minimum(s, nt[b] - 1), 0))
    den_spec = pl.BlockSpec((tb, 1), lambda b, s, nt: (b, 0))

    if single_buffer_weights:
        def const(shape):
            # Constant block index -> fetched once; single buffer reclaims VMEM
            # (w1 alone is 2 MiB; the saving matters most on v7x's 64 MiB budget).
            return pl.BlockSpec(shape, lambda b, s, nt: (0, 0),
                                pipeline_mode=pl.Buffered(1))
    else:
        def const(shape):
            return pl.BlockSpec(shape, lambda b, s, nt: (0, 0))

    grid_spec = pltpu.PrefetchScalarGridSpec(
        num_scalar_prefetch=1,
        grid=(nbt, nst),
        in_specs=[
            mask_spec, emb_spec, den_spec,
            const((HIDDEN, D1)), const((1, D1)), const((1, D1)), const((1, D1)),
            const((D1, D2)), const((1, D2)), const((1, D2)), const((1, D2)),
            const((1, D2)), const((1, 1)),
        ],
        out_specs=pl.BlockSpec((tb, 128), lambda b, s, nt: (b, 0)),
        scratch_shapes=[pltpu.VMEM((tb, HIDDEN), jnp.float32)],
    )

    weight_bytes = (HIDDEN * D1 + D1 * D2 + D2 + 3 * D1 + 3 * D2 + 1) * 4
    cost = pl.CostEstimate(
        flops=2 * b_pad * s_pad * HIDDEN + 2 * b_pad * (HIDDEN * D1 + D1 * D2 + D2),
        transcendentals=b_pad * (D1 + D2 + 1),
        bytes_accessed=(emb.size * emb.dtype.itemsize
                        + mask3.size * mask3.dtype.itemsize
                        + weight_bytes + b_pad * 128 * 4),
    )

    out = pl.pallas_call(
        _cross_encoder_kernel,
        out_shape=jax.ShapeDtypeStruct((b_pad, 128), jnp.float32),
        grid_spec=grid_spec,
        compiler_params=pltpu.CompilerParams(
            dimension_semantics=("parallel", "arbitrary"),
            vmem_limit_bytes=vmem_limit,
        ),
        cost_estimate=cost,
    )(ntiles, mask3, emb, den,
      params["w1"], params["b1"], params["g1"], params["be1"],
      params["w2"], params["b2"], params["g2"], params["be2"],
      w3t, params["b3"])

    # torch.sigmoid(logits).squeeze(-1)
    return out[:B, 0]


_SINGLE_BUFFER_WEIGHTS = None   # lazily probed: does this jax accept pl.Buffered(1)?


def cross_encoder_forward(token_embeddings, attention_mask, params, *,
                          batch_block=8, seq_block=None,
                          stream_dtype=jnp.bfloat16, vmem_limit_bytes=None):
    """token_embeddings: (B, S, H) f32/bf16; attention_mask: (B, S) -> (B,) probs."""
    global _SINGLE_BUFFER_WEIGHTS
    B, S, H = token_embeddings.shape
    assert H == HIDDEN, f"classifier expects hidden={HIDDEN}, got {H}"

    gen = _tpu_generation()
    def_ts, def_vmem, want_two_batch_tiles = _CHIP_DEFAULTS[gen]
    if seq_block is None:
        seq_block = def_ts
    if vmem_limit_bytes is None:
        vmem_limit_bytes = def_vmem
    if stream_dtype is None:
        stream_dtype = token_embeddings.dtype
    stream_dtype = jax.dtypes.canonicalize_dtype(stream_dtype)

    # Dtype-aware sequence-tile rounding: bf16 packs 16 sublane rows, 8-bit packs 32.
    seq_granule = 32 if stream_dtype.itemsize == 1 else 16

    b_pad8 = _round_up(B, 8)
    tb = _round_up(min(batch_block, b_pad8), 8)
    # v7x: make sure the "parallel" batch axis has >=2 tiles so both TCs get work.
    if want_two_batch_tiles and b_pad8 // tb < 2 and b_pad8 >= 16:
        tb = _round_up(b_pad8 // 2, 8)
    ts = _round_up(min(seq_block, S), seq_granule)

    kwargs = dict(tb=tb, ts=ts, vmem_limit=int(vmem_limit_bytes),
                  stream_dtype=stream_dtype)

    if _SINGLE_BUFFER_WEIGHTS is None:
        if not hasattr(pl, "Buffered"):
            _SINGLE_BUFFER_WEIGHTS = False
        else:
            try:
                out = jax.block_until_ready(
                    _forward_impl(token_embeddings, attention_mask, params,
                                  single_buffer_weights=True, **kwargs))
                _SINGLE_BUFFER_WEIGHTS = True
                return out
            except Exception:
                # pl.Buffered(1) rejected by this jax/libtpu: fall back to the
                # default (double-buffered, still constant-index) weight specs.
                _SINGLE_BUFFER_WEIGHTS = False

    return _forward_impl(token_embeddings, attention_mask, params,
                         single_buffer_weights=_SINGLE_BUFFER_WEIGHTS, **kwargs)


def init_params(key):
    """Deterministic synthetic parameters matching the module's shapes."""
    ks = jax.random.split(key, 6)

    def linear(kw, fan_in, fan_out):
        bound = 1.0 / jnp.sqrt(fan_in)
        return jax.random.uniform(kw, (fan_in, fan_out), jnp.float32, -bound, bound)

    return {
        "w1": linear(ks[0], HIDDEN, D1),
        "b1": jax.random.uniform(ks[1], (1, D1), jnp.float32, -0.01, 0.01),
        "g1": jnp.ones((1, D1), jnp.float32),
        "be1": jnp.zeros((1, D1), jnp.float32),
        "w2": linear(ks[2], D1, D2),
        "b2": jax.random.uniform(ks[3], (1, D2), jnp.float32, -0.01, 0.01),
        "g2": jnp.ones((1, D2), jnp.float32),
        "be2": jnp.zeros((1, D2), jnp.float32),
        "w3": linear(ks[4], D2, 1),
        "b3": jax.random.uniform(ks[5], (1, 1), jnp.float32, -0.01, 0.01),
    }


def _reference(token_embeddings, attention_mask, p):
    """Pure-JAX reference of the same forward, for a sanity check."""
    m = attention_mask.astype(jnp.float32)[:, :, None]
    pooled = jnp.sum(token_embeddings.astype(jnp.float32) * m, axis=1) / jnp.maximum(
        jnp.sum(m, axis=1), 1e-9)

    def ln(x, g, b):
        mu = jnp.mean(x, -1, keepdims=True)
        var = jnp.mean((x - mu) ** 2, -1, keepdims=True)
        return (x - mu) / jnp.sqrt(var + LN_EPS) * g + b

    gelu = lambda x: jax.nn.gelu(x, approximate=False)
    h = gelu(ln(pooled @ p["w1"] + p["b1"], p["g1"], p["be1"]))
    h = gelu(ln(h @ p["w2"] + p["b2"], p["g2"], p["be2"]))
    return jax.nn.sigmoid(h @ p["w3"] + p["b3"])[:, 0]


def _make_inputs(key, B, S, lengths):
    k_emb, _ = jax.random.split(key)
    emb = jax.random.normal(k_emb, (B, S, HIDDEN), jnp.float32)
    mask = (jnp.arange(S, dtype=jnp.int32)[None, :]
            < jnp.asarray(lengths, jnp.int32)[:, None]).astype(jnp.int32)
    return emb, mask


if __name__ == "__main__":
    key = jax.random.PRNGKey(0)
    k_in, k_in2, k_par = jax.random.split(key, 3)
    params = init_params(k_par)

    # --- test 1: small shapes, full-precision f32 stream, tight tolerance ---
    B, S = 2, 8
    emb, mask = _make_inputs(k_in, B, S, [S, S - 3])
    out = jax.block_until_ready(
        cross_encoder_forward(emb, mask, params, stream_dtype=None))
    ref = _reference(emb, mask, params)
    assert out.shape == (B,), out.shape
    assert jnp.allclose(out, ref, atol=1e-4, rtol=1e-4), (out, ref)

    # --- test 2: multiple batch/seq tiles, padded-tile skipping, bf16 stream ---
    B2, S2 = 10, 24
    lengths = [13, 9, 7, 24, 1, 16, 8, 5, 3, 11]
    emb2, mask2 = _make_inputs(k_in2, B2, S2, lengths)
    out2 = jax.block_until_ready(
        cross_encoder_forward(emb2, mask2, params, batch_block=8, seq_block=16))
    ref2 = _reference(emb2.astype(jnp.bfloat16).astype(jnp.float32), mask2, params)
    assert out2.shape == (B2,), out2.shape
    assert jnp.allclose(out2, ref2, atol=2e-3, rtol=2e-3), (out2, ref2)

    # --- test 3: bf16 embeddings straight through, chip-default tiling ---
    emb_bf16 = emb2.astype(jnp.bfloat16)
    out3 = jax.block_until_ready(cross_encoder_forward(emb_bf16, mask2, params))
    ref3 = _reference(emb_bf16.astype(jnp.float32), mask2, params)
    assert jnp.allclose(out3, ref3, atol=2e-3, rtol=2e-3), (out3, ref3)

    print("KERNEL_OK")
</pallas_src>

<mosaic_0001>
module attributes {stable_mosaic.version = 11 : i64} {
  func.func @_cross_encoder_kernel(%arg0: i32, %arg1: i32, %arg2: memref<1xi32, #tpu.memory_space<smem>>, %arg3: memref<8x16x1xbf16, #tpu.memory_space<vmem>>, %arg4: memref<8x16x1024xf32, #tpu.memory_space<vmem>>, %arg5: memref<8x1xf32, #tpu.memory_space<vmem>>, %arg6: memref<1024x512xf32, #tpu.memory_space<vmem>>, %arg7: memref<1x512xf32, #tpu.memory_space<vmem>>, %arg8: memref<1x512xf32, #tpu.memory_space<vmem>>, %arg9: memref<1x512xf32, #tpu.memory_space<vmem>>, %arg10: memref<512x128xf32, #tpu.memory_space<vmem>>, %arg11: memref<1x128xf32, #tpu.memory_space<vmem>>, %arg12: memref<1x128xf32, #tpu.memory_space<vmem>>, %arg13: memref<1x128xf32, #tpu.memory_space<vmem>>, %arg14: memref<1x128xf32, #tpu.memory_space<vmem>>, %arg15: memref<1x1xf32, #tpu.memory_space<vmem>>, %arg16: memref<8x128xf32, #tpu.memory_space<vmem>>, %arg17: memref<8x1024xf32, #tpu.memory_space<vmem>>) attributes {dimension_semantics = [#tpu.dimension_semantics<parallel>, #tpu.dimension_semantics<arbitrary>], iteration_bounds = array<i64: 1, 1>, scalar_prefetch = 1 : i64, scratch_operands = 1 : i64, tpu.core_type = #tpu.core_type<tc>, window_params = [{transform_indices = @transform_0, window_bounds = array<i64: 8, 16, 1>}, {transform_indices = @transform_1, window_bounds = array<i64: 8, 16, 1024>}, {transform_indices = @transform_2, window_bounds = array<i64: 8, 1>}, {pipeline_mode = #tpu.pipeline_mode<synchronous>, transform_indices = @transform_3, window_bounds = array<i64: 1024, 512>}, {pipeline_mode = #tpu.pipeline_mode<synchronous>, transform_indices = @transform_4, window_bounds = array<i64: 1, 512>}, {pipeline_mode = #tpu.pipeline_mode<synchronous>, transform_indices = @transform_5, window_bounds = array<i64: 1, 512>}, {pipeline_mode = #tpu.pipeline_mode<synchronous>, transform_indices = @transform_6, window_bounds = array<i64: 1, 512>}, {pipeline_mode = #tpu.pipeline_mode<synchronous>, transform_indices = @transform_7, window_bounds = array<i64: 512, 128>}, {pipeline_mode = #tpu.pipeline_mode<synchronous>, transform_indices = @transform_8, window_bounds = array<i64: 1, 128>}, {pipeline_mode = #tpu.pipeline_mode<synchronous>, transform_indices = @transform_9, window_bounds = array<i64: 1, 128>}, {pipeline_mode = #tpu.pipeline_mode<synchronous>, transform_indices = @transform_10, window_bounds = array<i64: 1, 128>}, {pipeline_mode = #tpu.pipeline_mode<synchronous>, transform_indices = @transform_11, window_bounds = array<i64: 1, 128>}, {pipeline_mode = #tpu.pipeline_mode<synchronous>, transform_indices = @transform_12, window_bounds = array<i64: 1, 1>}, {transform_indices = @transform_13, window_bounds = array<i64: 8, 128>}]} {
    %c0_i32 = arith.constant 0 : i32
    %0 = arith.cmpi eq, %arg1, %c0_i32 : i32
    %1 = arith.extui %0 : i1 to i32
    %c0_i32_0 = arith.constant 0 : i32
    %2 = arith.cmpi ne, %1, %c0_i32_0 : i32
    scf.if %2 {
      %cst = arith.constant 0.000000e+00 : f32
      %11 = vector.broadcast %cst : f32 to vector<8x1024xf32>
      %c0 = arith.constant 0 : index
      %c0_4 = arith.constant 0 : index
      %12 = vector.load %arg17[%c0, %c0_4] : memref<8x1024xf32, #tpu.memory_space<vmem>>, vector<8x1024xf32>
      tpu.vector_store %arg17[%c0, %c0_4], %11 {strides = array<i32>} : memref<8x1024xf32, #tpu.memory_space<vmem>>, vector<8x1024xf32>,
    } else {
    }
    %3 = arith.index_cast %arg0 : i32 to index
    %4 = memref.load %arg2[%3] : memref<1xi32, #tpu.memory_space<smem>>
    %5 = arith.cmpi slt, %arg1, %4 : i32
    %6 = arith.extui %5 : i1 to i32
    %c0_i32_1 = arith.constant 0 : i32
    %7 = arith.cmpi ne, %6, %c0_i32_1 : i32
    scf.if %7 {
      %c0 = arith.constant 0 : index
      %c0_4 = arith.constant 0 : index
      %c0_5 = arith.constant 0 : index
      %11 = vector.load %arg4[%c0, %c0_4, %c0_5] : memref<8x16x1024xf32, #tpu.memory_space<vmem>>, vector<8x16x1024xf32>
      %c0_6 = arith.constant 0 : index
      %c0_7 = arith.constant 0 : index
      %c0_8 = arith.constant 0 : index
      %12 = vector.load %arg3[%c0_6, %c0_7, %c0_8] : memref<8x16x1xbf16, #tpu.memory_space<vmem>>, vector<8x16x1xbf16>
      %13 = arith.extf %12 : vector<8x16x1xbf16> to vector<8x16x1xf32>
      %c0_9 = arith.constant 0 : index
      %c0_10 = arith.constant 0 : index
      %14 = vector.load %arg17[%c0_9, %c0_10] : memref<8x1024xf32, #tpu.memory_space<vmem>>, vector<8x1024xf32>
      %15 = vector.broadcast %13 : vector<8x16x1xf32> to vector<8x16x1024xf32>
      %16 = arith.mulf %11, %15 : vector<8x16x1024xf32>
      %cst = arith.constant dense<0.000000e+00> : vector<8x1024xf32>
      %17 = vector.multi_reduction <add>, %16, %cst [1] : vector<8x16x1024xf32> to vector<8x1024xf32>
      %18 = arith.addf %14, %17 : vector<8x1024xf32>
      %c0_11 = arith.constant 0 : index
      %c0_12 = arith.constant 0 : index
      %19 = vector.load %arg17[%c0_11, %c0_12] : memref<8x1024xf32, #tpu.memory_space<vmem>>, vector<8x1024xf32>
      tpu.vector_store %arg17[%c0_11, %c0_12], %18 {strides = array<i32>} : memref<8x1024xf32, #tpu.memory_space<vmem>>, vector<8x1024xf32>,
    } else {
    }
    %c0_i32_2 = arith.constant 0 : i32
    %8 = arith.cmpi eq, %arg1, %c0_i32_2 : i32
    %9 = arith.extui %8 : i1 to i32
    %c0_i32_3 = arith.constant 0 : i32
    %10 = arith.cmpi ne, %9, %c0_i32_3 : i32
    scf.if %10 {
      %c0 = arith.constant 0 : index
      %c0_4 = arith.constant 0 : index
      %11 = vector.load %arg17[%c0, %c0_4] : memref<8x1024xf32, #tpu.memory_space<vmem>>, vector<8x1024xf32>
      %c0_5 = arith.constant 0 : index
      %c0_6 = arith.constant 0 : index
      %12 = vector.load %arg5[%c0_5, %c0_6] : memref<8x1xf32, #tpu.memory_space<vmem>>, vector<8x1xf32>
      %13 = vector.broadcast %12 : vector<8x1xf32> to vector<8x1024xf32>
      %14 = arith.divf %11, %13 : vector<8x1024xf32>
      %c0_7 = arith.constant 0 : index
      %c0_8 = arith.constant 0 : index
      %15 = vector.load %arg6[%c0_7, %c0_8] : memref<1024x512xf32, #tpu.memory_space<vmem>>, vector<1024x512xf32>
      %cst = arith.constant dense<0.000000e+00> : vector<8x512xf32>
      %16 = tpu.matmul %14, %15, %cst {dimension_numbers = #tpu.dot_dimension_numbers<[1], [0], [0], [1], [0, 0, 1, 1], [], []>} : vector<8x1024xf32>, vector<1024x512xf32>, vector<8x512xf32> -> vector<8x512xf32>
      %c0_9 = arith.constant 0 : index
      %c0_10 = arith.constant 0 : index
      %17 = vector.load %arg7[%c0_9, %c0_10] : memref<1x512xf32, #tpu.memory_space<vmem>>, vector<1x512xf32>
      %18 = vector.broadcast %17 : vector<1x512xf32> to vector<8x512xf32>
      %19 = arith.addf %16, %18 : vector<8x512xf32>
      %c0_11 = arith.constant 0 : index
      %c0_12 = arith.constant 0 : index
      %20 = vector.load %arg8[%c0_11, %c0_12] : memref<1x512xf32, #tpu.memory_space<vmem>>, vector<1x512xf32>
      %c0_13 = arith.constant 0 : index
      %c0_14 = arith.constant 0 : index
      %21 = vector.load %arg9[%c0_13, %c0_14] : memref<1x512xf32, #tpu.memory_space<vmem>>, vector<1x512xf32>
      %cst_15 = arith.constant dense<0.000000e+00> : vector<8xf32>
      %22 = vector.multi_reduction <add>, %19, %cst_15 [1] : vector<8x512xf32> to vector<8xf32>
      %23 = vector.shape_cast %22 : vector<8xf32> to vector<8x1xf32>
      %cst_16 = arith.constant 5.120000e+02 : f32
      %24 = vector.broadcast %cst_16 : f32 to vector<8x1xf32>
      %25 = arith.divf %23, %24 : vector<8x1xf32>
      %26 = vector.broadcast %25 : vector<8x1xf32> to vector<8x512xf32>
      %27 = arith.subf %19, %26 : vector<8x512xf32>
      %28 = arith.mulf %27, %27 : vector<8x512xf32>
      %cst_17 = arith.constant dense<0.000000e+00> : vector<8xf32>
      %29 = vector.multi_reduction <add>, %28, %cst_17 [1] : vector<8x512xf32> to vector<8xf32>
      %30 = vector.shape_cast %29 : vector<8xf32> to vector<8x1xf32>
      %cst_18 = arith.constant 5.120000e+02 : f32
      %31 = vector.broadcast %cst_18 : f32 to vector<8x1xf32>
      %32 = arith.divf %30, %31 : vector<8x1xf32>
      %cst_19 = arith.constant 9.99999974E-6 : f32
      %33 = vector.broadcast %cst_19 : f32 to vector<8x1xf32>
      %34 = arith.addf %32, %33 : vector<8x1xf32>
      %35 = math.rsqrt %34 : vector<8x1xf32>
      %36 = vector.broadcast %35 : vector<8x1xf32> to vector<8x512xf32>
      %37 = arith.mulf %27, %36 : vector<8x512xf32>
      %38 = vector.broadcast %20 : vector<1x512xf32> to vector<8x512xf32>
      %39 = arith.mulf %37, %38 : vector<8x512xf32>
      %40 = vector.broadcast %21 : vector<1x512xf32> to vector<8x512xf32>
      %41 = arith.addf %39, %40 : vector<8x512xf32>
      %cst_20 = arith.constant 5.000000e-01 : f32
      %42 = vector.broadcast %cst_20 : f32 to vector<8x512xf32>
      %43 = arith.mulf %42, %41 : vector<8x512xf32>
      %cst_21 = arith.constant 0.707106769 : f32
      %44 = vector.broadcast %cst_21 : f32 to vector<8x512xf32>
      %45 = arith.mulf %41, %44 : vector<8x512xf32>
      %46 = math.erf %45 : vector<8x512xf32>
      %cst_22 = arith.constant 1.000000e+00 : f32
      %47 = vector.broadcast %cst_22 : f32 to vector<8x512xf32>
      %48 = arith.addf %47, %46 : vector<8x512xf32>
      %49 = arith.mulf %43, %48 : vector<8x512xf32>
      %c0_23 = arith.constant 0 : index
      %c0_24 = arith.constant 0 : index
      %50 = vector.load %arg10[%c0_23, %c0_24] : memref<512x128xf32, #tpu.memory_space<vmem>>, vector<512x128xf32>
      %cst_25 = arith.constant dense<0.000000e+00> : vector<8x128xf32>
      %51 = tpu.matmul %49, %50, %cst_25 {dimension_numbers = #tpu.dot_dimension_numbers<[1], [0], [0], [1], [0, 0, 1, 1], [], []>} : vector<8x512xf32>, vector<512x128xf32>, vector<8x128xf32> -> vector<8x128xf32>
      %c0_26 = arith.constant 0 : index
      %c0_27 = arith.constant 0 : index
      %52 = vector.load %arg11[%c0_26, %c0_27] : memref<1x128xf32, #tpu.memory_space<vmem>>, vector<1x128xf32>
      %53 = vector.broadcast %52 : vector<1x128xf32> to vector<8x128xf32>
      %54 = arith.addf %51, %53 : vector<8x128xf32>
      %c0_28 = arith.constant 0 : index
      %c0_29 = arith.constant 0 : index
      %55 = vector.load %arg12[%c0_28, %c0_29] : memref<1x128xf32, #tpu.memory_space<vmem>>, vector<1x128xf32>
      %c0_30 = arith.constant 0 : index
      %c0_31 = arith.constant 0 : index
      %56 = vector.load %arg13[%c0_30, %c0_31] : memref<1x128xf32, #tpu.memory_space<vmem>>, vector<1x128xf32>
      %cst_32 = arith.constant dense<0.000000e+00> : vector<8xf32>
      %57 = vector.multi_reduction <add>, %54, %cst_32 [1] : vector<8x128xf32> to vector<8xf32>
      %58 = vector.shape_cast %57 : vector<8xf32> to vector<8x1xf32>
      %cst_33 = arith.constant 1.280000e+02 : f32
      %59 = vector.broadcast %cst_33 : f32 to vector<8x1xf32>
      %60 = arith.divf %58, %59 : vector<8x1xf32>
      %61 = vector.broadcast %60 : vector<8x1xf32> to vector<8x128xf32>
      %62 = arith.subf %54, %61 : vector<8x128xf32>
      %63 = arith.mulf %62, %62 : vector<8x128xf32>
      %cst_34 = arith.constant dense<0.000000e+00> : vector<8xf32>
      %64 = vector.multi_reduction <add>, %63, %cst_34 [1] : vector<8x128xf32> to vector<8xf32>
      %65 = vector.shape_cast %64 : vector<8xf32> to vector<8x1xf32>
      %cst_35 = arith.constant 1.280000e+02 : f32
      %66 = vector.broadcast %cst_35 : f32 to vector<8x1xf32>
      %67 = arith.divf %65, %66 : vector<8x1xf32>
      %cst_36 = arith.constant 9.99999974E-6 : f32
      %68 = vector.broadcast %cst_36 : f32 to vector<8x1xf32>
      %69 = arith.addf %67, %68 : vector<8x1xf32>
      %70 = math.rsqrt %69 : vector<8x1xf32>
      %71 = vector.broadcast %70 : vector<8x1xf32> to vector<8x128xf32>
      %72 = arith.mulf %62, %71 : vector<8x128xf32>
      %73 = vector.broadcast %55 : vector<1x128xf32> to vector<8x128xf32>
      %74 = arith.mulf %72, %73 : vector<8x128xf32>
      %75 = vector.broadcast %56 : vector<1x128xf32> to vector<8x128xf32>
      %76 = arith.addf %74, %75 : vector<8x128xf32>
      %cst_37 = arith.constant 5.000000e-01 : f32
      %77 = vector.broadcast %cst_37 : f32 to vector<8x128xf32>
      %78 = arith.mulf %77, %76 : vector<8x128xf32>
      %cst_38 = arith.constant 0.707106769 : f32
      %79 = vector.broadcast %cst_38 : f32 to vector<8x128xf32>
      %80 = arith.mulf %76, %79 : vector<8x128xf32>
      %81 = math.erf %80 : vector<8x128xf32>
      %cst_39 = arith.constant 1.000000e+00 : f32
      %82 = vector.broadcast %cst_39 : f32 to vector<8x128xf32>
      %83 = arith.addf %82, %81 : vector<8x128xf32>
      %84 = arith.mulf %78, %83 : vector<8x128xf32>
      %c0_40 = arith.constant 0 : index
      %c0_41 = arith.constant 0 : index
      %85 = vector.load %arg14[%c0_40, %c0_41] : memref<1x128xf32, #tpu.memory_space<vmem>>, vector<1x128xf32>
      %86 = vector.broadcast %85 : vector<1x128xf32> to vector<8x128xf32>
      %87 = arith.mulf %84, %86 : vector<8x128xf32>
      %cst_42 = arith.constant dense<0.000000e+00> : vector<8xf32>
      %88 = vector.multi_reduction <add>, %87, %cst_42 [1] : vector<8x128xf32> to vector<8xf32>
      %89 = vector.shape_cast %88 : vector<8xf32> to vector<8x1xf32>
      %c0_43 = arith.constant 0 : index
      %c0_44 = arith.constant 0 : index
      %90 = vector.load %arg15[%c0_43, %c0_44] : memref<1x1xf32, #tpu.memory_space<vmem>>, vector<1x1xf32>
      %91 = vector.broadcast %90 : vector<1x1xf32> to vector<8x1xf32>
      %92 = arith.addf %89, %91 : vector<8x1xf32>
      %93 = arith.negf %92 : vector<8x1xf32>
      %94 = math.exp %93 : vector<8x1xf32>
      %cst_45 = arith.constant 1.000000e+00 : f32
      %95 = vector.broadcast %cst_45 : f32 to vector<8x1xf32>
      %96 = arith.addf %95, %94 : vector<8x1xf32>
      %97 = arith.divf %95, %96 : vector<8x1xf32>
      %98 = vector.shape_cast %97 : vector<8x1xf32> to vector<8x1xf32>
      %99 = vector.broadcast %98 : vector<8x1xf32> to vector<8x128xf32>
      %c0_46 = arith.constant 0 : index
      %c0_47 = arith.constant 0 : index
      %100 = vector.load %arg16[%c0_46, %c0_47] : memref<8x128xf32, #tpu.memory_space<vmem>>, vector<8x128xf32>
      tpu.vector_store %arg16[%c0_46, %c0_47], %99 {strides = array<i32>} : memref<8x128xf32, #tpu.memory_space<vmem>>, vector<8x128xf32>,
    } else {
    }
    return
  }
  func.func @transform_0(%arg0: i32, %arg1: i32, %arg2: memref<1xi32, #tpu.memory_space<smem>>) -> (i32, i32, i32) {
    %0 = arith.index_cast %arg0 : i32 to index
    %1 = memref.load %arg2[%0] : memref<1xi32, #tpu.memory_space<smem>>
    %c1_i32 = arith.constant 1 : i32
    %2 = arith.subi %1, %c1_i32 : i32
    %3 = arith.minsi %arg1, %2 : i32
    %c0_i32 = arith.constant 0 : i32
    %c0_i32_0 = arith.constant 0 : i32
    return %arg0, %3, %c0_i32 : i32, i32, i32
  }
  func.func @transform_1(%arg0: i32, %arg1: i32, %arg2: memref<1xi32, #tpu.memory_space<smem>>) -> (i32, i32, i32) {
    %0 = arith.index_cast %arg0 : i32 to index
    %1 = memref.load %arg2[%0] : memref<1xi32, #tpu.memory_space<smem>>
    %c1_i32 = arith.constant 1 : i32
    %2 = arith.subi %1, %c1_i32 : i32
    %3 = arith.minsi %arg1, %2 : i32
    %c0_i32 = arith.constant 0 : i32
    %c0_i32_0 = arith.constant 0 : i32
    return %arg0, %3, %c0_i32 : i32, i32, i32
  }
  func.func @transform_2(%arg0: i32, %arg1: i32, %arg2: memref<1xi32, #tpu.memory_space<smem>>) -> (i32, i32) {
    %c0_i32 = arith.constant 0 : i32
    %c0_i32_0 = arith.constant 0 : i32
    return %arg0, %c0_i32 : i32, i32
  }
  func.func @transform_3(%arg0: i32, %arg1: i32, %arg2: memref<1xi32, #tpu.memory_space<smem>>) -> (i32, i32) {
    %c0_i32 = arith.constant 0 : i32
    %c0_i32_0 = arith.constant 0 : i32
    %c0_i32_1 = arith.constant 0 : i32
    return %c0_i32, %c0_i32_0 : i32, i32
  }
  func.func @transform_4(%arg0: i32, %arg1: i32, %arg2: memref<1xi32, #tpu.memory_space<smem>>) -> (i32, i32) {
    %c0_i32 = arith.constant 0 : i32
    %c0_i32_0 = arith.constant 0 : i32
    %c0_i32_1 = arith.constant 0 : i32
    return %c0_i32, %c0_i32_0 : i32, i32
  }
  func.func @transform_5(%arg0: i32, %arg1: i32, %arg2: memref<1xi32, #tpu.memory_space<smem>>) -> (i32, i32) {
    %c0_i32 = arith.constant 0 : i32
    %c0_i32_0 = arith.constant 0 : i32
    %c0_i32_1 = arith.constant 0 : i32
    return %c0_i32, %c0_i32_0 : i32, i32
  }
  func.func @transform_6(%arg0: i32, %arg1: i32, %arg2: memref<1xi32, #tpu.memory_space<smem>>) -> (i32, i32) {
    %c0_i32 = arith.constant 0 : i32
    %c0_i32_0 = arith.constant 0 : i32
    %c0_i32_1 = arith.constant 0 : i32
    return %c0_i32, %c0_i32_0 : i32, i32
  }
  func.func @transform_7(%arg0: i32, %arg1: i32, %arg2: memref<1xi32, #tpu.memory_space<smem>>) -> (i32, i32) {
    %c0_i32 = arith.constant 0 : i32
    %c0_i32_0 = arith.constant 0 : i32
    %c0_i32_1 = arith.constant 0 : i32
    return %c0_i32, %c0_i32_0 : i32, i32
  }
  func.func @transform_8(%arg0: i32, %arg1: i32, %arg2: memref<1xi32, #tpu.memory_space<smem>>) -> (i32, i32) {
    %c0_i32 = arith.constant 0 : i32
    %c0_i32_0 = arith.constant 0 : i32
    %c0_i32_1 = arith.constant 0 : i32
    return %c0_i32, %c0_i32_0 : i32, i32
  }
  func.func @transform_9(%arg0: i32, %arg1: i32, %arg2: memref<1xi32, #tpu.memory_space<smem>>) -> (i32, i32) {
    %c0_i32 = arith.constant 0 : i32
    %c0_i32_0 = arith.constant 0 : i32
    %c0_i32_1 = arith.constant 0 : i32
    return %c0_i32, %c0_i32_0 : i32, i32
  }
  func.func @transform_10(%arg0: i32, %arg1: i32, %arg2: memref<1xi32, #tpu.memory_space<smem>>) -> (i32, i32) {
    %c0_i32 = arith.constant 0 : i32
    %c0_i32_0 = arith.constant 0 : i32
    %c0_i32_1 = arith.constant 0 : i32
    return %c0_i32, %c0_i32_0 : i32, i32
  }
  func.func @transform_11(%arg0: i32, %arg1: i32, %arg2: memref<1xi32, #tpu.memory_space<smem>>) -> (i32, i32) {
    %c0_i32 = arith.constant 0 : i32
    %c0_i32_0 = arith.constant 0 : i32
    %c0_i32_1 = arith.constant 0 : i32
    return %c0_i32, %c0_i32_0 : i32, i32
  }
  func.func @transform_12(%arg0: i32, %arg1: i32, %arg2: memref<1xi32, #tpu.memory_space<smem>>) -> (i32, i32) {
    %c0_i32 = arith.constant 0 : i32
    %c0_i32_0 = arith.constant 0 : i32
    %c0_i32_1 = arith.constant 0 : i32
    return %c0_i32, %c0_i32_0 : i32, i32
  }
  func.func @transform_13(%arg0: i32, %arg1: i32, %arg2: memref<1xi32, #tpu.memory_space<smem>>) -> (i32, i32) {
    %c0_i32 = arith.constant 0 : i32
    %c0_i32_0 = arith.constant 0 : i32
    return %arg0, %c0_i32 : i32, i32
  }
}

module attributes {stable_mosaic.version = 11 : i64} {
  func.func @_cross_encoder_kernel(%arg0: i32, %arg1: i32, %arg2: memref<1xi32, #tpu.memory_space<smem>>, %arg3: memref<8x16x1xbf16, #tpu.memory_space<vmem>>, %arg4: memref<8x16x1024xf32, #tpu.memory_space<vmem>>, %arg5: memref<8x1xf32, #tpu.memory_space<vmem>>, %arg6: memref<1024x512xf32, #tpu.memory_space<vmem>>, %arg7: memref<1x512xf32, #tpu.memory_space<vmem>>, %arg8: memref<1x512xf32, #tpu.memory_space<vmem>>, %arg9: memref<1x512xf32, #tpu.memory_space<vmem>>, %arg10: memref<512x128xf32, #tpu.memory_space<vmem>>, %arg11: memref<1x128xf32, #tpu.memory_space<vmem>>, %arg12: memref<1x128xf32, #tpu.memory_space<vmem>>, %arg13: memref<1x128xf32, #tpu.memory_space<vmem>>, %arg14: memref<1x128xf32, #tpu.memory_space<vmem>>, %arg15: memref<1x1xf32, #tpu.memory_space<vmem>>, %arg16: memref<8x128xf32, #tpu.memory_space<vmem>>, %arg17: memref<8x1024xf32, #tpu.memory_space<vmem>>) attributes {dimension_semantics = [#tpu.dimension_semantics<parallel>, #tpu.dimension_semantics<arbitrary>], iteration_bounds = array<i64: 1, 1>, scalar_prefetch = 1 : i64, scratch_operands = 1 : i64, tpu.core_type = #tpu.core_type<tc>, window_params = [{transform_indices = @transform_0, window_bounds = array<i64: 8, 16, 1>}, {transform_indices = @transform_1, window_bounds = array<i64: 8, 16, 1024>}, {transform_indices = @transform_2, window_bounds = array<i64: 8, 1>}, {pipeline_mode = #tpu.pipeline_mode<synchronous>, transform_indices = @transform_3, window_bounds = array<i64: 1024, 512>}, {pipeline_mode = #tpu.pipeline_mode<synchronous>, transform_indices = @transform_4, window_bounds = array<i64: 1, 512>}, {pipeline_mode = #tpu.pipeline_mode<synchronous>, transform_indices = @transform_5, window_bounds = array<i64: 1, 512>}, {pipeline_mode = #tpu.pipeline_mode<synchronous>, transform_indices = @transform_6, window_bounds = array<i64: 1, 512>}, {pipeline_mode = #tpu.pipeline_mode<synchronous>, transform_indices = @transform_7, window_bounds = array<i64: 512, 128>}, {pipeline_mode = #tpu.pipeline_mode<synchronous>, transform_indices = @transform_8, window_bounds = array<i64: 1, 128>}, {pipeline_mode = #tpu.pipeline_mode<synchronous>, transform_indices = @transform_9, window_bounds = array<i64: 1, 128>}, {pipeline_mode = #tpu.pipeline_mode<synchronous>, transform_indices = @transform_10, window_bounds = array<i64: 1, 128>}, {pipeline_mode = #tpu.pipeline_mode<synchronous>, transform_indices = @transform_11, window_bounds = array<i64: 1, 128>}, {pipeline_mode = #tpu.pipeline_mode<synchronous>, transform_indices = @transform_12, window_bounds = array<i64: 1, 1>}, {transform_indices = @transform_13, window_bounds = array<i64: 8, 128>}]} {
    %c0_i32 = arith.constant 0 : i32
    %0 = arith.cmpi eq, %arg1, %c0_i32 : i32
    %1 = arith.extui %0 : i1 to i32
    %c0_i32_0 = arith.constant 0 : i32
    %2 = arith.cmpi ne, %1, %c0_i32_0 : i32
    scf.if %2 {
      %cst = arith.constant 0.000000e+00 : f32
      %11 = vector.broadcast %cst : f32 to vector<8x1024xf32>
      %c0 = arith.constant 0 : index
      %c0_4 = arith.constant 0 : index
      %12 = vector.load %arg17[%c0, %c0_4] : memref<8x1024xf32, #tpu.memory_space<vmem>>, vector<8x1024xf32>
      tpu.vector_store %arg17[%c0, %c0_4], %11 {strides = array<i32>} : memref<8x1024xf32, #tpu.memory_space<vmem>>, vector<8x1024xf32>,
    } else {
    }
    %3 = arith.index_cast %arg0 : i32 to index
    %4 = memref.load %arg2[%3] : memref<1xi32, #tpu.memory_space<smem>>
    %5 = arith.cmpi slt, %arg1, %4 : i32
    %6 = arith.extui %5 : i1 to i32
    %c0_i32_1 = arith.constant 0 : i32
    %7 = arith.cmpi ne, %6, %c0_i32_1 : i32
    scf.if %7 {
      %c0 = arith.constant 0 : index
      %c0_4 = arith.constant 0 : index
      %c0_5 = arith.constant 0 : index
      %11 = vector.load %arg4[%c0, %c0_4, %c0_5] : memref<8x16x1024xf32, #tpu.memory_space<vmem>>, vector<8x16x1024xf32>
      %c0_6 = arith.constant 0 : index
      %c0_7 = arith.constant 0 : index
      %c0_8 = arith.constant 0 : index
      %12 = vector.load %arg3[%c0_6, %c0_7, %c0_8] : memref<8x16x1xbf16, #tpu.memory_space<vmem>>, vector<8x16x1xbf16>
      %13 = arith.extf %12 : vector<8x16x1xbf16> to vector<8x16x1xf32>
      %c0_9 = arith.constant 0 : index
      %c0_10 = arith.constant 0 : index
      %14 = vector.load %arg17[%c0_9, %c0_10] : memref<8x1024xf32, #tpu.memory_space<vmem>>, vector<8x1024xf32>
      %15 = vector.broadcast %13 : vector<8x16x1xf32> to vector<8x16x1024xf32>
      %16 = arith.mulf %11, %15 : vector<8x16x1024xf32>
      %cst = arith.constant dense<0.000000e+00> : vector<8x1024xf32>
      %17 = vector.multi_reduction <add>, %16, %cst [1] : vector<8x16x1024xf32> to vector<8x1024xf32>
      %18 = arith.addf %14, %17 : vector<8x1024xf32>
      %c0_11 = arith.constant 0 : index
      %c0_12 = arith.constant 0 : index
      %19 = vector.load %arg17[%c0_11, %c0_12] : memref<8x1024xf32, #tpu.memory_space<vmem>>, vector<8x1024xf32>
      tpu.vector_store %arg17[%c0_11, %c0_12], %18 {strides = array<i32>} : memref<8x1024xf32, #tpu.memory_space<vmem>>, vector<8x1024xf32>,
    } else {
    }
    %c0_i32_2 = arith.constant 0 : i32
    %8 = arith.cmpi eq, %arg1, %c0_i32_2 : i32
    %9 = arith.extui %8 : i1 to i32
    %c0_i32_3 = arith.constant 0 : i32
    %10 = arith.cmpi ne, %9, %c0_i32_3 : i32
    scf.if %10 {
      %c0 = arith.constant 0 : index
      %c0_4 = arith.constant 0 : index
      %11 = vector.load %arg17[%c0, %c0_4] : memref<8x1024xf32, #tpu.memory_space<vmem>>, vector<8x1024xf32>
      %c0_5 = arith.constant 0 : index
      %c0_6 = arith.constant 0 : index
      %12 = vector.load %arg5[%c0_5, %c0_6] : memref<8x1xf32, #tpu.memory_space<vmem>>, vector<8x1xf32>
      %13 = vector.broadcast %12 : vector<8x1xf32> to vector<8x1024xf32>
      %14 = arith.divf %11, %13 : vector<8x1024xf32>
      %c0_7 = arith.constant 0 : index
      %c0_8 = arith.constant 0 : index
      %15 = vector.load %arg6[%c0_7, %c0_8] : memref<1024x512xf32, #tpu.memory_space<vmem>>, vector<1024x512xf32>
      %cst = arith.constant dense<0.000000e+00> : vector<8x512xf32>
      %16 = tpu.matmul %14, %15, %cst {dimension_numbers = #tpu.dot_dimension_numbers<[1], [0], [0], [1], [0, 0, 1, 1], [], []>} : vector<8x1024xf32>, vector<1024x512xf32>, vector<8x512xf32> -> vector<8x512xf32>
      %c0_9 = arith.constant 0 : index
      %c0_10 = arith.constant 0 : index
      %17 = vector.load %arg7[%c0_9, %c0_10] : memref<1x512xf32, #tpu.memory_space<vmem>>, vector<1x512xf32>
      %18 = vector.broadcast %17 : vector<1x512xf32> to vector<8x512xf32>
      %19 = arith.addf %16, %18 : vector<8x512xf32>
      %c0_11 = arith.constant 0 : index
      %c0_12 = arith.constant 0 : index
      %20 = vector.load %arg8[%c0_11, %c0_12] : memref<1x512xf32, #tpu.memory_space<vmem>>, vector<1x512xf32>
      %c0_13 = arith.constant 0 : index
      %c0_14 = arith.constant 0 : index
      %21 = vector.load %arg9[%c0_13, %c0_14] : memref<1x512xf32, #tpu.memory_space<vmem>>, vector<1x512xf32>
      %cst_15 = arith.constant dense<0.000000e+00> : vector<8xf32>
      %22 = vector.multi_reduction <add>, %19, %cst_15 [1] : vector<8x512xf32> to vector<8xf32>
      %23 = vector.shape_cast %22 : vector<8xf32> to vector<8x1xf32>
      %cst_16 = arith.constant 5.120000e+02 : f32
      %24 = vector.broadcast %cst_16 : f32 to vector<8x1xf32>
      %25 = arith.divf %23, %24 : vector<8x1xf32>
      %26 = vector.broadcast %25 : vector<8x1xf32> to vector<8x512xf32>
      %27 = arith.subf %19, %26 : vector<8x512xf32>
      %28 = arith.mulf %27, %27 : vector<8x512xf32>
      %cst_17 = arith.constant dense<0.000000e+00> : vector<8xf32>
      %29 = vector.multi_reduction <add>, %28, %cst_17 [1] : vector<8x512xf32> to vector<8xf32>
      %30 = vector.shape_cast %29 : vector<8xf32> to vector<8x1xf32>
      %cst_18 = arith.constant 5.120000e+02 : f32
      %31 = vector.broadcast %cst_18 : f32 to vector<8x1xf32>
      %32 = arith.divf %30, %31 : vector<8x1xf32>
      %cst_19 = arith.constant 9.99999974E-6 : f32
      %33 = vector.broadcast %cst_19 : f32 to vector<8x1xf32>
      %34 = arith.addf %32, %33 : vector<8x1xf32>
      %35 = math.rsqrt %34 : vector<8x1xf32>
      %36 = vector.broadcast %35 : vector<8x1xf32> to vector<8x512xf32>
      %37 = arith.mulf %27, %36 : vector<8x512xf32>
      %38 = vector.broadcast %20 : vector<1x512xf32> to vector<8x512xf32>
      %39 = arith.mulf %37, %38 : vector<8x512xf32>
      %40 = vector.broadcast %21 : vector<1x512xf32> to vector<8x512xf32>
      %41 = arith.addf %39, %40 : vector<8x512xf32>
      %cst_20 = arith.constant 5.000000e-01 : f32
      %42 = vector.broadcast %cst_20 : f32 to vector<8x512xf32>
      %43 = arith.mulf %42, %41 : vector<8x512xf32>
      %cst_21 = arith.constant 0.707106769 : f32
      %44 = vector.broadcast %cst_21 : f32 to vector<8x512xf32>
      %45 = arith.mulf %41, %44 : vector<8x512xf32>
      %46 = math.erf %45 : vector<8x512xf32>
      %cst_22 = arith.constant 1.000000e+00 : f32
      %47 = vector.broadcast %cst_22 : f32 to vector<8x512xf32>
      %48 = arith.addf %47, %46 : vector<8x512xf32>
      %49 = arith.mulf %43, %48 : vector<8x512xf32>
      %c0_23 = arith.constant 0 : index
      %c0_24 = arith.constant 0 : index
      %50 = vector.load %arg10[%c0_23, %c0_24] : memref<512x128xf32, #tpu.memory_space<vmem>>, vector<512x128xf32>
      %cst_25 = arith.constant dense<0.000000e+00> : vector<8x128xf32>
      %51 = tpu.matmul %49, %50, %cst_25 {dimension_numbers = #tpu.dot_dimension_numbers<[1], [0], [0], [1], [0, 0, 1, 1], [], []>} : vector<8x512xf32>, vector<512x128xf32>, vector<8x128xf32> -> vector<8x128xf32>
      %c0_26 = arith.constant 0 : index
      %c0_27 = arith.constant 0 : index
      %52 = vector.load %arg11[%c0_26, %c0_27] : memref<1x128xf32, #tpu.memory_space<vmem>>, vector<1x128xf32>
      %53 = vector.broadcast %52 : vector<1x128xf32> to vector<8x128xf32>
      %54 = arith.addf %51, %53 : vector<8x128xf32>
      %c0_28 = arith.constant 0 : index
      %c0_29 = arith.constant 0 : index
      %55 = vector.load %arg12[%c0_28, %c0_29] : memref<1x128xf32, #tpu.memory_space<vmem>>, vector<1x128xf32>
      %c0_30 = arith.constant 0 : index
      %c0_31 = arith.constant 0 : index
      %56 = vector.load %arg13[%c0_30, %c0_31] : memref<1x128xf32, #tpu.memory_space<vmem>>, vector<1x128xf32>
      %cst_32 = arith.constant dense<0.000000e+00> : vector<8xf32>
      %57 = vector.multi_reduction <add>, %54, %cst_32 [1] : vector<8x128xf32> to vector<8xf32>
      %58 = vector.shape_cast %57 : vector<8xf32> to vector<8x1xf32>
      %cst_33 = arith.constant 1.280000e+02 : f32
      %59 = vector.broadcast %cst_33 : f32 to vector<8x1xf32>
      %60 = arith.divf %58, %59 : vector<8x1xf32>
      %61 = vector.broadcast %60 : vector<8x1xf32> to vector<8x128xf32>
      %62 = arith.subf %54, %61 : vector<8x128xf32>
      %63 = arith.mulf %62, %62 : vector<8x128xf32>
      %cst_34 = arith.constant dense<0.000000e+00> : vector<8xf32>
      %64 = vector.multi_reduction <add>, %63, %cst_34 [1] : vector<8x128xf32> to vector<8xf32>
      %65 = vector.shape_cast %64 : vector<8xf32> to vector<8x1xf32>
      %cst_35 = arith.constant 1.280000e+02 : f32
      %66 = vector.broadcast %cst_35 : f32 to vector<8x1xf32>
      %67 = arith.divf %65, %66 : vector<8x1xf32>
      %cst_36 = arith.constant 9.99999974E-6 : f32
      %68 = vector.broadcast %cst_36 : f32 to vector<8x1xf32>
      %69 = arith.addf %67, %68 : vector<8x1xf32>
      %70 = math.rsqrt %69 : vector<8x1xf32>
      %71 = vector.broadcast %70 : vector<8x1xf32> to vector<8x128xf32>
      %72 = arith.mulf %62, %71 : vector<8x128xf32>
      %73 = vector.broadcast %55 : vector<1x128xf32> to vector<8x128xf32>
      %74 = arith.mulf %72, %73 : vector<8x128xf32>
      %75 = vector.broadcast %56 : vector<1x128xf32> to vector<8x128xf32>
      %76 = arith.addf %74, %75 : vector<8x128xf32>
      %cst_37 = arith.constant 5.000000e-01 : f32
      %77 = vector.broadcast %cst_37 : f32 to vector<8x128xf32>
      %78 = arith.mulf %77, %76 : vector<8x128xf32>
      %cst_38 = arith.constant 0.707106769 : f32
      %79 = vector.broadcast %cst_38 : f32 to vector<8x128xf32>
      %80 = arith.mulf %76, %79 : vector<8x128xf32>
      %81 = math.erf %80 : vector<8x128xf32>
      %cst_39 = arith.constant 1.000000e+00 : f32
      %82 = vector.broadcast %cst_39 : f32 to vector<8x128xf32>
      %83 = arith.addf %82, %81 : vector<8x128xf32>
      %84 = arith.mulf %78, %83 : vector<8x128xf32>
      %c0_40 = arith.constant 0 : index
      %c0_41 = arith.constant 0 : index
      %85 = vector.load %arg14[%c0_40, %c0_41] : memref<1x128xf32, #tpu.memory_space<vmem>>, vector<1x128xf32>
      %86 = vector.broadcast %85 : vector<1x128xf32> to vector<8x128xf32>
      %87 = arith.mulf %84, %86 : vector<8x128xf32>
      %cst_42 = arith.constant dense<0.000000e+00> : vector<8xf32>
      %88 = vector.multi_reduction <add>, %87, %cst_42 [1] : vector<8x128xf32> to vector<8xf32>
      %89 = vector.shape_cast %88 : vector<8xf32> to vector<8x1xf32>
      %c0_43 = arith.constant 0 : index
      %c0_44 = arith.constant 0 : index
      %90 = vector.load %arg15[%c0_43, %c0_44] : memref<1x1xf32, #tpu.memory_space<vmem>>, vector<1x1xf32>
      %91 = vector.broadcast %90 : vector<1x1xf32> to vector<8x1xf32>
      %92 = arith.addf %89, %91 : vector<8x1xf32>
      %93 = arith.negf %92 : vector<8x1xf32>
      %94 = math.exp %93 : vector<8x1xf32>
      %cst_45 = arith.constant 1.000000e+00 : f32
      %95 = vector.broadcast %cst_45 : f32 to vector<8x1xf32>
      %96 = arith.addf %95, %94 : vector<8x1xf32>
      %97 = arith.divf %95, %96 : vector<8x1xf32>
      %98 = vector.shape_cast %97 : vector<8x1xf32> to vector<8x1xf32>
      %99 = vector.broadcast %98 : vector<8x1xf32> to vector<8x128xf32>
      %c0_46 = arith.constant 0 : index
      %c0_47 = arith.constant 0 : index
      %100 = vector.load %arg16[%c0_46, %c0_47] : memref<8x128xf32, #tpu.memory_space<vmem>>, vector<8x128xf32>
      tpu.vector_store %arg16[%c0_46, %c0_47], %99 {strides = array<i32>} : memref<8x128xf32, #tpu.memory_space<vmem>>, vector<8x128xf32>,
    } else {
    }
    return
  }
  func.func @transform_0(%arg0: i32, %arg1: i32, %arg2: memref<1xi32, #tpu.memory_space<smem>>) -> (i32, i32, i32) {
    %0 = arith.index_cast %arg0 : i32 to index
    %1 = memref.load %arg2[%0] : memref<1xi32, #tpu.memory_space<smem>>
    %c1_i32 = arith.constant 1 : i32
    %2 = arith.subi %1, %c1_i32 : i32
    %3 = arith.minsi %arg1, %2 : i32
    %c0_i32 = arith.constant 0 : i32
    %c0_i32_0 = arith.constant 0 : i32
    return %arg0, %3, %c0_i32 : i32, i32, i32
  }
  func.func @transform_1(%arg0: i32, %arg1: i32, %arg2: memref<1xi32, #tpu.memory_space<smem>>) -> (i32, i32, i32) {
    %0 = arith.index_cast %arg0 : i32 to index
    %1 = memref.load %arg2[%0] : memref<1xi32, #tpu.memory_space<smem>>
    %c1_i32 = arith.constant 1 : i32
    %2 = arith.subi %1, %c1_i32 : i32
    %3 = arith.minsi %arg1, %2 : i32
    %c0_i32 = arith.constant 0 : i32
    %c0_i32_0 = arith.constant 0 : i32
    return %arg0, %3, %c0_i32 : i32, i32, i32
  }
  func.func @transform_2(%arg0: i32, %arg1: i32, %arg2: memref<1xi32, #tpu.memory_space<smem>>) -> (i32, i32) {
    %c0_i32 = arith.constant 0 : i32
    %c0_i32_0 = arith.constant 0 : i32
    return %arg0, %c0_i32 : i32, i32
  }
  func.func @transform_3(%arg0: i32, %arg1: i32, %arg2: memref<1xi32, #tpu.memory_space<smem>>) -> (i32, i32) {
    %c0_i32 = arith.constant 0 : i32
    %c0_i32_0 = arith.constant 0 : i32
    %c0_i32_1 = arith.constant 0 : i32
    return %c0_i32, %c0_i32_0 : i32, i32
  }
  func.func @transform_4(%arg0: i32, %arg1: i32, %arg2: memref<1xi32, #tpu.memory_space<smem>>) -> (i32, i32) {
    %c0_i32 = arith.constant 0 : i32
    %c0_i32_0 = arith.constant 0 : i32
    %c0_i32_1 = arith.constant 0 : i32
    return %c0_i32, %c0_i32_0 : i32, i32
  }
  func.func @transform_5(%arg0: i32, %arg1: i32, %arg2: memref<1xi32, #tpu.memory_space<smem>>) -> (i32, i32) {
    %c0_i32 = arith.constant 0 : i32
    %c0_i32_0 = arith.constant 0 : i32
    %c0_i32_1 = arith.constant 0 : i32
    return %c0_i32, %c0_i32_0 : i32, i32
  }
  func.func @transform_6(%arg0: i32, %arg1: i32, %arg2: memref<1xi32, #tpu.memory_space<smem>>) -> (i32, i32) {
    %c0_i32 = arith.constant 0 : i32
    %c0_i32_0 = arith.constant 0 : i32
    %c0_i32_1 = arith.constant 0 : i32
    return %c0_i32, %c0_i32_0 : i32, i32
  }
  func.func @transform_7(%arg0: i32, %arg1: i32, %arg2: memref<1xi32, #tpu.memory_space<smem>>) -> (i32, i32) {
    %c0_i32 = arith.constant 0 : i32
    %c0_i32_0 = arith.constant 0 : i32
    %c0_i32_1 = arith.constant 0 : i32
    return %c0_i32, %c0_i32_0 : i32, i32
  }
  func.func @transform_8(%arg0: i32, %arg1: i32, %arg2: memref<1xi32, #tpu.memory_space<smem>>) -> (i32, i32) {
    %c0_i32 = arith.constant 0 : i32
    %c0_i32_0 = arith.constant 0 : i32
    %c0_i32_1 = arith.constant 0 : i32
    return %c0_i32, %c0_i32_0 : i32, i32
  }
  func.func @transform_9(%arg0: i32, %arg1: i32, %arg2: memref<1xi32, #tpu.memory_space<smem>>) -> (i32, i32) {
    %c0_i32 = arith.constant 0 : i32
    %c0_i32_0 = arith.constant 0 : i32
    %c0_i32_1 = arith.constant 0 : i32
    return %c0_i32, %c0_i32_0 : i32, i32
  }
  func.func @transform_10(%arg0: i32, %arg1: i32, %arg2: memref<1xi32, #tpu.memory_space<smem>>) -> (i32, i32) {
    %c0_i32 = arith.constant 0 : i32
    %c0_i32_0 = arith.constant 0 : i32
    %c0_i32_1 = arith.constant 0 : i32
    return %c0_i32, %c0_i32_0 : i32, i32
  }
  func.func @transform_11(%arg0: i32, %arg1: i32, %arg2: memref<1xi32, #tpu.memory_space<smem>>) -> (i32, i32) {
    %c0_i32 = arith.constant 0 : i32
    %c0_i32_0 = arith.constant 0 : i32
    %c0_i32_1 = arith.constant 0 : i32
    return %c0_i32, %c0_i32_0 : i32, i32
  }
  func.func @transform_12(%arg0: i32, %arg1: i32, %arg2: memref<1xi32, #tpu.memory_space<smem>>) -> (i32, i32) {
    %c0_i32 = arith.constant 0 : i32
    %c0_i32_0 = arith.constant 0 : i32
    %c0_i32_1 = arith.constant 0 : i32
    return %c0_i32, %c0_i32_0 : i32, i32
  }
  func.func @transform_13(%arg0: i32, %arg1: i32, %arg2: memref<1xi32, #tpu.memory_space<smem>>) -> (i32, i32) {
    %c0_i32 = arith.constant 0 : i32
    %c0_i32_0 = arith.constant 0 : i32
    return %arg0, %c0_i32 : i32, i32
  }
}

</mosaic_0001>

<llo_original>
// kernel: _forward_impl.1
$region0: #{_forward_impl.1}
  #allocation0 [shape = 'u32[]', space=smem, size = 0x4, offset = 0x4, fixed_abs, tag = 'smem constant byte address 0x4 - core index']
  #allocation1 [shape = 'u32[144,128]{1,0:T(1,128)}', space=vmem, size = 0x12000, scoped, tag = 'internal scratch']
  #allocation2 [shape = 'f32[8,1024]{1,0:T(8,128)}', space=vmem, size = 0x8000, scoped, tag = 'scratch operand']
  #allocation3 [shape = 's32[1]{0}', space=sflag, size = 0x4, scoped, tag = 'scoped memory for _forward_impl.1']
  #allocation4 [shape = 's32[1]{0:T(128)S(6)}', space=smem, size = 0x200, scoped, tag = 'prefetched SMEM operand 0']
  #allocation5 [shape = 'f32[1,1]{1,0:T(1,128)S(1)}', space=vmem, size = 0x200, scoped, tag = 'scoped memory for _forward_impl.1']
  %s0 = inlined_call_operand.<no memory space> [shape: s32[1], index: 0, kind: input, shape index: {}]
  %s1 = inlined_call_operand.vmem [shape: bf16[8,16,1], index: 1, kind: input, shape index: {}]
  %s2 = inlined_call_operand.vmem [shape: f32[8,16,1024], index: 2, kind: input, shape index: {}]
  %s3 = inlined_call_operand.vmem [shape: f32[8,1], index: 3, kind: input, shape index: {}]
  %s4 = inlined_call_operand.hbm [shape: f32[1024,512], index: 4, kind: input, shape index: {}]
  %s5 = inlined_call_operand.hbm [shape: f32[1,512], index: 5, kind: input, shape index: {}]
  %s6 = inlined_call_operand.hbm [shape: f32[1,512], index: 6, kind: input, shape index: {}]
  %s7 = inlined_call_operand.hbm [shape: f32[1,512], index: 7, kind: input, shape index: {}]
  %s8 = inlined_call_operand.hbm [shape: f32[512,128], index: 8, kind: input, shape index: {}]
  %s9 = inlined_call_operand.hbm [shape: f32[1,128], index: 9, kind: input, shape index: {}]
  %s10 = inlined_call_operand.hbm [shape: f32[1,128], index: 10, kind: input, shape index: {}]
  %s11 = inlined_call_operand.hbm [shape: f32[1,128], index: 11, kind: input, shape index: {}]
  %s12 = inlined_call_operand.hbm [shape: f32[1,128], index: 12, kind: input, shape index: {}]
  %s13 = inlined_call_operand.<no memory space> [shape: f32[1,1], index: 13, kind: input, shape index: {}]
  %s14 = inlined_call_operand.vmem [shape: f32[8,128], index: 14, kind: output, shape index: {}]
  %s15 = sld [smem:[#allocation0]]
  $region110: #{_forward_impl.1} parent=0
    _
  %s17 = ssub.s32 1, %s15
  %s18 = scalar_select 0, %s17, %s15
  %19 = sst [smem:[#allocation4]] %s0
  %v20 = vstv %s13
  %21 = vst [vmem:[#allocation5] sm:$0x1] %v20
  $region1: #{_forward_impl.1} parent=0
    #allocation6 [shape = 'u8[2097152]{0}', space=vmem, size = 0x200000, scoped, tag = 'input window, operand 4, single buffered']
    #allocation7 [shape = 's32[1]{0}', space=sflag, size = 0x4, scoped, tag = 'scoped memory for _forward_impl.1']
    #allocation8 [shape = 'u8[2048]{0}', space=vmem, size = 0x800, scoped, tag = 'input window, operand 5, single buffered']
    #allocation9 [shape = 's32[1]{0}', space=sflag, size = 0x4, scoped, tag = 'scoped memory for _forward_impl.1']
    #allocation10 [shape = 'u8[2048]{0}', space=vmem, size = 0x800, scoped, tag = 'input window, operand 6, single buffered']
    #allocation11 [shape = 'u8[2048]{0}', space=vmem, size = 0x800, scoped, tag = 'input window, operand 7, single buffered']
    #allocation12 [shape = 's32[1]{0}', space=sflag, size = 0x4, scoped, tag = 'scoped memory for _forward_impl.1']
    #allocation13 [shape = 'u8[262144]{0}', space=vmem, size = 0x40000, scoped, tag = 'input window, operand 8, single buffered']
    #allocation14 [shape = 'u8[512]{0}', space=vmem, size = 0x400, scoped, tag = 'input window, operand 9, single buffered']
    #allocation15 [shape = 's32[1]{0}', space=sflag, size = 0x4, scoped, tag = 'scoped memory for _forward_impl.1']
    #allocation16 [shape = 'u8[512]{0}', space=vmem, size = 0x400, scoped, tag = 'input window, operand 10, single buffered']
    #allocation17 [shape = 'u8[512]{0}', space=vmem, size = 0x400, scoped, tag = 'input window, operand 11, single buffered']
    #allocation18 [shape = 's32[1]{0}', space=sflag, size = 0x4, scoped, tag = 'scoped memory for _forward_impl.1']
    #allocation19 [shape = 'u8[512]{0}', space=vmem, size = 0x400, scoped, tag = 'input window, operand 12, single buffered']
    %22 = vsyncpa [#allocation7], 0
    %23 = vsyncpa [#allocation9], 0
    %24 = vsyncpa [#allocation12], 0
    %25 = vsyncpa [#allocation15], 0
    %26 = vsyncpa [#allocation18], 0
    // Predicated region
    $region2: #{_forward_impl.1} parent=1 // pred_check
      _
    $region3: #{_forward_impl.1} parent=1 // pred_check_branch
      %28 = sbr.rel (0) target = $region5
    $region4: #{_forward_impl.1} parent=1 // pred_region
      %s29 = sld [smem:[#allocation4]]
      %s30 = ssub.s32 %s29, 1
      %p31 = scmp.lt.s32.totalorder 0, %s30
      %s32 = scalar_select %p31, 0, %s30
      %s33 = smul.u32 2, %s32
      %p34 = scmp.lt.s32.totalorder %s33, 1
      %s35 = scalar_select %p34, %s33, 1
      %s36 = smul.addr %s35, 4
      %s37 = scalar_lea.vmem %s1, %s36
      %s38 = sld [smem:[#allocation4]]
      %s39 = ssub.s32 %s38, 1
      %p40 = scmp.lt.s32.totalorder 0, %s39
      %s41 = scalar_select %p40, 0, %s39
      %s42 = smul.u32 2, %s41
    $region5: #{_forward_impl.1} parent=1 // pred_fallthru
      _
    // Predicated region
    $region6: #{_forward_impl.1} parent=1 // pred_check
      _
    $region7: #{_forward_impl.1} parent=1 // pred_check_branch
      %44 = sbr.rel (0) target = $region9
    $region8: #{_forward_impl.1} parent=1 // pred_region
      %s45 = sld [smem:[#allocation4]]
      %s46 = ssub.s32 %s45, 1
      %p47 = scmp.lt.s32.totalorder 0, %s46
      %s48 = scalar_select %p47, 0, %s46
      %s49 = smul.u32 2, %s48
      %p50 = scmp.lt.s32.totalorder %s49, 1
      %s51 = scalar_select %p50, %s49, 1
      %s52 = smul.addr %s51, 8
      %s53 = smul.addr %s52, 8
      %s54 = scalar_lea.vmem %s2, %s53
      %s55 = sld [smem:[#allocation4]]
      %s56 = ssub.s32 %s55, 1
      %p57 = scmp.lt.s32.totalorder 0, %s56
      %s58 = scalar_select %p57, 0, %s56
      %s59 = smul.u32 2, %s58
    $region9: #{_forward_impl.1} parent=1 // pred_fallthru
      _
    // Predicated region
    $region10: #{_forward_impl.1} parent=1 // pred_check
      _
    $region11: #{_forward_impl.1} parent=1 // pred_check_branch
      %61 = sbr.rel (0) target = $region13
    $region12: #{_forward_impl.1} parent=1 // pred_region
      _
    $region13: #{_forward_impl.1} parent=1 // pred_fallthru
      _
    // Predicated region
    $region14: #{_forward_impl.1} parent=1 // pred_check
      _
    $region15: #{_forward_impl.1} parent=1 // pred_check_branch
      %63 = sbr.rel (0) target = $region17
    $region16: #{_forward_impl.1} parent=1 // pred_region
      %s65 = ssub.s32 65536, 65536
      %66 = vsyncadd [#allocation7], %s65
      %s67 = sshll.u32 [#allocation6], 4
      %s68 = int_to_ptr.vmem [resolvable:$true] %s67
      %73 = dma.hbm_to_vmem [thread:$0]  %s4, 65536, %s68, [#allocation7], 512, 512, 32
    $region17: #{_forward_impl.1} parent=1 // pred_fallthru
      _
    // Predicated region
    $region18: #{_forward_impl.1} parent=1 // pred_check
      _
    $region19: #{_forward_impl.1} parent=1 // pred_check_branch
      %75 = sbr.rel (0) target = $region21
    $region20: #{_forward_impl.1} parent=1 // pred_region
      %s77 = ssub.s32 64, 64
      %78 = vsyncadd [#allocation9], %s77
      %s80 = sshll.u32 [#allocation8], 4
      %s81 = int_to_ptr.vmem [resolvable:$true] %s80
      %83 = dma.hbm_to_vmem [thread:$0]  %s5, 64, %s81, [#allocation9]
    $region21: #{_forward_impl.1} parent=1 // pred_fallthru
      _
    // Predicated region
    $region22: #{_forward_impl.1} parent=1 // pred_check
      _
    $region23: #{_forward_impl.1} parent=1 // pred_check_branch
      %85 = sbr.rel (0) target = $region25
    $region24: #{_forward_impl.1} parent=1 // pred_region
      %s87 = ssub.s32 64, 64
      %88 = vsyncadd [#allocation9], %s87
      %s90 = sshll.u32 [#allocation10], 4
      %s91 = int_to_ptr.vmem [resolvable:$true] %s90
      %93 = dma.hbm_to_vmem [thread:$0]  %s6, 64, %s91, [#allocation9]
    $region25: #{_forward_impl.1} parent=1 // pred_fallthru
      _
    // Predicated region
    $region26: #{_forward_impl.1} parent=1 // pred_check
      _
    $region27: #{_forward_impl.1} parent=1 // pred_check_branch
      %95 = sbr.rel (0) target = $region29
    $region28: #{_forward_impl.1} parent=1 // pred_region
      %s97 = ssub.s32 64, 64
      %98 = vsyncadd [#allocation12], %s97
      %s100 = sshll.u32 [#allocation11], 4
      %s101 = int_to_ptr.vmem [resolvable:$true] %s100
      %103 = dma.hbm_to_vmem [thread:$0]  %s7, 64, %s101, [#allocation12]
    $region29: #{_forward_impl.1} parent=1 // pred_fallthru
      _
    // Predicated region
    $region30: #{_forward_impl.1} parent=1 // pred_check
      _
    $region31: #{_forward_impl.1} parent=1 // pred_check_branch
      %105 = sbr.rel (0) target = $region33
    $region32: #{_forward_impl.1} parent=1 // pred_region
      %s107 = ssub.s32 8192, 8192
      %108 = vsyncadd [#allocation12], %s107
      %s109 = sshll.u32 [#allocation13], 4
      %s110 = int_to_ptr.vmem [resolvable:$true] %s109
      %115 = dma.hbm_to_vmem [thread:$0]  %s8, 8192, %s110, [#allocation12], 128, 128, 8
    $region33: #{_forward_impl.1} parent=1 // pred_fallthru
      _
    // Predicated region
    $region34: #{_forward_impl.1} parent=1 // pred_check
      _
    $region35: #{_forward_impl.1} parent=1 // pred_check_branch
      %117 = sbr.rel (0) target = $region37
    $region36: #{_forward_impl.1} parent=1 // pred_region
      %s119 = ssub.s32 16, 16
      %120 = vsyncadd [#allocation15], %s119
      %s122 = sshll.u32 [#allocation14], 4
      %s123 = int_to_ptr.vmem [resolvable:$true] %s122
      %125 = dma.hbm_to_vmem [thread:$0]  %s9, 16, %s123, [#allocation15]
    $region37: #{_forward_impl.1} parent=1 // pred_fallthru
      _
    // Predicated region
    $region38: #{_forward_impl.1} parent=1 // pred_check
      _
    $region39: #{_forward_impl.1} parent=1 // pred_check_branch
      %127 = sbr.rel (0) target = $region41
    $region40: #{_forward_impl.1} parent=1 // pred_region
      %s129 = ssub.s32 16, 16
      %130 = vsyncadd [#allocation15], %s129
      %s132 = sshll.u32 [#allocation16], 4
      %s133 = int_to_ptr.vmem [resolvable:$true] %s132
      %135 = dma.hbm_to_vmem [thread:$0]  %s10, 16, %s133, [#allocation15]
    $region41: #{_forward_impl.1} parent=1 // pred_fallthru
      _
    // Predicated region
    $region42: #{_forward_impl.1} parent=1 // pred_check
      _
    $region43: #{_forward_impl.1} parent=1 // pred_check_branch
      %137 = sbr.rel (0) target = $region45
    $region44: #{_forward_impl.1} parent=1 // pred_region
      %s139 = ssub.s32 16, 16
      %140 = vsyncadd [#allocation18], %s139
      %s142 = sshll.u32 [#allocation17], 4
      %s143 = int_to_ptr.vmem [resolvable:$true] %s142
      %145 = dma.hbm_to_vmem [thread:$0]  %s11, 16, %s143, [#allocation18]
    $region45: #{_forward_impl.1} parent=1 // pred_fallthru
      _
    // Predicated region
    $region46: #{_forward_impl.1} parent=1 // pred_check
      _
    $region47: #{_forward_impl.1} parent=1 // pred_check_branch
      %147 = sbr.rel (0) target = $region49
    $region48: #{_forward_impl.1} parent=1 // pred_region
      %s149 = ssub.s32 16, 16
      %150 = vsyncadd [#allocation18], %s149
      %s152 = sshll.u32 [#allocation19], 4
      %s153 = int_to_ptr.vmem [resolvable:$true] %s152
      %155 = dma.hbm_to_vmem [thread:$0]  %s12, 16, %s153, [#allocation18]
    $region49: #{_forward_impl.1} parent=1 // pred_fallthru
      _
    // Predicated region
    $region50: #{_forward_impl.1} parent=1 // pred_check
      _
    $region51: #{_forward_impl.1} parent=1 // pred_check_branch
      %157 = sbr.rel (0) target = $region53
    $region52: #{_forward_impl.1} parent=1 // pred_region
      _
    $region53: #{_forward_impl.1} parent=1 // pred_fallthru
      _
    // Predicated region
    $region54: #{_forward_impl.1} parent=1 // pred_check
      _
    $region55: #{_forward_impl.1} parent=1 // pred_check_branch
      %159 = sbr.rel (0) target = $region57
    $region56: #{_forward_impl.1} parent=1 // pred_region
      %160 = dma.done [#allocation7], 65536
    $region57: #{_forward_impl.1} parent=1 // pred_fallthru
      _
    // Predicated region
    $region58: #{_forward_impl.1} parent=1 // pred_check
      _
    $region59: #{_forward_impl.1} parent=1 // pred_check_branch
      %162 = sbr.rel (0) target = $region61
    $region60: #{_forward_impl.1} parent=1 // pred_region
      %163 = dma.done [#allocation9], 64
    $region61: #{_forward_impl.1} parent=1 // pred_fallthru
      _
    // Predicated region
    $region62: #{_forward_impl.1} parent=1 // pred_check
      _
    $region63: #{_forward_impl.1} parent=1 // pred_check_branch
      %165 = sbr.rel (0) target = $region65
    $region64: #{_forward_impl.1} parent=1 // pred_region
      %166 = dma.done [#allocation9], 64
    $region65: #{_forward_impl.1} parent=1 // pred_fallthru
      _
    // Predicated region
    $region66: #{_forward_impl.1} parent=1 // pred_check
      _
    $region67: #{_forward_impl.1} parent=1 // pred_check_branch
      %168 = sbr.rel (0) target = $region69
    $region68: #{_forward_impl.1} parent=1 // pred_region
      %169 = dma.done [#allocation12], 64
    $region69: #{_forward_impl.1} parent=1 // pred_fallthru
      _
    // Predicated region
    $region70: #{_forward_impl.1} parent=1 // pred_check
      _
    $region71: #{_forward_impl.1} parent=1 // pred_check_branch
      %171 = sbr.rel (0) target = $region73
    $region72: #{_forward_impl.1} parent=1 // pred_region
      %172 = dma.done [#allocation12], 8192
    $region73: #{_forward_impl.1} parent=1 // pred_fallthru
      _
    // Predicated region
    $region74: #{_forward_impl.1} parent=1 // pred_check
      _
    $region75: #{_forward_impl.1} parent=1 // pred_check_branch
      %174 = sbr.rel (0) target = $region77
    $region76: #{_forward_impl.1} parent=1 // pred_region
      %175 = dma.done [#allocation15], 16
    $region77: #{_forward_impl.1} parent=1 // pred_fallthru
      _
    // Predicated region
    $region78: #{_forward_impl.1} parent=1 // pred_check
      _
    $region79: #{_forward_impl.1} parent=1 // pred_check_branch
      %177 = sbr.rel (0) target = $region81
    $region80: #{_forward_impl.1} parent=1 // pred_region
      %178 = dma.done [#allocation15], 16
    $region81: #{_forward_impl.1} parent=1 // pred_fallthru
      _
    // Predicated region
    $region82: #{_forward_impl.1} parent=1 // pred_check
      _
    $region83: #{_forward_impl.1} parent=1 // pred_check_branch
      %180 = sbr.rel (0) target = $region85
    $region84: #{_forward_impl.1} parent=1 // pred_region
      %181 = dma.done [#allocation18], 16
    $region85: #{_forward_impl.1} parent=1 // pred_fallthru
      _
    // Predicated region
    $region86: #{_forward_impl.1} parent=1 // pred_check
      _
    $region87: #{_forward_impl.1} parent=1 // pred_check_branch
      %183 = sbr.rel (0) target = $region89
    $region88: #{_forward_impl.1} parent=1 // pred_region
      %184 = dma.done [#allocation18], 16
    $region89: #{_forward_impl.1} parent=1 // pred_fallthru
      _
    %s185 = sld [smem:[#allocation4]]
    %s186 = ssub.s32 %s185, 1
    %p187 = scmp.lt.s32.totalorder 0, %s186
    %s188 = scalar_select %p187, 0, %s186
    %s189 = smul.u32 2, %s188
    %p190 = scmp.lt.s32.totalorder %s189, 1
    %s191 = scalar_select %p190, %s189, 1
    %s192 = smul.addr %s191, 4
    %s193 = scalar_lea.vmem %s1, %s192
    %s194 = sld [smem:[#allocation4]]
    %s195 = ssub.s32 %s194, 1
    %p196 = scmp.lt.s32.totalorder 0, %s195
    %s197 = scalar_select %p196, 0, %s195
    %s198 = smul.u32 2, %s197
    %p199 = scmp.lt.s32.totalorder %s198, 1
    %s200 = scalar_select %p199, %s198, 1
    %s201 = smul.addr %s200, 8
    %s202 = smul.addr %s201, 8
    %s203 = scalar_lea.vmem %s2, %s202
    %s204 = sld [smem:[#allocation4]]
    %s205 = ssub.s32 %s204, 1
    %p206 = scmp.lt.s32.totalorder 0, %s205
    %s207 = scalar_select %p206, 0, %s205
    %s208 = smul.u32 2, %s207
    %p209 = scmp.lt.s32.totalorder %s208, 1
    %s210 = scalar_select %p209, %s208, 1
    %s211 = smul.addr %s210, 4
    %s212 = scalar_lea.vmem %s1, %s211
    %s213 = sld [smem:[#allocation4]]
    %s214 = ssub.s32 %s213, 1
    %p215 = scmp.lt.s32.totalorder 0, %s214
    %s216 = scalar_select %p215, 0, %s214
    %s217 = smul.u32 2, %s216
    %s218 = sld [smem:[#allocation4]]
    %s219 = ssub.s32 %s218, 1
    %p220 = scmp.lt.s32.totalorder 0, %s219
    %s221 = scalar_select %p220, 0, %s219
    %s222 = smul.u32 2, %s221
    %p223 = scmp.lt.s32.totalorder %s222, 1
    %s224 = scalar_select %p223, %s222, 1
    %s225 = smul.addr %s224, 8
    %s226 = smul.addr %s225, 8
    %s227 = scalar_lea.vmem %s2, %s226
    %s228 = sld [smem:[#allocation4]]
    %s229 = ssub.s32 %s228, 1
    %p230 = scmp.lt.s32.totalorder 0, %s229
    %s231 = scalar_select %p230, 0, %s229
    %s232 = smul.u32 2, %s231
    %p233 = scmp.eq.s32.totalorder 0, 0
    // Predicated region
    $region90: #{_forward_impl.1} parent=1 // pred_check
      %p234 = pneg %p233
    $region91: #{_forward_impl.1} parent=1 // pred_check_branch
      %236 = sbr.rel (%p234) target = $region93
    $region92: #{_forward_impl.1} parent=1 // pred_region
      %237 = vst [vmem:[#allocation2] sm:$0xff] 0.0
      %238 = vst [vmem:[#allocation2 + $0x8] sm:$0xff] 0.0
      %239 = vst [vmem:[#allocation2 + $0x10] sm:$0xff] 0.0
      %240 = vst [vmem:[#allocation2 + $0x18] sm:$0xff] 0.0
      %241 = vst [vmem:[#allocation2 + $0x20] sm:$0xff] 0.0
      %242 = vst [vmem:[#allocation2 + $0x28] sm:$0xff] 0.0
      %243 = vst [vmem:[#allocation2 + $0x30] sm:$0xff] 0.0
      %244 = vst [vmem:[#allocation2 + $0x38] sm:$0xff] 0.0
    $region93: #{_forward_impl.1} parent=1 // pred_fallthru
      _
    %s245 = sld [smem:[#allocation4]]
    %p246 = scmp.lt.s32.totalorder 0, %s245
    // Predicated region
    $region94: #{_forward_impl.1} parent=1 // pred_check
      %p247 = pneg %p246
    $region95: #{_forward_impl.1} parent=1 // pred_check_branch
      %249 = sbr.rel (%p247) target = $region97
    $region96: #{_forward_impl.1} parent=1 // pred_region
      %v250 = vld [vmem:[%s227] sm:$0xff]
      %v251 = vld [vmem:[%s227 + $0x8] sm:$0xff]
      %v252 = vld [vmem:[%s227 + $0x10] sm:$0xff]
      %v253 = vld [vmem:[%s227 + $0x18] sm:$0xff]
      %v254 = vld [vmem:[%s227 + $0x20] sm:$0xff]
      %v255 = vld [vmem:[%s227 + $0x28] sm:$0xff]
      %v256 = vld [vmem:[%s227 + $0x30] sm:$0xff]
      %v257 = vld [vmem:[%s227 + $0x38] sm:$0xff]
      %v258 = vld [vmem:[%s227 + $0x40] sm:$0xff]
      %v259 = vld [vmem:[%s227 + $0x48] sm:$0xff]
      %v260 = vld [vmem:[%s227 + $0x50] sm:$0xff]
      %v261 = vld [vmem:[%s227 + $0x58] sm:$0xff]
      %v262 = vld [vmem:[%s227 + $0x60] sm:$0xff]
      %v263 = vld [vmem:[%s227 + $0x68] sm:$0xff]
      %v264 = vld [vmem:[%s227 + $0x70] sm:$0xff]
      %v265 = vld [vmem:[%s227 + $0x78] sm:$0xff]
      %v266 = vld [vmem:[%s227 + $0x80] sm:$0xff]
      %v267 = vld [vmem:[%s227 + $0x88] sm:$0xff]
      %v268 = vld [vmem:[%s227 + $0x90] sm:$0xff]
      %v269 = vld [vmem:[%s227 + $0x98] sm:$0xff]
      %v270 = vld [vmem:[%s227 + $0xa0] sm:$0xff]
      %v271 = vld [vmem:[%s227 + $0xa8] sm:$0xff]
      %v272 = vld [vmem:[%s227 + $0xb0] sm:$0xff]
      %v273 = vld [vmem:[%s227 + $0xb8] sm:$0xff]
      %v274 = vld [vmem:[%s227 + $0xc0] sm:$0xff]
      %v275 = vld [vmem:[%s227 + $0xc8] sm:$0xff]
      %v276 = vld [vmem:[%s227 + $0xd0] sm:$0xff]
      %v277 = vld [vmem:[%s227 + $0xd8] sm:$0xff]
      %v278 = vld [vmem:[%s227 + $0xe0] sm:$0xff]
      %v279 = vld [vmem:[%s227 + $0xe8] sm:$0xff]
      %v280 = vld [vmem:[%s227 + $0xf0] sm:$0xff]
      %v281 = vld [vmem:[%s227 + $0xf8] sm:$0xff]
      %v282 = vld [vmem:[%s227 + $0x100] sm:$0xff]
      %v283 = vld [vmem:[%s227 + $0x108] sm:$0xff]
      %v284 = vld [vmem:[%s227 + $0x110] sm:$0xff]
      %v285 = vld [vmem:[%s227 + $0x118] sm:$0xff]
      %v286 = vld [vmem:[%s227 + $0x120] sm:$0xff]
      %v287 = vld [vmem:[%s227 + $0x128] sm:$0xff]
      %v288 = vld [vmem:[%s227 + $0x130] sm:$0xff]
      %v289 = vld [vmem:[%s227 + $0x138] sm:$0xff]
      %v290 = vld [vmem:[%s227 + $0x140] sm:$0xff]
      %v291 = vld [vmem:[%s227 + $0x148] sm:$0xff]
      %v292 = vld [vmem:[%s227 + $0x150] sm:$0xff]
      %v293 = vld [vmem:[%s227 + $0x158] sm:$0xff]
      %v294 = vld [vmem:[%s227 + $0x160] sm:$0xff]
      %v295 = vld [vmem:[%s227 + $0x168] sm:$0xff]
      %v296 = vld [vmem:[%s227 + $0x170] sm:$0xff]
      %v297 = vld [vmem:[%s227 + $0x178] sm:$0xff]
      %v298 = vld [vmem:[%s227 + $0x180] sm:$0xff]
      %v299 = vld [vmem:[%s227 + $0x188] sm:$0xff]
      %v300 = vld [vmem:[%s227 + $0x190] sm:$0xff]
      %v301 = vld [vmem:[%s227 + $0x198] sm:$0xff]
      %v302 = vld [vmem:[%s227 + $0x1a0] sm:$0xff]
      %v303 = vld [vmem:[%s227 + $0x1a8] sm:$0xff]
      %v304 = vld [vmem:[%s227 + $0x1b0] sm:$0xff]
      %v305 = vld [vmem:[%s227 + $0x1b8] sm:$0xff]
      %v306 = vld [vmem:[%s227 + $0x1c0] sm:$0xff]
      %v307 = vld [vmem:[%s227 + $0x1c8] sm:$0xff]
      %v308 = vld [vmem:[%s227 + $0x1d0] sm:$0xff]
      %v309 = vld [vmem:[%s227 + $0x1d8] sm:$0xff]
      %v310 = vld [vmem:[%s227 + $0x1e0] sm:$0xff]
      %v311 = vld [vmem:[%s227 + $0x1e8] sm:$0xff]
      %v312 = vld [vmem:[%s227 + $0x1f0] sm:$0xff]
      %v313 = vld [vmem:[%s227 + $0x1f8] sm:$0xff]
      %v314 = vld [vmem:[%s227 + $0x200] sm:$0xff]
      %v315 = vld [vmem:[%s227 + $0x208] sm:$0xff]
      %v316 = vld [vmem:[%s227 + $0x210] sm:$0xff]
      %v317 = vld [vmem:[%s227 + $0x218] sm:$0xff]
      %v318 = vld [vmem:[%s227 + $0x220] sm:$0xff]
      %v319 = vld [vmem:[%s227 + $0x228] sm:$0xff]
      %v320 = vld [vmem:[%s227 + $0x230] sm:$0xff]
      %v321 = vld [vmem:[%s227 + $0x238] sm:$0xff]
      %v322 = vld [vmem:[%s227 + $0x240] sm:$0xff]
      %v323 = vld [vmem:[%s227 + $0x248] sm:$0xff]
      %v324 = vld [vmem:[%s227 + $0x250] sm:$0xff]
      %v325 = vld [vmem:[%s227 + $0x258] sm:$0xff]
      %v326 = vld [vmem:[%s227 + $0x260] sm:$0xff]
      %v327 = vld [vmem:[%s227 + $0x268] sm:$0xff]
      %v328 = vld [vmem:[%s227 + $0x270] sm:$0xff]
      %v329 = vld [vmem:[%s227 + $0x278] sm:$0xff]
      %v330 = vld [vmem:[%s227 + $0x280] sm:$0xff]
      %v331 = vld [vmem:[%s227 + $0x288] sm:$0xff]
      %v332 = vld [vmem:[%s227 + $0x290] sm:$0xff]
      %v333 = vld [vmem:[%s227 + $0x298] sm:$0xff]
      %v334 = vld [vmem:[%s227 + $0x2a0] sm:$0xff]
      %v335 = vld [vmem:[%s227 + $0x2a8] sm:$0xff]
      %v336 = vld [vmem:[%s227 + $0x2b0] sm:$0xff]
      %v337 = vld [vmem:[%s227 + $0x2b8] sm:$0xff]
      %v338 = vld [vmem:[%s227 + $0x2c0] sm:$0xff]
      %v339 = vld [vmem:[%s227 + $0x2c8] sm:$0xff]
      %v340 = vld [vmem:[%s227 + $0x2d0] sm:$0xff]
      %v341 = vld [vmem:[%s227 + $0x2d8] sm:$0xff]
      %v342 = vld [vmem:[%s227 + $0x2e0] sm:$0xff]
      %v343 = vld [vmem:[%s227 + $0x2e8] sm:$0xff]
      %v344 = vld [vmem:[%s227 + $0x2f0] sm:$0xff]
      %v345 = vld [vmem:[%s227 + $0x2f8] sm:$0xff]
      %v346 = vld [vmem:[%s227 + $0x300] sm:$0xff]
      %v347 = vld [vmem:[%s227 + $0x308] sm:$0xff]
      %v348 = vld [vmem:[%s227 + $0x310] sm:$0xff]
      %v349 = vld [vmem:[%s227 + $0x318] sm:$0xff]
      %v350 = vld [vmem:[%s227 + $0x320] sm:$0xff]
      %v351 = vld [vmem:[%s227 + $0x328] sm:$0xff]
      %v352 = vld [vmem:[%s227 + $0x330] sm:$0xff]
      %v353 = vld [vmem:[%s227 + $0x338] sm:$0xff]
      %v354 = vld [vmem:[%s227 + $0x340] sm:$0xff]
      %v355 = vld [vmem:[%s227 + $0x348] sm:$0xff]
      %v356 = vld [vmem:[%s227 + $0x350] sm:$0xff]
      %v357 = vld [vmem:[%s227 + $0x358] sm:$0xff]
      %v358 = vld [vmem:[%s227 + $0x360] sm:$0xff]
      %v359 = vld [vmem:[%s227 + $0x368] sm:$0xff]
      %v360 = vld [vmem:[%s227 + $0x370] sm:$0xff]
      %v361 = vld [vmem:[%s227 + $0x378] sm:$0xff]
      %v362 = vld [vmem:[%s227 + $0x380] sm:$0xff]
      %v363 = vld [vmem:[%s227 + $0x388] sm:$0xff]
      %v364 = vld [vmem:[%s227 + $0x390] sm:$0xff]
      %v365 = vld [vmem:[%s227 + $0x398] sm:$0xff]
      %v366 = vld [vmem:[%s227 + $0x3a0] sm:$0xff]
      %v367 = vld [vmem:[%s227 + $0x3a8] sm:$0xff]
      %v368 = vld [vmem:[%s227 + $0x3b0] sm:$0xff]
      %v369 = vld [vmem:[%s227 + $0x3b8] sm:$0xff]
      %v370 = vld [vmem:[%s227 + $0x3c0] sm:$0xff]
      %v371 = vld [vmem:[%s227 + $0x3c8] sm:$0xff]
      %v372 = vld [vmem:[%s227 + $0x3d0] sm:$0xff]
      %v373 = vld [vmem:[%s227 + $0x3d8] sm:$0xff]
      %v374 = vld [vmem:[%s227 + $0x3e0] sm:$0xff]
      %v375 = vld [vmem:[%s227 + $0x3e8] sm:$0xff]
      %v376 = vld [vmem:[%s227 + $0x3f0] sm:$0xff]
      %v377 = vld [vmem:[%s227 + $0x3f8] sm:$0xff]
      %v378 = vld [vmem:[%s212] sm:$0xf]
      %v379 = vld [vmem:[%s212 + $0x4] sm:$0xf]
      %v380 = vld [vmem:[%s212 + $0x8] sm:$0xf]
      %v381 = vld [vmem:[%s212 + $0xc] sm:$0xf]
      %v382 = vld [vmem:[%s212 + $0x10] sm:$0xf]
      %v383 = vld [vmem:[%s212 + $0x14] sm:$0xf]
      %v384 = vld [vmem:[%s212 + $0x18] sm:$0xf]
      %v385 = vld [vmem:[%s212 + $0x1c] sm:$0xf]
      %v386 = vld [vmem:[%s212 + $0x20] sm:$0xf]
      %v387 = vld [vmem:[%s212 + $0x24] sm:$0xf]
      %v388 = vld [vmem:[%s212 + $0x28] sm:$0xf]
      %v389 = vld [vmem:[%s212 + $0x2c] sm:$0xf]
      %v390 = vld [vmem:[%s212 + $0x30] sm:$0xf]
      %v391 = vld [vmem:[%s212 + $0x34] sm:$0xf]
      %v392 = vld [vmem:[%s212 + $0x38] sm:$0xf]
      %v393 = vld [vmem:[%s212 + $0x3c] sm:$0xf]
      %v394 = vunpack.c.l.bf16 %v378
      %v395 = vunpack.c.l.bf16 %v379
      %v396 = vunpack.c.l.bf16 %v380
      %v397 = vunpack.c.l.bf16 %v381
      %v398 = vunpack.c.l.bf16 %v382
      %v399 = vunpack.c.l.bf16 %v383
      %v400 = vunpack.c.l.bf16 %v384
      %v401 = vunpack.c.l.bf16 %v385
      %v402 = vunpack.c.l.bf16 %v386
      %v403 = vunpack.c.l.bf16 %v387
      %v404 = vunpack.c.l.bf16 %v388
      %v405 = vunpack.c.l.bf16 %v389
      %v406 = vunpack.c.l.bf16 %v390
      %v407 = vunpack.c.l.bf16 %v391
      %v408 = vunpack.c.l.bf16 %v392
      %v409 = vunpack.c.l.bf16 %v393
      %v410 = vld [vmem:[#allocation2] sm:$0xff]
      %v411 = vld [vmem:[#allocation2 + $0x8] sm:$0xff]
      %v412 = vld [vmem:[#allocation2 + $0x10] sm:$0xff]
      %v413 = vld [vmem:[#allocation2 + $0x18] sm:$0xff]
      %v414 = vld [vmem:[#allocation2 + $0x20] sm:$0xff]
      %v415 = vld [vmem:[#allocation2 + $0x28] sm:$0xff]
      %v416 = vld [vmem:[#allocation2 + $0x30] sm:$0xff]
      %v417 = vld [vmem:[#allocation2 + $0x38] sm:$0xff]
      %419 = vset.pattern.permute.xlu0 0
      %420 = vperm.xlu0 %419, %v394
      %v421 = vpop.permute.xlu0 %420
      %424 = vset.pattern.permute.xlu0 0
      %425 = vperm.xlu0 %424, %v395
      %v426 = vpop.permute.xlu0 %425
      %429 = vset.pattern.permute.xlu0 0
      %430 = vperm.xlu0 %429, %v396
      %v431 = vpop.permute.xlu0 %430
      %434 = vset.pattern.permute.xlu0 0
      %435 = vperm.xlu0 %434, %v397
      %v436 = vpop.permute.xlu0 %435
      %439 = vset.pattern.permute.xlu0 0
      %440 = vperm.xlu0 %439, %v398
      %v441 = vpop.permute.xlu0 %440
      %444 = vset.pattern.permute.xlu0 0
      %445 = vperm.xlu0 %444, %v399
      %v446 = vpop.permute.xlu0 %445
      %449 = vset.pattern.permute.xlu0 0
      %450 = vperm.xlu0 %449, %v400
      %v451 = vpop.permute.xlu0 %450
      %454 = vset.pattern.permute.xlu0 0
      %455 = vperm.xlu0 %454, %v401
      %v456 = vpop.permute.xlu0 %455
      %459 = vset.pattern.permute.xlu0 0
      %460 = vperm.xlu0 %459, %v402
      %v461 = vpop.permute.xlu0 %460
      %464 = vset.pattern.permute.xlu0 0
      %465 = vperm.xlu0 %464, %v403
      %v466 = vpop.permute.xlu0 %465
      %469 = vset.pattern.permute.xlu0 0
      %470 = vperm.xlu0 %469, %v404
      %v471 = vpop.permute.xlu0 %470
      %474 = vset.pattern.permute.xlu0 0
      %475 = vperm.xlu0 %474, %v405
      %v476 = vpop.permute.xlu0 %475
      %479 = vset.pattern.permute.xlu0 0
      %480 = vperm.xlu0 %479, %v406
      %v481 = vpop.permute.xlu0 %480
      %484 = vset.pattern.permute.xlu0 0
      %485 = vperm.xlu0 %484, %v407
      %v486 = vpop.permute.xlu0 %485
      %489 = vset.pattern.permute.xlu0 0
      %490 = vperm.xlu0 %489, %v408
      %v491 = vpop.permute.xlu0 %490
      %494 = vset.pattern.permute.xlu0 0
      %495 = vperm.xlu0 %494, %v409
      %v496 = vpop.permute.xlu0 %495
      %v498 = vmul.f32 %v250, %v421
      %v499 = vmul.f32 %v251, %v421
      %v500 = vmul.f32 %v252, %v421
      %v501 = vmul.f32 %v253, %v421
      %v502 = vmul.f32 %v254, %v421
      %v503 = vmul.f32 %v255, %v421
      %v504 = vmul.f32 %v256, %v421
      %v505 = vmul.f32 %v257, %v421
      %v506 = vmul.f32 %v258, %v426
      %v507 = vmul.f32 %v259, %v426
      %v508 = vmul.f32 %v260, %v426
      %v509 = vmul.f32 %v261, %v426
      %v510 = vmul.f32 %v262, %v426
      %v511 = vmul.f32 %v263, %v426
      %v512 = vmul.f32 %v264, %v426
      %v513 = vmul.f32 %v265, %v426
      %v514 = vmul.f32 %v266, %v431
      %v515 = vmul.f32 %v267, %v431
      %v516 = vmul.f32 %v268, %v431
      %v517 = vmul.f32 %v269, %v431
      %v518 = vmul.f32 %v270, %v431
      %v519 = vmul.f32 %v271, %v431
      %v520 = vmul.f32 %v272, %v431
      %v521 = vmul.f32 %v273, %v431
      %v522 = vmul.f32 %v274, %v436
      %v523 = vmul.f32 %v275, %v436
      %v524 = vmul.f32 %v276, %v436
      %v525 = vmul.f32 %v277, %v436
      %v526 = vmul.f32 %v278, %v436
      %v527 = vmul.f32 %v279, %v436
      %v528 = vmul.f32 %v280, %v436
      %v529 = vmul.f32 %v281, %v436
      %v530 = vmul.f32 %v282, %v441
      %v531 = vmul.f32 %v283, %v441
      %v532 = vmul.f32 %v284, %v441
      %v533 = vmul.f32 %v285, %v441
      %v534 = vmul.f32 %v286, %v441
      %v535 = vmul.f32 %v287, %v441
      %v536 = vmul.f32 %v288, %v441
      %v537 = vmul.f32 %v289, %v441
      %v538 = vmul.f32 %v290, %v446
      %v539 = vmul.f32 %v291, %v446
      %v540 = vmul.f32 %v292, %v446
      %v541 = vmul.f32 %v293, %v446
      %v542 = vmul.f32 %v294, %v446
      %v543 = vmul.f32 %v295, %v446
      %v544 = vmul.f32 %v296, %v446
      %v545 = vmul.f32 %v297, %v446
      %v546 = vmul.f32 %v298, %v451
      %v547 = vmul.f32 %v299, %v451
      %v548 = vmul.f32 %v300, %v451
      %v549 = vmul.f32 %v301, %v451
      %v550 = vmul.f32 %v302, %v451
      %v551 = vmul.f32 %v303, %v451
      %v552 = vmul.f32 %v304, %v451
      %v553 = vmul.f32 %v305, %v451
      %v554 = vmul.f32 %v306, %v456
      %v555 = vmul.f32 %v307, %v456
      %v556 = vmul.f32 %v308, %v456
      %v557 = vmul.f32 %v309, %v456
      %v558 = vmul.f32 %v310, %v456
      %v559 = vmul.f32 %v311, %v456
      %v560 = vmul.f32 %v312, %v456
      %v561 = vmul.f32 %v313, %v456
      %v562 = vmul.f32 %v314, %v461
      %v563 = vmul.f32 %v315, %v461
      %v564 = vmul.f32 %v316, %v461
      %v565 = vmul.f32 %v317, %v461
      %v566 = vmul.f32 %v318, %v461
      %v567 = vmul.f32 %v319, %v461
      %v568 = vmul.f32 %v320, %v461
      %v569 = vmul.f32 %v321, %v461
      %v570 = vmul.f32 %v322, %v466
      %v571 = vmul.f32 %v323, %v466
      %v572 = vmul.f32 %v324, %v466
      %v573 = vmul.f32 %v325, %v466
      %v574 = vmul.f32 %v326, %v466
      %v575 = vmul.f32 %v327, %v466
      %v576 = vmul.f32 %v328, %v466
      %v577 = vmul.f32 %v329, %v466
      %v578 = vmul.f32 %v330, %v471
      %v579 = vmul.f32 %v331, %v471
      %v580 = vmul.f32 %v332, %v471
      %v581 = vmul.f32 %v333, %v471
      %v582 = vmul.f32 %v334, %v471
      %v583 = vmul.f32 %v335, %v471
      %v584 = vmul.f32 %v336, %v471
      %v585 = vmul.f32 %v337, %v471
      %v586 = vmul.f32 %v338, %v476
      %v587 = vmul.f32 %v339, %v476
      %v588 = vmul.f32 %v340, %v476
      %v589 = vmul.f32 %v341, %v476
      %v590 = vmul.f32 %v342, %v476
      %v591 = vmul.f32 %v343, %v476
      %v592 = vmul.f32 %v344, %v476
      %v593 = vmul.f32 %v345, %v476
      %v594 = vmul.f32 %v346, %v481
      %v595 = vmul.f32 %v347, %v481
      %v596 = vmul.f32 %v348, %v481
      %v597 = vmul.f32 %v349, %v481
      %v598 = vmul.f32 %v350, %v481
      %v599 = vmul.f32 %v351, %v481
      %v600 = vmul.f32 %v352, %v481
      %v601 = vmul.f32 %v353, %v481
      %v602 = vmul.f32 %v354, %v486
      %v603 = vmul.f32 %v355, %v486
      %v604 = vmul.f32 %v356, %v486
      %v605 = vmul.f32 %v357, %v486
      %v606 = vmul.f32 %v358, %v486
      %v607 = vmul.f32 %v359, %v486
      %v608 = vmul.f32 %v360, %v486
      %v609 = vmul.f32 %v361, %v486
      %v610 = vmul.f32 %v362, %v491
      %v611 = vmul.f32 %v363, %v491
      %v612 = vmul.f32 %v364, %v491
      %v613 = vmul.f32 %v365, %v491
      %v614 = vmul.f32 %v366, %v491
      %v615 = vmul.f32 %v367, %v491
      %v616 = vmul.f32 %v368, %v491
      %v617 = vmul.f32 %v369, %v491
      %v618 = vmul.f32 %v370, %v496
      %v619 = vmul.f32 %v371, %v496
      %v620 = vmul.f32 %v372, %v496
      %v621 = vmul.f32 %v373, %v496
      %v622 = vmul.f32 %v374, %v496
      %v623 = vmul.f32 %v375, %v496
      %v624 = vmul.f32 %v376, %v496
      %v625 = vmul.f32 %v377, %v496
      %v626 = vadd.f32 %v498, %v506
      %v627 = vrot.slane %v626, 4
      %v628 = vadd.f32 %v626, %v627
      %v629 = vrot.slane %v628, 2
      %v630 = vadd.f32 %v628, %v629
      %v631 = vrot.slane %v630, 1
      %v632 = vadd.f32 %v630, %v631
      %v633 = vadd.f32 %v499, %v507
      %v634 = vrot.slane %v633, 4
      %v635 = vadd.f32 %v633, %v634
      %v636 = vrot.slane %v635, 2
      %v637 = vadd.f32 %v635, %v636
      %v638 = vrot.slane %v637, 1
      %v639 = vadd.f32 %v637, %v638
      %v640 = vadd.f32 %v500, %v508
      %v641 = vrot.slane %v640, 4
      %v642 = vadd.f32 %v640, %v641
      %v643 = vrot.slane %v642, 2
      %v644 = vadd.f32 %v642, %v643
      %v645 = vrot.slane %v644, 1
      %v646 = vadd.f32 %v644, %v645
      %v647 = vadd.f32 %v501, %v509
      %v648 = vrot.slane %v647, 4
      %v649 = vadd.f32 %v647, %v648
      %v650 = vrot.slane %v649, 2
      %v651 = vadd.f32 %v649, %v650
      %v652 = vrot.slane %v651, 1
      %v653 = vadd.f32 %v651, %v652
      %v654 = vadd.f32 %v502, %v510
      %v655 = vrot.slane %v654, 4
      %v656 = vadd.f32 %v654, %v655
      %v657 = vrot.slane %v656, 2
      %v658 = vadd.f32 %v656, %v657
      %v659 = vrot.slane %v658, 1
      %v660 = vadd.f32 %v658, %v659
      %v661 = vadd.f32 %v503, %v511
      %v662 = vrot.slane %v661, 4
      %v663 = vadd.f32 %v661, %v662
      %v664 = vrot.slane %v663, 2
      %v665 = vadd.f32 %v663, %v664
      %v666 = vrot.slane %v665, 1
      %v667 = vadd.f32 %v665, %v666
      %v668 = vadd.f32 %v504, %v512
      %v669 = vrot.slane %v668, 4
      %v670 = vadd.f32 %v668, %v669
      %v671 = vrot.slane %v670, 2
      %v672 = vadd.f32 %v670, %v671
      %v673 = vrot.slane %v672, 1
      %v674 = vadd.f32 %v672, %v673
      %v675 = vadd.f32 %v505, %v513
      %v676 = vrot.slane %v675, 4
      %v677 = vadd.f32 %v675, %v676
      %v678 = vrot.slane %v677, 2
      %v679 = vadd.f32 %v677, %v678
      %v680 = vrot.slane %v679, 1
      %v681 = vadd.f32 %v679, %v680
      %v682 = vadd.f32 %v514, %v522
      %v683 = vrot.slane %v682, 4
      %v684 = vadd.f32 %v682, %v683
      %v685 = vrot.slane %v684, 2
      %v686 = vadd.f32 %v684, %v685
      %v687 = vrot.slane %v686, 1
      %v688 = vadd.f32 %v686, %v687
      %v689 = vadd.f32 %v515, %v523
      %v690 = vrot.slane %v689, 4
      %v691 = vadd.f32 %v689, %v690
      %v692 = vrot.slane %v691, 2
      %v693 = vadd.f32 %v691, %v692
      %v694 = vrot.slane %v693, 1
      %v695 = vadd.f32 %v693, %v694
      %v696 = vadd.f32 %v516, %v524
      %v697 = vrot.slane %v696, 4
      %v698 = vadd.f32 %v696, %v697
      %v699 = vrot.slane %v698, 2
      %v700 = vadd.f32 %v698, %v699
      %v701 = vrot.slane %v700, 1
      %v702 = vadd.f32 %v700, %v701
      %v703 = vadd.f32 %v517, %v525
      %v704 = vrot.slane %v703, 4
      %v705 = vadd.f32 %v703, %v704
      %v706 = vrot.slane %v705, 2
      %v707 = vadd.f32 %v705, %v706
      %v708 = vrot.slane %v707, 1
      %v709 = vadd.f32 %v707, %v708
      %v710 = vadd.f32 %v518, %v526
      %v711 = vrot.slane %v710, 4
      %v712 = vadd.f32 %v710, %v711
      %v713 = vrot.slane %v712, 2
      %v714 = vadd.f32 %v712, %v713
      %v715 = vrot.slane %v714, 1
      %v716 = vadd.f32 %v714, %v715
      %v717 = vadd.f32 %v519, %v527
      %v718 = vrot.slane %v717, 4
      %v719 = vadd.f32 %v717, %v718
      %v720 = vrot.slane %v719, 2
      %v721 = vadd.f32 %v719, %v720
      %v722 = vrot.slane %v721, 1
      %v723 = vadd.f32 %v721, %v722
      %v724 = vadd.f32 %v520, %v528
      %v725 = vrot.slane %v724, 4
      %v726 = vadd.f32 %v724, %v725
      %v727 = vrot.slane %v726, 2
      %v728 = vadd.f32 %v726, %v727
      %v729 = vrot.slane %v728, 1
      %v730 = vadd.f32 %v728, %v729
      %v731 = vadd.f32 %v521, %v529
      %v732 = vrot.slane %v731, 4
      %v733 = vadd.f32 %v731, %v732
      %v734 = vrot.slane %v733, 2
      %v735 = vadd.f32 %v733, %v734
      %v736 = vrot.slane %v735, 1
      %v737 = vadd.f32 %v735, %v736
      %v738 = vadd.f32 %v530, %v538
      %v739 = vrot.slane %v738, 4
      %v740 = vadd.f32 %v738, %v739
      %v741 = vrot.slane %v740, 2
      %v742 = vadd.f32 %v740, %v741
      %v743 = vrot.slane %v742, 1
      %v744 = vadd.f32 %v742, %v743
      %v745 = vadd.f32 %v531, %v539
      %v746 = vrot.slane %v745, 4
      %v747 = vadd.f32 %v745, %v746
      %v748 = vrot.slane %v747, 2
      %v749 = vadd.f32 %v747, %v748
      %v750 = vrot.slane %v749, 1
      %v751 = vadd.f32 %v749, %v750
      %v752 = vadd.f32 %v532, %v540
      %v753 = vrot.slane %v752, 4
      %v754 = vadd.f32 %v752, %v753
      %v755 = vrot.slane %v754, 2
      %v756 = vadd.f32 %v754, %v755
      %v757 = vrot.slane %v756, 1
      %v758 = vadd.f32 %v756, %v757
      %v759 = vadd.f32 %v533, %v541
      %v760 = vrot.slane %v759, 4
      %v761 = vadd.f32 %v759, %v760
      %v762 = vrot.slane %v761, 2
      %v763 = vadd.f32 %v761, %v762
      %v764 = vrot.slane %v763, 1
      %v765 = vadd.f32 %v763, %v764
      %v766 = vadd.f32 %v534, %v542
      %v767 = vrot.slane %v766, 4
      %v768 = vadd.f32 %v766, %v767
      %v769 = vrot.slane %v768, 2
      %v770 = vadd.f32 %v768, %v769
      %v771 = vrot.slane %v770, 1
      %v772 = vadd.f32 %v770, %v771
      %v773 = vadd.f32 %v535, %v543
      %v774 = vrot.slane %v773, 4
      %v775 = vadd.f32 %v773, %v774
      %v776 = vrot.slane %v775, 2
      %v777 = vadd.f32 %v775, %v776
      %v778 = vrot.slane %v777, 1
      %v779 = vadd.f32 %v777, %v778
      %v780 = vadd.f32 %v536, %v544
      %v781 = vrot.slane %v780, 4
      %v782 = vadd.f32 %v780, %v781
      %v783 = vrot.slane %v782, 2
      %v784 = vadd.f32 %v782, %v783
      %v785 = vrot.slane %v784, 1
      %v786 = vadd.f32 %v784, %v785
      %v787 = vadd.f32 %v537, %v545
      %v788 = vrot.slane %v787, 4
      %v789 = vadd.f32 %v787, %v788
      %v790 = vrot.slane %v789, 2
      %v791 = vadd.f32 %v789, %v790
      %v792 = vrot.slane %v791, 1
      %v793 = vadd.f32 %v791, %v792
      %v794 = vadd.f32 %v546, %v554
      %v795 = vrot.slane %v794, 4
      %v796 = vadd.f32 %v794, %v795
      %v797 = vrot.slane %v796, 2
      %v798 = vadd.f32 %v796, %v797
      %v799 = vrot.slane %v798, 1
      %v800 = vadd.f32 %v798, %v799
      %v801 = vadd.f32 %v547, %v555
      %v802 = vrot.slane %v801, 4
      %v803 = vadd.f32 %v801, %v802
      %v804 = vrot.slane %v803, 2
      %v805 = vadd.f32 %v803, %v804
      %v806 = vrot.slane %v805, 1
      %v807 = vadd.f32 %v805, %v806
      %v808 = vadd.f32 %v548, %v556
      %v809 = vrot.slane %v808, 4
      %v810 = vadd.f32 %v808, %v809
      %v811 = vrot.slane %v810, 2
      %v812 = vadd.f32 %v810, %v811
      %v813 = vrot.slane %v812, 1
      %v814 = vadd.f32 %v812, %v813
      %v815 = vadd.f32 %v549, %v557
      %v816 = vrot.slane %v815, 4
      %v817 = vadd.f32 %v815, %v816
      %v818 = vrot.slane %v817, 2
      %v819 = vadd.f32 %v817, %v818
      %v820 = vrot.slane %v819, 1
      %v821 = vadd.f32 %v819, %v820
      %v822 = vadd.f32 %v550, %v558
      %v823 = vrot.slane %v822, 4
      %v824 = vadd.f32 %v822, %v823
      %v825 = vrot.slane %v824, 2
      %v826 = vadd.f32 %v824, %v825
      %v827 = vrot.slane %v826, 1
      %v828 = vadd.f32 %v826, %v827
      %v829 = vadd.f32 %v551, %v559
      %v830 = vrot.slane %v829, 4
      %v831 = vadd.f32 %v829, %v830
      %v832 = vrot.slane %v831, 2
      %v833 = vadd.f32 %v831, %v832
      %v834 = vrot.slane %v833, 1
      %v835 = vadd.f32 %v833, %v834
      %v836 = vadd.f32 %v552, %v560
      %v837 = vrot.slane %v836, 4
      %v838 = vadd.f32 %v836, %v837
      %v839 = vrot.slane %v838, 2
      %v840 = vadd.f32 %v838, %v839
      %v841 = vrot.slane %v840, 1
      %v842 = vadd.f32 %v840, %v841
      %v843 = vadd.f32 %v553, %v561
      %v844 = vrot.slane %v843, 4
      %v845 = vadd.f32 %v843, %v844
      %v846 = vrot.slane %v845, 2
      %v847 = vadd.f32 %v845, %v846
      %v848 = vrot.slane %v847, 1
      %v849 = vadd.f32 %v847, %v848
      %v850 = vadd.f32 %v562, %v570
      %v851 = vrot.slane %v850, 4
      %v852 = vadd.f32 %v850, %v851
      %v853 = vrot.slane %v852, 2
      %v854 = vadd.f32 %v852, %v853
      %v855 = vrot.slane %v854, 1
      %v856 = vadd.f32 %v854, %v855
      %v857 = vadd.f32 %v563, %v571
      %v858 = vrot.slane %v857, 4
      %v859 = vadd.f32 %v857, %v858
      %v860 = vrot.slane %v859, 2
      %v861 = vadd.f32 %v859, %v860
      %v862 = vrot.slane %v861, 1
      %v863 = vadd.f32 %v861, %v862
      %v864 = vadd.f32 %v564, %v572
      %v865 = vrot.slane %v864, 4
      %v866 = vadd.f32 %v864, %v865
      %v867 = vrot.slane %v866, 2
      %v868 = vadd.f32 %v866, %v867
      %v869 = vrot.slane %v868, 1
      %v870 = vadd.f32 %v868, %v869
      %v871 = vadd.f32 %v565, %v573
      %v872 = vrot.slane %v871, 4
      %v873 = vadd.f32 %v871, %v872
      %v874 = vrot.slane %v873, 2
      %v875 = vadd.f32 %v873, %v874
      %v876 = vrot.slane %v875, 1
      %v877 = vadd.f32 %v875, %v876
      %v878 = vadd.f32 %v566, %v574
      %v879 = vrot.slane %v878, 4
      %v880 = vadd.f32 %v878, %v879
      %v881 = vrot.slane %v880, 2
      %v882 = vadd.f32 %v880, %v881
      %v883 = vrot.slane %v882, 1
      %v884 = vadd.f32 %v882, %v883
      %v885 = vadd.f32 %v567, %v575
      %v886 = vrot.slane %v885, 4
      %v887 = vadd.f32 %v885, %v886
      %v888 = vrot.slane %v887, 2
      %v889 = vadd.f32 %v887, %v888
      %v890 = vrot.slane %v889, 1
      %v891 = vadd.f32 %v889, %v890
      %v892 = vadd.f32 %v568, %v576
      %v893 = vrot.slane %v892, 4
      %v894 = vadd.f32 %v892, %v893
      %v895 = vrot.slane %v894, 2
      %v896 = vadd.f32 %v894, %v895
      %v897 = vrot.slane %v896, 1
      %v898 = vadd.f32 %v896, %v897
      %v899 = vadd.f32 %v569, %v577
      %v900 = vrot.slane %v899, 4
      %v901 = vadd.f32 %v899, %v900
      %v902 = vrot.slane %v901, 2
      %v903 = vadd.f32 %v901, %v902
      %v904 = vrot.slane %v903, 1
      %v905 = vadd.f32 %v903, %v904
      %v906 = vadd.f32 %v578, %v586
      %v907 = vrot.slane %v906, 4
      %v908 = vadd.f32 %v906, %v907
      %v909 = vrot.slane %v908, 2
      %v910 = vadd.f32 %v908, %v909
      %v911 = vrot.slane %v910, 1
      %v912 = vadd.f32 %v910, %v911
      %v913 = vadd.f32 %v579, %v587
      %v914 = vrot.slane %v913, 4
      %v915 = vadd.f32 %v913, %v914
      %v916 = vrot.slane %v915, 2
      %v917 = vadd.f32 %v915, %v916
      %v918 = vrot.slane %v917, 1
      %v919 = vadd.f32 %v917, %v918
      %v920 = vadd.f32 %v580, %v588
      %v921 = vrot.slane %v920, 4
      %v922 = vadd.f32 %v920, %v921
      %v923 = vrot.slane %v922, 2
      %v924 = vadd.f32 %v922, %v923
      %v925 = vrot.slane %v924, 1
      %v926 = vadd.f32 %v924, %v925
      %v927 = vadd.f32 %v581, %v589
      %v928 = vrot.slane %v927, 4
      %v929 = vadd.f32 %v927, %v928
      %v930 = vrot.slane %v929, 2
      %v931 = vadd.f32 %v929, %v930
      %v932 = vrot.slane %v931, 1
      %v933 = vadd.f32 %v931, %v932
      %v934 = vadd.f32 %v582, %v590
      %v935 = vrot.slane %v934, 4
      %v936 = vadd.f32 %v934, %v935
      %v937 = vrot.slane %v936, 2
      %v938 = vadd.f32 %v936, %v937
      %v939 = vrot.slane %v938, 1
      %v940 = vadd.f32 %v938, %v939
      %v941 = vadd.f32 %v583, %v591
      %v942 = vrot.slane %v941, 4
      %v943 = vadd.f32 %v941, %v942
      %v944 = vrot.slane %v943, 2
      %v945 = vadd.f32 %v943, %v944
      %v946 = vrot.slane %v945, 1
      %v947 = vadd.f32 %v945, %v946
      %v948 = vadd.f32 %v584, %v592
      %v949 = vrot.slane %v948, 4
      %v950 = vadd.f32 %v948, %v949
      %v951 = vrot.slane %v950, 2
      %v952 = vadd.f32 %v950, %v951
      %v953 = vrot.slane %v952, 1
      %v954 = vadd.f32 %v952, %v953
      %v955 = vadd.f32 %v585, %v593
      %v956 = vrot.slane %v955, 4
      %v957 = vadd.f32 %v955, %v956
      %v958 = vrot.slane %v957, 2
      %v959 = vadd.f32 %v957, %v958
      %v960 = vrot.slane %v959, 1
      %v961 = vadd.f32 %v959, %v960
      %v962 = vadd.f32 %v594, %v602
      %v963 = vrot.slane %v962, 4
      %v964 = vadd.f32 %v962, %v963
      %v965 = vrot.slane %v964, 2
      %v966 = vadd.f32 %v964, %v965
      %v967 = vrot.slane %v966, 1
      %v968 = vadd.f32 %v966, %v967
      %v969 = vadd.f32 %v595, %v603
      %v970 = vrot.slane %v969, 4
      %v971 = vadd.f32 %v969, %v970
      %v972 = vrot.slane %v971, 2
      %v973 = vadd.f32 %v971, %v972
      %v974 = vrot.slane %v973, 1
      %v975 = vadd.f32 %v973, %v974
      %v976 = vadd.f32 %v596, %v604
      %v977 = vrot.slane %v976, 4
      %v978 = vadd.f32 %v976, %v977
      %v979 = vrot.slane %v978, 2
      %v980 = vadd.f32 %v978, %v979
      %v981 = vrot.slane %v980, 1
      %v982 = vadd.f32 %v980, %v981
      %v983 = vadd.f32 %v597, %v605
      %v984 = vrot.slane %v983, 4
      %v985 = vadd.f32 %v983, %v984
      %v986 = vrot.slane %v985, 2
      %v987 = vadd.f32 %v985, %v986
      %v988 = vrot.slane %v987, 1
      %v989 = vadd.f32 %v987, %v988
      %v990 = vadd.f32 %v598, %v606
      %v991 = vrot.slane %v990, 4
      %v992 = vadd.f32 %v990, %v991
      %v993 = vrot.slane %v992, 2
      %v994 = vadd.f32 %v992, %v993
      %v995 = vrot.slane %v994, 1
      %v996 = vadd.f32 %v994, %v995
      %v997 = vadd.f32 %v599, %v607
      %v998 = vrot.slane %v997, 4
      %v999 = vadd.f32 %v997, %v998
      %v1000 = vrot.slane %v999, 2
      %v1001 = vadd.f32 %v999, %v1000
      %v1002 = vrot.slane %v1001, 1
      %v1003 = vadd.f32 %v1001, %v1002
      %v1004 = vadd.f32 %v600, %v608
      %v1005 = vrot.slane %v1004, 4
      %v1006 = vadd.f32 %v1004, %v1005
      %v1007 = vrot.slane %v1006, 2
      %v1008 = vadd.f32 %v1006, %v1007
      %v1009 = vrot.slane %v1008, 1
      %v1010 = vadd.f32 %v1008, %v1009
      %v1011 = vadd.f32 %v601, %v609
      %v1012 = vrot.slane %v1011, 4
      %v1013 = vadd.f32 %v1011, %v1012
      %v1014 = vrot.slane %v1013, 2
      %v1015 = vadd.f32 %v1013, %v1014
      %v1016 = vrot.slane %v1015, 1
      %v1017 = vadd.f32 %v1015, %v1016
      %v1018 = vadd.f32 %v610, %v618
      %v1019 = vrot.slane %v1018, 4
      %v1020 = vadd.f32 %v1018, %v1019
      %v1021 = vrot.slane %v1020, 2
      %v1022 = vadd.f32 %v1020, %v1021
      %v1023 = vrot.slane %v1022, 1
      %v1024 = vadd.f32 %v1022, %v1023
      %v1025 = vadd.f32 %v611, %v619
      %v1026 = vrot.slane %v1025, 4
      %v1027 = vadd.f32 %v1025, %v1026
      %v1028 = vrot.slane %v1027, 2
      %v1029 = vadd.f32 %v1027, %v1028
      %v1030 = vrot.slane %v1029, 1
      %v1031 = vadd.f32 %v1029, %v1030
      %v1032 = vadd.f32 %v612, %v620
      %v1033 = vrot.slane %v1032, 4
      %v1034 = vadd.f32 %v1032, %v1033
      %v1035 = vrot.slane %v1034, 2
      %v1036 = vadd.f32 %v1034, %v1035
      %v1037 = vrot.slane %v1036, 1
      %v1038 = vadd.f32 %v1036, %v1037
      %v1039 = vadd.f32 %v613, %v621
      %v1040 = vrot.slane %v1039, 4
      %v1041 = vadd.f32 %v1039, %v1040
      %v1042 = vrot.slane %v1041, 2
      %v1043 = vadd.f32 %v1041, %v1042
      %v1044 = vrot.slane %v1043, 1
      %v1045 = vadd.f32 %v1043, %v1044
      %v1046 = vadd.f32 %v614, %v622
      %v1047 = vrot.slane %v1046, 4
      %v1048 = vadd.f32 %v1046, %v1047
      %v1049 = vrot.slane %v1048, 2
      %v1050 = vadd.f32 %v1048, %v1049
      %v1051 = vrot.slane %v1050, 1
      %v1052 = vadd.f32 %v1050, %v1051
      %v1053 = vadd.f32 %v615, %v623
      %v1054 = vrot.slane %v1053, 4
      %v1055 = vadd.f32 %v1053, %v1054
      %v1056 = vrot.slane %v1055, 2
      %v1057 = vadd.f32 %v1055, %v1056
      %v1058 = vrot.slane %v1057, 1
      %v1059 = vadd.f32 %v1057, %v1058
      %v1060 = vadd.f32 %v616, %v624
      %v1061 = vrot.slane %v1060, 4
      %v1062 = vadd.f32 %v1060, %v1061
      %v1063 = vrot.slane %v1062, 2
      %v1064 = vadd.f32 %v1062, %v1063
      %v1065 = vrot.slane %v1064, 1
      %v1066 = vadd.f32 %v1064, %v1065
      %v1067 = vadd.f32 %v617, %v625
      %v1068 = vrot.slane %v1067, 4
      %v1069 = vadd.f32 %v1067, %v1068
      %v1070 = vrot.slane %v1069, 2
      %v1071 = vadd.f32 %v1069, %v1070
      %v1072 = vrot.slane %v1071, 1
      %v1073 = vadd.f32 %v1071, %v1072
      %vm1138 = vcmask 1041409
      %v1139 = vsel %vm1138, %v688, %v632
      %vm1140 = vcmask 1042434
      %v1141 = vsel %vm1140, %v744, %v1139
      %vm1142 = vcmask 1043459
      %v1143 = vsel %vm1142, %v800, %v1141
      %vm1144 = vcmask 1044484
      %v1145 = vsel %vm1144, %v856, %v1143
      %vm1146 = vcmask 1045509
      %v1147 = vsel %vm1146, %v912, %v1145
      %vm1148 = vcmask 1046534
      %v1149 = vsel %vm1148, %v968, %v1147
      %vm1150 = vcmask 1047559
      %v1151 = vsel %vm1150, %v1024, %v1149
      %v1152 = vsel %vm1138, %v695, %v639
      %v1153 = vsel %vm1140, %v751, %v1152
      %v1154 = vsel %vm1142, %v807, %v1153
      %v1155 = vsel %vm1144, %v863, %v1154
      %v1156 = vsel %vm1146, %v919, %v1155
      %v1157 = vsel %vm1148, %v975, %v1156
      %v1158 = vsel %vm1150, %v1031, %v1157
      %v1159 = vsel %vm1138, %v702, %v646
      %v1160 = vsel %vm1140, %v758, %v1159
      %v1161 = vsel %vm1142, %v814, %v1160
      %v1162 = vsel %vm1144, %v870, %v1161
      %v1163 = vsel %vm1146, %v926, %v1162
      %v1164 = vsel %vm1148, %v982, %v1163
      %v1165 = vsel %vm1150, %v1038, %v1164
      %v1166 = vsel %vm1138, %v709, %v653
      %v1167 = vsel %vm1140, %v765, %v1166
      %v1168 = vsel %vm1142, %v821, %v1167
      %v1169 = vsel %vm1144, %v877, %v1168
      %v1170 = vsel %vm1146, %v933, %v1169
      %v1171 = vsel %vm1148, %v989, %v1170
      %v1172 = vsel %vm1150, %v1045, %v1171
      %v1173 = vsel %vm1138, %v716, %v660
      %v1174 = vsel %vm1140, %v772, %v1173
      %v1175 = vsel %vm1142, %v828, %v1174
      %v1176 = vsel %vm1144, %v884, %v1175
      %v1177 = vsel %vm1146, %v940, %v1176
      %v1178 = vsel %vm1148, %v996, %v1177
      %v1179 = vsel %vm1150, %v1052, %v1178
      %v1180 = vsel %vm1138, %v723, %v667
      %v1181 = vsel %vm1140, %v779, %v1180
      %v1182 = vsel %vm1142, %v835, %v1181
      %v1183 = vsel %vm1144, %v891, %v1182
      %v1184 = vsel %vm1146, %v947, %v1183
      %v1185 = vsel %vm1148, %v1003, %v1184
      %v1186 = vsel %vm1150, %v1059, %v1185
      %v1187 = vsel %vm1138, %v730, %v674
      %v1188 = vsel %vm1140, %v786, %v1187
      %v1189 = vsel %vm1142, %v842, %v1188
      %v1190 = vsel %vm1144, %v898, %v1189
      %v1191 = vsel %vm1146, %v954, %v1190
      %v1192 = vsel %vm1148, %v1010, %v1191
      %v1193 = vsel %vm1150, %v1066, %v1192
      %v1194 = vsel %vm1138, %v737, %v681
      %v1195 = vsel %vm1140, %v793, %v1194
      %v1196 = vsel %vm1142, %v849, %v1195
      %v1197 = vsel %vm1144, %v905, %v1196
      %v1198 = vsel %vm1146, %v961, %v1197
      %v1199 = vsel %vm1148, %v1017, %v1198
      %v1200 = vsel %vm1150, %v1073, %v1199
      %v1209 = vadd.f32 %v410, %v1151
      %v1210 = vadd.f32 %v411, %v1158
      %v1211 = vadd.f32 %v412, %v1165
      %v1212 = vadd.f32 %v413, %v1172
      %v1213 = vadd.f32 %v414, %v1179
      %v1214 = vadd.f32 %v415, %v1186
      %v1215 = vadd.f32 %v416, %v1193
      %v1216 = vadd.f32 %v417, %v1200
      %1217 = vst [vmem:[#allocation2] sm:$0xff] %v1209
      %1218 = vst [vmem:[#allocation2 + $0x8] sm:$0xff] %v1210
      %1219 = vst [vmem:[#allocation2 + $0x10] sm:$0xff] %v1211
      %1220 = vst [vmem:[#allocation2 + $0x18] sm:$0xff] %v1212
      %1221 = vst [vmem:[#allocation2 + $0x20] sm:$0xff] %v1213
      %1222 = vst [vmem:[#allocation2 + $0x28] sm:$0xff] %v1214
      %1223 = vst [vmem:[#allocation2 + $0x30] sm:$0xff] %v1215
      %1224 = vst [vmem:[#allocation2 + $0x38] sm:$0xff] %v1216
    $region97: #{_forward_impl.1} parent=1 // pred_fallthru
      _
    // Predicated region
    $region98: #{_forward_impl.1} parent=1 // pred_check
      %p1225 = pneg %p233
    $region99: #{_forward_impl.1} parent=1 // pred_check_branch
      %1227 = sbr.rel (%p1225) target = $region101
    $region100: #{_forward_impl.1} parent=1 // pred_region
      %v1228 = vld [vmem:[#allocation2] sm:$0xff]
      %v1229 = vld [vmem:[#allocation2 + $0x8] sm:$0xff]
      %v1230 = vld [vmem:[#allocation2 + $0x10] sm:$0xff]
      %v1231 = vld [vmem:[#allocation2 + $0x18] sm:$0xff]
      %v1232 = vld [vmem:[#allocation2 + $0x20] sm:$0xff]
      %v1233 = vld [vmem:[#allocation2 + $0x28] sm:$0xff]
      %v1234 = vld [vmem:[#allocation2 + $0x30] sm:$0xff]
      %v1235 = vld [vmem:[#allocation2 + $0x38] sm:$0xff]
      %v1236 = vld [vmem:[%s3] sm:$0xff]
      %1238 = vset.pattern.permute.xlu0 0
      %1239 = vperm.xlu0 %1238, %v1236
      %v1240 = vpop.permute.xlu0 %1239
      %v1242 = vrcp.pop %v1240
      %v1243 = vmul.f32 %v1228, %v1242
      %v1244 = vmul.f32 %v1229, %v1242
      %v1245 = vmul.f32 %v1230, %v1242
      %v1246 = vmul.f32 %v1231, %v1242
      %v1247 = vmul.f32 %v1232, %v1242
      %v1248 = vmul.f32 %v1233, %v1242
      %v1249 = vmul.f32 %v1234, %v1242
      %v1250 = vmul.f32 %v1235, %v1242
      %v1251 = vld [vmem:[#allocation6] sm:$0xff]
      %v1252 = vld [vmem:[#allocation6 + $0x8] sm:$0xff]
      %v1253 = vld [vmem:[#allocation6 + $0x10] sm:$0xff]
      %v1254 = vld [vmem:[#allocation6 + $0x18] sm:$0xff]
      %v1255 = vld [vmem:[#allocation6 + $0x20] sm:$0xff]
      %v1256 = vld [vmem:[#allocation6 + $0x28] sm:$0xff]
      %v1257 = vld [vmem:[#allocation6 + $0x30] sm:$0xff]
      %v1258 = vld [vmem:[#allocation6 + $0x38] sm:$0xff]
      %v1259 = vld [vmem:[#allocation6 + $0x40] sm:$0xff]
      %v1260 = vld [vmem:[#allocation6 + $0x48] sm:$0xff]
      %v1261 = vld [vmem:[#allocation6 + $0x50] sm:$0xff]
      %v1262 = vld [vmem:[#allocation6 + $0x58] sm:$0xff]
      %v1263 = vld [vmem:[#allocation6 + $0x60] sm:$0xff]
      %v1264 = vld [vmem:[#allocation6 + $0x68] sm:$0xff]
      %v1265 = vld [vmem:[#allocation6 + $0x70] sm:$0xff]
      %v1266 = vld [vmem:[#allocation6 + $0x78] sm:$0xff]
      %v1267 = vld [vmem:[#allocation6 + $0x80] sm:$0xff]
      %v1268 = vld [vmem:[#allocation6 + $0x88] sm:$0xff]
      %v1269 = vld [vmem:[#allocation6 + $0x90] sm:$0xff]
      %v1270 = vld [vmem:[#allocation6 + $0x98] sm:$0xff]
      %v1271 = vld [vmem:[#allocation6 + $0xa0] sm:$0xff]
      %v1272 = vld [vmem:[#allocation6 + $0xa8] sm:$0xff]
      %v1273 = vld [vmem:[#allocation6 + $0xb0] sm:$0xff]
      %v1274 = vld [vmem:[#allocation6 + $0xb8] sm:$0xff]
      %v1275 = vld [vmem:[#allocation6 + $0xc0] sm:$0xff]
      %v1276 = vld [vmem:[#allocation6 + $0xc8] sm:$0xff]
      %v1277 = vld [vmem:[#allocation6 + $0xd0] sm:$0xff]
      %v1278 = vld [vmem:[#allocation6 + $0xd8] sm:$0xff]
      %v1279 = vld [vmem:[#allocation6 + $0xe0] sm:$0xff]
      %v1280 = vld [vmem:[#allocation6 + $0xe8] sm:$0xff]
      %v1281 = vld [vmem:[#allocation6 + $0xf0] sm:$0xff]
      %v1282 = vld [vmem:[#allocation6 + $0xf8] sm:$0xff]
      %v1283 = vld [vmem:[#allocation6 + $0x100] sm:$0xff]
      %v1284 = vld [vmem:[#allocation6 + $0x108] sm:$0xff]
      %v1285 = vld [vmem:[#allocation6 + $0x110] sm:$0xff]
      %v1286 = vld [vmem:[#allocation6 + $0x118] sm:$0xff]
      %v1287 = vld [vmem:[#allocation6 + $0x120] sm:$0xff]
      %v1288 = vld [vmem:[#allocation6 + $0x128] sm:$0xff]
      %v1289 = vld [vmem:[#allocation6 + $0x130] sm:$0xff]
      %v1290 = vld [vmem:[#allocation6 + $0x138] sm:$0xff]
      %v1291 = vld [vmem:[#allocation6 + $0x140] sm:$0xff]
      %v1292 = vld [vmem:[#allocation6 + $0x148] sm:$0xff]
      %v1293 = vld [vmem:[#allocation6 + $0x150] sm:$0xff]
      %v1294 = vld [vmem:[#allocation6 + $0x158] sm:$0xff]
      %v1295 = vld [vmem:[#allocation6 + $0x160] sm:$0xff]
      %v1296 = vld [vmem:[#allocation6 + $0x168] sm:$0xff]
      %v1297 = vld [vmem:[#allocation6 + $0x170] sm:$0xff]
      %v1298 = vld [vmem:[#allocation6 + $0x178] sm:$0xff]
      %v1299 = vld [vmem:[#allocation6 + $0x180] sm:$0xff]
      %v1300 = vld [vmem:[#allocation6 + $0x188] sm:$0xff]
      %v1301 = vld [vmem:[#allocation6 + $0x190] sm:$0xff]
      %v1302 = vld [vmem:[#allocation6 + $0x198] sm:$0xff]
      %v1303 = vld [vmem:[#allocation6 + $0x1a0] sm:$0xff]
      %v1304 = vld [vmem:[#allocation6 + $0x1a8] sm:$0xff]
      %v1305 = vld [vmem:[#allocation6 + $0x1b0] sm:$0xff]
      %v1306 = vld [vmem:[#allocation6 + $0x1b8] sm:$0xff]
      %v1307 = vld [vmem:[#allocation6 + $0x1c0] sm:$0xff]
      %v1308 = vld [vmem:[#allocation6 + $0x1c8] sm:$0xff]
      %v1309 = vld [vmem:[#allocation6 + $0x1d0] sm:$0xff]
      %v1310 = vld [vmem:[#allocation6 + $0x1d8] sm:$0xff]
      %v1311 = vld [vmem:[#allocation6 + $0x1e0] sm:$0xff]
      %v1312 = vld [vmem:[#allocation6 + $0x1e8] sm:$0xff]
      %v1313 = vld [vmem:[#allocation6 + $0x1f0] sm:$0xff]
      %v1314 = vld [vmem:[#allocation6 + $0x1f8] sm:$0xff]
      %v1315 = vld [vmem:[#allocation6 + $0x200] sm:$0xff]
      %v1316 = vld [vmem:[#allocation6 + $0x208] sm:$0xff]
      %v1317 = vld [vmem:[#allocation6 + $0x210] sm:$0xff]
      %v1318 = vld [vmem:[#allocation6 + $0x218] sm:$0xff]
      %v1319 = vld [vmem:[#allocation6 + $0x220] sm:$0xff]
      %v1320 = vld [vmem:[#allocation6 + $0x228] sm:$0xff]
      %v1321 = vld [vmem:[#allocation6 + $0x230] sm:$0xff]
      %v1322 = vld [vmem:[#allocation6 + $0x238] sm:$0xff]
      %v1323 = vld [vmem:[#allocation6 + $0x240] sm:$0xff]
      %v1324 = vld [vmem:[#allocation6 + $0x248] sm:$0xff]
      %v1325 = vld [vmem:[#allocation6 + $0x250] sm:$0xff]
      %v1326 = vld [vmem:[#allocation6 + $0x258] sm:$0xff]
      %v1327 = vld [vmem:[#allocation6 + $0x260] sm:$0xff]
      %v1328 = vld [vmem:[#allocation6 + $0x268] sm:$0xff]
      %v1329 = vld [vmem:[#allocation6 + $0x270] sm:$0xff]
      %v1330 = vld [vmem:[#allocation6 + $0x278] sm:$0xff]
      %v1331 = vld [vmem:[#allocation6 + $0x280] sm:$0xff]
      %v1332 = vld [vmem:[#allocation6 + $0x288] sm:$0xff]
      %v1333 = vld [vmem:[#allocation6 + $0x290] sm:$0xff]
      %v1334 = vld [vmem:[#allocation6 + $0x298] sm:$0xff]
      %v1335 = vld [vmem:[#allocation6 + $0x2a0] sm:$0xff]
      %v1336 = vld [vmem:[#allocation6 + $0x2a8] sm:$0xff]
      %v1337 = vld [vmem:[#allocation6 + $0x2b0] sm:$0xff]
      %v1338 = vld [vmem:[#allocation6 + $0x2b8] sm:$0xff]
      %v1339 = vld [vmem:[#allocation6 + $0x2c0] sm:$0xff]
      %v1340 = vld [vmem:[#allocation6 + $0x2c8] sm:$0xff]
      %v1341 = vld [vmem:[#allocation6 + $0x2d0] sm:$0xff]
      %v1342 = vld [vmem:[#allocation6 + $0x2d8] sm:$0xff]
      %v1343 = vld [vmem:[#allocation6 + $0x2e0] sm:$0xff]
      %v1344 = vld [vmem:[#allocation6 + $0x2e8] sm:$0xff]
      %v1345 = vld [vmem:[#allocation6 + $0x2f0] sm:$0xff]
      %v1346 = vld [vmem:[#allocation6 + $0x2f8] sm:$0xff]
      %v1347 = vld [vmem:[#allocation6 + $0x300] sm:$0xff]
      %v1348 = vld [vmem:[#allocation6 + $0x308] sm:$0xff]
      %v1349 = vld [vmem:[#allocation6 + $0x310] sm:$0xff]
      %v1350 = vld [vmem:[#allocation6 + $0x318] sm:$0xff]
      %v1351 = vld [vmem:[#allocation6 + $0x320] sm:$0xff]
      %v1352 = vld [vmem:[#allocation6 + $0x328] sm:$0xff]
      %v1353 = vld [vmem:[#allocation6 + $0x330] sm:$0xff]
      %v1354 = vld [vmem:[#allocation6 + $0x338] sm:$0xff]
      %v1355 = vld [vmem:[#allocation6 + $0x340] sm:$0xff]
      %v1356 = vld [vmem:[#allocation6 + $0x348] sm:$0xff]
      %v1357 = vld [vmem:[#allocation6 + $0x350] sm:$0xff]
      %v1358 = vld [vmem:[#allocation6 + $0x358] sm:$0xff]
      %v1359 = vld [vmem:[#allocation6 + $0x360] sm:$0xff]
      %v1360 = vld [vmem:[#allocation6 + $0x368] sm:$0xff]
      %v1361 = vld [vmem:[#allocation6 + $0x370] sm:$0xff]
      %v1362 = vld [vmem:[#allocation6 + $0x378] sm:$0xff]
      %v1363 = vld [vmem:[#allocation6 + $0x380] sm:$0xff]
      %v1364 = vld [vmem:[#allocation6 + $0x388] sm:$0xff]
      %v1365 = vld [vmem:[#allocation6 + $0x390] sm:$0xff]
      %v1366 = vld [vmem:[#allocation6 + $0x398] sm:$0xff]
      %v1367 = vld [vmem:[#allocation6 + $0x3a0] sm:$0xff]
      %v1368 = vld [vmem:[#allocation6 + $0x3a8] sm:$0xff]
      %v1369 = vld [vmem:[#allocation6 + $0x3b0] sm:$0xff]
      %v1370 = vld [vmem:[#allocation6 + $0x3b8] sm:$0xff]
      %v1371 = vld [vmem:[#allocation6 + $0x3c0] sm:$0xff]
      %v1372 = vld [vmem:[#allocation6 + $0x3c8] sm:$0xff]
      %v1373 = vld [vmem:[#allocation6 + $0x3d0] sm:$0xff]
      %v1374 = vld [vmem:[#allocation6 + $0x3d8] sm:$0xff]
      %v1375 = vld [vmem:[#allocation6 + $0x3e0] sm:$0xff]
      %v1376 = vld [vmem:[#allocation6 + $0x3e8] sm:$0xff]
      %v1377 = vld [vmem:[#allocation6 + $0x3f0] sm:$0xff]
      %v1378 = vld [vmem:[#allocation6 + $0x3f8] sm:$0xff]
      %v1379 = vld [vmem:[#allocation6 + $0x400] sm:$0xff]
      %v1380 = vld [vmem:[#allocation6 + $0x408] sm:$0xff]
      %v1381 = vld [vmem:[#allocation6 + $0x410] sm:$0xff]
      %v1382 = vld [vmem:[#allocation6 + $0x418] sm:$0xff]
      %v1383 = vld [vmem:[#allocation6 + $0x420] sm:$0xff]
      %v1384 = vld [vmem:[#allocation6 + $0x428] sm:$0xff]
      %v1385 = vld [vmem:[#allocation6 + $0x430] sm:$0xff]
      %v1386 = vld [vmem:[#allocation6 + $0x438] sm:$0xff]
      %v1387 = vld [vmem:[#allocation6 + $0x440] sm:$0xff]
      %v1388 = vld [vmem:[#allocation6 + $0x448] sm:$0xff]
      %v1389 = vld [vmem:[#allocation6 + $0x450] sm:$0xff]
      %v1390 = vld [vmem:[#allocation6 + $0x458] sm:$0xff]
      %v1391 = vld [vmem:[#allocation6 + $0x460] sm:$0xff]
      %v1392 = vld [vmem:[#allocation6 + $0x468] sm:$0xff]
      %v1393 = vld [vmem:[#allocation6 + $0x470] sm:$0xff]
      %v1394 = vld [vmem:[#allocation6 + $0x478] sm:$0xff]
      %v1395 = vld [vmem:[#allocation6 + $0x480] sm:$0xff]
      %v1396 = vld [vmem:[#allocation6 + $0x488] sm:$0xff]
      %v1397 = vld [vmem:[#allocation6 + $0x490] sm:$0xff]
      %v1398 = vld [vmem:[#allocation6 + $0x498] sm:$0xff]
      %v1399 = vld [vmem:[#allocation6 + $0x4a0] sm:$0xff]
      %v1400 = vld [vmem:[#allocation6 + $0x4a8] sm:$0xff]
      %v1401 = vld [vmem:[#allocation6 + $0x4b0] sm:$0xff]
      %v1402 = vld [vmem:[#allocation6 + $0x4b8] sm:$0xff]
      %v1403 = vld [vmem:[#allocation6 + $0x4c0] sm:$0xff]
      %v1404 = vld [vmem:[#allocation6 + $0x4c8] sm:$0xff]
      %v1405 = vld [vmem:[#allocation6 + $0x4d0] sm:$0xff]
      %v1406 = vld [vmem:[#allocation6 + $0x4d8] sm:$0xff]
      %v1407 = vld [vmem:[#allocation6 + $0x4e0] sm:$0xff]
      %v1408 = vld [vmem:[#allocation6 + $0x4e8] sm:$0xff]
      %v1409 = vld [vmem:[#allocation6 + $0x4f0] sm:$0xff]
      %v1410 = vld [vmem:[#allocation6 + $0x4f8] sm:$0xff]
      %v1411 = vld [vmem:[#allocation6 + $0x500] sm:$0xff]
      %v1412 = vld [vmem:[#allocation6 + $0x508] sm:$0xff]
      %v1413 = vld [vmem:[#allocation6 + $0x510] sm:$0xff]
      %v1414 = vld [vmem:[#allocation6 + $0x518] sm:$0xff]
      %v1415 = vld [vmem:[#allocation6 + $0x520] sm:$0xff]
      %v1416 = vld [vmem:[#allocation6 + $0x528] sm:$0xff]
      %v1417 = vld [vmem:[#allocation6 + $0x530] sm:$0xff]
      %v1418 = vld [vmem:[#allocation6 + $0x538] sm:$0xff]
      %v1419 = vld [vmem:[#allocation6 + $0x540] sm:$0xff]
      %v1420 = vld [vmem:[#allocation6 + $0x548] sm:$0xff]
      %v1421 = vld [vmem:[#allocation6 + $0x550] sm:$0xff]
      %v1422 = vld [vmem:[#allocation6 + $0x558] sm:$0xff]
      %v1423 = vld [vmem:[#allocation6 + $0x560] sm:$0xff]
      %v1424 = vld [vmem:[#allocation6 + $0x568] sm:$0xff]
      %v1425 = vld [vmem:[#allocation6 + $0x570] sm:$0xff]
      %v1426 = vld [vmem:[#allocation6 + $0x578] sm:$0xff]
      %v1427 = vld [vmem:[#allocation6 + $0x580] sm:$0xff]
      %v1428 = vld [vmem:[#allocation6 + $0x588] sm:$0xff]
      %v1429 = vld [vmem:[#allocation6 + $0x590] sm:$0xff]
      %v1430 = vld [vmem:[#allocation6 + $0x598] sm:$0xff]
      %v1431 = vld [vmem:[#allocation6 + $0x5a0] sm:$0xff]
      %v1432 = vld [vmem:[#allocation6 + $0x5a8] sm:$0xff]
      %v1433 = vld [vmem:[#allocation6 + $0x5b0] sm:$0xff]
      %v1434 = vld [vmem:[#allocation6 + $0x5b8] sm:$0xff]
      %v1435 = vld [vmem:[#allocation6 + $0x5c0] sm:$0xff]
      %v1436 = vld [vmem:[#allocation6 + $0x5c8] sm:$0xff]
      %v1437 = vld [vmem:[#allocation6 + $0x5d0] sm:$0xff]
      %v1438 = vld [vmem:[#allocation6 + $0x5d8] sm:$0xff]
      %v1439 = vld [vmem:[#allocation6 + $0x5e0] sm:$0xff]
      %v1440 = vld [vmem:[#allocation6 + $0x5e8] sm:$0xff]
      %v1441 = vld [vmem:[#allocation6 + $0x5f0] sm:$0xff]
      %v1442 = vld [vmem:[#allocation6 + $0x5f8] sm:$0xff]
      %v1443 = vld [vmem:[#allocation6 + $0x600] sm:$0xff]
      %v1444 = vld [vmem:[#allocation6 + $0x608] sm:$0xff]
      %v1445 = vld [vmem:[#allocation6 + $0x610] sm:$0xff]
      %v1446 = vld [vmem:[#allocation6 + $0x618] sm:$0xff]
      %v1447 = vld [vmem:[#allocation6 + $0x620] sm:$0xff]
      %v1448 = vld [vmem:[#allocation6 + $0x628] sm:$0xff]
      %v1449 = vld [vmem:[#allocation6 + $0x630] sm:$0xff]
      %v1450 = vld [vmem:[#allocation6 + $0x638] sm:$0xff]
      %v1451 = vld [vmem:[#allocation6 + $0x640] sm:$0xff]
      %v1452 = vld [vmem:[#allocation6 + $0x648] sm:$0xff]
      %v1453 = vld [vmem:[#allocation6 + $0x650] sm:$0xff]
      %v1454 = vld [vmem:[#allocation6 + $0x658] sm:$0xff]
      %v1455 = vld [vmem:[#allocation6 + $0x660] sm:$0xff]
      %v1456 = vld [vmem:[#allocation6 + $0x668] sm:$0xff]
      %v1457 = vld [vmem:[#allocation6 + $0x670] sm:$0xff]
      %v1458 = vld [vmem:[#allocation6 + $0x678] sm:$0xff]
      %v1459 = vld [vmem:[#allocation6 + $0x680] sm:$0xff]
      %v1460 = vld [vmem:[#allocation6 + $0x688] sm:$0xff]
      %v1461 = vld [vmem:[#allocation6 + $0x690] sm:$0xff]
      %v1462 = vld [vmem:[#allocation6 + $0x698] sm:$0xff]
      %v1463 = vld [vmem:[#allocation6 + $0x6a0] sm:$0xff]
      %v1464 = vld [vmem:[#allocation6 + $0x6a8] sm:$0xff]
      %v1465 = vld [vmem:[#allocation6 + $0x6b0] sm:$0xff]
      %v1466 = vld [vmem:[#allocation6 + $0x6b8] sm:$0xff]
      %v1467 = vld [vmem:[#allocation6 + $0x6c0] sm:$0xff]
      %v1468 = vld [vmem:[#allocation6 + $0x6c8] sm:$0xff]
      %v1469 = vld [vmem:[#allocation6 + $0x6d0] sm:$0xff]
      %v1470 = vld [vmem:[#allocation6 + $0x6d8] sm:$0xff]
      %v1471 = vld [vmem:[#allocation6 + $0x6e0] sm:$0xff]
      %v1472 = vld [vmem:[#allocation6 + $0x6e8] sm:$0xff]
      %v1473 = vld [vmem:[#allocation6 + $0x6f0] sm:$0xff]
      %v1474 = vld [vmem:[#allocation6 + $0x6f8] sm:$0xff]
      %v1475 = vld [vmem:[#allocation6 + $0x700] sm:$0xff]
      %v1476 = vld [vmem:[#allocation6 + $0x708] sm:$0xff]
      %v1477 = vld [vmem:[#allocation6 + $0x710] sm:$0xff]
      %v1478 = vld [vmem:[#allocation6 + $0x718] sm:$0xff]
      %v1479 = vld [vmem:[#allocation6 + $0x720] sm:$0xff]
      %v1480 = vld [vmem:[#allocation6 + $0x728] sm:$0xff]
      %v1481 = vld [vmem:[#allocation6 + $0x730] sm:$0xff]
      %v1482 = vld [vmem:[#allocation6 + $0x738] sm:$0xff]
      %v1483 = vld [vmem:[#allocation6 + $0x740] sm:$0xff]
      %v1484 = vld [vmem:[#allocation6 + $0x748] sm:$0xff]
      %v1485 = vld [vmem:[#allocation6 + $0x750] sm:$0xff]
      %v1486 = vld [vmem:[#allocation6 + $0x758] sm:$0xff]
      %v1487 = vld [vmem:[#allocation6 + $0x760] sm:$0xff]
      %v1488 = vld [vmem:[#allocation6 + $0x768] sm:$0xff]
      %v1489 = vld [vmem:[#allocation6 + $0x770] sm:$0xff]
      %v1490 = vld [vmem:[#allocation6 + $0x778] sm:$0xff]
      %v1491 = vld [vmem:[#allocation6 + $0x780] sm:$0xff]
      %v1492 = vld [vmem:[#allocation6 + $0x788] sm:$0xff]
      %v1493 = vld [vmem:[#allocation6 + $0x790] sm:$0xff]
      %v1494 = vld [vmem:[#allocation6 + $0x798] sm:$0xff]
      %v1495 = vld [vmem:[#allocation6 + $0x7a0] sm:$0xff]
      %v1496 = vld [vmem:[#allocation6 + $0x7a8] sm:$0xff]
      %v1497 = vld [vmem:[#allocation6 + $0x7b0] sm:$0xff]
      %v1498 = vld [vmem:[#allocation6 + $0x7b8] sm:$0xff]
      %v1499 = vld [vmem:[#allocation6 + $0x7c0] sm:$0xff]
      %v1500 = vld [vmem:[#allocation6 + $0x7c8] sm:$0xff]
      %v1501 = vld [vmem:[#allocation6 + $0x7d0] sm:$0xff]
      %v1502 = vld [vmem:[#allocation6 + $0x7d8] sm:$0xff]
      %v1503 = vld [vmem:[#allocation6 + $0x7e0] sm:$0xff]
      %v1504 = vld [vmem:[#allocation6 + $0x7e8] sm:$0xff]
      %v1505 = vld [vmem:[#allocation6 + $0x7f0] sm:$0xff]
      %v1506 = vld [vmem:[#allocation6 + $0x7f8] sm:$0xff]
      %v1507 = vld [vmem:[#allocation6 + $0x800] sm:$0xff]
      %v1508 = vld [vmem:[#allocation6 + $0x808] sm:$0xff]
      %v1509 = vld [vmem:[#allocation6 + $0x810] sm:$0xff]
      %v1510 = vld [vmem:[#allocation6 + $0x818] sm:$0xff]
      %v1511 = vld [vmem:[#allocation6 + $0x820] sm:$0xff]
      %v1512 = vld [vmem:[#allocation6 + $0x828] sm:$0xff]
      %v1513 = vld [vmem:[#allocation6 + $0x830] sm:$0xff]
      %v1514 = vld [vmem:[#allocation6 + $0x838] sm:$0xff]
      %v1515 = vld [vmem:[#allocation6 + $0x840] sm:$0xff]
      %v1516 = vld [vmem:[#allocation6 + $0x848] sm:$0xff]
      %v1517 = vld [vmem:[#allocation6 + $0x850] sm:$0xff]
      %v1518 = vld [vmem:[#allocation6 + $0x858] sm:$0xff]
      %v1519 = vld [vmem:[#allocation6 + $0x860] sm:$0xff]
      %v1520 = vld [vmem:[#allocation6 + $0x868] sm:$0xff]
      %v1521 = vld [vmem:[#allocation6 + $0x870] sm:$0xff]
      %v1522 = vld [vmem:[#allocation6 + $0x878] sm:$0xff]
      %v1523 = vld [vmem:[#allocation6 + $0x880] sm:$0xff]
      %v1524 = vld [vmem:[#allocation6 + $0x888] sm:$0xff]
      %v1525 = vld [vmem:[#allocation6 + $0x890] sm:$0xff]
      %v1526 = vld [vmem:[#allocation6 + $0x898] sm:$0xff]
      %v1527 = vld [vmem:[#allocation6 + $0x8a0] sm:$0xff]
      %v1528 = vld [vmem:[#allocation6 + $0x8a8] sm:$0xff]
      %v1529 = vld [vmem:[#allocation6 + $0x8b0] sm:$0xff]
      %v1530 = vld [vmem:[#allocation6 + $0x8b8] sm:$0xff]
      %v1531 = vld [vmem:[#allocation6 + $0x8c0] sm:$0xff]
      %v1532 = vld [vmem:[#allocation6 + $0x8c8] sm:$0xff]
      %v1533 = vld [vmem:[#allocation6 + $0x8d0] sm:$0xff]
      %v1534 = vld [vmem:[#allocation6 + $0x8d8] sm:$0xff]
      %v1535 = vld [vmem:[#allocation6 + $0x8e0] sm:$0xff]
      %v1536 = vld [vmem:[#allocation6 + $0x8e8] sm:$0xff]
      %v1537 = vld [vmem:[#allocation6 + $0x8f0] sm:$0xff]
      %v1538 = vld [vmem:[#allocation6 + $0x8f8] sm:$0xff]
      %v1539 = vld [vmem:[#allocation6 + $0x900] sm:$0xff]
      %v1540 = vld [vmem:[#allocation6 + $0x908] sm:$0xff]
      %v1541 = vld [vmem:[#allocation6 + $0x910] sm:$0xff]
      %v1542 = vld [vmem:[#allocation6 + $0x918] sm:$0xff]
      %v1543 = vld [vmem:[#allocation6 + $0x920] sm:$0xff]
      %v1544 = vld [vmem:[#allocation6 + $0x928] sm:$0xff]
      %v1545 = vld [vmem:[#allocation6 + $0x930] sm:$0xff]
      %v1546 = vld [vmem:[#allocation6 + $0x938] sm:$0xff]
      %v1547 = vld [vmem:[#allocation6 + $0x940] sm:$0xff]
      %v1548 = vld [vmem:[#allocation6 + $0x948] sm:$0xff]
      %v1549 = vld [vmem:[#allocation6 + $0x950] sm:$0xff]
      %v1550 = vld [vmem:[#allocation6 + $0x958] sm:$0xff]
      %v1551 = vld [vmem:[#allocation6 + $0x960] sm:$0xff]
      %v1552 = vld [vmem:[#allocation6 + $0x968] sm:$0xff]
      %v1553 = vld [vmem:[#allocation6 + $0x970] sm:$0xff]
      %v1554 = vld [vmem:[#allocation6 + $0x978] sm:$0xff]
      %v1555 = vld [vmem:[#allocation6 + $0x980] sm:$0xff]
      %v1556 = vld [vmem:[#allocation6 + $0x988] sm:$0xff]
      %v1557 = vld [vmem:[#allocation6 + $0x990] sm:$0xff]
      %v1558 = vld [vmem:[#allocation6 + $0x998] sm:$0xff]
      %v1559 = vld [vmem:[#allocation6 + $0x9a0] sm:$0xff]
      %v1560 = vld [vmem:[#allocation6 + $0x9a8] sm:$0xff]
      %v1561 = vld [vmem:[#allocation6 + $0x9b0] sm:$0xff]
      %v1562 = vld [vmem:[#allocation6 + $0x9b8] sm:$0xff]
      %v1563 = vld [vmem:[#allocation6 + $0x9c0] sm:$0xff]
      %v1564 = vld [vmem:[#allocation6 + $0x9c8] sm:$0xff]
      %v1565 = vld [vmem:[#allocation6 + $0x9d0] sm:$0xff]
      %v1566 = vld [vmem:[#allocation6 + $0x9d8] sm:$0xff]
      %v1567 = vld [vmem:[#allocation6 + $0x9e0] sm:$0xff]
      %v1568 = vld [vmem:[#allocation6 + $0x9e8] sm:$0xff]
      %v1569 = vld [vmem:[#allocation6 + $0x9f0] sm:$0xff]
      %v1570 = vld [vmem:[#allocation6 + $0x9f8] sm:$0xff]
      %v1571 = vld [vmem:[#allocation6 + $0xa00] sm:$0xff]
      %v1572 = vld [vmem:[#allocation6 + $0xa08] sm:$0xff]
      %v1573 = vld [vmem:[#allocation6 + $0xa10] sm:$0xff]
      %v1574 = vld [vmem:[#allocation6 + $0xa18] sm:$0xff]
      %v1575 = vld [vmem:[#allocation6 + $0xa20] sm:$0xff]
      %v1576 = vld [vmem:[#allocation6 + $0xa28] sm:$0xff]
      %v1577 = vld [vmem:[#allocation6 + $0xa30] sm:$0xff]
      %v1578 = vld [vmem:[#allocation6 + $0xa38] sm:$0xff]
      %v1579 = vld [vmem:[#allocation6 + $0xa40] sm:$0xff]
      %v1580 = vld [vmem:[#allocation6 + $0xa48] sm:$0xff]
      %v1581 = vld [vmem:[#allocation6 + $0xa50] sm:$0xff]
      %v1582 = vld [vmem:[#allocation6 + $0xa58] sm:$0xff]
      %v1583 = vld [vmem:[#allocation6 + $0xa60] sm:$0xff]
      %v1584 = vld [vmem:[#allocation6 + $0xa68] sm:$0xff]
      %v1585 = vld [vmem:[#allocation6 + $0xa70] sm:$0xff]
      %v1586 = vld [vmem:[#allocation6 + $0xa78] sm:$0xff]
      %v1587 = vld [vmem:[#allocation6 + $0xa80] sm:$0xff]
      %v1588 = vld [vmem:[#allocation6 + $0xa88] sm:$0xff]
      %v1589 = vld [vmem:[#allocation6 + $0xa90] sm:$0xff]
      %v1590 = vld [vmem:[#allocation6 + $0xa98] sm:$0xff]
      %v1591 = vld [vmem:[#allocation6 + $0xaa0] sm:$0xff]
      %v1592 = vld [vmem:[#allocation6 + $0xaa8] sm:$0xff]
      %v1593 = vld [vmem:[#allocation6 + $0xab0] sm:$0xff]
      %v1594 = vld [vmem:[#allocation6 + $0xab8] sm:$0xff]
      %v1595 = vld [vmem:[#allocation6 + $0xac0] sm:$0xff]
      %v1596 = vld [vmem:[#allocation6 + $0xac8] sm:$0xff]
      %v1597 = vld [vmem:[#allocation6 + $0xad0] sm:$0xff]
      %v1598 = vld [vmem:[#allocation6 + $0xad8] sm:$0xff]
      %v1599 = vld [vmem:[#allocation6 + $0xae0] sm:$0xff]
      %v1600 = vld [vmem:[#allocation6 + $0xae8] sm:$0xff]
      %v1601 = vld [vmem:[#allocation6 + $0xaf0] sm:$0xff]
      %v1602 = vld [vmem:[#allocation6 + $0xaf8] sm:$0xff]
      %v1603 = vld [vmem:[#allocation6 + $0xb00] sm:$0xff]
      %v1604 = vld [vmem:[#allocation6 + $0xb08] sm:$0xff]
      %v1605 = vld [vmem:[#allocation6 + $0xb10] sm:$0xff]
      %v1606 = vld [vmem:[#allocation6 + $0xb18] sm:$0xff]
      %v1607 = vld [vmem:[#allocation6 + $0xb20] sm:$0xff]
      %v1608 = vld [vmem:[#allocation6 + $0xb28] sm:$0xff]
      %v1609 = vld [vmem:[#allocation6 + $0xb30] sm:$0xff]
      %v1610 = vld [vmem:[#allocation6 + $0xb38] sm:$0xff]
      %v1611 = vld [vmem:[#allocation6 + $0xb40] sm:$0xff]
      %v1612 = vld [vmem:[#allocation6 + $0xb48] sm:$0xff]
      %v1613 = vld [vmem:[#allocation6 + $0xb50] sm:$0xff]
      %v1614 = vld [vmem:[#allocation6 + $0xb58] sm:$0xff]
      %v1615 = vld [vmem:[#allocation6 + $0xb60] sm:$0xff]
      %v1616 = vld [vmem:[#allocation6 + $0xb68] sm:$0xff]
      %v1617 = vld [vmem:[#allocation6 + $0xb70] sm:$0xff]
      %v1618 = vld [vmem:[#allocation6 + $0xb78] sm:$0xff]
      %v1619 = vld [vmem:[#allocation6 + $0xb80] sm:$0xff]
      %v1620 = vld [vmem:[#allocation6 + $0xb88] sm:$0xff]
      %v1621 = vld [vmem:[#allocation6 + $0xb90] sm:$0xff]
      %v1622 = vld [vmem:[#allocation6 + $0xb98] sm:$0xff]
      %v1623 = vld [vmem:[#allocation6 + $0xba0] sm:$0xff]
      %v1624 = vld [vmem:[#allocation6 + $0xba8] sm:$0xff]
      %v1625 = vld [vmem:[#allocation6 + $0xbb0] sm:$0xff]
      %v1626 = vld [vmem:[#allocation6 + $0xbb8] sm:$0xff]
      %v1627 = vld [vmem:[#allocation6 + $0xbc0] sm:$0xff]
      %v1628 = vld [vmem:[#allocation6 + $0xbc8] sm:$0xff]
      %v1629 = vld [vmem:[#allocation6 + $0xbd0] sm:$0xff]
      %v1630 = vld [vmem:[#allocation6 + $0xbd8] sm:$0xff]
      %v1631 = vld [vmem:[#allocation6 + $0xbe0] sm:$0xff]
      %v1632 = vld [vmem:[#allocation6 + $0xbe8] sm:$0xff]
      %v1633 = vld [vmem:[#allocation6 + $0xbf0] sm:$0xff]
      %v1634 = vld [vmem:[#allocation6 + $0xbf8] sm:$0xff]
      %v1635 = vld [vmem:[#allocation6 + $0xc00] sm:$0xff]
      %v1636 = vld [vmem:[#allocation6 + $0xc08] sm:$0xff]
      %v1637 = vld [vmem:[#allocation6 + $0xc10] sm:$0xff]
      %v1638 = vld [vmem:[#allocation6 + $0xc18] sm:$0xff]
      %v1639 = vld [vmem:[#allocation6 + $0xc20] sm:$0xff]
      %v1640 = vld [vmem:[#allocation6 + $0xc28] sm:$0xff]
      %v1641 = vld [vmem:[#allocation6 + $0xc30] sm:$0xff]
      %v1642 = vld [vmem:[#allocation6 + $0xc38] sm:$0xff]
      %v1643 = vld [vmem:[#allocation6 + $0xc40] sm:$0xff]
      %v1644 = vld [vmem:[#allocation6 + $0xc48] sm:$0xff]
      %v1645 = vld [vmem:[#allocation6 + $0xc50] sm:$0xff]
      %v1646 = vld [vmem:[#allocation6 + $0xc58] sm:$0xff]
      %v1647 = vld [vmem:[#allocation6 + $0xc60] sm:$0xff]
      %v1648 = vld [vmem:[#allocation6 + $0xc68] sm:$0xff]
      %v1649 = vld [vmem:[#allocation6 + $0xc70] sm:$0xff]
      %v1650 = vld [vmem:[#allocation6 + $0xc78] sm:$0xff]
      %v1651 = vld [vmem:[#allocation6 + $0xc80] sm:$0xff]
      %v1652 = vld [vmem:[#allocation6 + $0xc88] sm:$0xff]
      %v1653 = vld [vmem:[#allocation6 + $0xc90] sm:$0xff]
      %v1654 = vld [vmem:[#allocation6 + $0xc98] sm:$0xff]
      %v1655 = vld [vmem:[#allocation6 + $0xca0] sm:$0xff]
      %v1656 = vld [vmem:[#allocation6 + $0xca8] sm:$0xff]
      %v1657 = vld [vmem:[#allocation6 + $0xcb0] sm:$0xff]
      %v1658 = vld [vmem:[#allocation6 + $0xcb8] sm:$0xff]
      %v1659 = vld [vmem:[#allocation6 + $0xcc0] sm:$0xff]
      %v1660 = vld [vmem:[#allocation6 + $0xcc8] sm:$0xff]
      %v1661 = vld [vmem:[#allocation6 + $0xcd0] sm:$0xff]
      %v1662 = vld [vmem:[#allocation6 + $0xcd8] sm:$0xff]
      %v1663 = vld [vmem:[#allocation6 + $0xce0] sm:$0xff]
      %v1664 = vld [vmem:[#allocation6 + $0xce8] sm:$0xff]
      %v1665 = vld [vmem:[#allocation6 + $0xcf0] sm:$0xff]
      %v1666 = vld [vmem:[#allocation6 + $0xcf8] sm:$0xff]
      %v1667 = vld [vmem:[#allocation6 + $0xd00] sm:$0xff]
      %v1668 = vld [vmem:[#allocation6 + $0xd08] sm:$0xff]
      %v1669 = vld [vmem:[#allocation6 + $0xd10] sm:$0xff]
      %v1670 = vld [vmem:[#allocation6 + $0xd18] sm:$0xff]
      %v1671 = vld [vmem:[#allocation6 + $0xd20] sm:$0xff]
      %v1672 = vld [vmem:[#allocation6 + $0xd28] sm:$0xff]
      %v1673 = vld [vmem:[#allocation6 + $0xd30] sm:$0xff]
      %v1674 = vld [vmem:[#allocation6 + $0xd38] sm:$0xff]
      %v1675 = vld [vmem:[#allocation6 + $0xd40] sm:$0xff]
      %v1676 = vld [vmem:[#allocation6 + $0xd48] sm:$0xff]
      %v1677 = vld [vmem:[#allocation6 + $0xd50] sm:$0xff]
      %v1678 = vld [vmem:[#allocation6 + $0xd58] sm:$0xff]
      %v1679 = vld [vmem:[#allocation6 + $0xd60] sm:$0xff]
      %v1680 = vld [vmem:[#allocation6 + $0xd68] sm:$0xff]
      %v1681 = vld [vmem:[#allocation6 + $0xd70] sm:$0xff]
      %v1682 = vld [vmem:[#allocation6 + $0xd78] sm:$0xff]
      %v1683 = vld [vmem:[#allocation6 + $0xd80] sm:$0xff]
      %v1684 = vld [vmem:[#allocation6 + $0xd88] sm:$0xff]
      %v1685 = vld [vmem:[#allocation6 + $0xd90] sm:$0xff]
      %v1686 = vld [vmem:[#allocation6 + $0xd98] sm:$0xff]
      %v1687 = vld [vmem:[#allocation6 + $0xda0] sm:$0xff]
      %v1688 = vld [vmem:[#allocation6 + $0xda8] sm:$0xff]
      %v1689 = vld [vmem:[#allocation6 + $0xdb0] sm:$0xff]
      %v1690 = vld [vmem:[#allocation6 + $0xdb8] sm:$0xff]
      %v1691 = vld [vmem:[#allocation6 + $0xdc0] sm:$0xff]
      %v1692 = vld [vmem:[#allocation6 + $0xdc8] sm:$0xff]
      %v1693 = vld [vmem:[#allocation6 + $0xdd0] sm:$0xff]
      %v1694 = vld [vmem:[#allocation6 + $0xdd8] sm:$0xff]
      %v1695 = vld [vmem:[#allocation6 + $0xde0] sm:$0xff]
      %v1696 = vld [vmem:[#allocation6 + $0xde8] sm:$0xff]
      %v1697 = vld [vmem:[#allocation6 + $0xdf0] sm:$0xff]
      %v1698 = vld [vmem:[#allocation6 + $0xdf8] sm:$0xff]
      %v1699 = vld [vmem:[#allocation6 + $0xe00] sm:$0xff]
      %v1700 = vld [vmem:[#allocation6 + $0xe08] sm:$0xff]
      %v1701 = vld [vmem:[#allocation6 + $0xe10] sm:$0xff]
      %v1702 = vld [vmem:[#allocation6 + $0xe18] sm:$0xff]
      %v1703 = vld [vmem:[#allocation6 + $0xe20] sm:$0xff]
      %v1704 = vld [vmem:[#allocation6 + $0xe28] sm:$0xff]
      %v1705 = vld [vmem:[#allocation6 + $0xe30] sm:$0xff]
      %v1706 = vld [vmem:[#allocation6 + $0xe38] sm:$0xff]
      %v1707 = vld [vmem:[#allocation6 + $0xe40] sm:$0xff]
      %v1708 = vld [vmem:[#allocation6 + $0xe48] sm:$0xff]
      %v1709 = vld [vmem:[#allocation6 + $0xe50] sm:$0xff]
      %v1710 = vld [vmem:[#allocation6 + $0xe58] sm:$0xff]
      %v1711 = vld [vmem:[#allocation6 + $0xe60] sm:$0xff]
      %v1712 = vld [vmem:[#allocation6 + $0xe68] sm:$0xff]
      %v1713 = vld [vmem:[#allocation6 + $0xe70] sm:$0xff]
      %v1714 = vld [vmem:[#allocation6 + $0xe78] sm:$0xff]
      %v1715 = vld [vmem:[#allocation6 + $0xe80] sm:$0xff]
      %v1716 = vld [vmem:[#allocation6 + $0xe88] sm:$0xff]
      %v1717 = vld [vmem:[#allocation6 + $0xe90] sm:$0xff]
      %v1718 = vld [vmem:[#allocation6 + $0xe98] sm:$0xff]
      %v1719 = vld [vmem:[#allocation6 + $0xea0] sm:$0xff]
      %v1720 = vld [vmem:[#allocation6 + $0xea8] sm:$0xff]
      %v1721 = vld [vmem:[#allocation6 + $0xeb0] sm:$0xff]
      %v1722 = vld [vmem:[#allocation6 + $0xeb8] sm:$0xff]
      %v1723 = vld [vmem:[#allocation6 + $0xec0] sm:$0xff]
      %v1724 = vld [vmem:[#allocation6 + $0xec8] sm:$0xff]
      %v1725 = vld [vmem:[#allocation6 + $0xed0] sm:$0xff]
      %v1726 = vld [vmem:[#allocation6 + $0xed8] sm:$0xff]
      %v1727 = vld [vmem:[#allocation6 + $0xee0] sm:$0xff]
      %v1728 = vld [vmem:[#allocation6 + $0xee8] sm:$0xff]
      %v1729 = vld [vmem:[#allocation6 + $0xef0] sm:$0xff]
      %v1730 = vld [vmem:[#allocation6 + $0xef8] sm:$0xff]
      %v1731 = vld [vmem:[#allocation6 + $0xf00] sm:$0xff]
      %v1732 = vld [vmem:[#allocation6 + $0xf08] sm:$0xff]
      %v1733 = vld [vmem:[#allocation6 + $0xf10] sm:$0xff]
      %v1734 = vld [vmem:[#allocation6 + $0xf18] sm:$0xff]
      %v1735 = vld [vmem:[#allocation6 + $0xf20] sm:$0xff]
      %v1736 = vld [vmem:[#allocation6 + $0xf28] sm:$0xff]
      %v1737 = vld [vmem:[#allocation6 + $0xf30] sm:$0xff]
      %v1738 = vld [vmem:[#allocation6 + $0xf38] sm:$0xff]
      %v1739 = vld [vmem:[#allocation6 + $0xf40] sm:$0xff]
      %v1740 = vld [vmem:[#allocation6 + $0xf48] sm:$0xff]
      %v1741 = vld [vmem:[#allocation6 + $0xf50] sm:$0xff]
      %v1742 = vld [vmem:[#allocation6 + $0xf58] sm:$0xff]
      %v1743 = vld [vmem:[#allocation6 + $0xf60] sm:$0xff]
      %v1744 = vld [vmem:[#allocation6 + $0xf68] sm:$0xff]
      %v1745 = vld [vmem:[#allocation6 + $0xf70] sm:$0xff]
      %v1746 = vld [vmem:[#allocation6 + $0xf78] sm:$0xff]
      %v1747 = vld [vmem:[#allocation6 + $0xf80] sm:$0xff]
      %v1748 = vld [vmem:[#allocation6 + $0xf88] sm:$0xff]
      %v1749 = vld [vmem:[#allocation6 + $0xf90] sm:$0xff]
      %v1750 = vld [vmem:[#allocation6 + $0xf98] sm:$0xff]
      %v1751 = vld [vmem:[#allocation6 + $0xfa0] sm:$0xff]
      %v1752 = vld [vmem:[#allocation6 + $0xfa8] sm:$0xff]
      %v1753 = vld [vmem:[#allocation6 + $0xfb0] sm:$0xff]
      %v1754 = vld [vmem:[#allocation6 + $0xfb8] sm:$0xff]
      %v1755 = vld [vmem:[#allocation6 + $0xfc0] sm:$0xff]
      %v1756 = vld [vmem:[#allocation6 + $0xfc8] sm:$0xff]
      %v1757 = vld [vmem:[#allocation6 + $0xfd0] sm:$0xff]
      %v1758 = vld [vmem:[#allocation6 + $0xfd8] sm:$0xff]
      %v1759 = vld [vmem:[#allocation6 + $0xfe0] sm:$0xff]
      %v1760 = vld [vmem:[#allocation6 + $0xfe8] sm:$0xff]
      %v1761 = vld [vmem:[#allocation6 + $0xff0] sm:$0xff]
      %v1762 = vld [vmem:[#allocation6 + $0xff8] sm:$0xff]
      %v1763 = vld [vmem:[#allocation8] sm:$0xf]
      %v1765 = vlaneseq
      %v1766 = vshrl.u32 %v1765, 7
      %v1767 = vsub.s32 0, %v1766
      %v1768 = vrot.slane %v1763, %v1767
      %v1769 = vlaneseq
      %v1770 = vshrl.u32 %v1769, 7
      %v1771 = vsub.s32 1, %v1770
      %v1772 = vrot.slane %v1763, %v1771
      %v1773 = vlaneseq
      %v1774 = vshrl.u32 %v1773, 7
      %v1775 = vsub.s32 2, %v1774
      %v1776 = vrot.slane %v1763, %v1775
      %v1777 = vlaneseq
      %v1778 = vshrl.u32 %v1777, 7
      %v1779 = vsub.s32 3, %v1778
      %v1780 = vrot.slane %v1763, %v1779
      %1785 = vmatprep.subr.mxu0 %v1312
      %1786 = vmatpush1.msra.mxu0 %v1311
      %1787 = vmatprep.subr.mxu0 %v1308
      %1788 = vmatpush1.msra.mxu0 %v1307
      %1789 = vmatprep.subr.mxu0 %v1304
      %1790 = vmatpush1.msra.mxu0 %v1303
      %1791 = vmatprep.subr.mxu0 %v1300
      %1792 = vmatpush1.msra.mxu0 %v1299
      %1793 = vmatprep.subr.mxu0 %v1296
      %1794 = vmatpush1.msra.mxu0 %v1295
      %1795 = vmatprep.subr.mxu0 %v1292
      %1796 = vmatpush1.msra.mxu0 %v1291
      %1797 = vmatprep.subr.mxu0 %v1288
      %1798 = vmatpush1.msra.mxu0 %v1287
      %1799 = vmatprep.subr.mxu0 %v1284
      %1800 = vmatpush1.msra.mxu0 %v1283
      %1801 = vmatprep.subr.mxu0 %v1280
      %1802 = vmatpush1.msra.mxu0 %v1279
      %1803 = vmatprep.subr.mxu0 %v1276
      %1804 = vmatpush1.msra.mxu0 %v1275
      %1805 = vmatprep.subr.mxu0 %v1272
      %1806 = vmatpush1.msra.mxu0 %v1271
      %1807 = vmatprep.subr.mxu0 %v1268
      %1808 = vmatpush1.msra.mxu0 %v1267
      %1809 = vmatprep.subr.mxu0 %v1264
      %1810 = vmatpush1.msra.mxu0 %v1263
      %1811 = vmatprep.subr.mxu0 %v1260
      %1812 = vmatpush1.msra.mxu0 %v1259
      %1813 = vmatprep.subr.mxu0 %v1256
      %1814 = vmatpush1.msra.mxu0 %v1255
      %1815 = vmatprep.subr.mxu0 %v1252
      %1816 = vmatpush1.msra.mxu0 %v1251
      %1817 = vmatprep.subr.mxu0 %v1376
      %1818 = vmatpush2.msra.mxu0 %v1375
      %1819 = vmatprep.subr.mxu0 %v1372
      %1820 = vmatpush2.msra.mxu0 %v1371
      %1821 = vmatprep.subr.mxu0 %v1368
      %1822 = vmatpush2.msra.mxu0 %v1367
      %1823 = vmatprep.subr.mxu0 %v1364
      %1824 = vmatpush2.msra.mxu0 %v1363
      %1825 = vmatprep.subr.mxu0 %v1360
      %1826 = vmatpush2.msra.mxu0 %v1359
      %1827 = vmatprep.subr.mxu0 %v1356
      %1828 = vmatpush2.msra.mxu0 %v1355
      %1829 = vmatprep.subr.mxu0 %v1352
      %1830 = vmatpush2.msra.mxu0 %v1351
      %1831 = vmatprep.subr.mxu0 %v1348
      %1832 = vmatpush2.msra.mxu0 %v1347
      %1833 = vmatprep.subr.mxu0 %v1344
      %1834 = vmatpush2.msra.mxu0 %v1343
      %1835 = vmatprep.subr.mxu0 %v1340
      %1836 = vmatpush2.msra.mxu0 %v1339
      %1837 = vmatprep.subr.mxu0 %v1336
      %1838 = vmatpush2.msra.mxu0 %v1335
      %1839 = vmatprep.subr.mxu0 %v1332
      %1840 = vmatpush2.msra.mxu0 %v1331
      %1841 = vmatprep.subr.mxu0 %v1328
      %1842 = vmatpush2.msra.mxu0 %v1327
      %1843 = vmatprep.subr.mxu0 %v1324
      %1844 = vmatpush2.msra.mxu0 %v1323
      %1845 = vmatprep.subr.mxu0 %v1320
      %1846 = vmatpush2.msra.mxu0 %v1319
      %1847 = vmatprep.subr.mxu0 %v1316
      %1848 = vmatpush2.msra.mxu0 %v1315
      %1849 = vmatprep.mubr.f32.mxu0 %v1244
      %1850 = vmatmul.mubr.f32.gmra.mxu0 %v1243
      %v1851 = vpop.f32.mrf.mxu0
      %v1852 = vadd.f32 %v1768, %v1851
      %v1853 = vpop.f32.mrf.mxu0
      %v1854 = vadd.f32 %v1772, %v1853
      %1855 = vdwg.mxu0
      %1856 = vmatprep.subr.mxu0 %v1440
      %1857 = vmatpush1.msra.mxu0 %v1439
      %1858 = vmatprep.subr.mxu0 %v1436
      %1859 = vmatpush1.msra.mxu0 %v1435
      %1860 = vmatprep.subr.mxu0 %v1432
      %1861 = vmatpush1.msra.mxu0 %v1431
      %1862 = vmatprep.subr.mxu0 %v1428
      %1863 = vmatpush1.msra.mxu0 %v1427
      %1864 = vmatprep.subr.mxu0 %v1424
      %1865 = vmatpush1.msra.mxu0 %v1423
      %1866 = vmatprep.subr.mxu0 %v1420
      %1867 = vmatpush1.msra.mxu0 %v1419
      %1868 = vmatprep.subr.mxu0 %v1416
      %1869 = vmatpush1.msra.mxu0 %v1415
      %1870 = vmatprep.subr.mxu0 %v1412
      %1871 = vmatpush1.msra.mxu0 %v1411
      %1872 = vmatprep.subr.mxu0 %v1408
      %1873 = vmatpush1.msra.mxu0 %v1407
      %1874 = vmatprep.subr.mxu0 %v1404
      %1875 = vmatpush1.msra.mxu0 %v1403
      %1876 = vmatprep.subr.mxu0 %v1400
      %1877 = vmatpush1.msra.mxu0 %v1399
      %1878 = vmatprep.subr.mxu0 %v1396
      %1879 = vmatpush1.msra.mxu0 %v1395
      %1880 = vmatprep.subr.mxu0 %v1392
      %1881 = vmatpush1.msra.mxu0 %v1391
      %1882 = vmatprep.subr.mxu0 %v1388
      %1883 = vmatpush1.msra.mxu0 %v1387
      %1884 = vmatprep.subr.mxu0 %v1384
      %1885 = vmatpush1.msra.mxu0 %v1383
      %1886 = vmatprep.subr.mxu0 %v1380
      %1887 = vmatpush1.msra.mxu0 %v1379
      %1888 = vmatprep.subr.mxu0 %v1504
      %1889 = vmatpush2.msra.mxu0 %v1503
      %1890 = vmatprep.subr.mxu0 %v1500
      %1891 = vmatpush2.msra.mxu0 %v1499
      %1892 = vmatprep.subr.mxu0 %v1496
      %1893 = vmatpush2.msra.mxu0 %v1495
      %1894 = vmatprep.subr.mxu0 %v1492
      %1895 = vmatpush2.msra.mxu0 %v1491
      %1896 = vmatprep.subr.mxu0 %v1488
      %1897 = vmatpush2.msra.mxu0 %v1487
      %1898 = vmatprep.subr.mxu0 %v1484
      %1899 = vmatpush2.msra.mxu0 %v1483
      %1900 = vmatprep.subr.mxu0 %v1480
      %1901 = vmatpush2.msra.mxu0 %v1479
      %1902 = vmatprep.subr.mxu0 %v1476
      %1903 = vmatpush2.msra.mxu0 %v1475
      %1904 = vmatprep.subr.mxu0 %v1472
      %1905 = vmatpush2.msra.mxu0 %v1471
      %1906 = vmatprep.subr.mxu0 %v1468
      %1907 = vmatpush2.msra.mxu0 %v1467
      %1908 = vmatprep.subr.mxu0 %v1464
      %1909 = vmatpush2.msra.mxu0 %v1463
      %1910 = vmatprep.subr.mxu0 %v1460
      %1911 = vmatpush2.msra.mxu0 %v1459
      %1912 = vmatprep.subr.mxu0 %v1456
      %1913 = vmatpush2.msra.mxu0 %v1455
      %1914 = vmatprep.subr.mxu0 %v1452
      %1915 = vmatpush2.msra.mxu0 %v1451
      %1916 = vmatprep.subr.mxu0 %v1448
      %1917 = vmatpush2.msra.mxu0 %v1447
      %1918 = vmatprep.subr.mxu0 %v1444
      %1919 = vmatpush2.msra.mxu0 %v1443
      %1920 = vmatprep.mubr.f32.mxu0 %v1246
      %1921 = vmatmul.mubr.f32.gmra.mxu0 %v1245
      %v1922 = vpop.f32.mrf.mxu0
      %v1923 = vadd.f32 %v1852, %v1922
      %v1924 = vpop.f32.mrf.mxu0
      %v1925 = vadd.f32 %v1854, %v1924
      %1926 = vdwg.mxu0
      %1927 = vmatprep.subr.mxu0 %v1568
      %1928 = vmatpush1.msra.mxu0 %v1567
      %1929 = vmatprep.subr.mxu0 %v1564
      %1930 = vmatpush1.msra.mxu0 %v1563
      %1931 = vmatprep.subr.mxu0 %v1560
      %1932 = vmatpush1.msra.mxu0 %v1559
      %1933 = vmatprep.subr.mxu0 %v1556
      %1934 = vmatpush1.msra.mxu0 %v1555
      %1935 = vmatprep.subr.mxu0 %v1552
      %1936 = vmatpush1.msra.mxu0 %v1551
      %1937 = vmatprep.subr.mxu0 %v1548
      %1938 = vmatpush1.msra.mxu0 %v1547
      %1939 = vmatprep.subr.mxu0 %v1544
      %1940 = vmatpush1.msra.mxu0 %v1543
      %1941 = vmatprep.subr.mxu0 %v1540
      %1942 = vmatpush1.msra.mxu0 %v1539
      %1943 = vmatprep.subr.mxu0 %v1536
      %1944 = vmatpush1.msra.mxu0 %v1535
      %1945 = vmatprep.subr.mxu0 %v1532
      %1946 = vmatpush1.msra.mxu0 %v1531
      %1947 = vmatprep.subr.mxu0 %v1528
      %1948 = vmatpush1.msra.mxu0 %v1527
      %1949 = vmatprep.subr.mxu0 %v1524
      %1950 = vmatpush1.msra.mxu0 %v1523
      %1951 = vmatprep.subr.mxu0 %v1520
      %1952 = vmatpush1.msra.mxu0 %v1519
      %1953 = vmatprep.subr.mxu0 %v1516
      %1954 = vmatpush1.msra.mxu0 %v1515
      %1955 = vmatprep.subr.mxu0 %v1512
      %1956 = vmatpush1.msra.mxu0 %v1511
      %1957 = vmatprep.subr.mxu0 %v1508
      %1958 = vmatpush1.msra.mxu0 %v1507
      %1959 = vmatprep.subr.mxu0 %v1632
      %1960 = vmatpush2.msra.mxu0 %v1631
      %1961 = vmatprep.subr.mxu0 %v1628
      %1962 = vmatpush2.msra.mxu0 %v1627
      %1963 = vmatprep.subr.mxu0 %v1624
      %1964 = vmatpush2.msra.mxu0 %v1623
      %1965 = vmatprep.subr.mxu0 %v1620
      %1966 = vmatpush2.msra.mxu0 %v1619
      %1967 = vmatprep.subr.mxu0 %v1616
      %1968 = vmatpush2.msra.mxu0 %v1615
      %1969 = vmatprep.subr.mxu0 %v1612
      %1970 = vmatpush2.msra.mxu0 %v1611
      %1971 = vmatprep.subr.mxu0 %v1608
      %1972 = vmatpush2.msra.mxu0 %v1607
      %1973 = vmatprep.subr.mxu0 %v1604
      %1974 = vmatpush2.msra.mxu0 %v1603
      %1975 = vmatprep.subr.mxu0 %v1600
      %1976 = vmatpush2.msra.mxu0 %v1599
      %1977 = vmatprep.subr.mxu0 %v1596
      %1978 = vmatpush2.msra.mxu0 %v1595
      %1979 = vmatprep.subr.mxu0 %v1592
      %1980 = vmatpush2.msra.mxu0 %v1591
      %1981 = vmatprep.subr.mxu0 %v1588
      %1982 = vmatpush2.msra.mxu0 %v1587
      %1983 = vmatprep.subr.mxu0 %v1584
      %1984 = vmatpush2.msra.mxu0 %v1583
      %1985 = vmatprep.subr.mxu0 %v1580
      %1986 = vmatpush2.msra.mxu0 %v1579
      %1987 = vmatprep.subr.mxu0 %v1576
      %1988 = vmatpush2.msra.mxu0 %v1575
      %1989 = vmatprep.subr.mxu0 %v1572
      %1990 = vmatpush2.msra.mxu0 %v1571
      %1991 = vmatprep.mubr.f32.mxu0 %v1248
      %1992 = vmatmul.mubr.f32.gmra.mxu0 %v1247
      %v1993 = vpop.f32.mrf.mxu0
      %v1994 = vadd.f32 %v1923, %v1993
      %v1995 = vpop.f32.mrf.mxu0
      %v1996 = vadd.f32 %v1925, %v1995
      %1997 = vdwg.mxu0
      %1998 = vmatprep.subr.mxu0 %v1696
      %1999 = vmatpush1.msra.mxu0 %v1695
      %2000 = vmatprep.subr.mxu0 %v1692
      %2001 = vmatpush1.msra.mxu0 %v1691
      %2002 = vmatprep.subr.mxu0 %v1688
      %2003 = vmatpush1.msra.mxu0 %v1687
      %2004 = vmatprep.subr.mxu0 %v1684
      %2005 = vmatpush1.msra.mxu0 %v1683
      %2006 = vmatprep.subr.mxu0 %v1680
      %2007 = vmatpush1.msra.mxu0 %v1679
      %2008 = vmatprep.subr.mxu0 %v1676
      %2009 = vmatpush1.msra.mxu0 %v1675
      %2010 = vmatprep.subr.mxu0 %v1672
      %2011 = vmatpush1.msra.mxu0 %v1671
      %2012 = vmatprep.subr.mxu0 %v1668
      %2013 = vmatpush1.msra.mxu0 %v1667
      %2014 = vmatprep.subr.mxu0 %v1664
      %2015 = vmatpush1.msra.mxu0 %v1663
      %2016 = vmatprep.subr.mxu0 %v1660
      %2017 = vmatpush1.msra.mxu0 %v1659
      %2018 = vmatprep.subr.mxu0 %v1656
      %2019 = vmatpush1.msra.mxu0 %v1655
      %2020 = vmatprep.subr.mxu0 %v1652
      %2021 = vmatpush1.msra.mxu0 %v1651
      %2022 = vmatprep.subr.mxu0 %v1648
      %2023 = vmatpush1.msra.mxu0 %v1647
      %2024 = vmatprep.subr.mxu0 %v1644
      %2025 = vmatpush1.msra.mxu0 %v1643
      %2026 = vmatprep.subr.mxu0 %v1640
      %2027 = vmatpush1.msra.mxu0 %v1639
      %2028 = vmatprep.subr.mxu0 %v1636
      %2029 = vmatpush1.msra.mxu0 %v1635
      %2030 = vmatprep.subr.mxu0 %v1760
      %2031 = vmatpush2.msra.mxu0 %v1759
      %2032 = vmatprep.subr.mxu0 %v1756
      %2033 = vmatpush2.msra.mxu0 %v1755
      %2034 = vmatprep.subr.mxu0 %v1752
      %2035 = vmatpush2.msra.mxu0 %v1751
      %2036 = vmatprep.subr.mxu0 %v1748
      %2037 = vmatpush2.msra.mxu0 %v1747
      %2038 = vmatprep.subr.mxu0 %v1744
      %2039 = vmatpush2.msra.mxu0 %v1743
      %2040 = vmatprep.subr.mxu0 %v1740
      %2041 = vmatpush2.msra.mxu0 %v1739
      %2042 = vmatprep.subr.mxu0 %v1736
      %2043 = vmatpush2.msra.mxu0 %v1735
      %2044 = vmatprep.subr.mxu0 %v1732
      %2045 = vmatpush2.msra.mxu0 %v1731
      %2046 = vmatprep.subr.mxu0 %v1728
      %2047 = vmatpush2.msra.mxu0 %v1727
      %2048 = vmatprep.subr.mxu0 %v1724
      %2049 = vmatpush2.msra.mxu0 %v1723
      %2050 = vmatprep.subr.mxu0 %v1720
      %2051 = vmatpush2.msra.mxu0 %v1719
      %2052 = vmatprep.subr.mxu0 %v1716
      %2053 = vmatpush2.msra.mxu0 %v1715
      %2054 = vmatprep.subr.mxu0 %v1712
      %2055 = vmatpush2.msra.mxu0 %v1711
      %2056 = vmatprep.subr.mxu0 %v1708
      %2057 = vmatpush2.msra.mxu0 %v1707
      %2058 = vmatprep.subr.mxu0 %v1704
      %2059 = vmatpush2.msra.mxu0 %v1703
      %2060 = vmatprep.subr.mxu0 %v1700
      %2061 = vmatpush2.msra.mxu0 %v1699
      %2062 = vmatprep.mubr.f32.mxu0 %v1250
      %2063 = vmatmul.mubr.f32.gmra.mxu0 %v1249
      %v2064 = vpop.f32.mrf.mxu0
      %v2065 = vadd.f32 %v1994, %v2064
      %v2066 = vpop.f32.mrf.mxu0
      %v2067 = vadd.f32 %v1996, %v2066
      %2068 = vdwg.mxu0
      %2069 = vmatprep.subr.mxu0 %v1314
      %2070 = vmatpush1.msra.mxu0 %v1313
      %2071 = vmatprep.subr.mxu0 %v1310
      %2072 = vmatpush1.msra.mxu0 %v1309
      %2073 = vmatprep.subr.mxu0 %v1306
      %2074 = vmatpush1.msra.mxu0 %v1305
      %2075 = vmatprep.subr.mxu0 %v1302
      %2076 = vmatpush1.msra.mxu0 %v1301
      %2077 = vmatprep.subr.mxu0 %v1298
      %2078 = vmatpush1.msra.mxu0 %v1297
      %2079 = vmatprep.subr.mxu0 %v1294
      %2080 = vmatpush1.msra.mxu0 %v1293
      %2081 = vmatprep.subr.mxu0 %v1290
      %2082 = vmatpush1.msra.mxu0 %v1289
      %2083 = vmatprep.subr.mxu0 %v1286
      %2084 = vmatpush1.msra.mxu0 %v1285
      %2085 = vmatprep.subr.mxu0 %v1282
      %2086 = vmatpush1.msra.mxu0 %v1281
      %2087 = vmatprep.subr.mxu0 %v1278
      %2088 = vmatpush1.msra.mxu0 %v1277
      %2089 = vmatprep.subr.mxu0 %v1274
      %2090 = vmatpush1.msra.mxu0 %v1273
      %2091 = vmatprep.subr.mxu0 %v1270
      %2092 = vmatpush1.msra.mxu0 %v1269
      %2093 = vmatprep.subr.mxu0 %v1266
      %2094 = vmatpush1.msra.mxu0 %v1265
      %2095 = vmatprep.subr.mxu0 %v1262
      %2096 = vmatpush1.msra.mxu0 %v1261
      %2097 = vmatprep.subr.mxu0 %v1258
      %2098 = vmatpush1.msra.mxu0 %v1257
      %2099 = vmatprep.subr.mxu0 %v1254
      %2100 = vmatpush1.msra.mxu0 %v1253
      %2101 = vmatprep.subr.mxu0 %v1378
      %2102 = vmatpush2.msra.mxu0 %v1377
      %2103 = vmatprep.subr.mxu0 %v1374
      %2104 = vmatpush2.msra.mxu0 %v1373
      %2105 = vmatprep.subr.mxu0 %v1370
      %2106 = vmatpush2.msra.mxu0 %v1369
      %2107 = vmatprep.subr.mxu0 %v1366
      %2108 = vmatpush2.msra.mxu0 %v1365
      %2109 = vmatprep.subr.mxu0 %v1362
      %2110 = vmatpush2.msra.mxu0 %v1361
      %2111 = vmatprep.subr.mxu0 %v1358
      %2112 = vmatpush2.msra.mxu0 %v1357
      %2113 = vmatprep.subr.mxu0 %v1354
      %2114 = vmatpush2.msra.mxu0 %v1353
      %2115 = vmatprep.subr.mxu0 %v1350
      %2116 = vmatpush2.msra.mxu0 %v1349
      %2117 = vmatprep.subr.mxu0 %v1346
      %2118 = vmatpush2.msra.mxu0 %v1345
      %2119 = vmatprep.subr.mxu0 %v1342
      %2120 = vmatpush2.msra.mxu0 %v1341
      %2121 = vmatprep.subr.mxu0 %v1338
      %2122 = vmatpush2.msra.mxu0 %v1337
      %2123 = vmatprep.subr.mxu0 %v1334
      %2124 = vmatpush2.msra.mxu0 %v1333
      %2125 = vmatprep.subr.mxu0 %v1330
      %2126 = vmatpush2.msra.mxu0 %v1329
      %2127 = vmatprep.subr.mxu0 %v1326
      %2128 = vmatpush2.msra.mxu0 %v1325
      %2129 = vmatprep.subr.mxu0 %v1322
      %2130 = vmatpush2.msra.mxu0 %v1321
      %2131 = vmatprep.subr.mxu0 %v1318
      %2132 = vmatpush2.msra.mxu0 %v1317
      %2133 = vmatprep.mubr.f32.mxu0 %v1244
      %2134 = vmatmul.mubr.f32.gmra.mxu0 %v1243
      %v2135 = vpop.f32.mrf.mxu0
      %v2136 = vadd.f32 %v1776, %v2135
      %v2137 = vpop.f32.mrf.mxu0
      %v2138 = vadd.f32 %v1780, %v2137
      %2139 = vdwg.mxu0
      %2140 = vmatprep.subr.mxu0 %v1442
      %2141 = vmatpush1.msra.mxu0 %v1441
      %2142 = vmatprep.subr.mxu0 %v1438
      %2143 = vmatpush1.msra.mxu0 %v1437
      %2144 = vmatprep.subr.mxu0 %v1434
      %2145 = vmatpush1.msra.mxu0 %v1433
      %2146 = vmatprep.subr.mxu0 %v1430
      %2147 = vmatpush1.msra.mxu0 %v1429
      %2148 = vmatprep.subr.mxu0 %v1426
      %2149 = vmatpush1.msra.mxu0 %v1425
      %2150 = vmatprep.subr.mxu0 %v1422
      %2151 = vmatpush1.msra.mxu0 %v1421
      %2152 = vmatprep.subr.mxu0 %v1418
      %2153 = vmatpush1.msra.mxu0 %v1417
      %2154 = vmatprep.subr.mxu0 %v1414
      %2155 = vmatpush1.msra.mxu0 %v1413
      %2156 = vmatprep.subr.mxu0 %v1410
      %2157 = vmatpush1.msra.mxu0 %v1409
      %2158 = vmatprep.subr.mxu0 %v1406
      %2159 = vmatpush1.msra.mxu0 %v1405
      %2160 = vmatprep.subr.mxu0 %v1402
      %2161 = vmatpush1.msra.mxu0 %v1401
      %2162 = vmatprep.subr.mxu0 %v1398
      %2163 = vmatpush1.msra.mxu0 %v1397
      %2164 = vmatprep.subr.mxu0 %v1394
      %2165 = vmatpush1.msra.mxu0 %v1393
      %2166 = vmatprep.subr.mxu0 %v1390
      %2167 = vmatpush1.msra.mxu0 %v1389
      %2168 = vmatprep.subr.mxu0 %v1386
      %2169 = vmatpush1.msra.mxu0 %v1385
      %2170 = vmatprep.subr.mxu0 %v1382
      %2171 = vmatpush1.msra.mxu0 %v1381
      %2172 = vmatprep.subr.mxu0 %v1506
      %2173 = vmatpush2.msra.mxu0 %v1505
      %2174 = vmatprep.subr.mxu0 %v1502
      %2175 = vmatpush2.msra.mxu0 %v1501
      %2176 = vmatprep.subr.mxu0 %v1498
      %2177 = vmatpush2.msra.mxu0 %v1497
      %2178 = vmatprep.subr.mxu0 %v1494
      %2179 = vmatpush2.msra.mxu0 %v1493
      %2180 = vmatprep.subr.mxu0 %v1490
      %2181 = vmatpush2.msra.mxu0 %v1489
      %2182 = vmatprep.subr.mxu0 %v1486
      %2183 = vmatpush2.msra.mxu0 %v1485
      %2184 = vmatprep.subr.mxu0 %v1482
      %2185 = vmatpush2.msra.mxu0 %v1481
      %2186 = vmatprep.subr.mxu0 %v1478
      %2187 = vmatpush2.msra.mxu0 %v1477
      %2188 = vmatprep.subr.mxu0 %v1474
      %2189 = vmatpush2.msra.mxu0 %v1473
      %2190 = vmatprep.subr.mxu0 %v1470
      %2191 = vmatpush2.msra.mxu0 %v1469
      %2192 = vmatprep.subr.mxu0 %v1466
      %2193 = vmatpush2.msra.mxu0 %v1465
      %2194 = vmatprep.subr.mxu0 %v1462
      %2195 = vmatpush2.msra.mxu0 %v1461
      %2196 = vmatprep.subr.mxu0 %v1458
      %2197 = vmatpush2.msra.mxu0 %v1457
      %2198 = vmatprep.subr.mxu0 %v1454
      %2199 = vmatpush2.msra.mxu0 %v1453
      %2200 = vmatprep.subr.mxu0 %v1450
      %2201 = vmatpush2.msra.mxu0 %v1449
      %2202 = vmatprep.subr.mxu0 %v1446
      %2203 = vmatpush2.msra.mxu0 %v1445
      %2204 = vmatprep.mubr.f32.mxu0 %v1246
      %2205 = vmatmul.mubr.f32.gmra.mxu0 %v1245
      %v2206 = vpop.f32.mrf.mxu0
      %v2207 = vadd.f32 %v2136, %v2206
      %v2208 = vpop.f32.mrf.mxu0
      %v2209 = vadd.f32 %v2138, %v2208
      %2210 = vdwg.mxu0
      %2211 = vmatprep.subr.mxu0 %v1570
      %2212 = vmatpush1.msra.mxu0 %v1569
      %2213 = vmatprep.subr.mxu0 %v1566
      %2214 = vmatpush1.msra.mxu0 %v1565
      %2215 = vmatprep.subr.mxu0 %v1562
      %2216 = vmatpush1.msra.mxu0 %v1561
      %2217 = vmatprep.subr.mxu0 %v1558
      %2218 = vmatpush1.msra.mxu0 %v1557
      %2219 = vmatprep.subr.mxu0 %v1554
      %2220 = vmatpush1.msra.mxu0 %v1553
      %2221 = vmatprep.subr.mxu0 %v1550
      %2222 = vmatpush1.msra.mxu0 %v1549
      %2223 = vmatprep.subr.mxu0 %v1546
      %2224 = vmatpush1.msra.mxu0 %v1545
      %2225 = vmatprep.subr.mxu0 %v1542
      %2226 = vmatpush1.msra.mxu0 %v1541
      %2227 = vmatprep.subr.mxu0 %v1538
      %2228 = vmatpush1.msra.mxu0 %v1537
      %2229 = vmatprep.subr.mxu0 %v1534
      %2230 = vmatpush1.msra.mxu0 %v1533
      %2231 = vmatprep.subr.mxu0 %v1530
      %2232 = vmatpush1.msra.mxu0 %v1529
      %2233 = vmatprep.subr.mxu0 %v1526
      %2234 = vmatpush1.msra.mxu0 %v1525
      %2235 = vmatprep.subr.mxu0 %v1522
      %2236 = vmatpush1.msra.mxu0 %v1521
      %2237 = vmatprep.subr.mxu0 %v1518
      %2238 = vmatpush1.msra.mxu0 %v1517
      %2239 = vmatprep.subr.mxu0 %v1514
      %2240 = vmatpush1.msra.mxu0 %v1513
      %2241 = vmatprep.subr.mxu0 %v1510
      %2242 = vmatpush1.msra.mxu0 %v1509
      %2243 = vmatprep.subr.mxu0 %v1634
      %2244 = vmatpush2.msra.mxu0 %v1633
      %2245 = vmatprep.subr.mxu0 %v1630
      %2246 = vmatpush2.msra.mxu0 %v1629
      %2247 = vmatprep.subr.mxu0 %v1626
      %2248 = vmatpush2.msra.mxu0 %v1625
      %2249 = vmatprep.subr.mxu0 %v1622
      %2250 = vmatpush2.msra.mxu0 %v1621
      %2251 = vmatprep.subr.mxu0 %v1618
      %2252 = vmatpush2.msra.mxu0 %v1617
      %2253 = vmatprep.subr.mxu0 %v1614
      %2254 = vmatpush2.msra.mxu0 %v1613
      %2255 = vmatprep.subr.mxu0 %v1610
      %2256 = vmatpush2.msra.mxu0 %v1609
      %2257 = vmatprep.subr.mxu0 %v1606
      %2258 = vmatpush2.msra.mxu0 %v1605
      %2259 = vmatprep.subr.mxu0 %v1602
      %2260 = vmatpush2.msra.mxu0 %v1601
      %2261 = vmatprep.subr.mxu0 %v1598
      %2262 = vmatpush2.msra.mxu0 %v1597
      %2263 = vmatprep.subr.mxu0 %v1594
      %2264 = vmatpush2.msra.mxu0 %v1593
      %2265 = vmatprep.subr.mxu0 %v1590
      %2266 = vmatpush2.msra.mxu0 %v1589
      %2267 = vmatprep.subr.mxu0 %v1586
      %2268 = vmatpush2.msra.mxu0 %v1585
      %2269 = vmatprep.subr.mxu0 %v1582
      %2270 = vmatpush2.msra.mxu0 %v1581
      %2271 = vmatprep.subr.mxu0 %v1578
      %2272 = vmatpush2.msra.mxu0 %v1577
      %2273 = vmatprep.subr.mxu0 %v1574
      %2274 = vmatpush2.msra.mxu0 %v1573
      %2275 = vmatprep.mubr.f32.mxu0 %v1248
      %2276 = vmatmul.mubr.f32.gmra.mxu0 %v1247
      %v2277 = vpop.f32.mrf.mxu0
      %v2278 = vadd.f32 %v2207, %v2277
      %v2279 = vpop.f32.mrf.mxu0
      %v2280 = vadd.f32 %v2209, %v2279
      %2281 = vdwg.mxu0
      %2282 = vmatprep.subr.mxu0 %v1698
      %2283 = vmatpush1.msra.mxu0 %v1697
      %2284 = vmatprep.subr.mxu0 %v1694
      %2285 = vmatpush1.msra.mxu0 %v1693
      %2286 = vmatprep.subr.mxu0 %v1690
      %2287 = vmatpush1.msra.mxu0 %v1689
      %2288 = vmatprep.subr.mxu0 %v1686
      %2289 = vmatpush1.msra.mxu0 %v1685
      %2290 = vmatprep.subr.mxu0 %v1682
      %2291 = vmatpush1.msra.mxu0 %v1681
      %2292 = vmatprep.subr.mxu0 %v1678
      %2293 = vmatpush1.msra.mxu0 %v1677
      %2294 = vmatprep.subr.mxu0 %v1674
      %2295 = vmatpush1.msra.mxu0 %v1673
      %2296 = vmatprep.subr.mxu0 %v1670
      %2297 = vmatpush1.msra.mxu0 %v1669
      %2298 = vmatprep.subr.mxu0 %v1666
      %2299 = vmatpush1.msra.mxu0 %v1665
      %2300 = vmatprep.subr.mxu0 %v1662
      %2301 = vmatpush1.msra.mxu0 %v1661
      %2302 = vmatprep.subr.mxu0 %v1658
      %2303 = vmatpush1.msra.mxu0 %v1657
      %2304 = vmatprep.subr.mxu0 %v1654
      %2305 = vmatpush1.msra.mxu0 %v1653
      %2306 = vmatprep.subr.mxu0 %v1650
      %2307 = vmatpush1.msra.mxu0 %v1649
      %2308 = vmatprep.subr.mxu0 %v1646
      %2309 = vmatpush1.msra.mxu0 %v1645
      %2310 = vmatprep.subr.mxu0 %v1642
      %2311 = vmatpush1.msra.mxu0 %v1641
      %2312 = vmatprep.subr.mxu0 %v1638
      %2313 = vmatpush1.msra.mxu0 %v1637
      %2314 = vmatprep.subr.mxu0 %v1762
      %2315 = vmatpush2.msra.mxu0 %v1761
      %2316 = vmatprep.subr.mxu0 %v1758
      %2317 = vmatpush2.msra.mxu0 %v1757
      %2318 = vmatprep.subr.mxu0 %v1754
      %2319 = vmatpush2.msra.mxu0 %v1753
      %2320 = vmatprep.subr.mxu0 %v1750
      %2321 = vmatpush2.msra.mxu0 %v1749
      %2322 = vmatprep.subr.mxu0 %v1746
      %2323 = vmatpush2.msra.mxu0 %v1745
      %2324 = vmatprep.subr.mxu0 %v1742
      %2325 = vmatpush2.msra.mxu0 %v1741
      %2326 = vmatprep.subr.mxu0 %v1738
      %2327 = vmatpush2.msra.mxu0 %v1737
      %2328 = vmatprep.subr.mxu0 %v1734
      %2329 = vmatpush2.msra.mxu0 %v1733
      %2330 = vmatprep.subr.mxu0 %v1730
      %2331 = vmatpush2.msra.mxu0 %v1729
      %2332 = vmatprep.subr.mxu0 %v1726
      %2333 = vmatpush2.msra.mxu0 %v1725
      %2334 = vmatprep.subr.mxu0 %v1722
      %2335 = vmatpush2.msra.mxu0 %v1721
      %2336 = vmatprep.subr.mxu0 %v1718
      %2337 = vmatpush2.msra.mxu0 %v1717
      %2338 = vmatprep.subr.mxu0 %v1714
      %2339 = vmatpush2.msra.mxu0 %v1713
      %2340 = vmatprep.subr.mxu0 %v1710
      %2341 = vmatpush2.msra.mxu0 %v1709
      %2342 = vmatprep.subr.mxu0 %v1706
      %2343 = vmatpush2.msra.mxu0 %v1705
      %2344 = vmatprep.subr.mxu0 %v1702
      %2345 = vmatpush2.msra.mxu0 %v1701
      %2346 = vmatprep.mubr.f32.mxu0 %v1250
      %2347 = vmatmul.mubr.f32.gmra.mxu0 %v1249
      %v2348 = vpop.f32.mrf.mxu0
      %v2349 = vadd.f32 %v2278, %v2348
      %v2350 = vpop.f32.mrf.mxu0
      %v2351 = vadd.f32 %v2280, %v2350
      %2352 = vdwg.mxu0
      %v2353 = vld [vmem:[#allocation10] sm:$0xf]
      %v2354 = vld [vmem:[#allocation11] sm:$0xf]
      %v2355 = vadd.f32 %v2065, %v2067
      %v2356 = vadd.f32 %v2355, %v2349
      %v2357 = vadd.f32 %v2356, %v2351
      %2358 = vadd.xlane.f32.xlu0 %v2357
      %v2359 = vpop.xlane.xlu0 %2358
      %v2360 = vrcp.pop 512.0
      %v2361 = vmul.f32 %v2359, %v2360
      %v2362 = vsub.f32 %v2065, %v2361
      %v2363 = vsub.f32 %v2067, %v2361
      %v2364 = vsub.f32 %v2349, %v2361
      %v2365 = vsub.f32 %v2351, %v2361
      %v2366 = vmul.f32 %v2362, %v2362
      %v2367 = vmul.f32 %v2363, %v2363
      %v2368 = vmul.f32 %v2364, %v2364
      %v2369 = vmul.f32 %v2365, %v2365
      %v2370 = vadd.f32 %v2366, %v2367
      %v2371 = vadd.f32 %v2370, %v2368
      %v2372 = vadd.f32 %v2371, %v2369
      %2373 = vadd.xlane.f32.xlu0 %v2372
      %v2374 = vpop.xlane.xlu0 %2373
      %v2375 = vmul.f32 %v2374, %v2360
      %v2376 = vadd.f32 %v2375, 1e-05
      %v2377 = vrsqrt.pop %v2376
      %v2378 = vmul.f32 %v2362, %v2377
      %v2379 = vmul.f32 %v2363, %v2377
      %v2380 = vmul.f32 %v2364, %v2377
      %v2381 = vmul.f32 %v2365, %v2377
      %v2383 = vlaneseq
      %v2384 = vshrl.u32 %v2383, 7
      %v2385 = vsub.s32 0, %v2384
      %v2386 = vrot.slane %v2353, %v2385
      %v2387 = vlaneseq
      %v2388 = vshrl.u32 %v2387, 7
      %v2389 = vsub.s32 1, %v2388
      %v2390 = vrot.slane %v2353, %v2389
      %v2391 = vlaneseq
      %v2392 = vshrl.u32 %v2391, 7
      %v2393 = vsub.s32 2, %v2392
      %v2394 = vrot.slane %v2353, %v2393
      %v2395 = vlaneseq
      %v2396 = vshrl.u32 %v2395, 7
      %v2397 = vsub.s32 3, %v2396
      %v2398 = vrot.slane %v2353, %v2397
      %v2403 = vmul.f32 %v2378, %v2386
      %v2404 = vmul.f32 %v2379, %v2390
      %v2405 = vmul.f32 %v2380, %v2394
      %v2406 = vmul.f32 %v2381, %v2398
      %v2408 = vlaneseq
      %v2409 = vshrl.u32 %v2408, 7
      %v2410 = vsub.s32 0, %v2409
      %v2411 = vrot.slane %v2354, %v2410
      %v2412 = vlaneseq
      %v2413 = vshrl.u32 %v2412, 7
      %v2414 = vsub.s32 1, %v2413
      %v2415 = vrot.slane %v2354, %v2414
      %v2416 = vlaneseq
      %v2417 = vshrl.u32 %v2416, 7
      %v2418 = vsub.s32 2, %v2417
      %v2419 = vrot.slane %v2354, %v2418
      %v2420 = vlaneseq
      %v2421 = vshrl.u32 %v2420, 7
      %v2422 = vsub.s32 3, %v2421
      %v2423 = vrot.slane %v2354, %v2422
      %v2428 = vadd.f32 %v2403, %v2411
      %v2429 = vadd.f32 %v2404, %v2415
      %v2430 = vadd.f32 %v2405, %v2419
      %v2431 = vadd.f32 %v2406, %v2423
      %v2432 = vmul.f32 %v2428, 0.5
      %v2433 = vmul.f32 %v2429, 0.5
      %v2434 = vmul.f32 %v2430, 0.5
      %v2435 = vmul.f32 %v2431, 0.5
      %v2436 = vmul.f32 %v2428, 0.70710677
      %v2437 = vmul.f32 %v2429, 0.70710677
      %v2438 = vmul.f32 %v2430, 0.70710677
      %v2439 = vmul.f32 %v2431, 0.70710677
      %v2440 = verf.f32.pop %v2436
      %v2441 = verf.f32.pop %v2437
      %v2442 = verf.f32.pop %v2438
      %v2443 = verf.f32.pop %v2439
      %v2444 = vadd.f32 %v2440, 1.0
      %v2445 = vadd.f32 %v2441, 1.0
      %v2446 = vadd.f32 %v2442, 1.0
      %v2447 = vadd.f32 %v2443, 1.0
      %v2448 = vmul.f32 %v2432, %v2444
      %v2449 = vmul.f32 %v2433, %v2445
      %v2450 = vmul.f32 %v2434, %v2446
      %v2451 = vmul.f32 %v2435, %v2447
      %v2452 = vld [vmem:[#allocation13] sm:$0xff]
      %v2453 = vld [vmem:[#allocation13 + $0x8] sm:$0xff]
      %v2454 = vld [vmem:[#allocation13 + $0x10] sm:$0xff]
      %v2455 = vld [vmem:[#allocation13 + $0x18] sm:$0xff]
      %v2456 = vld [vmem:[#allocation13 + $0x20] sm:$0xff]
      %v2457 = vld [vmem:[#allocation13 + $0x28] sm:$0xff]
      %v2458 = vld [vmem:[#allocation13 + $0x30] sm:$0xff]
      %v2459 = vld [vmem:[#allocation13 + $0x38] sm:$0xff]
      %v2460 = vld [vmem:[#allocation13 + $0x40] sm:$0xff]
      %v2461 = vld [vmem:[#allocation13 + $0x48] sm:$0xff]
      %v2462 = vld [vmem:[#allocation13 + $0x50] sm:$0xff]
      %v2463 = vld [vmem:[#allocation13 + $0x58] sm:$0xff]
      %v2464 = vld [vmem:[#allocation13 + $0x60] sm:$0xff]
      %v2465 = vld [vmem:[#allocation13 + $0x68] sm:$0xff]
      %v2466 = vld [vmem:[#allocation13 + $0x70] sm:$0xff]
      %v2467 = vld [vmem:[#allocation13 + $0x78] sm:$0xff]
      %v2468 = vld [vmem:[#allocation13 + $0x80] sm:$0xff]
      %v2469 = vld [vmem:[#allocation13 + $0x88] sm:$0xff]
      %v2470 = vld [vmem:[#allocation13 + $0x90] sm:$0xff]
      %v2471 = vld [vmem:[#allocation13 + $0x98] sm:$0xff]
      %v2472 = vld [vmem:[#allocation13 + $0xa0] sm:$0xff]
      %v2473 = vld [vmem:[#allocation13 + $0xa8] sm:$0xff]
      %v2474 = vld [vmem:[#allocation13 + $0xb0] sm:$0xff]
      %v2475 = vld [vmem:[#allocation13 + $0xb8] sm:$0xff]
      %v2476 = vld [vmem:[#allocation13 + $0xc0] sm:$0xff]
      %v2477 = vld [vmem:[#allocation13 + $0xc8] sm:$0xff]
      %v2478 = vld [vmem:[#allocation13 + $0xd0] sm:$0xff]
      %v2479 = vld [vmem:[#allocation13 + $0xd8] sm:$0xff]
      %v2480 = vld [vmem:[#allocation13 + $0xe0] sm:$0xff]
      %v2481 = vld [vmem:[#allocation13 + $0xe8] sm:$0xff]
      %v2482 = vld [vmem:[#allocation13 + $0xf0] sm:$0xff]
      %v2483 = vld [vmem:[#allocation13 + $0xf8] sm:$0xff]
      %v2484 = vld [vmem:[#allocation13 + $0x100] sm:$0xff]
      %v2485 = vld [vmem:[#allocation13 + $0x108] sm:$0xff]
      %v2486 = vld [vmem:[#allocation13 + $0x110] sm:$0xff]
      %v2487 = vld [vmem:[#allocation13 + $0x118] sm:$0xff]
      %v2488 = vld [vmem:[#allocation13 + $0x120] sm:$0xff]
      %v2489 = vld [vmem:[#allocation13 + $0x128] sm:$0xff]
      %v2490 = vld [vmem:[#allocation13 + $0x130] sm:$0xff]
      %v2491 = vld [vmem:[#allocation13 + $0x138] sm:$0xff]
      %v2492 = vld [vmem:[#allocation13 + $0x140] sm:$0xff]
      %v2493 = vld [vmem:[#allocation13 + $0x148] sm:$0xff]
      %v2494 = vld [vmem:[#allocation13 + $0x150] sm:$0xff]
      %v2495 = vld [vmem:[#allocation13 + $0x158] sm:$0xff]
      %v2496 = vld [vmem:[#allocation13 + $0x160] sm:$0xff]
      %v2497 = vld [vmem:[#allocation13 + $0x168] sm:$0xff]
      %v2498 = vld [vmem:[#allocation13 + $0x170] sm:$0xff]
      %v2499 = vld [vmem:[#allocation13 + $0x178] sm:$0xff]
      %v2500 = vld [vmem:[#allocation13 + $0x180] sm:$0xff]
      %v2501 = vld [vmem:[#allocation13 + $0x188] sm:$0xff]
      %v2502 = vld [vmem:[#allocation13 + $0x190] sm:$0xff]
      %v2503 = vld [vmem:[#allocation13 + $0x198] sm:$0xff]
      %v2504 = vld [vmem:[#allocation13 + $0x1a0] sm:$0xff]
      %v2505 = vld [vmem:[#allocation13 + $0x1a8] sm:$0xff]
      %v2506 = vld [vmem:[#allocation13 + $0x1b0] sm:$0xff]
      %v2507 = vld [vmem:[#allocation13 + $0x1b8] sm:$0xff]
      %v2508 = vld [vmem:[#allocation13 + $0x1c0] sm:$0xff]
      %v2509 = vld [vmem:[#allocation13 + $0x1c8] sm:$0xff]
      %v2510 = vld [vmem:[#allocation13 + $0x1d0] sm:$0xff]
      %v2511 = vld [vmem:[#allocation13 + $0x1d8] sm:$0xff]
      %v2512 = vld [vmem:[#allocation13 + $0x1e0] sm:$0xff]
      %v2513 = vld [vmem:[#allocation13 + $0x1e8] sm:$0xff]
      %v2514 = vld [vmem:[#allocation13 + $0x1f0] sm:$0xff]
      %v2515 = vld [vmem:[#allocation13 + $0x1f8] sm:$0xff]
      %v2516 = vld [vmem:[#allocation14] sm:$0x1]
      %v2518 = vlaneseq
      %v2519 = vshrl.u32 %v2518, 7
      %v2520 = vsub.s32 0, %v2519
      %v2521 = vrot.slane %v2516, %v2520
      %2523 = vmatprep.subr.mxu0 0.0
      %2524 = vmatpush1.msra.mxu0 %v2467
      %2525 = vmatprep.subr.mxu0 0.0
      %2526 = vmatpush1.msra.mxu0 %v2466
      %2527 = vmatprep.subr.mxu0 0.0
      %2528 = vmatpush1.msra.mxu0 %v2465
      %2529 = vmatprep.subr.mxu0 0.0
      %2530 = vmatpush1.msra.mxu0 %v2464
      %2531 = vmatprep.subr.mxu0 0.0
      %2532 = vmatpush1.msra.mxu0 %v2463
      %2533 = vmatprep.subr.mxu0 0.0
      %2534 = vmatpush1.msra.mxu0 %v2462
      %2535 = vmatprep.subr.mxu0 0.0
      %2536 = vmatpush1.msra.mxu0 %v2461
      %2537 = vmatprep.subr.mxu0 0.0
      %2538 = vmatpush1.msra.mxu0 %v2460
      %2539 = vmatprep.subr.mxu0 0.0
      %2540 = vmatpush1.msra.mxu0 %v2459
      %2541 = vmatprep.subr.mxu0 0.0
      %2542 = vmatpush1.msra.mxu0 %v2458
      %2543 = vmatprep.subr.mxu0 0.0
      %2544 = vmatpush1.msra.mxu0 %v2457
      %2545 = vmatprep.subr.mxu0 0.0
      %2546 = vmatpush1.msra.mxu0 %v2456
      %2547 = vmatprep.subr.mxu0 0.0
      %2548 = vmatpush1.msra.mxu0 %v2455
      %2549 = vmatprep.subr.mxu0 0.0
      %2550 = vmatpush1.msra.mxu0 %v2454
      %2551 = vmatprep.subr.mxu0 0.0
      %2552 = vmatpush1.msra.mxu0 %v2453
      %2553 = vmatprep.subr.mxu0 0.0
      %2554 = vmatpush1.msra.mxu0 %v2452
      %2555 = vmatprep.subr.mxu0 0.0
      %2556 = vmatpush2.msra.mxu0 %v2483
      %2557 = vmatprep.subr.mxu0 0.0
      %2558 = vmatpush2.msra.mxu0 %v2482
      %2559 = vmatprep.subr.mxu0 0.0
      %2560 = vmatpush2.msra.mxu0 %v2481
      %2561 = vmatprep.subr.mxu0 0.0
      %2562 = vmatpush2.msra.mxu0 %v2480
      %2563 = vmatprep.subr.mxu0 0.0
      %2564 = vmatpush2.msra.mxu0 %v2479
      %2565 = vmatprep.subr.mxu0 0.0
      %2566 = vmatpush2.msra.mxu0 %v2478
      %2567 = vmatprep.subr.mxu0 0.0
      %2568 = vmatpush2.msra.mxu0 %v2477
      %2569 = vmatprep.subr.mxu0 0.0
      %2570 = vmatpush2.msra.mxu0 %v2476
      %2571 = vmatprep.subr.mxu0 0.0
      %2572 = vmatpush2.msra.mxu0 %v2475
      %2573 = vmatprep.subr.mxu0 0.0
      %2574 = vmatpush2.msra.mxu0 %v2474
      %2575 = vmatprep.subr.mxu0 0.0
      %2576 = vmatpush2.msra.mxu0 %v2473
      %2577 = vmatprep.subr.mxu0 0.0
      %2578 = vmatpush2.msra.mxu0 %v2472
      %2579 = vmatprep.subr.mxu0 0.0
      %2580 = vmatpush2.msra.mxu0 %v2471
      %2581 = vmatprep.subr.mxu0 0.0
      %2582 = vmatpush2.msra.mxu0 %v2470
      %2583 = vmatprep.subr.mxu0 0.0
      %2584 = vmatpush2.msra.mxu0 %v2469
      %2585 = vmatprep.subr.mxu0 0.0
      %2586 = vmatpush2.msra.mxu0 %v2468
      %2587 = vmatprep.mubr.f32.mxu0 %v2449
      %2588 = vmatmul.mubr.f32.gmra.mxu0 %v2448
      %v2589 = vpop.f32.mrf.mxu0
      %v2590 = vadd.f32 %v2521, %v2589
      %v2591 = vpop.f32.mrf.mxu0
      %2592 = vdwg.mxu0
      %2593 = vmatprep.subr.mxu0 0.0
      %2594 = vmatpush1.msra.mxu0 %v2499
      %2595 = vmatprep.subr.mxu0 0.0
      %2596 = vmatpush1.msra.mxu0 %v2498
      %2597 = vmatprep.subr.mxu0 0.0
      %2598 = vmatpush1.msra.mxu0 %v2497
      %2599 = vmatprep.subr.mxu0 0.0
      %2600 = vmatpush1.msra.mxu0 %v2496
      %2601 = vmatprep.subr.mxu0 0.0
      %2602 = vmatpush1.msra.mxu0 %v2495
      %2603 = vmatprep.subr.mxu0 0.0
      %2604 = vmatpush1.msra.mxu0 %v2494
      %2605 = vmatprep.subr.mxu0 0.0
      %2606 = vmatpush1.msra.mxu0 %v2493
      %2607 = vmatprep.subr.mxu0 0.0
      %2608 = vmatpush1.msra.mxu0 %v2492
      %2609 = vmatprep.subr.mxu0 0.0
      %2610 = vmatpush1.msra.mxu0 %v2491
      %2611 = vmatprep.subr.mxu0 0.0
      %2612 = vmatpush1.msra.mxu0 %v2490
      %2613 = vmatprep.subr.mxu0 0.0
      %2614 = vmatpush1.msra.mxu0 %v2489
      %2615 = vmatprep.subr.mxu0 0.0
      %2616 = vmatpush1.msra.mxu0 %v2488
      %2617 = vmatprep.subr.mxu0 0.0
      %2618 = vmatpush1.msra.mxu0 %v2487
      %2619 = vmatprep.subr.mxu0 0.0
      %2620 = vmatpush1.msra.mxu0 %v2486
      %2621 = vmatprep.subr.mxu0 0.0
      %2622 = vmatpush1.msra.mxu0 %v2485
      %2623 = vmatprep.subr.mxu0 0.0
      %2624 = vmatpush1.msra.mxu0 %v2484
      %2625 = vmatprep.subr.mxu0 0.0
      %2626 = vmatpush2.msra.mxu0 %v2515
      %2627 = vmatprep.subr.mxu0 0.0
      %2628 = vmatpush2.msra.mxu0 %v2514
      %2629 = vmatprep.subr.mxu0 0.0
      %2630 = vmatpush2.msra.mxu0 %v2513
      %2631 = vmatprep.subr.mxu0 0.0
      %2632 = vmatpush2.msra.mxu0 %v2512
      %2633 = vmatprep.subr.mxu0 0.0
      %2634 = vmatpush2.msra.mxu0 %v2511
      %2635 = vmatprep.subr.mxu0 0.0
      %2636 = vmatpush2.msra.mxu0 %v2510
      %2637 = vmatprep.subr.mxu0 0.0
      %2638 = vmatpush2.msra.mxu0 %v2509
      %2639 = vmatprep.subr.mxu0 0.0
      %2640 = vmatpush2.msra.mxu0 %v2508
      %2641 = vmatprep.subr.mxu0 0.0
      %2642 = vmatpush2.msra.mxu0 %v2507
      %2643 = vmatprep.subr.mxu0 0.0
      %2644 = vmatpush2.msra.mxu0 %v2506
      %2645 = vmatprep.subr.mxu0 0.0
      %2646 = vmatpush2.msra.mxu0 %v2505
      %2647 = vmatprep.subr.mxu0 0.0
      %2648 = vmatpush2.msra.mxu0 %v2504
      %2649 = vmatprep.subr.mxu0 0.0
      %2650 = vmatpush2.msra.mxu0 %v2503
      %2651 = vmatprep.subr.mxu0 0.0
      %2652 = vmatpush2.msra.mxu0 %v2502
      %2653 = vmatprep.subr.mxu0 0.0
      %2654 = vmatpush2.msra.mxu0 %v2501
      %2655 = vmatprep.subr.mxu0 0.0
      %2656 = vmatpush2.msra.mxu0 %v2500
      %2657 = vmatprep.mubr.f32.mxu0 %v2451
      %2658 = vmatmul.mubr.f32.gmra.mxu0 %v2450
      %v2659 = vpop.f32.mrf.mxu0
      %v2660 = vadd.f32 %v2590, %v2659
      %v2661 = vpop.f32.mrf.mxu0
      %2662 = vdwg.mxu0
      %v2663 = vld [vmem:[#allocation16] sm:$0x1]
      %v2664 = vld [vmem:[#allocation17] sm:$0x1]
      %2665 = vadd.xlane.f32.xlu0 %v2660
      %v2666 = vpop.xlane.xlu0 %2665
      %v2667 = vrcp.pop 128.0
      %v2668 = vmul.f32 %v2666, %v2667
      %v2669 = vsub.f32 %v2660, %v2668
      %v2670 = vmul.f32 %v2669, %v2669
      %2671 = vadd.xlane.f32.xlu0 %v2670
      %v2672 = vpop.xlane.xlu0 %2671
      %v2673 = vmul.f32 %v2672, %v2667
      %v2674 = vadd.f32 %v2673, 1e-05
      %v2675 = vrsqrt.pop %v2674
      %v2676 = vmul.f32 %v2669, %v2675
      %v2678 = vlaneseq
      %v2679 = vshrl.u32 %v2678, 7
      %v2680 = vsub.s32 0, %v2679
      %v2681 = vrot.slane %v2663, %v2680
      %v2683 = vmul.f32 %v2676, %v2681
      %v2685 = vlaneseq
      %v2686 = vshrl.u32 %v2685, 7
      %v2687 = vsub.s32 0, %v2686
      %v2688 = vrot.slane %v2664, %v2687
      %v2690 = vadd.f32 %v2683, %v2688
      %v2691 = vmul.f32 %v2690, 0.5
      %v2692 = vmul.f32 %v2690, 0.70710677
      %v2693 = verf.f32.pop %v2692
      %v2694 = vadd.f32 %v2693, 1.0
      %v2695 = vmul.f32 %v2691, %v2694
      %v2696 = vld [vmem:[#allocation19] sm:$0x1]
      %v2698 = vlaneseq
      %v2699 = vshrl.u32 %v2698, 7
      %v2700 = vsub.s32 0, %v2699
      %v2701 = vrot.slane %v2696, %v2700
      %v2703 = vmul.f32 %v2695, %v2701
      %2704 = vadd.xlane.f32.xlu0 %v2703
      %v2705 = vpop.xlane.xlu0 %2704
      %v2706 = vld [vmem:[#allocation5] sm:$0x1]
      %v2708 = vlaneseq
      %v2709 = vshrl.u32 %v2708, 7
      %v2710 = vsub.s32 0, %v2709
      %v2711 = vrot.slane %v2706, %v2710
      %v2713 = vadd.f32 %v2705, %v2711
      %v2714 = vxor.u32 %v2713, 2147483648
      %v2715 = vmul.f32 %v2714, 1.442695
      %v2716 = vpow.pop %v2715
      %v2717 = vadd.f32 %v2716, 1.0
      %v2718 = vrcp.pop %v2717
      %v2719 = vmul.f32 1.0, %v2718
      %2721 = vset.pattern.permute.xlu0 0
      %2722 = vperm.xlu0 %2721, %v2719
      %v2723 = vpop.permute.xlu0 %2722
      %2725 = vst [vmem:[%s14] sm:$0xff] %v2723
    $region101: #{_forward_impl.1} parent=1 // pred_fallthru
      _
    // Predicated region
    $region102: #{_forward_impl.1} parent=1 // pred_check
      _
    $region103: #{_forward_impl.1} parent=1 // pred_check_branch
      %2727 = sbr.rel (0) target = $region105
    $region104: #{_forward_impl.1} parent=1 // pred_region
      _
    $region105: #{_forward_impl.1} parent=1 // pred_fallthru
      _
    // Predicated region
    $region106: #{_forward_impl.1} parent=1 // pred_check
      _
    $region107: #{_forward_impl.1} parent=1 // pred_check_branch
      %2729 = sbr.rel (0) target = $region109
    $region108: #{_forward_impl.1} parent=1 // pred_region
      _
    $region109: #{_forward_impl.1} parent=1 // pred_fallthru
      _
    %2730 = vsyncpa [#allocation7], 1
    %2731 = vsyncpa [#allocation9], 1
    %2732 = vsyncpa [#allocation12], 1
    %2733 = vsyncpa [#allocation15], 1
    %2734 = vsyncpa [#allocation18], 1

// kernel: _forward_impl.1
$region0: #{_forward_impl.1}
  #allocation0 [shape = 'u32[]', space=smem, size = 0x4, offset = 0x4, fixed_abs, tag = 'smem constant byte address 0x4 - core index']
  #allocation1 [shape = 'u32[144,128]{1,0:T(1,128)}', space=vmem, size = 0x12000, scoped, tag = 'internal scratch']
  #allocation2 [shape = 'f32[8,1024]{1,0:T(8,128)}', space=vmem, size = 0x8000, scoped, tag = 'scratch operand']
  #allocation3 [shape = 's32[1]{0}', space=sflag, size = 0x4, scoped, tag = 'scoped memory for _forward_impl.1']
  #allocation4 [shape = 's32[1]{0:T(128)S(6)}', space=smem, size = 0x200, scoped, tag = 'prefetched SMEM operand 0']
  #allocation5 [shape = 'f32[1,1]{1,0:T(1,128)S(1)}', space=vmem, size = 0x200, scoped, tag = 'scoped memory for _forward_impl.1']
  %s0 = inlined_call_operand.<no memory space> [shape: s32[1], index: 0, kind: input, shape index: {}]
  %s1 = inlined_call_operand.vmem [shape: bf16[8,16,1], index: 1, kind: input, shape index: {}]
  %s2 = inlined_call_operand.vmem [shape: f32[8,16,1024], index: 2, kind: input, shape index: {}]
  %s3 = inlined_call_operand.vmem [shape: f32[8,1], index: 3, kind: input, shape index: {}]
  %s4 = inlined_call_operand.hbm [shape: f32[1024,512], index: 4, kind: input, shape index: {}]
  %s5 = inlined_call_operand.hbm [shape: f32[1,512], index: 5, kind: input, shape index: {}]
  %s6 = inlined_call_operand.hbm [shape: f32[1,512], index: 6, kind: input, shape index: {}]
  %s7 = inlined_call_operand.hbm [shape: f32[1,512], index: 7, kind: input, shape index: {}]
  %s8 = inlined_call_operand.hbm [shape: f32[512,128], index: 8, kind: input, shape index: {}]
  %s9 = inlined_call_operand.hbm [shape: f32[1,128], index: 9, kind: input, shape index: {}]
  %s10 = inlined_call_operand.hbm [shape: f32[1,128], index: 10, kind: input, shape index: {}]
  %s11 = inlined_call_operand.hbm [shape: f32[1,128], index: 11, kind: input, shape index: {}]
  %s12 = inlined_call_operand.hbm [shape: f32[1,128], index: 12, kind: input, shape index: {}]
  %s13 = inlined_call_operand.<no memory space> [shape: f32[1,1], index: 13, kind: input, shape index: {}]
  %s14 = inlined_call_operand.vmem [shape: f32[8,128], index: 14, kind: output, shape index: {}]
  %s15 = sld [smem:[#allocation0]]
  $region110: #{_forward_impl.1} parent=0
    _
  %s17 = ssub.s32 1, %s15
  %s18 = scalar_select 0, %s17, %s15
  %19 = sst [smem:[#allocation4]] %s0
  %v20 = vstv %s13
  %21 = vst [vmem:[#allocation5] sm:$0x1] %v20
  $region1: #{_forward_impl.1} parent=0
    #allocation6 [shape = 'u8[2097152]{0}', space=vmem, size = 0x200000, scoped, tag = 'input window, operand 4, single buffered']
    #allocation7 [shape = 's32[1]{0}', space=sflag, size = 0x4, scoped, tag = 'scoped memory for _forward_impl.1']
    #allocation8 [shape = 'u8[2048]{0}', space=vmem, size = 0x800, scoped, tag = 'input window, operand 5, single buffered']
    #allocation9 [shape = 's32[1]{0}', space=sflag, size = 0x4, scoped, tag = 'scoped memory for _forward_impl.1']
    #allocation10 [shape = 'u8[2048]{0}', space=vmem, size = 0x800, scoped, tag = 'input window, operand 6, single buffered']
    #allocation11 [shape = 'u8[2048]{0}', space=vmem, size = 0x800, scoped, tag = 'input window, operand 7, single buffered']
    #allocation12 [shape = 's32[1]{0}', space=sflag, size = 0x4, scoped, tag = 'scoped memory for _forward_impl.1']
    #allocation13 [shape = 'u8[262144]{0}', space=vmem, size = 0x40000, scoped, tag = 'input window, operand 8, single buffered']
    #allocation14 [shape = 'u8[512]{0}', space=vmem, size = 0x400, scoped, tag = 'input window, operand 9, single buffered']
    #allocation15 [shape = 's32[1]{0}', space=sflag, size = 0x4, scoped, tag = 'scoped memory for _forward_impl.1']
    #allocation16 [shape = 'u8[512]{0}', space=vmem, size = 0x400, scoped, tag = 'input window, operand 10, single buffered']
    #allocation17 [shape = 'u8[512]{0}', space=vmem, size = 0x400, scoped, tag = 'input window, operand 11, single buffered']
    #allocation18 [shape = 's32[1]{0}', space=sflag, size = 0x4, scoped, tag = 'scoped memory for _forward_impl.1']
    #allocation19 [shape = 'u8[512]{0}', space=vmem, size = 0x400, scoped, tag = 'input window, operand 12, single buffered']
    %22 = vsyncpa [#allocation7], 0
    %23 = vsyncpa [#allocation9], 0
    %24 = vsyncpa [#allocation12], 0
    %25 = vsyncpa [#allocation15], 0
    %26 = vsyncpa [#allocation18], 0
    // Predicated region
    $region2: #{_forward_impl.1} parent=1 // pred_check
      _
    $region3: #{_forward_impl.1} parent=1 // pred_check_branch
      %28 = sbr.rel (0) target = $region5
    $region4: #{_forward_impl.1} parent=1 // pred_region
      %s29 = sld [smem:[#allocation4]]
      %s30 = ssub.s32 %s29, 1
      %p31 = scmp.lt.s32.totalorder 0, %s30
      %s32 = scalar_select %p31, 0, %s30
      %s33 = smul.u32 2, %s32
      %p34 = scmp.lt.s32.totalorder %s33, 1
      %s35 = scalar_select %p34, %s33, 1
      %s36 = smul.addr %s35, 4
      %s37 = scalar_lea.vmem %s1, %s36
      %s38 = sld [smem:[#allocation4]]
      %s39 = ssub.s32 %s38, 1
      %p40 = scmp.lt.s32.totalorder 0, %s39
      %s41 = scalar_select %p40, 0, %s39
      %s42 = smul.u32 2, %s41
    $region5: #{_forward_impl.1} parent=1 // pred_fallthru
      _
    // Predicated region
    $region6: #{_forward_impl.1} parent=1 // pred_check
      _
    $region7: #{_forward_impl.1} parent=1 // pred_check_branch
      %44 = sbr.rel (0) target = $region9
    $region8: #{_forward_impl.1} parent=1 // pred_region
      %s45 = sld [smem:[#allocation4]]
      %s46 = ssub.s32 %s45, 1
      %p47 = scmp.lt.s32.totalorder 0, %s46
      %s48 = scalar_select %p47, 0, %s46
      %s49 = smul.u32 2, %s48
      %p50 = scmp.lt.s32.totalorder %s49, 1
      %s51 = scalar_select %p50, %s49, 1
      %s52 = smul.addr %s51, 8
      %s53 = smul.addr %s52, 8
      %s54 = scalar_lea.vmem %s2, %s53
      %s55 = sld [smem:[#allocation4]]
      %s56 = ssub.s32 %s55, 1
      %p57 = scmp.lt.s32.totalorder 0, %s56
      %s58 = scalar_select %p57, 0, %s56
      %s59 = smul.u32 2, %s58
    $region9: #{_forward_impl.1} parent=1 // pred_fallthru
      _
    // Predicated region
    $region10: #{_forward_impl.1} parent=1 // pred_check
      _
    $region11: #{_forward_impl.1} parent=1 // pred_check_branch
      %61 = sbr.rel (0) target = $region13
    $region12: #{_forward_impl.1} parent=1 // pred_region
      _
    $region13: #{_forward_impl.1} parent=1 // pred_fallthru
      _
    // Predicated region
    $region14: #{_forward_impl.1} parent=1 // pred_check
      _
    $region15: #{_forward_impl.1} parent=1 // pred_check_branch
      %63 = sbr.rel (0) target = $region17
    $region16: #{_forward_impl.1} parent=1 // pred_region
      %s65 = ssub.s32 65536, 65536
      %66 = vsyncadd [#allocation7], %s65
      %s67 = sshll.u32 [#allocation6], 4
      %s68 = int_to_ptr.vmem [resolvable:$true] %s67
      %73 = dma.hbm_to_vmem [thread:$0]  %s4, 65536, %s68, [#allocation7], 512, 512, 32
    $region17: #{_forward_impl.1} parent=1 // pred_fallthru
      _
    // Predicated region
    $region18: #{_forward_impl.1} parent=1 // pred_check
      _
    $region19: #{_forward_impl.1} parent=1 // pred_check_branch
      %75 = sbr.rel (0) target = $region21
    $region20: #{_forward_impl.1} parent=1 // pred_region
      %s77 = ssub.s32 64, 64
      %78 = vsyncadd [#allocation9], %s77
      %s80 = sshll.u32 [#allocation8], 4
      %s81 = int_to_ptr.vmem [resolvable:$true] %s80
      %83 = dma.hbm_to_vmem [thread:$0]  %s5, 64, %s81, [#allocation9]
    $region21: #{_forward_impl.1} parent=1 // pred_fallthru
      _
    // Predicated region
    $region22: #{_forward_impl.1} parent=1 // pred_check
      _
    $region23: #{_forward_impl.1} parent=1 // pred_check_branch
      %85 = sbr.rel (0) target = $region25
    $region24: #{_forward_impl.1} parent=1 // pred_region
      %s87 = ssub.s32 64, 64
      %88 = vsyncadd [#allocation9], %s87
      %s90 = sshll.u32 [#allocation10], 4
      %s91 = int_to_ptr.vmem [resolvable:$true] %s90
      %93 = dma.hbm_to_vmem [thread:$0]  %s6, 64, %s91, [#allocation9]
    $region25: #{_forward_impl.1} parent=1 // pred_fallthru
      _
    // Predicated region
    $region26: #{_forward_impl.1} parent=1 // pred_check
      _
    $region27: #{_forward_impl.1} parent=1 // pred_check_branch
      %95 = sbr.rel (0) target = $region29
    $region28: #{_forward_impl.1} parent=1 // pred_region
      %s97 = ssub.s32 64, 64
      %98 = vsyncadd [#allocation12], %s97
      %s100 = sshll.u32 [#allocation11], 4
      %s101 = int_to_ptr.vmem [resolvable:$true] %s100
      %103 = dma.hbm_to_vmem [thread:$0]  %s7, 64, %s101, [#allocation12]
    $region29: #{_forward_impl.1} parent=1 // pred_fallthru
      _
    // Predicated region
    $region30: #{_forward_impl.1} parent=1 // pred_check
      _
    $region31: #{_forward_impl.1} parent=1 // pred_check_branch
      %105 = sbr.rel (0) target = $region33
    $region32: #{_forward_impl.1} parent=1 // pred_region
      %s107 = ssub.s32 8192, 8192
      %108 = vsyncadd [#allocation12], %s107
      %s109 = sshll.u32 [#allocation13], 4
      %s110 = int_to_ptr.vmem [resolvable:$true] %s109
      %115 = dma.hbm_to_vmem [thread:$0]  %s8, 8192, %s110, [#allocation12], 128, 128, 8
    $region33: #{_forward_impl.1} parent=1 // pred_fallthru
      _
    // Predicated region
    $region34: #{_forward_impl.1} parent=1 // pred_check
      _
    $region35: #{_forward_impl.1} parent=1 // pred_check_branch
      %117 = sbr.rel (0) target = $region37
    $region36: #{_forward_impl.1} parent=1 // pred_region
      %s119 = ssub.s32 16, 16
      %120 = vsyncadd [#allocation15], %s119
      %s122 = sshll.u32 [#allocation14], 4
      %s123 = int_to_ptr.vmem [resolvable:$true] %s122
      %125 = dma.hbm_to_vmem [thread:$0]  %s9, 16, %s123, [#allocation15]
    $region37: #{_forward_impl.1} parent=1 // pred_fallthru
      _
    // Predicated region
    $region38: #{_forward_impl.1} parent=1 // pred_check
      _
    $region39: #{_forward_impl.1} parent=1 // pred_check_branch
      %127 = sbr.rel (0) target = $region41
    $region40: #{_forward_impl.1} parent=1 // pred_region
      %s129 = ssub.s32 16, 16
      %130 = vsyncadd [#allocation15], %s129
      %s132 = sshll.u32 [#allocation16], 4
      %s133 = int_to_ptr.vmem [resolvable:$true] %s132
      %135 = dma.hbm_to_vmem [thread:$0]  %s10, 16, %s133, [#allocation15]
    $region41: #{_forward_impl.1} parent=1 // pred_fallthru
      _
    // Predicated region
    $region42: #{_forward_impl.1} parent=1 // pred_check
      _
    $region43: #{_forward_impl.1} parent=1 // pred_check_branch
      %137 = sbr.rel (0) target = $region45
    $region44: #{_forward_impl.1} parent=1 // pred_region
      %s139 = ssub.s32 16, 16
      %140 = vsyncadd [#allocation18], %s139
      %s142 = sshll.u32 [#allocation17], 4
      %s143 = int_to_ptr.vmem [resolvable:$true] %s142
      %145 = dma.hbm_to_vmem [thread:$0]  %s11, 16, %s143, [#allocation18]
    $region45: #{_forward_impl.1} parent=1 // pred_fallthru
      _
    // Predicated region
    $region46: #{_forward_impl.1} parent=1 // pred_check
      _
    $region47: #{_forward_impl.1} parent=1 // pred_check_branch
      %147 = sbr.rel (0) target = $region49
    $region48: #{_forward_impl.1} parent=1 // pred_region
      %s149 = ssub.s32 16, 16
      %150 = vsyncadd [#allocation18], %s149
      %s152 = sshll.u32 [#allocation19], 4
      %s153 = int_to_ptr.vmem [resolvable:$true] %s152
      %155 = dma.hbm_to_vmem [thread:$0]  %s12, 16, %s153, [#allocation18]
    $region49: #{_forward_impl.1} parent=1 // pred_fallthru
      _
    // Predicated region
    $region50: #{_forward_impl.1} parent=1 // pred_check
      _
    $region51: #{_forward_impl.1} parent=1 // pred_check_branch
      %157 = sbr.rel (0) target = $region53
    $region52: #{_forward_impl.1} parent=1 // pred_region
      _
    $region53: #{_forward_impl.1} parent=1 // pred_fallthru
      _
    // Predicated region
    $region54: #{_forward_impl.1} parent=1 // pred_check
      _
    $region55: #{_forward_impl.1} parent=1 // pred_check_branch
      %159 = sbr.rel (0) target = $region57
    $region56: #{_forward_impl.1} parent=1 // pred_region
      %160 = dma.done [#allocation7], 65536
    $region57: #{_forward_impl.1} parent=1 // pred_fallthru
      _
    // Predicated region
    $region58: #{_forward_impl.1} parent=1 // pred_check
      _
    $region59: #{_forward_impl.1} parent=1 // pred_check_branch
      %162 = sbr.rel (0) target = $region61
    $region60: #{_forward_impl.1} parent=1 // pred_region
      %163 = dma.done [#allocation9], 64
    $region61: #{_forward_impl.1} parent=1 // pred_fallthru
      _
    // Predicated region
    $region62: #{_forward_impl.1} parent=1 // pred_check
      _
    $region63: #{_forward_impl.1} parent=1 // pred_check_branch
      %165 = sbr.rel (0) target = $region65
    $region64: #{_forward_impl.1} parent=1 // pred_region
      %166 = dma.done [#allocation9], 64
    $region65: #{_forward_impl.1} parent=1 // pred_fallthru
      _
    // Predicated region
    $region66: #{_forward_impl.1} parent=1 // pred_check
      _
    $region67: #{_forward_impl.1} parent=1 // pred_check_branch
      %168 = sbr.rel (0) target = $region69
    $region68: #{_forward_impl.1} parent=1 // pred_region
      %169 = dma.done [#allocation12], 64
    $region69: #{_forward_impl.1} parent=1 // pred_fallthru
      _
    // Predicated region
    $region70: #{_forward_impl.1} parent=1 // pred_check
      _
    $region71: #{_forward_impl.1} parent=1 // pred_check_branch
      %171 = sbr.rel (0) target = $region73
    $region72: #{_forward_impl.1} parent=1 // pred_region
      %172 = dma.done [#allocation12], 8192
    $region73: #{_forward_impl.1} parent=1 // pred_fallthru
      _
    // Predicated region
    $region74: #{_forward_impl.1} parent=1 // pred_check
      _
    $region75: #{_forward_impl.1} parent=1 // pred_check_branch
      %174 = sbr.rel (0) target = $region77
    $region76: #{_forward_impl.1} parent=1 // pred_region
      %175 = dma.done [#allocation15], 16
    $region77: #{_forward_impl.1} parent=1 // pred_fallthru
      _
    // Predicated region
    $region78: #{_forward_impl.1} parent=1 // pred_check
      _
    $region79: #{_forward_impl.1} parent=1 // pred_check_branch
      %177 = sbr.rel (0) target = $region81
    $region80: #{_forward_impl.1} parent=1 // pred_region
      %178 = dma.done [#allocation15], 16
    $region81: #{_forward_impl.1} parent=1 // pred_fallthru
      _
    // Predicated region
    $region82: #{_forward_impl.1} parent=1 // pred_check
      _
    $region83: #{_forward_impl.1} parent=1 // pred_check_branch
      %180 = sbr.rel (0) target = $region85
    $region84: #{_forward_impl.1} parent=1 // pred_region
      %181 = dma.done [#allocation18], 16
    $region85: #{_forward_impl.1} parent=1 // pred_fallthru
      _
    // Predicated region
    $region86: #{_forward_impl.1} parent=1 // pred_check
      _
    $region87: #{_forward_impl.1} parent=1 // pred_check_branch
      %183 = sbr.rel (0) target = $region89
    $region88: #{_forward_impl.1} parent=1 // pred_region
      %184 = dma.done [#allocation18], 16
    $region89: #{_forward_impl.1} parent=1 // pred_fallthru
      _
    %s185 = sld [smem:[#allocation4]]
    %s186 = ssub.s32 %s185, 1
    %p187 = scmp.lt.s32.totalorder 0, %s186
    %s188 = scalar_select %p187, 0, %s186
    %s189 = smul.u32 2, %s188
    %p190 = scmp.lt.s32.totalorder %s189, 1
    %s191 = scalar_select %p190, %s189, 1
    %s192 = smul.addr %s191, 4
    %s193 = scalar_lea.vmem %s1, %s192
    %s194 = sld [smem:[#allocation4]]
    %s195 = ssub.s32 %s194, 1
    %p196 = scmp.lt.s32.totalorder 0, %s195
    %s197 = scalar_select %p196, 0, %s195
    %s198 = smul.u32 2, %s197
    %p199 = scmp.lt.s32.totalorder %s198, 1
    %s200 = scalar_select %p199, %s198, 1
    %s201 = smul.addr %s200, 8
    %s202 = smul.addr %s201, 8
    %s203 = scalar_lea.vmem %s2, %s202
    %s204 = sld [smem:[#allocation4]]
    %s205 = ssub.s32 %s204, 1
    %p206 = scmp.lt.s32.totalorder 0, %s205
    %s207 = scalar_select %p206, 0, %s205
    %s208 = smul.u32 2, %s207
    %p209 = scmp.lt.s32.totalorder %s208, 1
    %s210 = scalar_select %p209, %s208, 1
    %s211 = smul.addr %s210, 4
    %s212 = scalar_lea.vmem %s1, %s211
    %s213 = sld [smem:[#allocation4]]
    %s214 = ssub.s32 %s213, 1
    %p215 = scmp.lt.s32.totalorder 0, %s214
    %s216 = scalar_select %p215, 0, %s214
    %s217 = smul.u32 2, %s216
    %s218 = sld [smem:[#allocation4]]
    %s219 = ssub.s32 %s218, 1
    %p220 = scmp.lt.s32.totalorder 0, %s219
    %s221 = scalar_select %p220, 0, %s219
    %s222 = smul.u32 2, %s221
    %p223 = scmp.lt.s32.totalorder %s222, 1
    %s224 = scalar_select %p223, %s222, 1
    %s225 = smul.addr %s224, 8
    %s226 = smul.addr %s225, 8
    %s227 = scalar_lea.vmem %s2, %s226
    %s228 = sld [smem:[#allocation4]]
    %s229 = ssub.s32 %s228, 1
    %p230 = scmp.lt.s32.totalorder 0, %s229
    %s231 = scalar_select %p230, 0, %s229
    %s232 = smul.u32 2, %s231
    %p233 = scmp.eq.s32.totalorder 0, 0
    // Predicated region
    $region90: #{_forward_impl.1} parent=1 // pred_check
      %p234 = pneg %p233
    $region91: #{_forward_impl.1} parent=1 // pred_check_branch
      %236 = sbr.rel (%p234) target = $region93
    $region92: #{_forward_impl.1} parent=1 // pred_region
      %237 = vst [vmem:[#allocation2] sm:$0xff] 0.0
      %238 = vst [vmem:[#allocation2 + $0x8] sm:$0xff] 0.0
      %239 = vst [vmem:[#allocation2 + $0x10] sm:$0xff] 0.0
      %240 = vst [vmem:[#allocation2 + $0x18] sm:$0xff] 0.0
      %241 = vst [vmem:[#allocation2 + $0x20] sm:$0xff] 0.0
      %242 = vst [vmem:[#allocation2 + $0x28] sm:$0xff] 0.0
      %243 = vst [vmem:[#allocation2 + $0x30] sm:$0xff] 0.0
      %244 = vst [vmem:[#allocation2 + $0x38] sm:$0xff] 0.0
    $region93: #{_forward_impl.1} parent=1 // pred_fallthru
      _
    %s245 = sld [smem:[#allocation4]]
    %p246 = scmp.lt.s32.totalorder 0, %s245
    // Predicated region
    $region94: #{_forward_impl.1} parent=1 // pred_check
      %p247 = pneg %p246
    $region95: #{_forward_impl.1} parent=1 // pred_check_branch
      %249 = sbr.rel (%p247) target = $region97
    $region96: #{_forward_impl.1} parent=1 // pred_region
      %v250 = vld [vmem:[%s227] sm:$0xff]
      %v251 = vld [vmem:[%s227 + $0x8] sm:$0xff]
      %v252 = vld [vmem:[%s227 + $0x10] sm:$0xff]
      %v253 = vld [vmem:[%s227 + $0x18] sm:$0xff]
      %v254 = vld [vmem:[%s227 + $0x20] sm:$0xff]
      %v255 = vld [vmem:[%s227 + $0x28] sm:$0xff]
      %v256 = vld [vmem:[%s227 + $0x30] sm:$0xff]
      %v257 = vld [vmem:[%s227 + $0x38] sm:$0xff]
      %v258 = vld [vmem:[%s227 + $0x40] sm:$0xff]
      %v259 = vld [vmem:[%s227 + $0x48] sm:$0xff]
      %v260 = vld [vmem:[%s227 + $0x50] sm:$0xff]
      %v261 = vld [vmem:[%s227 + $0x58] sm:$0xff]
      %v262 = vld [vmem:[%s227 + $0x60] sm:$0xff]
      %v263 = vld [vmem:[%s227 + $0x68] sm:$0xff]
      %v264 = vld [vmem:[%s227 + $0x70] sm:$0xff]
      %v265 = vld [vmem:[%s227 + $0x78] sm:$0xff]
      %v266 = vld [vmem:[%s227 + $0x80] sm:$0xff]
      %v267 = vld [vmem:[%s227 + $0x88] sm:$0xff]
      %v268 = vld [vmem:[%s227 + $0x90] sm:$0xff]
      %v269 = vld [vmem:[%s227 + $0x98] sm:$0xff]
      %v270 = vld [vmem:[%s227 + $0xa0] sm:$0xff]
      %v271 = vld [vmem:[%s227 + $0xa8] sm:$0xff]
      %v272 = vld [vmem:[%s227 + $0xb0] sm:$0xff]
      %v273 = vld [vmem:[%s227 + $0xb8] sm:$0xff]
      %v274 = vld [vmem:[%s227 + $0xc0] sm:$0xff]
      %v275 = vld [vmem:[%s227 + $0xc8] sm:$0xff]
      %v276 = vld [vmem:[%s227 + $0xd0] sm:$0xff]
      %v277 = vld [vmem:[%s227 + $0xd8] sm:$0xff]
      %v278 = vld [vmem:[%s227 + $0xe0] sm:$0xff]
      %v279 = vld [vmem:[%s227 + $0xe8] sm:$0xff]
      %v280 = vld [vmem:[%s227 + $0xf0] sm:$0xff]
      %v281 = vld [vmem:[%s227 + $0xf8] sm:$0xff]
      %v282 = vld [vmem:[%s227 + $0x100] sm:$0xff]
      %v283 = vld [vmem:[%s227 + $0x108] sm:$0xff]
      %v284 = vld [vmem:[%s227 + $0x110] sm:$0xff]
      %v285 = vld [vmem:[%s227 + $0x118] sm:$0xff]
      %v286 = vld [vmem:[%s227 + $0x120] sm:$0xff]
      %v287 = vld [vmem:[%s227 + $0x128] sm:$0xff]
      %v288 = vld [vmem:[%s227 + $0x130] sm:$0xff]
      %v289 = vld [vmem:[%s227 + $0x138] sm:$0xff]
      %v290 = vld [vmem:[%s227 + $0x140] sm:$0xff]
      %v291 = vld [vmem:[%s227 + $0x148] sm:$0xff]
      %v292 = vld [vmem:[%s227 + $0x150] sm:$0xff]
      %v293 = vld [vmem:[%s227 + $0x158] sm:$0xff]
      %v294 = vld [vmem:[%s227 + $0x160] sm:$0xff]
      %v295 = vld [vmem:[%s227 + $0x168] sm:$0xff]
      %v296 = vld [vmem:[%s227 + $0x170] sm:$0xff]
      %v297 = vld [vmem:[%s227 + $0x178] sm:$0xff]
      %v298 = vld [vmem:[%s227 + $0x180] sm:$0xff]
      %v299 = vld [vmem:[%s227 + $0x188] sm:$0xff]
      %v300 = vld [vmem:[%s227 + $0x190] sm:$0xff]
      %v301 = vld [vmem:[%s227 + $0x198] sm:$0xff]
      %v302 = vld [vmem:[%s227 + $0x1a0] sm:$0xff]
      %v303 = vld [vmem:[%s227 + $0x1a8] sm:$0xff]
      %v304 = vld [vmem:[%s227 + $0x1b0] sm:$0xff]
      %v305 = vld [vmem:[%s227 + $0x1b8] sm:$0xff]
      %v306 = vld [vmem:[%s227 + $0x1c0] sm:$0xff]
      %v307 = vld [vmem:[%s227 + $0x1c8] sm:$0xff]
      %v308 = vld [vmem:[%s227 + $0x1d0] sm:$0xff]
      %v309 = vld [vmem:[%s227 + $0x1d8] sm:$0xff]
      %v310 = vld [vmem:[%s227 + $0x1e0] sm:$0xff]
      %v311 = vld [vmem:[%s227 + $0x1e8] sm:$0xff]
      %v312 = vld [vmem:[%s227 + $0x1f0] sm:$0xff]
      %v313 = vld [vmem:[%s227 + $0x1f8] sm:$0xff]
      %v314 = vld [vmem:[%s227 + $0x200] sm:$0xff]
      %v315 = vld [vmem:[%s227 + $0x208] sm:$0xff]
      %v316 = vld [vmem:[%s227 + $0x210] sm:$0xff]
      %v317 = vld [vmem:[%s227 + $0x218] sm:$0xff]
      %v318 = vld [vmem:[%s227 + $0x220] sm:$0xff]
      %v319 = vld [vmem:[%s227 + $0x228] sm:$0xff]
      %v320 = vld [vmem:[%s227 + $0x230] sm:$0xff]
      %v321 = vld [vmem:[%s227 + $0x238] sm:$0xff]
      %v322 = vld [vmem:[%s227 + $0x240] sm:$0xff]
      %v323 = vld [vmem:[%s227 + $0x248] sm:$0xff]
      %v324 = vld [vmem:[%s227 + $0x250] sm:$0xff]
      %v325 = vld [vmem:[%s227 + $0x258] sm:$0xff]
      %v326 = vld [vmem:[%s227 + $0x260] sm:$0xff]
      %v327 = vld [vmem:[%s227 + $0x268] sm:$0xff]
      %v328 = vld [vmem:[%s227 + $0x270] sm:$0xff]
      %v329 = vld [vmem:[%s227 + $0x278] sm:$0xff]
      %v330 = vld [vmem:[%s227 + $0x280] sm:$0xff]
      %v331 = vld [vmem:[%s227 + $0x288] sm:$0xff]
      %v332 = vld [vmem:[%s227 + $0x290] sm:$0xff]
      %v333 = vld [vmem:[%s227 + $0x298] sm:$0xff]
      %v334 = vld [vmem:[%s227 + $0x2a0] sm:$0xff]
      %v335 = vld [vmem:[%s227 + $0x2a8] sm:$0xff]
      %v336 = vld [vmem:[%s227 + $0x2b0] sm:$0xff]
      %v337 = vld [vmem:[%s227 + $0x2b8] sm:$0xff]
      %v338 = vld [vmem:[%s227 + $0x2c0] sm:$0xff]
      %v339 = vld [vmem:[%s227 + $0x2c8] sm:$0xff]
      %v340 = vld [vmem:[%s227 + $0x2d0] sm:$0xff]
      %v341 = vld [vmem:[%s227 + $0x2d8] sm:$0xff]
      %v342 = vld [vmem:[%s227 + $0x2e0] sm:$0xff]
      %v343 = vld [vmem:[%s227 + $0x2e8] sm:$0xff]
      %v344 = vld [vmem:[%s227 + $0x2f0] sm:$0xff]
      %v345 = vld [vmem:[%s227 + $0x2f8] sm:$0xff]
      %v346 = vld [vmem:[%s227 + $0x300] sm:$0xff]
      %v347 = vld [vmem:[%s227 + $0x308] sm:$0xff]
      %v348 = vld [vmem:[%s227 + $0x310] sm:$0xff]
      %v349 = vld [vmem:[%s227 + $0x318] sm:$0xff]
      %v350 = vld [vmem:[%s227 + $0x320] sm:$0xff]
      %v351 = vld [vmem:[%s227 + $0x328] sm:$0xff]
      %v352 = vld [vmem:[%s227 + $0x330] sm:$0xff]
      %v353 = vld [vmem:[%s227 + $0x338] sm:$0xff]
      %v354 = vld [vmem:[%s227 + $0x340] sm:$0xff]
      %v355 = vld [vmem:[%s227 + $0x348] sm:$0xff]
      %v356 = vld [vmem:[%s227 + $0x350] sm:$0xff]
      %v357 = vld [vmem:[%s227 + $0x358] sm:$0xff]
      %v358 = vld [vmem:[%s227 + $0x360] sm:$0xff]
      %v359 = vld [vmem:[%s227 + $0x368] sm:$0xff]
      %v360 = vld [vmem:[%s227 + $0x370] sm:$0xff]
      %v361 = vld [vmem:[%s227 + $0x378] sm:$0xff]
      %v362 = vld [vmem:[%s227 + $0x380] sm:$0xff]
      %v363 = vld [vmem:[%s227 + $0x388] sm:$0xff]
      %v364 = vld [vmem:[%s227 + $0x390] sm:$0xff]
      %v365 = vld [vmem:[%s227 + $0x398] sm:$0xff]
      %v366 = vld [vmem:[%s227 + $0x3a0] sm:$0xff]
      %v367 = vld [vmem:[%s227 + $0x3a8] sm:$0xff]
      %v368 = vld [vmem:[%s227 + $0x3b0] sm:$0xff]
      %v369 = vld [vmem:[%s227 + $0x3b8] sm:$0xff]
      %v370 = vld [vmem:[%s227 + $0x3c0] sm:$0xff]
      %v371 = vld [vmem:[%s227 + $0x3c8] sm:$0xff]
      %v372 = vld [vmem:[%s227 + $0x3d0] sm:$0xff]
      %v373 = vld [vmem:[%s227 + $0x3d8] sm:$0xff]
      %v374 = vld [vmem:[%s227 + $0x3e0] sm:$0xff]
      %v375 = vld [vmem:[%s227 + $0x3e8] sm:$0xff]
      %v376 = vld [vmem:[%s227 + $0x3f0] sm:$0xff]
      %v377 = vld [vmem:[%s227 + $0x3f8] sm:$0xff]
      %v378 = vld [vmem:[%s212] sm:$0xf]
      %v379 = vld [vmem:[%s212 + $0x4] sm:$0xf]
      %v380 = vld [vmem:[%s212 + $0x8] sm:$0xf]
      %v381 = vld [vmem:[%s212 + $0xc] sm:$0xf]
      %v382 = vld [vmem:[%s212 + $0x10] sm:$0xf]
      %v383 = vld [vmem:[%s212 + $0x14] sm:$0xf]
      %v384 = vld [vmem:[%s212 + $0x18] sm:$0xf]
      %v385 = vld [vmem:[%s212 + $0x1c] sm:$0xf]
      %v386 = vld [vmem:[%s212 + $0x20] sm:$0xf]
      %v387 = vld [vmem:[%s212 + $0x24] sm:$0xf]
      %v388 = vld [vmem:[%s212 + $0x28] sm:$0xf]
      %v389 = vld [vmem:[%s212 + $0x2c] sm:$0xf]
      %v390 = vld [vmem:[%s212 + $0x30] sm:$0xf]
      %v391 = vld [vmem:[%s212 + $0x34] sm:$0xf]
      %v392 = vld [vmem:[%s212 + $0x38] sm:$0xf]
      %v393 = vld [vmem:[%s212 + $0x3c] sm:$0xf]
      %v394 = vunpack.c.l.bf16 %v378
      %v395 = vunpack.c.l.bf16 %v379
      %v396 = vunpack.c.l.bf16 %v380
      %v397 = vunpack.c.l.bf16 %v381
      %v398 = vunpack.c.l.bf16 %v382
      %v399 = vunpack.c.l.bf16 %v383
      %v400 = vunpack.c.l.bf16 %v384
      %v401 = vunpack.c.l.bf16 %v385
      %v402 = vunpack.c.l.bf16 %v386
      %v403 = vunpack.c.l.bf16 %v387
      %v404 = vunpack.c.l.bf16 %v388
      %v405 = vunpack.c.l.bf16 %v389
      %v406 = vunpack.c.l.bf16 %v390
      %v407 = vunpack.c.l.bf16 %v391
      %v408 = vunpack.c.l.bf16 %v392
      %v409 = vunpack.c.l.bf16 %v393
      %v410 = vld [vmem:[#allocation2] sm:$0xff]
      %v411 = vld [vmem:[#allocation2 + $0x8] sm:$0xff]
      %v412 = vld [vmem:[#allocation2 + $0x10] sm:$0xff]
      %v413 = vld [vmem:[#allocation2 + $0x18] sm:$0xff]
      %v414 = vld [vmem:[#allocation2 + $0x20] sm:$0xff]
      %v415 = vld [vmem:[#allocation2 + $0x28] sm:$0xff]
      %v416 = vld [vmem:[#allocation2 + $0x30] sm:$0xff]
      %v417 = vld [vmem:[#allocation2 + $0x38] sm:$0xff]
      %419 = vset.pattern.permute.xlu0 0
      %420 = vperm.xlu0 %419, %v394
      %v421 = vpop.permute.xlu0 %420
      %424 = vset.pattern.permute.xlu0 0
      %425 = vperm.xlu0 %424, %v395
      %v426 = vpop.permute.xlu0 %425
      %429 = vset.pattern.permute.xlu0 0
      %430 = vperm.xlu0 %429, %v396
      %v431 = vpop.permute.xlu0 %430
      %434 = vset.pattern.permute.xlu0 0
      %435 = vperm.xlu0 %434, %v397
      %v436 = vpop.permute.xlu0 %435
      %439 = vset.pattern.permute.xlu0 0
      %440 = vperm.xlu0 %439, %v398
      %v441 = vpop.permute.xlu0 %440
      %444 = vset.pattern.permute.xlu0 0
      %445 = vperm.xlu0 %444, %v399
      %v446 = vpop.permute.xlu0 %445
      %449 = vset.pattern.permute.xlu0 0
      %450 = vperm.xlu0 %449, %v400
      %v451 = vpop.permute.xlu0 %450
      %454 = vset.pattern.permute.xlu0 0
      %455 = vperm.xlu0 %454, %v401
      %v456 = vpop.permute.xlu0 %455
      %459 = vset.pattern.permute.xlu0 0
      %460 = vperm.xlu0 %459, %v402
      %v461 = vpop.permute.xlu0 %460
      %464 = vset.pattern.permute.xlu0 0
      %465 = vperm.xlu0 %464, %v403
      %v466 = vpop.permute.xlu0 %465
      %469 = vset.pattern.permute.xlu0 0
      %470 = vperm.xlu0 %469, %v404
      %v471 = vpop.permute.xlu0 %470
      %474 = vset.pattern.permute.xlu0 0
      %475 = vperm.xlu0 %474, %v405
      %v476 = vpop.permute.xlu0 %475
      %479 = vset.pattern.permute.xlu0 0
      %480 = vperm.xlu0 %479, %v406
      %v481 = vpop.permute.xlu0 %480
      %484 = vset.pattern.permute.xlu0 0
      %485 = vperm.xlu0 %484, %v407
      %v486 = vpop.permute.xlu0 %485
      %489 = vset.pattern.permute.xlu0 0
      %490 = vperm.xlu0 %489, %v408
      %v491 = vpop.permute.xlu0 %490
      %494 = vset.pattern.permute.xlu0 0
      %495 = vperm.xlu0 %494, %v409
      %v496 = vpop.permute.xlu0 %495
      %v498 = vmul.f32 %v250, %v421
      %v499 = vmul.f32 %v251, %v421
      %v500 = vmul.f32 %v252, %v421
      %v501 = vmul.f32 %v253, %v421
      %v502 = vmul.f32 %v254, %v421
      %v503 = vmul.f32 %v255, %v421
      %v504 = vmul.f32 %v256, %v421
      %v505 = vmul.f32 %v257, %v421
      %v506 = vmul.f32 %v258, %v426
      %v507 = vmul.f32 %v259, %v426
      %v508 = vmul.f32 %v260, %v426
      %v509 = vmul.f32 %v261, %v426
      %v510 = vmul.f32 %v262, %v426
      %v511 = vmul.f32 %v263, %v426
      %v512 = vmul.f32 %v264, %v426
      %v513 = vmul.f32 %v265, %v426
      %v514 = vmul.f32 %v266, %v431
      %v515 = vmul.f32 %v267, %v431
      %v516 = vmul.f32 %v268, %v431
      %v517 = vmul.f32 %v269, %v431
      %v518 = vmul.f32 %v270, %v431
      %v519 = vmul.f32 %v271, %v431
      %v520 = vmul.f32 %v272, %v431
      %v521 = vmul.f32 %v273, %v431
      %v522 = vmul.f32 %v274, %v436
      %v523 = vmul.f32 %v275, %v436
      %v524 = vmul.f32 %v276, %v436
      %v525 = vmul.f32 %v277, %v436
      %v526 = vmul.f32 %v278, %v436
      %v527 = vmul.f32 %v279, %v436
      %v528 = vmul.f32 %v280, %v436
      %v529 = vmul.f32 %v281, %v436
      %v530 = vmul.f32 %v282, %v441
      %v531 = vmul.f32 %v283, %v441
      %v532 = vmul.f32 %v284, %v441
      %v533 = vmul.f32 %v285, %v441
      %v534 = vmul.f32 %v286, %v441
      %v535 = vmul.f32 %v287, %v441
      %v536 = vmul.f32 %v288, %v441
      %v537 = vmul.f32 %v289, %v441
      %v538 = vmul.f32 %v290, %v446
      %v539 = vmul.f32 %v291, %v446
      %v540 = vmul.f32 %v292, %v446
      %v541 = vmul.f32 %v293, %v446
      %v542 = vmul.f32 %v294, %v446
      %v543 = vmul.f32 %v295, %v446
      %v544 = vmul.f32 %v296, %v446
      %v545 = vmul.f32 %v297, %v446
      %v546 = vmul.f32 %v298, %v451
      %v547 = vmul.f32 %v299, %v451
      %v548 = vmul.f32 %v300, %v451
      %v549 = vmul.f32 %v301, %v451
      %v550 = vmul.f32 %v302, %v451
      %v551 = vmul.f32 %v303, %v451
      %v552 = vmul.f32 %v304, %v451
      %v553 = vmul.f32 %v305, %v451
      %v554 = vmul.f32 %v306, %v456
      %v555 = vmul.f32 %v307, %v456
      %v556 = vmul.f32 %v308, %v456
      %v557 = vmul.f32 %v309, %v456
      %v558 = vmul.f32 %v310, %v456
      %v559 = vmul.f32 %v311, %v456
      %v560 = vmul.f32 %v312, %v456
      %v561 = vmul.f32 %v313, %v456
      %v562 = vmul.f32 %v314, %v461
      %v563 = vmul.f32 %v315, %v461
      %v564 = vmul.f32 %v316, %v461
      %v565 = vmul.f32 %v317, %v461
      %v566 = vmul.f32 %v318, %v461
      %v567 = vmul.f32 %v319, %v461
      %v568 = vmul.f32 %v320, %v461
      %v569 = vmul.f32 %v321, %v461
      %v570 = vmul.f32 %v322, %v466
      %v571 = vmul.f32 %v323, %v466
      %v572 = vmul.f32 %v324, %v466
      %v573 = vmul.f32 %v325, %v466
      %v574 = vmul.f32 %v326, %v466
      %v575 = vmul.f32 %v327, %v466
      %v576 = vmul.f32 %v328, %v466
      %v577 = vmul.f32 %v329, %v466
      %v578 = vmul.f32 %v330, %v471
      %v579 = vmul.f32 %v331, %v471
      %v580 = vmul.f32 %v332, %v471
      %v581 = vmul.f32 %v333, %v471
      %v582 = vmul.f32 %v334, %v471
      %v583 = vmul.f32 %v335, %v471
      %v584 = vmul.f32 %v336, %v471
      %v585 = vmul.f32 %v337, %v471
      %v586 = vmul.f32 %v338, %v476
      %v587 = vmul.f32 %v339, %v476
      %v588 = vmul.f32 %v340, %v476
      %v589 = vmul.f32 %v341, %v476
      %v590 = vmul.f32 %v342, %v476
      %v591 = vmul.f32 %v343, %v476
      %v592 = vmul.f32 %v344, %v476
      %v593 = vmul.f32 %v345, %v476
      %v594 = vmul.f32 %v346, %v481
      %v595 = vmul.f32 %v347, %v481
      %v596 = vmul.f32 %v348, %v481
      %v597 = vmul.f32 %v349, %v481
      %v598 = vmul.f32 %v350, %v481
      %v599 = vmul.f32 %v351, %v481
      %v600 = vmul.f32 %v352, %v481
      %v601 = vmul.f32 %v353, %v481
      %v602 = vmul.f32 %v354, %v486
      %v603 = vmul.f32 %v355, %v486
      %v604 = vmul.f32 %v356, %v486
      %v605 = vmul.f32 %v357, %v486
      %v606 = vmul.f32 %v358, %v486
      %v607 = vmul.f32 %v359, %v486
      %v608 = vmul.f32 %v360, %v486
      %v609 = vmul.f32 %v361, %v486
      %v610 = vmul.f32 %v362, %v491
      %v611 = vmul.f32 %v363, %v491
      %v612 = vmul.f32 %v364, %v491
      %v613 = vmul.f32 %v365, %v491
      %v614 = vmul.f32 %v366, %v491
      %v615 = vmul.f32 %v367, %v491
      %v616 = vmul.f32 %v368, %v491
      %v617 = vmul.f32 %v369, %v491
      %v618 = vmul.f32 %v370, %v496
      %v619 = vmul.f32 %v371, %v496
      %v620 = vmul.f32 %v372, %v496
      %v621 = vmul.f32 %v373, %v496
      %v622 = vmul.f32 %v374, %v496
      %v623 = vmul.f32 %v375, %v496
      %v624 = vmul.f32 %v376, %v496
      %v625 = vmul.f32 %v377, %v496
      %v626 = vadd.f32 %v498, %v506
      %v627 = vrot.slane %v626, 4
      %v628 = vadd.f32 %v626, %v627
      %v629 = vrot.slane %v628, 2
      %v630 = vadd.f32 %v628, %v629
      %v631 = vrot.slane %v630, 1
      %v632 = vadd.f32 %v630, %v631
      %v633 = vadd.f32 %v499, %v507
      %v634 = vrot.slane %v633, 4
      %v635 = vadd.f32 %v633, %v634
      %v636 = vrot.slane %v635, 2
      %v637 = vadd.f32 %v635, %v636
      %v638 = vrot.slane %v637, 1
      %v639 = vadd.f32 %v637, %v638
      %v640 = vadd.f32 %v500, %v508
      %v641 = vrot.slane %v640, 4
      %v642 = vadd.f32 %v640, %v641
      %v643 = vrot.slane %v642, 2
      %v644 = vadd.f32 %v642, %v643
      %v645 = vrot.slane %v644, 1
      %v646 = vadd.f32 %v644, %v645
      %v647 = vadd.f32 %v501, %v509
      %v648 = vrot.slane %v647, 4
      %v649 = vadd.f32 %v647, %v648
      %v650 = vrot.slane %v649, 2
      %v651 = vadd.f32 %v649, %v650
      %v652 = vrot.slane %v651, 1
      %v653 = vadd.f32 %v651, %v652
      %v654 = vadd.f32 %v502, %v510
      %v655 = vrot.slane %v654, 4
      %v656 = vadd.f32 %v654, %v655
      %v657 = vrot.slane %v656, 2
      %v658 = vadd.f32 %v656, %v657
      %v659 = vrot.slane %v658, 1
      %v660 = vadd.f32 %v658, %v659
      %v661 = vadd.f32 %v503, %v511
      %v662 = vrot.slane %v661, 4
      %v663 = vadd.f32 %v661, %v662
      %v664 = vrot.slane %v663, 2
      %v665 = vadd.f32 %v663, %v664
      %v666 = vrot.slane %v665, 1
      %v667 = vadd.f32 %v665, %v666
      %v668 = vadd.f32 %v504, %v512
      %v669 = vrot.slane %v668, 4
      %v670 = vadd.f32 %v668, %v669
      %v671 = vrot.slane %v670, 2
      %v672 = vadd.f32 %v670, %v671
      %v673 = vrot.slane %v672, 1
      %v674 = vadd.f32 %v672, %v673
      %v675 = vadd.f32 %v505, %v513
      %v676 = vrot.slane %v675, 4
      %v677 = vadd.f32 %v675, %v676
      %v678 = vrot.slane %v677, 2
      %v679 = vadd.f32 %v677, %v678
      %v680 = vrot.slane %v679, 1
      %v681 = vadd.f32 %v679, %v680
      %v682 = vadd.f32 %v514, %v522
      %v683 = vrot.slane %v682, 4
      %v684 = vadd.f32 %v682, %v683
      %v685 = vrot.slane %v684, 2
      %v686 = vadd.f32 %v684, %v685
      %v687 = vrot.slane %v686, 1
      %v688 = vadd.f32 %v686, %v687
      %v689 = vadd.f32 %v515, %v523
      %v690 = vrot.slane %v689, 4
      %v691 = vadd.f32 %v689, %v690
      %v692 = vrot.slane %v691, 2
      %v693 = vadd.f32 %v691, %v692
      %v694 = vrot.slane %v693, 1
      %v695 = vadd.f32 %v693, %v694
      %v696 = vadd.f32 %v516, %v524
      %v697 = vrot.slane %v696, 4
      %v698 = vadd.f32 %v696, %v697
      %v699 = vrot.slane %v698, 2
      %v700 = vadd.f32 %v698, %v699
      %v701 = vrot.slane %v700, 1
      %v702 = vadd.f32 %v700, %v701
      %v703 = vadd.f32 %v517, %v525
      %v704 = vrot.slane %v703, 4
      %v705 = vadd.f32 %v703, %v704
      %v706 = vrot.slane %v705, 2
      %v707 = vadd.f32 %v705, %v706
      %v708 = vrot.slane %v707, 1
      %v709 = vadd.f32 %v707, %v708
      %v710 = vadd.f32 %v518, %v526
      %v711 = vrot.slane %v710, 4
      %v712 = vadd.f32 %v710, %v711
      %v713 = vrot.slane %v712, 2
      %v714 = vadd.f32 %v712, %v713
      %v715 = vrot.slane %v714, 1
      %v716 = vadd.f32 %v714, %v715
      %v717 = vadd.f32 %v519, %v527
      %v718 = vrot.slane %v717, 4
      %v719 = vadd.f32 %v717, %v718
      %v720 = vrot.slane %v719, 2
      %v721 = vadd.f32 %v719, %v720
      %v722 = vrot.slane %v721, 1
      %v723 = vadd.f32 %v721, %v722
      %v724 = vadd.f32 %v520, %v528
      %v725 = vrot.slane %v724, 4
      %v726 = vadd.f32 %v724, %v725
      %v727 = vrot.slane %v726, 2
      %v728 = vadd.f32 %v726, %v727
      %v729 = vrot.slane %v728, 1
      %v730 = vadd.f32 %v728, %v729
      %v731 = vadd.f32 %v521, %v529
      %v732 = vrot.slane %v731, 4
      %v733 = vadd.f32 %v731, %v732
      %v734 = vrot.slane %v733, 2
      %v735 = vadd.f32 %v733, %v734
      %v736 = vrot.slane %v735, 1
      %v737 = vadd.f32 %v735, %v736
      %v738 = vadd.f32 %v530, %v538
      %v739 = vrot.slane %v738, 4
      %v740 = vadd.f32 %v738, %v739
      %v741 = vrot.slane %v740, 2
      %v742 = vadd.f32 %v740, %v741
      %v743 = vrot.slane %v742, 1
      %v744 = vadd.f32 %v742, %v743
      %v745 = vadd.f32 %v531, %v539
      %v746 = vrot.slane %v745, 4
      %v747 = vadd.f32 %v745, %v746
      %v748 = vrot.slane %v747, 2
      %v749 = vadd.f32 %v747, %v748
      %v750 = vrot.slane %v749, 1
      %v751 = vadd.f32 %v749, %v750
      %v752 = vadd.f32 %v532, %v540
      %v753 = vrot.slane %v752, 4
      %v754 = vadd.f32 %v752, %v753
      %v755 = vrot.slane %v754, 2
      %v756 = vadd.f32 %v754, %v755
      %v757 = vrot.slane %v756, 1
      %v758 = vadd.f32 %v756, %v757
      %v759 = vadd.f32 %v533, %v541
      %v760 = vrot.slane %v759, 4
      %v761 = vadd.f32 %v759, %v760
      %v762 = vrot.slane %v761, 2
      %v763 = vadd.f32 %v761, %v762
      %v764 = vrot.slane %v763, 1
      %v765 = vadd.f32 %v763, %v764
      %v766 = vadd.f32 %v534, %v542
      %v767 = vrot.slane %v766, 4
      %v768 = vadd.f32 %v766, %v767
      %v769 = vrot.slane %v768, 2
      %v770 = vadd.f32 %v768, %v769
      %v771 = vrot.slane %v770, 1
      %v772 = vadd.f32 %v770, %v771
      %v773 = vadd.f32 %v535, %v543
      %v774 = vrot.slane %v773, 4
      %v775 = vadd.f32 %v773, %v774
      %v776 = vrot.slane %v775, 2
      %v777 = vadd.f32 %v775, %v776
      %v778 = vrot.slane %v777, 1
      %v779 = vadd.f32 %v777, %v778
      %v780 = vadd.f32 %v536, %v544
      %v781 = vrot.slane %v780, 4
      %v782 = vadd.f32 %v780, %v781
      %v783 = vrot.slane %v782, 2
      %v784 = vadd.f32 %v782, %v783
      %v785 = vrot.slane %v784, 1
      %v786 = vadd.f32 %v784, %v785
      %v787 = vadd.f32 %v537, %v545
      %v788 = vrot.slane %v787, 4
      %v789 = vadd.f32 %v787, %v788
      %v790 = vrot.slane %v789, 2
      %v791 = vadd.f32 %v789, %v790
      %v792 = vrot.slane %v791, 1
      %v793 = vadd.f32 %v791, %v792
      %v794 = vadd.f32 %v546, %v554
      %v795 = vrot.slane %v794, 4
      %v796 = vadd.f32 %v794, %v795
      %v797 = vrot.slane %v796, 2
      %v798 = vadd.f32 %v796, %v797
      %v799 = vrot.slane %v798, 1
      %v800 = vadd.f32 %v798, %v799
      %v801 = vadd.f32 %v547, %v555
      %v802 = vrot.slane %v801, 4
      %v803 = vadd.f32 %v801, %v802
      %v804 = vrot.slane %v803, 2
      %v805 = vadd.f32 %v803, %v804
      %v806 = vrot.slane %v805, 1
      %v807 = vadd.f32 %v805, %v806
      %v808 = vadd.f32 %v548, %v556
      %v809 = vrot.slane %v808, 4
      %v810 = vadd.f32 %v808, %v809
      %v811 = vrot.slane %v810, 2
      %v812 = vadd.f32 %v810, %v811
      %v813 = vrot.slane %v812, 1
      %v814 = vadd.f32 %v812, %v813
      %v815 = vadd.f32 %v549, %v557
      %v816 = vrot.slane %v815, 4
      %v817 = vadd.f32 %v815, %v816
      %v818 = vrot.slane %v817, 2
      %v819 = vadd.f32 %v817, %v818
      %v820 = vrot.slane %v819, 1
      %v821 = vadd.f32 %v819, %v820
      %v822 = vadd.f32 %v550, %v558
      %v823 = vrot.slane %v822, 4
      %v824 = vadd.f32 %v822, %v823
      %v825 = vrot.slane %v824, 2
      %v826 = vadd.f32 %v824, %v825
      %v827 = vrot.slane %v826, 1
      %v828 = vadd.f32 %v826, %v827
      %v829 = vadd.f32 %v551, %v559
      %v830 = vrot.slane %v829, 4
      %v831 = vadd.f32 %v829, %v830
      %v832 = vrot.slane %v831, 2
      %v833 = vadd.f32 %v831, %v832
      %v834 = vrot.slane %v833, 1
      %v835 = vadd.f32 %v833, %v834
      %v836 = vadd.f32 %v552, %v560
      %v837 = vrot.slane %v836, 4
      %v838 = vadd.f32 %v836, %v837
      %v839 = vrot.slane %v838, 2
      %v840 = vadd.f32 %v838, %v839
      %v841 = vrot.slane %v840, 1
      %v842 = vadd.f32 %v840, %v841
      %v843 = vadd.f32 %v553, %v561
      %v844 = vrot.slane %v843, 4
      %v845 = vadd.f32 %v843, %v844
      %v846 = vrot.slane %v845, 2
      %v847 = vadd.f32 %v845, %v846
      %v848 = vrot.slane %v847, 1
      %v849 = vadd.f32 %v847, %v848
      %v850 = vadd.f32 %v562, %v570
      %v851 = vrot.slane %v850, 4
      %v852 = vadd.f32 %v850, %v851
      %v853 = vrot.slane %v852, 2
      %v854 = vadd.f32 %v852, %v853
      %v855 = vrot.slane %v854, 1
      %v856 = vadd.f32 %v854, %v855
      %v857 = vadd.f32 %v563, %v571
      %v858 = vrot.slane %v857, 4
      %v859 = vadd.f32 %v857, %v858
      %v860 = vrot.slane %v859, 2
      %v861 = vadd.f32 %v859, %v860
      %v862 = vrot.slane %v861, 1
      %v863 = vadd.f32 %v861, %v862
      %v864 = vadd.f32 %v564, %v572
      %v865 = vrot.slane %v864, 4
      %v866 = vadd.f32 %v864, %v865
      %v867 = vrot.slane %v866, 2
      %v868 = vadd.f32 %v866, %v867
      %v869 = vrot.slane %v868, 1
      %v870 = vadd.f32 %v868, %v869
      %v871 = vadd.f32 %v565, %v573
      %v872 = vrot.slane %v871, 4
      %v873 = vadd.f32 %v871, %v872
      %v874 = vrot.slane %v873, 2
      %v875 = vadd.f32 %v873, %v874
      %v876 = vrot.slane %v875, 1
      %v877 = vadd.f32 %v875, %v876
      %v878 = vadd.f32 %v566, %v574
      %v879 = vrot.slane %v878, 4
      %v880 = vadd.f32 %v878, %v879
      %v881 = vrot.slane %v880, 2
      %v882 = vadd.f32 %v880, %v881
      %v883 = vrot.slane %v882, 1
      %v884 = vadd.f32 %v882, %v883
      %v885 = vadd.f32 %v567, %v575
      %v886 = vrot.slane %v885, 4
      %v887 = vadd.f32 %v885, %v886
      %v888 = vrot.slane %v887, 2
      %v889 = vadd.f32 %v887, %v888
      %v890 = vrot.slane %v889, 1
      %v891 = vadd.f32 %v889, %v890
      %v892 = vadd.f32 %v568, %v576
      %v893 = vrot.slane %v892, 4
      %v894 = vadd.f32 %v892, %v893
      %v895 = vrot.slane %v894, 2
      %v896 = vadd.f32 %v894, %v895
      %v897 = vrot.slane %v896, 1
      %v898 = vadd.f32 %v896, %v897
      %v899 = vadd.f32 %v569, %v577
      %v900 = vrot.slane %v899, 4
      %v901 = vadd.f32 %v899, %v900
      %v902 = vrot.slane %v901, 2
      %v903 = vadd.f32 %v901, %v902
      %v904 = vrot.slane %v903, 1
      %v905 = vadd.f32 %v903, %v904
      %v906 = vadd.f32 %v578, %v586
      %v907 = vrot.slane %v906, 4
      %v908 = vadd.f32 %v906, %v907
      %v909 = vrot.slane %v908, 2
      %v910 = vadd.f32 %v908, %v909
      %v911 = vrot.slane %v910, 1
      %v912 = vadd.f32 %v910, %v911
      %v913 = vadd.f32 %v579, %v587
      %v914 = vrot.slane %v913, 4
      %v915 = vadd.f32 %v913, %v914
      %v916 = vrot.slane %v915, 2
      %v917 = vadd.f32 %v915, %v916
      %v918 = vrot.slane %v917, 1
      %v919 = vadd.f32 %v917, %v918
      %v920 = vadd.f32 %v580, %v588
      %v921 = vrot.slane %v920, 4
      %v922 = vadd.f32 %v920, %v921
      %v923 = vrot.slane %v922, 2
      %v924 = vadd.f32 %v922, %v923
      %v925 = vrot.slane %v924, 1
      %v926 = vadd.f32 %v924, %v925
      %v927 = vadd.f32 %v581, %v589
      %v928 = vrot.slane %v927, 4
      %v929 = vadd.f32 %v927, %v928
      %v930 = vrot.slane %v929, 2
      %v931 = vadd.f32 %v929, %v930
      %v932 = vrot.slane %v931, 1
      %v933 = vadd.f32 %v931, %v932
      %v934 = vadd.f32 %v582, %v590
      %v935 = vrot.slane %v934, 4
      %v936 = vadd.f32 %v934, %v935
      %v937 = vrot.slane %v936, 2
      %v938 = vadd.f32 %v936, %v937
      %v939 = vrot.slane %v938, 1
      %v940 = vadd.f32 %v938, %v939
      %v941 = vadd.f32 %v583, %v591
      %v942 = vrot.slane %v941, 4
      %v943 = vadd.f32 %v941, %v942
      %v944 = vrot.slane %v943, 2
      %v945 = vadd.f32 %v943, %v944
      %v946 = vrot.slane %v945, 1
      %v947 = vadd.f32 %v945, %v946
      %v948 = vadd.f32 %v584, %v592
      %v949 = vrot.slane %v948, 4
      %v950 = vadd.f32 %v948, %v949
      %v951 = vrot.slane %v950, 2
      %v952 = vadd.f32 %v950, %v951
      %v953 = vrot.slane %v952, 1
      %v954 = vadd.f32 %v952, %v953
      %v955 = vadd.f32 %v585, %v593
      %v956 = vrot.slane %v955, 4
      %v957 = vadd.f32 %v955, %v956
      %v958 = vrot.slane %v957, 2
      %v959 = vadd.f32 %v957, %v958
      %v960 = vrot.slane %v959, 1
      %v961 = vadd.f32 %v959, %v960
      %v962 = vadd.f32 %v594, %v602
      %v963 = vrot.slane %v962, 4
      %v964 = vadd.f32 %v962, %v963
      %v965 = vrot.slane %v964, 2
      %v966 = vadd.f32 %v964, %v965
      %v967 = vrot.slane %v966, 1
      %v968 = vadd.f32 %v966, %v967
      %v969 = vadd.f32 %v595, %v603
      %v970 = vrot.slane %v969, 4
      %v971 = vadd.f32 %v969, %v970
      %v972 = vrot.slane %v971, 2
      %v973 = vadd.f32 %v971, %v972
      %v974 = vrot.slane %v973, 1
      %v975 = vadd.f32 %v973, %v974
      %v976 = vadd.f32 %v596, %v604
      %v977 = vrot.slane %v976, 4
      %v978 = vadd.f32 %v976, %v977
      %v979 = vrot.slane %v978, 2
      %v980 = vadd.f32 %v978, %v979
      %v981 = vrot.slane %v980, 1
      %v982 = vadd.f32 %v980, %v981
      %v983 = vadd.f32 %v597, %v605
      %v984 = vrot.slane %v983, 4
      %v985 = vadd.f32 %v983, %v984
      %v986 = vrot.slane %v985, 2
      %v987 = vadd.f32 %v985, %v986
      %v988 = vrot.slane %v987, 1
      %v989 = vadd.f32 %v987, %v988
      %v990 = vadd.f32 %v598, %v606
      %v991 = vrot.slane %v990, 4
      %v992 = vadd.f32 %v990, %v991
      %v993 = vrot.slane %v992, 2
      %v994 = vadd.f32 %v992, %v993
      %v995 = vrot.slane %v994, 1
      %v996 = vadd.f32 %v994, %v995
      %v997 = vadd.f32 %v599, %v607
      %v998 = vrot.slane %v997, 4
      %v999 = vadd.f32 %v997, %v998
      %v1000 = vrot.slane %v999, 2
      %v1001 = vadd.f32 %v999, %v1000
      %v1002 = vrot.slane %v1001, 1
      %v1003 = vadd.f32 %v1001, %v1002
      %v1004 = vadd.f32 %v600, %v608
      %v1005 = vrot.slane %v1004, 4
      %v1006 = vadd.f32 %v1004, %v1005
      %v1007 = vrot.slane %v1006, 2
      %v1008 = vadd.f32 %v1006, %v1007
      %v1009 = vrot.slane %v1008, 1
      %v1010 = vadd.f32 %v1008, %v1009
      %v1011 = vadd.f32 %v601, %v609
      %v1012 = vrot.slane %v1011, 4
      %v1013 = vadd.f32 %v1011, %v1012
      %v1014 = vrot.slane %v1013, 2
      %v1015 = vadd.f32 %v1013, %v1014
      %v1016 = vrot.slane %v1015, 1
      %v1017 = vadd.f32 %v1015, %v1016
      %v1018 = vadd.f32 %v610, %v618
      %v1019 = vrot.slane %v1018, 4
      %v1020 = vadd.f32 %v1018, %v1019
      %v1021 = vrot.slane %v1020, 2
      %v1022 = vadd.f32 %v1020, %v1021
      %v1023 = vrot.slane %v1022, 1
      %v1024 = vadd.f32 %v1022, %v1023
      %v1025 = vadd.f32 %v611, %v619
      %v1026 = vrot.slane %v1025, 4
      %v1027 = vadd.f32 %v1025, %v1026
      %v1028 = vrot.slane %v1027, 2
      %v1029 = vadd.f32 %v1027, %v1028
      %v1030 = vrot.slane %v1029, 1
      %v1031 = vadd.f32 %v1029, %v1030
      %v1032 = vadd.f32 %v612, %v620
      %v1033 = vrot.slane %v1032, 4
      %v1034 = vadd.f32 %v1032, %v1033
      %v1035 = vrot.slane %v1034, 2
      %v1036 = vadd.f32 %v1034, %v1035
      %v1037 = vrot.slane %v1036, 1
      %v1038 = vadd.f32 %v1036, %v1037
      %v1039 = vadd.f32 %v613, %v621
      %v1040 = vrot.slane %v1039, 4
      %v1041 = vadd.f32 %v1039, %v1040
      %v1042 = vrot.slane %v1041, 2
      %v1043 = vadd.f32 %v1041, %v1042
      %v1044 = vrot.slane %v1043, 1
      %v1045 = vadd.f32 %v1043, %v1044
      %v1046 = vadd.f32 %v614, %v622
      %v1047 = vrot.slane %v1046, 4
      %v1048 = vadd.f32 %v1046, %v1047
      %v1049 = vrot.slane %v1048, 2
      %v1050 = vadd.f32 %v1048, %v1049
      %v1051 = vrot.slane %v1050, 1
      %v1052 = vadd.f32 %v1050, %v1051
      %v1053 = vadd.f32 %v615, %v623
      %v1054 = vrot.slane %v1053, 4
      %v1055 = vadd.f32 %v1053, %v1054
      %v1056 = vrot.slane %v1055, 2
      %v1057 = vadd.f32 %v1055, %v1056
      %v1058 = vrot.slane %v1057, 1
      %v1059 = vadd.f32 %v1057, %v1058
      %v1060 = vadd.f32 %v616, %v624
      %v1061 = vrot.slane %v1060, 4
      %v1062 = vadd.f32 %v1060, %v1061
      %v1063 = vrot.slane %v1062, 2
      %v1064 = vadd.f32 %v1062, %v1063
      %v1065 = vrot.slane %v1064, 1
      %v1066 = vadd.f32 %v1064, %v1065
      %v1067 = vadd.f32 %v617, %v625
      %v1068 = vrot.slane %v1067, 4
      %v1069 = vadd.f32 %v1067, %v1068
      %v1070 = vrot.slane %v1069, 2
      %v1071 = vadd.f32 %v1069, %v1070
      %v1072 = vrot.slane %v1071, 1
      %v1073 = vadd.f32 %v1071, %v1072
      %vm1138 = vcmask 1041409
      %v1139 = vsel %vm1138, %v688, %v632
      %vm1140 = vcmask 1042434
      %v1141 = vsel %vm1140, %v744, %v1139
      %vm1142 = vcmask 1043459
      %v1143 = vsel %vm1142, %v800, %v1141
      %vm1144 = vcmask 1044484
      %v1145 = vsel %vm1144, %v856, %v1143
      %vm1146 = vcmask 1045509
      %v1147 = vsel %vm1146, %v912, %v1145
      %vm1148 = vcmask 1046534
      %v1149 = vsel %vm1148, %v968, %v1147
      %vm1150 = vcmask 1047559
      %v1151 = vsel %vm1150, %v1024, %v1149
      %v1152 = vsel %vm1138, %v695, %v639
      %v1153 = vsel %vm1140, %v751, %v1152
      %v1154 = vsel %vm1142, %v807, %v1153
      %v1155 = vsel %vm1144, %v863, %v1154
      %v1156 = vsel %vm1146, %v919, %v1155
      %v1157 = vsel %vm1148, %v975, %v1156
      %v1158 = vsel %vm1150, %v1031, %v1157
      %v1159 = vsel %vm1138, %v702, %v646
      %v1160 = vsel %vm1140, %v758, %v1159
      %v1161 = vsel %vm1142, %v814, %v1160
      %v1162 = vsel %vm1144, %v870, %v1161
      %v1163 = vsel %vm1146, %v926, %v1162
      %v1164 = vsel %vm1148, %v982, %v1163
      %v1165 = vsel %vm1150, %v1038, %v1164
      %v1166 = vsel %vm1138, %v709, %v653
      %v1167 = vsel %vm1140, %v765, %v1166
      %v1168 = vsel %vm1142, %v821, %v1167
      %v1169 = vsel %vm1144, %v877, %v1168
      %v1170 = vsel %vm1146, %v933, %v1169
      %v1171 = vsel %vm1148, %v989, %v1170
      %v1172 = vsel %vm1150, %v1045, %v1171
      %v1173 = vsel %vm1138, %v716, %v660
      %v1174 = vsel %vm1140, %v772, %v1173
      %v1175 = vsel %vm1142, %v828, %v1174
      %v1176 = vsel %vm1144, %v884, %v1175
      %v1177 = vsel %vm1146, %v940, %v1176
      %v1178 = vsel %vm1148, %v996, %v1177
      %v1179 = vsel %vm1150, %v1052, %v1178
      %v1180 = vsel %vm1138, %v723, %v667
      %v1181 = vsel %vm1140, %v779, %v1180
      %v1182 = vsel %vm1142, %v835, %v1181
      %v1183 = vsel %vm1144, %v891, %v1182
      %v1184 = vsel %vm1146, %v947, %v1183
      %v1185 = vsel %vm1148, %v1003, %v1184
      %v1186 = vsel %vm1150, %v1059, %v1185
      %v1187 = vsel %vm1138, %v730, %v674
      %v1188 = vsel %vm1140, %v786, %v1187
      %v1189 = vsel %vm1142, %v842, %v1188
      %v1190 = vsel %vm1144, %v898, %v1189
      %v1191 = vsel %vm1146, %v954, %v1190
      %v1192 = vsel %vm1148, %v1010, %v1191
      %v1193 = vsel %vm1150, %v1066, %v1192
      %v1194 = vsel %vm1138, %v737, %v681
      %v1195 = vsel %vm1140, %v793, %v1194
      %v1196 = vsel %vm1142, %v849, %v1195
      %v1197 = vsel %vm1144, %v905, %v1196
      %v1198 = vsel %vm1146, %v961, %v1197
      %v1199 = vsel %vm1148, %v1017, %v1198
      %v1200 = vsel %vm1150, %v1073, %v1199
      %v1209 = vadd.f32 %v410, %v1151
      %v1210 = vadd.f32 %v411, %v1158
      %v1211 = vadd.f32 %v412, %v1165
      %v1212 = vadd.f32 %v413, %v1172
      %v1213 = vadd.f32 %v414, %v1179
      %v1214 = vadd.f32 %v415, %v1186
      %v1215 = vadd.f32 %v416, %v1193
      %v1216 = vadd.f32 %v417, %v1200
      %1217 = vst [vmem:[#allocation2] sm:$0xff] %v1209
      %1218 = vst [vmem:[#allocation2 + $0x8] sm:$0xff] %v1210
      %1219 = vst [vmem:[#allocation2 + $0x10] sm:$0xff] %v1211
      %1220 = vst [vmem:[#allocation2 + $0x18] sm:$0xff] %v1212
      %1221 = vst [vmem:[#allocation2 + $0x20] sm:$0xff] %v1213
      %1222 = vst [vmem:[#allocation2 + $0x28] sm:$0xff] %v1214
      %1223 = vst [vmem:[#allocation2 + $0x30] sm:$0xff] %v1215
      %1224 = vst [vmem:[#allocation2 + $0x38] sm:$0xff] %v1216
    $region97: #{_forward_impl.1} parent=1 // pred_fallthru
      _
    // Predicated region
    $region98: #{_forward_impl.1} parent=1 // pred_check
      %p1225 = pneg %p233
    $region99: #{_forward_impl.1} parent=1 // pred_check_branch
      %1227 = sbr.rel (%p1225) target = $region101
    $region100: #{_forward_impl.1} parent=1 // pred_region
      %v1228 = vld [vmem:[#allocation2] sm:$0xff]
      %v1229 = vld [vmem:[#allocation2 + $0x8] sm:$0xff]
      %v1230 = vld [vmem:[#allocation2 + $0x10] sm:$0xff]
      %v1231 = vld [vmem:[#allocation2 + $0x18] sm:$0xff]
      %v1232 = vld [vmem:[#allocation2 + $0x20] sm:$0xff]
      %v1233 = vld [vmem:[#allocation2 + $0x28] sm:$0xff]
      %v1234 = vld [vmem:[#allocation2 + $0x30] sm:$0xff]
      %v1235 = vld [vmem:[#allocation2 + $0x38] sm:$0xff]
      %v1236 = vld [vmem:[%s3] sm:$0xff]
      %1238 = vset.pattern.permute.xlu0 0
      %1239 = vperm.xlu0 %1238, %v1236
      %v1240 = vpop.permute.xlu0 %1239
      %v1242 = vrcp.pop %v1240
      %v1243 = vmul.f32 %v1228, %v1242
      %v1244 = vmul.f32 %v1229, %v1242
      %v1245 = vmul.f32 %v1230, %v1242
      %v1246 = vmul.f32 %v1231, %v1242
      %v1247 = vmul.f32 %v1232, %v1242
      %v1248 = vmul.f32 %v1233, %v1242
      %v1249 = vmul.f32 %v1234, %v1242
      %v1250 = vmul.f32 %v1235, %v1242
      %v1251 = vld [vmem:[#allocation6] sm:$0xff]
      %v1252 = vld [vmem:[#allocation6 + $0x8] sm:$0xff]
      %v1253 = vld [vmem:[#allocation6 + $0x10] sm:$0xff]
      %v1254 = vld [vmem:[#allocation6 + $0x18] sm:$0xff]
      %v1255 = vld [vmem:[#allocation6 + $0x20] sm:$0xff]
      %v1256 = vld [vmem:[#allocation6 + $0x28] sm:$0xff]
      %v1257 = vld [vmem:[#allocation6 + $0x30] sm:$0xff]
      %v1258 = vld [vmem:[#allocation6 + $0x38] sm:$0xff]
      %v1259 = vld [vmem:[#allocation6 + $0x40] sm:$0xff]
      %v1260 = vld [vmem:[#allocation6 + $0x48] sm:$0xff]
      %v1261 = vld [vmem:[#allocation6 + $0x50] sm:$0xff]
      %v1262 = vld [vmem:[#allocation6 + $0x58] sm:$0xff]
      %v1263 = vld [vmem:[#allocation6 + $0x60] sm:$0xff]
      %v1264 = vld [vmem:[#allocation6 + $0x68] sm:$0xff]
      %v1265 = vld [vmem:[#allocation6 + $0x70] sm:$0xff]
      %v1266 = vld [vmem:[#allocation6 + $0x78] sm:$0xff]
      %v1267 = vld [vmem:[#allocation6 + $0x80] sm:$0xff]
      %v1268 = vld [vmem:[#allocation6 + $0x88] sm:$0xff]
      %v1269 = vld [vmem:[#allocation6 + $0x90] sm:$0xff]
      %v1270 = vld [vmem:[#allocation6 + $0x98] sm:$0xff]
      %v1271 = vld [vmem:[#allocation6 + $0xa0] sm:$0xff]
      %v1272 = vld [vmem:[#allocation6 + $0xa8] sm:$0xff]
      %v1273 = vld [vmem:[#allocation6 + $0xb0] sm:$0xff]
      %v1274 = vld [vmem:[#allocation6 + $0xb8] sm:$0xff]
      %v1275 = vld [vmem:[#allocation6 + $0xc0] sm:$0xff]
      %v1276 = vld [vmem:[#allocation6 + $0xc8] sm:$0xff]
      %v1277 = vld [vmem:[#allocation6 + $0xd0] sm:$0xff]
      %v1278 = vld [vmem:[#allocation6 + $0xd8] sm:$0xff]
      %v1279 = vld [vmem:[#allocation6 + $0xe0] sm:$0xff]
      %v1280 = vld [vmem:[#allocation6 + $0xe8] sm:$0xff]
      %v1281 = vld [vmem:[#allocation6 + $0xf0] sm:$0xff]
      %v1282 = vld [vmem:[#allocation6 + $0xf8] sm:$0xff]
      %v1283 = vld [vmem:[#allocation6 + $0x100] sm:$0xff]
      %v1284 = vld [vmem:[#allocation6 + $0x108] sm:$0xff]
      %v1285 = vld [vmem:[#allocation6 + $0x110] sm:$0xff]
      %v1286 = vld [vmem:[#allocation6 + $0x118] sm:$0xff]
      %v1287 = vld [vmem:[#allocation6 + $0x120] sm:$0xff]
      %v1288 = vld [vmem:[#allocation6 + $0x128] sm:$0xff]
      %v1289 = vld [vmem:[#allocation6 + $0x130] sm:$0xff]
      %v1290 = vld [vmem:[#allocation6 + $0x138] sm:$0xff]
      %v1291 = vld [vmem:[#allocation6 + $0x140] sm:$0xff]
      %v1292 = vld [vmem:[#allocation6 + $0x148] sm:$0xff]
      %v1293 = vld [vmem:[#allocation6 + $0x150] sm:$0xff]
      %v1294 = vld [vmem:[#allocation6 + $0x158] sm:$0xff]
      %v1295 = vld [vmem:[#allocation6 + $0x160] sm:$0xff]
      %v1296 = vld [vmem:[#allocation6 + $0x168] sm:$0xff]
      %v1297 = vld [vmem:[#allocation6 + $0x170] sm:$0xff]
      %v1298 = vld [vmem:[#allocation6 + $0x178] sm:$0xff]
      %v1299 = vld [vmem:[#allocation6 + $0x180] sm:$0xff]
      %v1300 = vld [vmem:[#allocation6 + $0x188] sm:$0xff]
      %v1301 = vld [vmem:[#allocation6 + $0x190] sm:$0xff]
      %v1302 = vld [vmem:[#allocation6 + $0x198] sm:$0xff]
      %v1303 = vld [vmem:[#allocation6 + $0x1a0] sm:$0xff]
      %v1304 = vld [vmem:[#allocation6 + $0x1a8] sm:$0xff]
      %v1305 = vld [vmem:[#allocation6 + $0x1b0] sm:$0xff]
      %v1306 = vld [vmem:[#allocation6 + $0x1b8] sm:$0xff]
      %v1307 = vld [vmem:[#allocation6 + $0x1c0] sm:$0xff]
      %v1308 = vld [vmem:[#allocation6 + $0x1c8] sm:$0xff]
      %v1309 = vld [vmem:[#allocation6 + $0x1d0] sm:$0xff]
      %v1310 = vld [vmem:[#allocation6 + $0x1d8] sm:$0xff]
      %v1311 = vld [vmem:[#allocation6 + $0x1e0] sm:$0xff]
      %v1312 = vld [vmem:[#allocation6 + $0x1e8] sm:$0xff]
      %v1313 = vld [vmem:[#allocation6 + $0x1f0] sm:$0xff]
      %v1314 = vld [vmem:[#allocation6 + $0x1f8] sm:$0xff]
      %v1315 = vld [vmem:[#allocation6 + $0x200] sm:$0xff]
      %v1316 = vld [vmem:[#allocation6 + $0x208] sm:$0xff]
      %v1317 = vld [vmem:[#allocation6 + $0x210] sm:$0xff]
      %v1318 = vld [vmem:[#allocation6 + $0x218] sm:$0xff]
      %v1319 = vld [vmem:[#allocation6 + $0x220] sm:$0xff]
      %v1320 = vld [vmem:[#allocation6 + $0x228] sm:$0xff]
      %v1321 = vld [vmem:[#allocation6 + $0x230] sm:$0xff]
      %v1322 = vld [vmem:[#allocation6 + $0x238] sm:$0xff]
      %v1323 = vld [vmem:[#allocation6 + $0x240] sm:$0xff]
      %v1324 = vld [vmem:[#allocation6 + $0x248] sm:$0xff]
      %v1325 = vld [vmem:[#allocation6 + $0x250] sm:$0xff]
      %v1326 = vld [vmem:[#allocation6 + $0x258] sm:$0xff]
      %v1327 = vld [vmem:[#allocation6 + $0x260] sm:$0xff]
      %v1328 = vld [vmem:[#allocation6 + $0x268] sm:$0xff]
      %v1329 = vld [vmem:[#allocation6 + $0x270] sm:$0xff]
      %v1330 = vld [vmem:[#allocation6 + $0x278] sm:$0xff]
      %v1331 = vld [vmem:[#allocation6 + $0x280] sm:$0xff]
      %v1332 = vld [vmem:[#allocation6 + $0x288] sm:$0xff]
      %v1333 = vld [vmem:[#allocation6 + $0x290] sm:$0xff]
      %v1334 = vld [vmem:[#allocation6 + $0x298] sm:$0xff]
      %v1335 = vld [vmem:[#allocation6 + $0x2a0] sm:$0xff]
      %v1336 = vld [vmem:[#allocation6 + $0x2a8] sm:$0xff]
      %v1337 = vld [vmem:[#allocation6 + $0x2b0] sm:$0xff]
      %v1338 = vld [vmem:[#allocation6 + $0x2b8] sm:$0xff]
      %v1339 = vld [vmem:[#allocation6 + $0x2c0] sm:$0xff]
      %v1340 = vld [vmem:[#allocation6 + $0x2c8] sm:$0xff]
      %v1341 = vld [vmem:[#allocation6 + $0x2d0] sm:$0xff]
      %v1342 = vld [vmem:[#allocation6 + $0x2d8] sm:$0xff]
      %v1343 = vld [vmem:[#allocation6 + $0x2e0] sm:$0xff]
      %v1344 = vld [vmem:[#allocation6 + $0x2e8] sm:$0xff]
      %v1345 = vld [vmem:[#allocation6 + $0x2f0] sm:$0xff]
      %v1346 = vld [vmem:[#allocation6 + $0x2f8] sm:$0xff]
      %v1347 = vld [vmem:[#allocation6 + $0x300] sm:$0xff]
      %v1348 = vld [vmem:[#allocation6 + $0x308] sm:$0xff]
      %v1349 = vld [vmem:[#allocation6 + $0x310] sm:$0xff]
      %v1350 = vld [vmem:[#allocation6 + $0x318] sm:$0xff]
      %v1351 = vld [vmem:[#allocation6 + $0x320] sm:$0xff]
      %v1352 = vld [vmem:[#allocation6 + $0x328] sm:$0xff]
      %v1353 = vld [vmem:[#allocation6 + $0x330] sm:$0xff]
      %v1354 = vld [vmem:[#allocation6 + $0x338] sm:$0xff]
      %v1355 = vld [vmem:[#allocation6 + $0x340] sm:$0xff]
      %v1356 = vld [vmem:[#allocation6 + $0x348] sm:$0xff]
      %v1357 = vld [vmem:[#allocation6 + $0x350] sm:$0xff]
      %v1358 = vld [vmem:[#allocation6 + $0x358] sm:$0xff]
      %v1359 = vld [vmem:[#allocation6 + $0x360] sm:$0xff]
      %v1360 = vld [vmem:[#allocation6 + $0x368] sm:$0xff]
      %v1361 = vld [vmem:[#allocation6 + $0x370] sm:$0xff]
      %v1362 = vld [vmem:[#allocation6 + $0x378] sm:$0xff]
      %v1363 = vld [vmem:[#allocation6 + $0x380] sm:$0xff]
      %v1364 = vld [vmem:[#allocation6 + $0x388] sm:$0xff]
      %v1365 = vld [vmem:[#allocation6 + $0x390] sm:$0xff]
      %v1366 = vld [vmem:[#allocation6 + $0x398] sm:$0xff]
      %v1367 = vld [vmem:[#allocation6 + $0x3a0] sm:$0xff]
      %v1368 = vld [vmem:[#allocation6 + $0x3a8] sm:$0xff]
      %v1369 = vld [vmem:[#allocation6 + $0x3b0] sm:$0xff]
      %v1370 = vld [vmem:[#allocation6 + $0x3b8] sm:$0xff]
      %v1371 = vld [vmem:[#allocation6 + $0x3c0] sm:$0xff]
      %v1372 = vld [vmem:[#allocation6 + $0x3c8] sm:$0xff]
      %v1373 = vld [vmem:[#allocation6 + $0x3d0] sm:$0xff]
      %v1374 = vld [vmem:[#allocation6 + $0x3d8] sm:$0xff]
      %v1375 = vld [vmem:[#allocation6 + $0x3e0] sm:$0xff]
      %v1376 = vld [vmem:[#allocation6 + $0x3e8] sm:$0xff]
      %v1377 = vld [vmem:[#allocation6 + $0x3f0] sm:$0xff]
      %v1378 = vld [vmem:[#allocation6 + $0x3f8] sm:$0xff]
      %v1379 = vld [vmem:[#allocation6 + $0x400] sm:$0xff]
      %v1380 = vld [vmem:[#allocation6 + $0x408] sm:$0xff]
      %v1381 = vld [vmem:[#allocation6 + $0x410] sm:$0xff]
      %v1382 = vld [vmem:[#allocation6 + $0x418] sm:$0xff]
      %v1383 = vld [vmem:[#allocation6 + $0x420] sm:$0xff]
      %v1384 = vld [vmem:[#allocation6 + $0x428] sm:$0xff]
      %v1385 = vld [vmem:[#allocation6 + $0x430] sm:$0xff]
      %v1386 = vld [vmem:[#allocation6 + $0x438] sm:$0xff]
      %v1387 = vld [vmem:[#allocation6 + $0x440] sm:$0xff]
      %v1388 = vld [vmem:[#allocation6 + $0x448] sm:$0xff]
      %v1389 = vld [vmem:[#allocation6 + $0x450] sm:$0xff]
      %v1390 = vld [vmem:[#allocation6 + $0x458] sm:$0xff]
      %v1391 = vld [vmem:[#allocation6 + $0x460] sm:$0xff]
      %v1392 = vld [vmem:[#allocation6 + $0x468] sm:$0xff]
      %v1393 = vld [vmem:[#allocation6 + $0x470] sm:$0xff]
      %v1394 = vld [vmem:[#allocation6 + $0x478] sm:$0xff]
      %v1395 = vld [vmem:[#allocation6 + $0x480] sm:$0xff]
      %v1396 = vld [vmem:[#allocation6 + $0x488] sm:$0xff]
      %v1397 = vld [vmem:[#allocation6 + $0x490] sm:$0xff]
      %v1398 = vld [vmem:[#allocation6 + $0x498] sm:$0xff]
      %v1399 = vld [vmem:[#allocation6 + $0x4a0] sm:$0xff]
      %v1400 = vld [vmem:[#allocation6 + $0x4a8] sm:$0xff]
      %v1401 = vld [vmem:[#allocation6 + $0x4b0] sm:$0xff]
      %v1402 = vld [vmem:[#allocation6 + $0x4b8] sm:$0xff]
      %v1403 = vld [vmem:[#allocation6 + $0x4c0] sm:$0xff]
      %v1404 = vld [vmem:[#allocation6 + $0x4c8] sm:$0xff]
      %v1405 = vld [vmem:[#allocation6 + $0x4d0] sm:$0xff]
      %v1406 = vld [vmem:[#allocation6 + $0x4d8] sm:$0xff]
      %v1407 = vld [vmem:[#allocation6 + $0x4e0] sm:$0xff]
      %v1408 = vld [vmem:[#allocation6 + $0x4e8] sm:$0xff]
      %v1409 = vld [vmem:[#allocation6 + $0x4f0] sm:$0xff]
      %v1410 = vld [vmem:[#allocation6 + $0x4f8] sm:$0xff]
      %v1411 = vld [vmem:[#allocation6 + $0x500] sm:$0xff]
      %v1412 = vld [vmem:[#allocation6 + $0x508] sm:$0xff]
      %v1413 = vld [vmem:[#allocation6 + $0x510] sm:$0xff]
      %v1414 = vld [vmem:[#allocation6 + $0x518] sm:$0xff]
      %v1415 = vld [vmem:[#allocation6 + $0x520] sm:$0xff]
      %v1416 = vld [vmem:[#allocation6 + $0x528] sm:$0xff]
      %v1417 = vld [vmem:[#allocation6 + $0x530] sm:$0xff]
      %v1418 = vld [vmem:[#allocation6 + $0x538] sm:$0xff]
      %v1419 = vld [vmem:[#allocation6 + $0x540] sm:$0xff]
      %v1420 = vld [vmem:[#allocation6 + $0x548] sm:$0xff]
      %v1421 = vld [vmem:[#allocation6 + $0x550] sm:$0xff]
      %v1422 = vld [vmem:[#allocation6 + $0x558] sm:$0xff]
      %v1423 = vld [vmem:[#allocation6 + $0x560] sm:$0xff]
      %v1424 = vld [vmem:[#allocation6 + $0x568] sm:$0xff]
      %v1425 = vld [vmem:[#allocation6 + $0x570] sm:$0xff]
      %v1426 = vld [vmem:[#allocation6 + $0x578] sm:$0xff]
      %v1427 = vld [vmem:[#allocation6 + $0x580] sm:$0xff]
      %v1428 = vld [vmem:[#allocation6 + $0x588] sm:$0xff]
      %v1429 = vld [vmem:[#allocation6 + $0x590] sm:$0xff]
      %v1430 = vld [vmem:[#allocation6 + $0x598] sm:$0xff]
      %v1431 = vld [vmem:[#allocation6 + $0x5a0] sm:$0xff]
      %v1432 = vld [vmem:[#allocation6 + $0x5a8] sm:$0xff]
      %v1433 = vld [vmem:[#allocation6 + $0x5b0] sm:$0xff]
      %v1434 = vld [vmem:[#allocation6 + $0x5b8] sm:$0xff]
      %v1435 = vld [vmem:[#allocation6 + $0x5c0] sm:$0xff]
      %v1436 = vld [vmem:[#allocation6 + $0x5c8] sm:$0xff]
      %v1437 = vld [vmem:[#allocation6 + $0x5d0] sm:$0xff]
      %v1438 = vld [vmem:[#allocation6 + $0x5d8] sm:$0xff]
      %v1439 = vld [vmem:[#allocation6 + $0x5e0] sm:$0xff]
      %v1440 = vld [vmem:[#allocation6 + $0x5e8] sm:$0xff]
      %v1441 = vld [vmem:[#allocation6 + $0x5f0] sm:$0xff]
      %v1442 = vld [vmem:[#allocation6 + $0x5f8] sm:$0xff]
      %v1443 = vld [vmem:[#allocation6 + $0x600] sm:$0xff]
      %v1444 = vld [vmem:[#allocation6 + $0x608] sm:$0xff]
      %v1445 = vld [vmem:[#allocation6 + $0x610] sm:$0xff]
      %v1446 = vld [vmem:[#allocation6 + $0x618] sm:$0xff]
      %v1447 = vld [vmem:[#allocation6 + $0x620] sm:$0xff]
      %v1448 = vld [vmem:[#allocation6 + $0x628] sm:$0xff]
      %v1449 = vld [vmem:[#allocation6 + $0x630] sm:$0xff]
      %v1450 = vld [vmem:[#allocation6 + $0x638] sm:$0xff]
      %v1451 = vld [vmem:[#allocation6 + $0x640] sm:$0xff]
      %v1452 = vld [vmem:[#allocation6 + $0x648] sm:$0xff]
      %v1453 = vld [vmem:[#allocation6 + $0x650] sm:$0xff]
      %v1454 = vld [vmem:[#allocation6 + $0x658] sm:$0xff]
      %v1455 = vld [vmem:[#allocation6 + $0x660] sm:$0xff]
      %v1456 = vld [vmem:[#allocation6 + $0x668] sm:$0xff]
      %v1457 = vld [vmem:[#allocation6 + $0x670] sm:$0xff]
      %v1458 = vld [vmem:[#allocation6 + $0x678] sm:$0xff]
      %v1459 = vld [vmem:[#allocation6 + $0x680] sm:$0xff]
      %v1460 = vld [vmem:[#allocation6 + $0x688] sm:$0xff]
      %v1461 = vld [vmem:[#allocation6 + $0x690] sm:$0xff]
      %v1462 = vld [vmem:[#allocation6 + $0x698] sm:$0xff]
      %v1463 = vld [vmem:[#allocation6 + $0x6a0] sm:$0xff]
      %v1464 = vld [vmem:[#allocation6 + $0x6a8] sm:$0xff]
      %v1465 = vld [vmem:[#allocation6 + $0x6b0] sm:$0xff]
      %v1466 = vld [vmem:[#allocation6 + $0x6b8] sm:$0xff]
      %v1467 = vld [vmem:[#allocation6 + $0x6c0] sm:$0xff]
      %v1468 = vld [vmem:[#allocation6 + $0x6c8] sm:$0xff]
      %v1469 = vld [vmem:[#allocation6 + $0x6d0] sm:$0xff]
      %v1470 = vld [vmem:[#allocation6 + $0x6d8] sm:$0xff]
      %v1471 = vld [vmem:[#allocation6 + $0x6e0] sm:$0xff]
      %v1472 = vld [vmem:[#allocation6 + $0x6e8] sm:$0xff]
      %v1473 = vld [vmem:[#allocation6 + $0x6f0] sm:$0xff]
      %v1474 = vld [vmem:[#allocation6 + $0x6f8] sm:$0xff]
      %v1475 = vld [vmem:[#allocation6 + $0x700] sm:$0xff]
      %v1476 = vld [vmem:[#allocation6 + $0x708] sm:$0xff]
      %v1477 = vld [vmem:[#allocation6 + $0x710] sm:$0xff]
      %v1478 = vld [vmem:[#allocation6 + $0x718] sm:$0xff]
      %v1479 = vld [vmem:[#allocation6 + $0x720] sm:$0xff]
      %v1480 = vld [vmem:[#allocation6 + $0x728] sm:$0xff]
      %v1481 = vld [vmem:[#allocation6 + $0x730] sm:$0xff]
      %v1482 = vld [vmem:[#allocation6 + $0x738] sm:$0xff]
      %v1483 = vld [vmem:[#allocation6 + $0x740] sm:$0xff]
      %v1484 = vld [vmem:[#allocation6 + $0x748] sm:$0xff]
      %v1485 = vld [vmem:[#allocation6 + $0x750] sm:$0xff]
      %v1486 = vld [vmem:[#allocation6 + $0x758] sm:$0xff]
      %v1487 = vld [vmem:[#allocation6 + $0x760] sm:$0xff]
      %v1488 = vld [vmem:[#allocation6 + $0x768] sm:$0xff]
      %v1489 = vld [vmem:[#allocation6 + $0x770] sm:$0xff]
      %v1490 = vld [vmem:[#allocation6 + $0x778] sm:$0xff]
      %v1491 = vld [vmem:[#allocation6 + $0x780] sm:$0xff]
      %v1492 = vld [vmem:[#allocation6 + $0x788] sm:$0xff]
      %v1493 = vld [vmem:[#allocation6 + $0x790] sm:$0xff]
      %v1494 = vld [vmem:[#allocation6 + $0x798] sm:$0xff]
      %v1495 = vld [vmem:[#allocation6 + $0x7a0] sm:$0xff]
      %v1496 = vld [vmem:[#allocation6 + $0x7a8] sm:$0xff]
      %v1497 = vld [vmem:[#allocation6 + $0x7b0] sm:$0xff]
      %v1498 = vld [vmem:[#allocation6 + $0x7b8] sm:$0xff]
      %v1499 = vld [vmem:[#allocation6 + $0x7c0] sm:$0xff]
      %v1500 = vld [vmem:[#allocation6 + $0x7c8] sm:$0xff]
      %v1501 = vld [vmem:[#allocation6 + $0x7d0] sm:$0xff]
      %v1502 = vld [vmem:[#allocation6 + $0x7d8] sm:$0xff]
      %v1503 = vld [vmem:[#allocation6 + $0x7e0] sm:$0xff]
      %v1504 = vld [vmem:[#allocation6 + $0x7e8] sm:$0xff]
      %v1505 = vld [vmem:[#allocation6 + $0x7f0] sm:$0xff]
      %v1506 = vld [vmem:[#allocation6 + $0x7f8] sm:$0xff]
      %v1507 = vld [vmem:[#allocation6 + $0x800] sm:$0xff]
      %v1508 = vld [vmem:[#allocation6 + $0x808] sm:$0xff]
      %v1509 = vld [vmem:[#allocation6 + $0x810] sm:$0xff]
      %v1510 = vld [vmem:[#allocation6 + $0x818] sm:$0xff]
      %v1511 = vld [vmem:[#allocation6 + $0x820] sm:$0xff]
      %v1512 = vld [vmem:[#allocation6 + $0x828] sm:$0xff]
      %v1513 = vld [vmem:[#allocation6 + $0x830] sm:$0xff]
      %v1514 = vld [vmem:[#allocation6 + $0x838] sm:$0xff]
      %v1515 = vld [vmem:[#allocation6 + $0x840] sm:$0xff]
      %v1516 = vld [vmem:[#allocation6 + $0x848] sm:$0xff]
      %v1517 = vld [vmem:[#allocation6 + $0x850] sm:$0xff]
      %v1518 = vld [vmem:[#allocation6 + $0x858] sm:$0xff]
      %v1519 = vld [vmem:[#allocation6 + $0x860] sm:$0xff]
      %v1520 = vld [vmem:[#allocation6 + $0x868] sm:$0xff]
      %v1521 = vld [vmem:[#allocation6 + $0x870] sm:$0xff]
      %v1522 = vld [vmem:[#allocation6 + $0x878] sm:$0xff]
      %v1523 = vld [vmem:[#allocation6 + $0x880] sm:$0xff]
      %v1524 = vld [vmem:[#allocation6 + $0x888] sm:$0xff]
      %v1525 = vld [vmem:[#allocation6 + $0x890] sm:$0xff]
      %v1526 = vld [vmem:[#allocation6 + $0x898] sm:$0xff]
      %v1527 = vld [vmem:[#allocation6 + $0x8a0] sm:$0xff]
      %v1528 = vld [vmem:[#allocation6 + $0x8a8] sm:$0xff]
      %v1529 = vld [vmem:[#allocation6 + $0x8b0] sm:$0xff]
      %v1530 = vld [vmem:[#allocation6 + $0x8b8] sm:$0xff]
      %v1531 = vld [vmem:[#allocation6 + $0x8c0] sm:$0xff]
      %v1532 = vld [vmem:[#allocation6 + $0x8c8] sm:$0xff]
      %v1533 = vld [vmem:[#allocation6 + $0x8d0] sm:$0xff]
      %v1534 = vld [vmem:[#allocation6 + $0x8d8] sm:$0xff]
      %v1535 = vld [vmem:[#allocation6 + $0x8e0] sm:$0xff]
      %v1536 = vld [vmem:[#allocation6 + $0x8e8] sm:$0xff]
      %v1537 = vld [vmem:[#allocation6 + $0x8f0] sm:$0xff]
      %v1538 = vld [vmem:[#allocation6 + $0x8f8] sm:$0xff]
      %v1539 = vld [vmem:[#allocation6 + $0x900] sm:$0xff]
      %v1540 = vld [vmem:[#allocation6 + $0x908] sm:$0xff]
      %v1541 = vld [vmem:[#allocation6 + $0x910] sm:$0xff]
      %v1542 = vld [vmem:[#allocation6 + $0x918] sm:$0xff]
      %v1543 = vld [vmem:[#allocation6 + $0x920] sm:$0xff]
      %v1544 = vld [vmem:[#allocation6 + $0x928] sm:$0xff]
      %v1545 = vld [vmem:[#allocation6 + $0x930] sm:$0xff]
      %v1546 = vld [vmem:[#allocation6 + $0x938] sm:$0xff]
      %v1547 = vld [vmem:[#allocation6 + $0x940] sm:$0xff]
      %v1548 = vld [vmem:[#allocation6 + $0x948] sm:$0xff]
      %v1549 = vld [vmem:[#allocation6 + $0x950] sm:$0xff]
      %v1550 = vld [vmem:[#allocation6 + $0x958] sm:$0xff]
      %v1551 = vld [vmem:[#allocation6 + $0x960] sm:$0xff]
      %v1552 = vld [vmem:[#allocation6 + $0x968] sm:$0xff]
      %v1553 = vld [vmem:[#allocation6 + $0x970] sm:$0xff]
      %v1554 = vld [vmem:[#allocation6 + $0x978] sm:$0xff]
      %v1555 = vld [vmem:[#allocation6 + $0x980] sm:$0xff]
      %v1556 = vld [vmem:[#allocation6 + $0x988] sm:$0xff]
      %v1557 = vld [vmem:[#allocation6 + $0x990] sm:$0xff]
      %v1558 = vld [vmem:[#allocation6 + $0x998] sm:$0xff]
      %v1559 = vld [vmem:[#allocation6 + $0x9a0] sm:$0xff]
      %v1560 = vld [vmem:[#allocation6 + $0x9a8] sm:$0xff]
      %v1561 = vld [vmem:[#allocation6 + $0x9b0] sm:$0xff]
      %v1562 = vld [vmem:[#allocation6 + $0x9b8] sm:$0xff]
      %v1563 = vld [vmem:[#allocation6 + $0x9c0] sm:$0xff]
      %v1564 = vld [vmem:[#allocation6 + $0x9c8] sm:$0xff]
      %v1565 = vld [vmem:[#allocation6 + $0x9d0] sm:$0xff]
      %v1566 = vld [vmem:[#allocation6 + $0x9d8] sm:$0xff]
      %v1567 = vld [vmem:[#allocation6 + $0x9e0] sm:$0xff]
      %v1568 = vld [vmem:[#allocation6 + $0x9e8] sm:$0xff]
      %v1569 = vld [vmem:[#allocation6 + $0x9f0] sm:$0xff]
      %v1570 = vld [vmem:[#allocation6 + $0x9f8] sm:$0xff]
      %v1571 = vld [vmem:[#allocation6 + $0xa00] sm:$0xff]
      %v1572 = vld [vmem:[#allocation6 + $0xa08] sm:$0xff]
      %v1573 = vld [vmem:[#allocation6 + $0xa10] sm:$0xff]
      %v1574 = vld [vmem:[#allocation6 + $0xa18] sm:$0xff]
      %v1575 = vld [vmem:[#allocation6 + $0xa20] sm:$0xff]
      %v1576 = vld [vmem:[#allocation6 + $0xa28] sm:$0xff]
      %v1577 = vld [vmem:[#allocation6 + $0xa30] sm:$0xff]
      %v1578 = vld [vmem:[#allocation6 + $0xa38] sm:$0xff]
      %v1579 = vld [vmem:[#allocation6 + $0xa40] sm:$0xff]
      %v1580 = vld [vmem:[#allocation6 + $0xa48] sm:$0xff]
      %v1581 = vld [vmem:[#allocation6 + $0xa50] sm:$0xff]
      %v1582 = vld [vmem:[#allocation6 + $0xa58] sm:$0xff]
      %v1583 = vld [vmem:[#allocation6 + $0xa60] sm:$0xff]
      %v1584 = vld [vmem:[#allocation6 + $0xa68] sm:$0xff]
      %v1585 = vld [vmem:[#allocation6 + $0xa70] sm:$0xff]
      %v1586 = vld [vmem:[#allocation6 + $0xa78] sm:$0xff]
      %v1587 = vld [vmem:[#allocation6 + $0xa80] sm:$0xff]
      %v1588 = vld [vmem:[#allocation6 + $0xa88] sm:$0xff]
      %v1589 = vld [vmem:[#allocation6 + $0xa90] sm:$0xff]
      %v1590 = vld [vmem:[#allocation6 + $0xa98] sm:$0xff]
      %v1591 = vld [vmem:[#allocation6 + $0xaa0] sm:$0xff]
      %v1592 = vld [vmem:[#allocation6 + $0xaa8] sm:$0xff]
      %v1593 = vld [vmem:[#allocation6 + $0xab0] sm:$0xff]
      %v1594 = vld [vmem:[#allocation6 + $0xab8] sm:$0xff]
      %v1595 = vld [vmem:[#allocation6 + $0xac0] sm:$0xff]
      %v1596 = vld [vmem:[#allocation6 + $0xac8] sm:$0xff]
      %v1597 = vld [vmem:[#allocation6 + $0xad0] sm:$0xff]
      %v1598 = vld [vmem:[#allocation6 + $0xad8] sm:$0xff]
      %v1599 = vld [vmem:[#allocation6 + $0xae0] sm:$0xff]
      %v1600 = vld [vmem:[#allocation6 + $0xae8] sm:$0xff]
      %v1601 = vld [vmem:[#allocation6 + $0xaf0] sm:$0xff]
      %v1602 = vld [vmem:[#allocation6 + $0xaf8] sm:$0xff]
      %v1603 = vld [vmem:[#allocation6 + $0xb00] sm:$0xff]
      %v1604 = vld [vmem:[#allocation6 + $0xb08] sm:$0xff]
      %v1605 = vld [vmem:[#allocation6 + $0xb10] sm:$0xff]
      %v1606 = vld [vmem:[#allocation6 + $0xb18] sm:$0xff]
      %v1607 = vld [vmem:[#allocation6 + $0xb20] sm:$0xff]
      %v1608 = vld [vmem:[#allocation6 + $0xb28] sm:$0xff]
      %v1609 = vld [vmem:[#allocation6 + $0xb30] sm:$0xff]
      %v1610 = vld [vmem:[#allocation6 + $0xb38] sm:$0xff]
      %v1611 = vld [vmem:[#allocation6 + $0xb40] sm:$0xff]
      %v1612 = vld [vmem:[#allocation6 + $0xb48] sm:$0xff]
      %v1613 = vld [vmem:[#allocation6 + $0xb50] sm:$0xff]
      %v1614 = vld [vmem:[#allocation6 + $0xb58] sm:$0xff]
      %v1615 = vld [vmem:[#allocation6 + $0xb60] sm:$0xff]
      %v1616 = vld [vmem:[#allocation6 + $0xb68] sm:$0xff]
      %v1617 = vld [vmem:[#allocation6 + $0xb70] sm:$0xff]
      %v1618 = vld [vmem:[#allocation6 + $0xb78] sm:$0xff]
      %v1619 = vld [vmem:[#allocation6 + $0xb80] sm:$0xff]
      %v1620 = vld [vmem:[#allocation6 + $0xb88] sm:$0xff]
      %v1621 = vld [vmem:[#allocation6 + $0xb90] sm:$0xff]
      %v1622 = vld [vmem:[#allocation6 + $0xb98] sm:$0xff]
      %v1623 = vld [vmem:[#allocation6 + $0xba0] sm:$0xff]
      %v1624 = vld [vmem:[#allocation6 + $0xba8] sm:$0xff]
      %v1625 = vld [vmem:[#allocation6 + $0xbb0] sm:$0xff]
      %v1626 = vld [vmem:[#allocation6 + $0xbb8] sm:$0xff]
      %v1627 = vld [vmem:[#allocation6 + $0xbc0] sm:$0xff]
      %v1628 = vld [vmem:[#allocation6 + $0xbc8] sm:$0xff]
      %v1629 = vld [vmem:[#allocation6 + $0xbd0] sm:$0xff]
      %v1630 = vld [vmem:[#allocation6 + $0xbd8] sm:$0xff]
      %v1631 = vld [vmem:[#allocation6 + $0xbe0] sm:$0xff]
      %v1632 = vld [vmem:[#allocation6 + $0xbe8] sm:$0xff]
      %v1633 = vld [vmem:[#allocation6 + $0xbf0] sm:$0xff]
      %v1634 = vld [vmem:[#allocation6 + $0xbf8] sm:$0xff]
      %v1635 = vld [vmem:[#allocation6 + $0xc00] sm:$0xff]
      %v1636 = vld [vmem:[#allocation6 + $0xc08] sm:$0xff]
      %v1637 = vld [vmem:[#allocation6 + $0xc10] sm:$0xff]
      %v1638 = vld [vmem:[#allocation6 + $0xc18] sm:$0xff]
      %v1639 = vld [vmem:[#allocation6 + $0xc20] sm:$0xff]
      %v1640 = vld [vmem:[#allocation6 + $0xc28] sm:$0xff]
      %v1641 = vld [vmem:[#allocation6 + $0xc30] sm:$0xff]
      %v1642 = vld [vmem:[#allocation6 + $0xc38] sm:$0xff]
      %v1643 = vld [vmem:[#allocation6 + $0xc40] sm:$0xff]
      %v1644 = vld [vmem:[#allocation6 + $0xc48] sm:$0xff]
      %v1645 = vld [vmem:[#allocation6 + $0xc50] sm:$0xff]
      %v1646 = vld [vmem:[#allocation6 + $0xc58] sm:$0xff]
      %v1647 = vld [vmem:[#allocation6 + $0xc60] sm:$0xff]
      %v1648 = vld [vmem:[#allocation6 + $0xc68] sm:$0xff]
      %v1649 = vld [vmem:[#allocation6 + $0xc70] sm:$0xff]
      %v1650 = vld [vmem:[#allocation6 + $0xc78] sm:$0xff]
      %v1651 = vld [vmem:[#allocation6 + $0xc80] sm:$0xff]
      %v1652 = vld [vmem:[#allocation6 + $0xc88] sm:$0xff]
      %v1653 = vld [vmem:[#allocation6 + $0xc90] sm:$0xff]
      %v1654 = vld [vmem:[#allocation6 + $0xc98] sm:$0xff]
      %v1655 = vld [vmem:[#allocation6 + $0xca0] sm:$0xff]
      %v1656 = vld [vmem:[#allocation6 + $0xca8] sm:$0xff]
      %v1657 = vld [vmem:[#allocation6 + $0xcb0] sm:$0xff]
      %v1658 = vld [vmem:[#allocation6 + $0xcb8] sm:$0xff]
      %v1659 = vld [vmem:[#allocation6 + $0xcc0] sm:$0xff]
      %v1660 = vld [vmem:[#allocation6 + $0xcc8] sm:$0xff]
      %v1661 = vld [vmem:[#allocation6 + $0xcd0] sm:$0xff]
      %v1662 = vld [vmem:[#allocation6 + $0xcd8] sm:$0xff]
      %v1663 = vld [vmem:[#allocation6 + $0xce0] sm:$0xff]
      %v1664 = vld [vmem:[#allocation6 + $0xce8] sm:$0xff]
      %v1665 = vld [vmem:[#allocation6 + $0xcf0] sm:$0xff]
      %v1666 = vld [vmem:[#allocation6 + $0xcf8] sm:$0xff]
      %v1667 = vld [vmem:[#allocation6 + $0xd00] sm:$0xff]
      %v1668 = vld [vmem:[#allocation6 + $0xd08] sm:$0xff]
      %v1669 = vld [vmem:[#allocation6 + $0xd10] sm:$0xff]
      %v1670 = vld [vmem:[#allocation6 + $0xd18] sm:$0xff]
      %v1671 = vld [vmem:[#allocation6 + $0xd20] sm:$0xff]
      %v1672 = vld [vmem:[#allocation6 + $0xd28] sm:$0xff]
      %v1673 = vld [vmem:[#allocation6 + $0xd30] sm:$0xff]
      %v1674 = vld [vmem:[#allocation6 + $0xd38] sm:$0xff]
      %v1675 = vld [vmem:[#allocation6 + $0xd40] sm:$0xff]
      %v1676 = vld [vmem:[#allocation6 + $0xd48] sm:$0xff]
      %v1677 = vld [vmem:[#allocation6 + $0xd50] sm:$0xff]
      %v1678 = vld [vmem:[#allocation6 + $0xd58] sm:$0xff]
      %v1679 = vld [vmem:[#allocation6 + $0xd60] sm:$0xff]
      %v1680 = vld [vmem:[#allocation6 + $0xd68] sm:$0xff]
      %v1681 = vld [vmem:[#allocation6 + $0xd70] sm:$0xff]
      %v1682 = vld [vmem:[#allocation6 + $0xd78] sm:$0xff]
      %v1683 = vld [vmem:[#allocation6 + $0xd80] sm:$0xff]
      %v1684 = vld [vmem:[#allocation6 + $0xd88] sm:$0xff]
      %v1685 = vld [vmem:[#allocation6 + $0xd90] sm:$0xff]
      %v1686 = vld [vmem:[#allocation6 + $0xd98] sm:$0xff]
      %v1687 = vld [vmem:[#allocation6 + $0xda0] sm:$0xff]
      %v1688 = vld [vmem:[#allocation6 + $0xda8] sm:$0xff]
      %v1689 = vld [vmem:[#allocation6 + $0xdb0] sm:$0xff]
      %v1690 = vld [vmem:[#allocation6 + $0xdb8] sm:$0xff]
      %v1691 = vld [vmem:[#allocation6 + $0xdc0] sm:$0xff]
      %v1692 = vld [vmem:[#allocation6 + $0xdc8] sm:$0xff]
      %v1693 = vld [vmem:[#allocation6 + $0xdd0] sm:$0xff]
      %v1694 = vld [vmem:[#allocation6 + $0xdd8] sm:$0xff]
      %v1695 = vld [vmem:[#allocation6 + $0xde0] sm:$0xff]
      %v1696 = vld [vmem:[#allocation6 + $0xde8] sm:$0xff]
      %v1697 = vld [vmem:[#allocation6 + $0xdf0] sm:$0xff]
      %v1698 = vld [vmem:[#allocation6 + $0xdf8] sm:$0xff]
      %v1699 = vld [vmem:[#allocation6 + $0xe00] sm:$0xff]
      %v1700 = vld [vmem:[#allocation6 + $0xe08] sm:$0xff]
      %v1701 = vld [vmem:[#allocation6 + $0xe10] sm:$0xff]
      %v1702 = vld [vmem:[#allocation6 + $0xe18] sm:$0xff]
      %v1703 = vld [vmem:[#allocation6 + $0xe20] sm:$0xff]
      %v1704 = vld [vmem:[#allocation6 + $0xe28] sm:$0xff]
      %v1705 = vld [vmem:[#allocation6 + $0xe30] sm:$0xff]
      %v1706 = vld [vmem:[#allocation6 + $0xe38] sm:$0xff]
      %v1707 = vld [vmem:[#allocation6 + $0xe40] sm:$0xff]
      %v1708 = vld [vmem:[#allocation6 + $0xe48] sm:$0xff]
      %v1709 = vld [vmem:[#allocation6 + $0xe50] sm:$0xff]
      %v1710 = vld [vmem:[#allocation6 + $0xe58] sm:$0xff]
      %v1711 = vld [vmem:[#allocation6 + $0xe60] sm:$0xff]
      %v1712 = vld [vmem:[#allocation6 + $0xe68] sm:$0xff]
      %v1713 = vld [vmem:[#allocation6 + $0xe70] sm:$0xff]
      %v1714 = vld [vmem:[#allocation6 + $0xe78] sm:$0xff]
      %v1715 = vld [vmem:[#allocation6 + $0xe80] sm:$0xff]
      %v1716 = vld [vmem:[#allocation6 + $0xe88] sm:$0xff]
      %v1717 = vld [vmem:[#allocation6 + $0xe90] sm:$0xff]
      %v1718 = vld [vmem:[#allocation6 + $0xe98] sm:$0xff]
      %v1719 = vld [vmem:[#allocation6 + $0xea0] sm:$0xff]
      %v1720 = vld [vmem:[#allocation6 + $0xea8] sm:$0xff]
      %v1721 = vld [vmem:[#allocation6 + $0xeb0] sm:$0xff]
      %v1722 = vld [vmem:[#allocation6 + $0xeb8] sm:$0xff]
      %v1723 = vld [vmem:[#allocation6 + $0xec0] sm:$0xff]
      %v1724 = vld [vmem:[#allocation6 + $0xec8] sm:$0xff]
      %v1725 = vld [vmem:[#allocation6 + $0xed0] sm:$0xff]
      %v1726 = vld [vmem:[#allocation6 + $0xed8] sm:$0xff]
      %v1727 = vld [vmem:[#allocation6 + $0xee0] sm:$0xff]
      %v1728 = vld [vmem:[#allocation6 + $0xee8] sm:$0xff]
      %v1729 = vld [vmem:[#allocation6 + $0xef0] sm:$0xff]
      %v1730 = vld [vmem:[#allocation6 + $0xef8] sm:$0xff]
      %v1731 = vld [vmem:[#allocation6 + $0xf00] sm:$0xff]
      %v1732 = vld [vmem:[#allocation6 + $0xf08] sm:$0xff]
      %v1733 = vld [vmem:[#allocation6 + $0xf10] sm:$0xff]
      %v1734 = vld [vmem:[#allocation6 + $0xf18] sm:$0xff]
      %v1735 = vld [vmem:[#allocation6 + $0xf20] sm:$0xff]
      %v1736 = vld [vmem:[#allocation6 + $0xf28] sm:$0xff]
      %v1737 = vld [vmem:[#allocation6 + $0xf30] sm:$0xff]
      %v1738 = vld [vmem:[#allocation6 + $0xf38] sm:$0xff]
      %v1739 = vld [vmem:[#allocation6 + $0xf40] sm:$0xff]
      %v1740 = vld [vmem:[#allocation6 + $0xf48] sm:$0xff]
      %v1741 = vld [vmem:[#allocation6 + $0xf50] sm:$0xff]
      %v1742 = vld [vmem:[#allocation6 + $0xf58] sm:$0xff]
      %v1743 = vld [vmem:[#allocation6 + $0xf60] sm:$0xff]
      %v1744 = vld [vmem:[#allocation6 + $0xf68] sm:$0xff]
      %v1745 = vld [vmem:[#allocation6 + $0xf70] sm:$0xff]
      %v1746 = vld [vmem:[#allocation6 + $0xf78] sm:$0xff]
      %v1747 = vld [vmem:[#allocation6 + $0xf80] sm:$0xff]
      %v1748 = vld [vmem:[#allocation6 + $0xf88] sm:$0xff]
      %v1749 = vld [vmem:[#allocation6 + $0xf90] sm:$0xff]
      %v1750 = vld [vmem:[#allocation6 + $0xf98] sm:$0xff]
      %v1751 = vld [vmem:[#allocation6 + $0xfa0] sm:$0xff]
      %v1752 = vld [vmem:[#allocation6 + $0xfa8] sm:$0xff]
      %v1753 = vld [vmem:[#allocation6 + $0xfb0] sm:$0xff]
      %v1754 = vld [vmem:[#allocation6 + $0xfb8] sm:$0xff]
      %v1755 = vld [vmem:[#allocation6 + $0xfc0] sm:$0xff]
      %v1756 = vld [vmem:[#allocation6 + $0xfc8] sm:$0xff]
      %v1757 = vld [vmem:[#allocation6 + $0xfd0] sm:$0xff]
      %v1758 = vld [vmem:[#allocation6 + $0xfd8] sm:$0xff]
      %v1759 = vld [vmem:[#allocation6 + $0xfe0] sm:$0xff]
      %v1760 = vld [vmem:[#allocation6 + $0xfe8] sm:$0xff]
      %v1761 = vld [vmem:[#allocation6 + $0xff0] sm:$0xff]
      %v1762 = vld [vmem:[#allocation6 + $0xff8] sm:$0xff]
      %v1763 = vld [vmem:[#allocation8] sm:$0xf]
      %v1765 = vlaneseq
      %v1766 = vshrl.u32 %v1765, 7
      %v1767 = vsub.s32 0, %v1766
      %v1768 = vrot.slane %v1763, %v1767
      %v1769 = vlaneseq
      %v1770 = vshrl.u32 %v1769, 7
      %v1771 = vsub.s32 1, %v1770
      %v1772 = vrot.slane %v1763, %v1771
      %v1773 = vlaneseq
      %v1774 = vshrl.u32 %v1773, 7
      %v1775 = vsub.s32 2, %v1774
      %v1776 = vrot.slane %v1763, %v1775
      %v1777 = vlaneseq
      %v1778 = vshrl.u32 %v1777, 7
      %v1779 = vsub.s32 3, %v1778
      %v1780 = vrot.slane %v1763, %v1779
      %1785 = vmatprep.subr.mxu0 %v1312
      %1786 = vmatpush1.msra.mxu0 %v1311
      %1787 = vmatprep.subr.mxu0 %v1308
      %1788 = vmatpush1.msra.mxu0 %v1307
      %1789 = vmatprep.subr.mxu0 %v1304
      %1790 = vmatpush1.msra.mxu0 %v1303
      %1791 = vmatprep.subr.mxu0 %v1300
      %1792 = vmatpush1.msra.mxu0 %v1299
      %1793 = vmatprep.subr.mxu0 %v1296
      %1794 = vmatpush1.msra.mxu0 %v1295
      %1795 = vmatprep.subr.mxu0 %v1292
      %1796 = vmatpush1.msra.mxu0 %v1291
      %1797 = vmatprep.subr.mxu0 %v1288
      %1798 = vmatpush1.msra.mxu0 %v1287
      %1799 = vmatprep.subr.mxu0 %v1284
      %1800 = vmatpush1.msra.mxu0 %v1283
      %1801 = vmatprep.subr.mxu0 %v1280
      %1802 = vmatpush1.msra.mxu0 %v1279
      %1803 = vmatprep.subr.mxu0 %v1276
      %1804 = vmatpush1.msra.mxu0 %v1275
      %1805 = vmatprep.subr.mxu0 %v1272
      %1806 = vmatpush1.msra.mxu0 %v1271
      %1807 = vmatprep.subr.mxu0 %v1268
      %1808 = vmatpush1.msra.mxu0 %v1267
      %1809 = vmatprep.subr.mxu0 %v1264
      %1810 = vmatpush1.msra.mxu0 %v1263
      %1811 = vmatprep.subr.mxu0 %v1260
      %1812 = vmatpush1.msra.mxu0 %v1259
      %1813 = vmatprep.subr.mxu0 %v1256
      %1814 = vmatpush1.msra.mxu0 %v1255
      %1815 = vmatprep.subr.mxu0 %v1252
      %1816 = vmatpush1.msra.mxu0 %v1251
      %1817 = vmatprep.subr.mxu0 %v1376
      %1818 = vmatpush2.msra.mxu0 %v1375
      %1819 = vmatprep.subr.mxu0 %v1372
      %1820 = vmatpush2.msra.mxu0 %v1371
      %1821 = vmatprep.subr.mxu0 %v1368
      %1822 = vmatpush2.msra.mxu0 %v1367
      %1823 = vmatprep.subr.mxu0 %v1364
      %1824 = vmatpush2.msra.mxu0 %v1363
      %1825 = vmatprep.subr.mxu0 %v1360
      %1826 = vmatpush2.msra.mxu0 %v1359
      %1827 = vmatprep.subr.mxu0 %v1356
      %1828 = vmatpush2.msra.mxu0 %v1355
      %1829 = vmatprep.subr.mxu0 %v1352
      %1830 = vmatpush2.msra.mxu0 %v1351
      %1831 = vmatprep.subr.mxu0 %v1348
      %1832 = vmatpush2.msra.mxu0 %v1347
      %1833 = vmatprep.subr.mxu0 %v1344
      %1834 = vmatpush2.msra.mxu0 %v1343
      %1835 = vmatprep.subr.mxu0 %v1340
      %1836 = vmatpush2.msra.mxu0 %v1339
      %1837 = vmatprep.subr.mxu0 %v1336
      %1838 = vmatpush2.msra.mxu0 %v1335
      %1839 = vmatprep.subr.mxu0 %v1332
      %1840 = vmatpush2.msra.mxu0 %v1331
      %1841 = vmatprep.subr.mxu0 %v1328
      %1842 = vmatpush2.msra.mxu0 %v1327
      %1843 = vmatprep.subr.mxu0 %v1324
      %1844 = vmatpush2.msra.mxu0 %v1323
      %1845 = vmatprep.subr.mxu0 %v1320
      %1846 = vmatpush2.msra.mxu0 %v1319
      %1847 = vmatprep.subr.mxu0 %v1316
      %1848 = vmatpush2.msra.mxu0 %v1315
      %1849 = vmatprep.mubr.f32.mxu0 %v1244
      %1850 = vmatmul.mubr.f32.gmra.mxu0 %v1243
      %v1851 = vpop.f32.mrf.mxu0
      %v1852 = vadd.f32 %v1768, %v1851
      %v1853 = vpop.f32.mrf.mxu0
      %v1854 = vadd.f32 %v1772, %v1853
      %1855 = vdwg.mxu0
      %1856 = vmatprep.subr.mxu0 %v1440
      %1857 = vmatpush1.msra.mxu0 %v1439
      %1858 = vmatprep.subr.mxu0 %v1436
      %1859 = vmatpush1.msra.mxu0 %v1435
      %1860 = vmatprep.subr.mxu0 %v1432
      %1861 = vmatpush1.msra.mxu0 %v1431
      %1862 = vmatprep.subr.mxu0 %v1428
      %1863 = vmatpush1.msra.mxu0 %v1427
      %1864 = vmatprep.subr.mxu0 %v1424
      %1865 = vmatpush1.msra.mxu0 %v1423
      %1866 = vmatprep.subr.mxu0 %v1420
      %1867 = vmatpush1.msra.mxu0 %v1419
      %1868 = vmatprep.subr.mxu0 %v1416
      %1869 = vmatpush1.msra.mxu0 %v1415
      %1870 = vmatprep.subr.mxu0 %v1412
      %1871 = vmatpush1.msra.mxu0 %v1411
      %1872 = vmatprep.subr.mxu0 %v1408
      %1873 = vmatpush1.msra.mxu0 %v1407
      %1874 = vmatprep.subr.mxu0 %v1404
      %1875 = vmatpush1.msra.mxu0 %v1403
      %1876 = vmatprep.subr.mxu0 %v1400
      %1877 = vmatpush1.msra.mxu0 %v1399
      %1878 = vmatprep.subr.mxu0 %v1396
      %1879 = vmatpush1.msra.mxu0 %v1395
      %1880 = vmatprep.subr.mxu0 %v1392
      %1881 = vmatpush1.msra.mxu0 %v1391
      %1882 = vmatprep.subr.mxu0 %v1388
      %1883 = vmatpush1.msra.mxu0 %v1387
      %1884 = vmatprep.subr.mxu0 %v1384
      %1885 = vmatpush1.msra.mxu0 %v1383
      %1886 = vmatprep.subr.mxu0 %v1380
      %1887 = vmatpush1.msra.mxu0 %v1379
      %1888 = vmatprep.subr.mxu0 %v1504
      %1889 = vmatpush2.msra.mxu0 %v1503
      %1890 = vmatprep.subr.mxu0 %v1500
      %1891 = vmatpush2.msra.mxu0 %v1499
      %1892 = vmatprep.subr.mxu0 %v1496
      %1893 = vmatpush2.msra.mxu0 %v1495
      %1894 = vmatprep.subr.mxu0 %v1492
      %1895 = vmatpush2.msra.mxu0 %v1491
      %1896 = vmatprep.subr.mxu0 %v1488
      %1897 = vmatpush2.msra.mxu0 %v1487
      %1898 = vmatprep.subr.mxu0 %v1484
      %1899 = vmatpush2.msra.mxu0 %v1483
      %1900 = vmatprep.subr.mxu0 %v1480
      %1901 = vmatpush2.msra.mxu0 %v1479
      %1902 = vmatprep.subr.mxu0 %v1476
      %1903 = vmatpush2.msra.mxu0 %v1475
      %1904 = vmatprep.subr.mxu0 %v1472
      %1905 = vmatpush2.msra.mxu0 %v1471
      %1906 = vmatprep.subr.mxu0 %v1468
      %1907 = vmatpush2.msra.mxu0 %v1467
      %1908 = vmatprep.subr.mxu0 %v1464
      %1909 = vmatpush2.msra.mxu0 %v1463
      %1910 = vmatprep.subr.mxu0 %v1460
      %1911 = vmatpush2.msra.mxu0 %v1459
      %1912 = vmatprep.subr.mxu0 %v1456
      %1913 = vmatpush2.msra.mxu0 %v1455
      %1914 = vmatprep.subr.mxu0 %v1452
      %1915 = vmatpush2.msra.mxu0 %v1451
      %1916 = vmatprep.subr.mxu0 %v1448
      %1917 = vmatpush2.msra.mxu0 %v1447
      %1918 = vmatprep.subr.mxu0 %v1444
      %1919 = vmatpush2.msra.mxu0 %v1443
      %1920 = vmatprep.mubr.f32.mxu0 %v1246
      %1921 = vmatmul.mubr.f32.gmra.mxu0 %v1245
      %v1922 = vpop.f32.mrf.mxu0
      %v1923 = vadd.f32 %v1852, %v1922
      %v1924 = vpop.f32.mrf.mxu0
      %v1925 = vadd.f32 %v1854, %v1924
      %1926 = vdwg.mxu0
      %1927 = vmatprep.subr.mxu0 %v1568
      %1928 = vmatpush1.msra.mxu0 %v1567
      %1929 = vmatprep.subr.mxu0 %v1564
      %1930 = vmatpush1.msra.mxu0 %v1563
      %1931 = vmatprep.subr.mxu0 %v1560
      %1932 = vmatpush1.msra.mxu0 %v1559
      %1933 = vmatprep.subr.mxu0 %v1556
      %1934 = vmatpush1.msra.mxu0 %v1555
      %1935 = vmatprep.subr.mxu0 %v1552
      %1936 = vmatpush1.msra.mxu0 %v1551
      %1937 = vmatprep.subr.mxu0 %v1548
      %1938 = vmatpush1.msra.mxu0 %v1547
      %1939 = vmatprep.subr.mxu0 %v1544
      %1940 = vmatpush1.msra.mxu0 %v1543
      %1941 = vmatprep.subr.mxu0 %v1540
      %1942 = vmatpush1.msra.mxu0 %v1539
      %1943 = vmatprep.subr.mxu0 %v1536
      %1944 = vmatpush1.msra.mxu0 %v1535
      %1945 = vmatprep.subr.mxu0 %v1532
      %1946 = vmatpush1.msra.mxu0 %v1531
      %1947 = vmatprep.subr.mxu0 %v1528
      %1948 = vmatpush1.msra.mxu0 %v1527
      %1949 = vmatprep.subr.mxu0 %v1524
      %1950 = vmatpush1.msra.mxu0 %v1523
      %1951 = vmatprep.subr.mxu0 %v1520
      %1952 = vmatpush1.msra.mxu0 %v1519
      %1953 = vmatprep.subr.mxu0 %v1516
      %1954 = vmatpush1.msra.mxu0 %v1515
      %1955 = vmatprep.subr.mxu0 %v1512
      %1956 = vmatpush1.msra.mxu0 %v1511
      %1957 = vmatprep.subr.mxu0 %v1508
      %1958 = vmatpush1.msra.mxu0 %v1507
      %1959 = vmatprep.subr.mxu0 %v1632
      %1960 = vmatpush2.msra.mxu0 %v1631
      %1961 = vmatprep.subr.mxu0 %v1628
      %1962 = vmatpush2.msra.mxu0 %v1627
      %1963 = vmatprep.subr.mxu0 %v1624
      %1964 = vmatpush2.msra.mxu0 %v1623
      %1965 = vmatprep.subr.mxu0 %v1620
      %1966 = vmatpush2.msra.mxu0 %v1619
      %1967 = vmatprep.subr.mxu0 %v1616
      %1968 = vmatpush2.msra.mxu0 %v1615
      %1969 = vmatprep.subr.mxu0 %v1612
      %1970 = vmatpush2.msra.mxu0 %v1611
      %1971 = vmatprep.subr.mxu0 %v1608
      %1972 = vmatpush2.msra.mxu0 %v1607
      %1973 = vmatprep.subr.mxu0 %v1604
      %1974 = vmatpush2.msra.mxu0 %v1603
      %1975 = vmatprep.subr.mxu0 %v1600
      %1976 = vmatpush2.msra.mxu0 %v1599
      %1977 = vmatprep.subr.mxu0 %v1596
      %1978 = vmatpush2.msra.mxu0 %v1595
      %1979 = vmatprep.subr.mxu0 %v1592
      %1980 = vmatpush2.msra.mxu0 %v1591
      %1981 = vmatprep.subr.mxu0 %v1588
      %1982 = vmatpush2.msra.mxu0 %v1587
      %1983 = vmatprep.subr.mxu0 %v1584
      %1984 = vmatpush2.msra.mxu0 %v1583
      %1985 = vmatprep.subr.mxu0 %v1580
      %1986 = vmatpush2.msra.mxu0 %v1579
      %1987 = vmatprep.subr.mxu0 %v1576
      %1988 = vmatpush2.msra.mxu0 %v1575
      %1989 = vmatprep.subr.mxu0 %v1572
      %1990 = vmatpush2.msra.mxu0 %v1571
      %1991 = vmatprep.mubr.f32.mxu0 %v1248
      %1992 = vmatmul.mubr.f32.gmra.mxu0 %v1247
      %v1993 = vpop.f32.mrf.mxu0
      %v1994 = vadd.f32 %v1923, %v1993
      %v1995 = vpop.f32.mrf.mxu0
      %v1996 = vadd.f32 %v1925, %v1995
      %1997 = vdwg.mxu0
      %1998 = vmatprep.subr.mxu0 %v1696
      %1999 = vmatpush1.msra.mxu0 %v1695
      %2000 = vmatprep.subr.mxu0 %v1692
      %2001 = vmatpush1.msra.mxu0 %v1691
      %2002 = vmatprep.subr.mxu0 %v1688
      %2003 = vmatpush1.msra.mxu0 %v1687
      %2004 = vmatprep.subr.mxu0 %v1684
      %2005 = vmatpush1.msra.mxu0 %v1683
      %2006 = vmatprep.subr.mxu0 %v1680
      %2007 = vmatpush1.msra.mxu0 %v1679
      %2008 = vmatprep.subr.mxu0 %v1676
      %2009 = vmatpush1.msra.mxu0 %v1675
      %2010 = vmatprep.subr.mxu0 %v1672
      %2011 = vmatpush1.msra.mxu0 %v1671
      %2012 = vmatprep.subr.mxu0 %v1668
      %2013 = vmatpush1.msra.mxu0 %v1667
      %2014 = vmatprep.subr.mxu0 %v1664
      %2015 = vmatpush1.msra.mxu0 %v1663
      %2016 = vmatprep.subr.mxu0 %v1660
      %2017 = vmatpush1.msra.mxu0 %v1659
      %2018 = vmatprep.subr.mxu0 %v1656
      %2019 = vmatpush1.msra.mxu0 %v1655
      %2020 = vmatprep.subr.mxu0 %v1652
      %2021 = vmatpush1.msra.mxu0 %v1651
      %2022 = vmatprep.subr.mxu0 %v1648
      %2023 = vmatpush1.msra.mxu0 %v1647
      %2024 = vmatprep.subr.mxu0 %v1644
      %2025 = vmatpush1.msra.mxu0 %v1643
      %2026 = vmatprep.subr.mxu0 %v1640
      %2027 = vmatpush1.msra.mxu0 %v1639
      %2028 = vmatprep.subr.mxu0 %v1636
      %2029 = vmatpush1.msra.mxu0 %v1635
      %2030 = vmatprep.subr.mxu0 %v1760
      %2031 = vmatpush2.msra.mxu0 %v1759
      %2032 = vmatprep.subr.mxu0 %v1756
      %2033 = vmatpush2.msra.mxu0 %v1755
      %2034 = vmatprep.subr.mxu0 %v1752
      %2035 = vmatpush2.msra.mxu0 %v1751
      %2036 = vmatprep.subr.mxu0 %v1748
      %2037 = vmatpush2.msra.mxu0 %v1747
      %2038 = vmatprep.subr.mxu0 %v1744
      %2039 = vmatpush2.msra.mxu0 %v1743
      %2040 = vmatprep.subr.mxu0 %v1740
      %2041 = vmatpush2.msra.mxu0 %v1739
      %2042 = vmatprep.subr.mxu0 %v1736
      %2043 = vmatpush2.msra.mxu0 %v1735
      %2044 = vmatprep.subr.mxu0 %v1732
      %2045 = vmatpush2.msra.mxu0 %v1731
      %2046 = vmatprep.subr.mxu0 %v1728
      %2047 = vmatpush2.msra.mxu0 %v1727
      %2048 = vmatprep.subr.mxu0 %v1724
      %2049 = vmatpush2.msra.mxu0 %v1723
      %2050 = vmatprep.subr.mxu0 %v1720
      %2051 = vmatpush2.msra.mxu0 %v1719
      %2052 = vmatprep.subr.mxu0 %v1716
      %2053 = vmatpush2.msra.mxu0 %v1715
      %2054 = vmatprep.subr.mxu0 %v1712
      %2055 = vmatpush2.msra.mxu0 %v1711
      %2056 = vmatprep.subr.mxu0 %v1708
      %2057 = vmatpush2.msra.mxu0 %v1707
      %2058 = vmatprep.subr.mxu0 %v1704
      %2059 = vmatpush2.msra.mxu0 %v1703
      %2060 = vmatprep.subr.mxu0 %v1700
      %2061 = vmatpush2.msra.mxu0 %v1699
      %2062 = vmatprep.mubr.f32.mxu0 %v1250
      %2063 = vmatmul.mubr.f32.gmra.mxu0 %v1249
      %v2064 = vpop.f32.mrf.mxu0
      %v2065 = vadd.f32 %v1994, %v2064
      %v2066 = vpop.f32.mrf.mxu0
      %v2067 = vadd.f32 %v1996, %v2066
      %2068 = vdwg.mxu0
      %2069 = vmatprep.subr.mxu0 %v1314
      %2070 = vmatpush1.msra.mxu0 %v1313
      %2071 = vmatprep.subr.mxu0 %v1310
      %2072 = vmatpush1.msra.mxu0 %v1309
      %2073 = vmatprep.subr.mxu0 %v1306
      %2074 = vmatpush1.msra.mxu0 %v1305
      %2075 = vmatprep.subr.mxu0 %v1302
      %2076 = vmatpush1.msra.mxu0 %v1301
      %2077 = vmatprep.subr.mxu0 %v1298
      %2078 = vmatpush1.msra.mxu0 %v1297
      %2079 = vmatprep.subr.mxu0 %v1294
      %2080 = vmatpush1.msra.mxu0 %v1293
      %2081 = vmatprep.subr.mxu0 %v1290
      %2082 = vmatpush1.msra.mxu0 %v1289
      %2083 = vmatprep.subr.mxu0 %v1286
      %2084 = vmatpush1.msra.mxu0 %v1285
      %2085 = vmatprep.subr.mxu0 %v1282
      %2086 = vmatpush1.msra.mxu0 %v1281
      %2087 = vmatprep.subr.mxu0 %v1278
      %2088 = vmatpush1.msra.mxu0 %v1277
      %2089 = vmatprep.subr.mxu0 %v1274
      %2090 = vmatpush1.msra.mxu0 %v1273
      %2091 = vmatprep.subr.mxu0 %v1270
      %2092 = vmatpush1.msra.mxu0 %v1269
      %2093 = vmatprep.subr.mxu0 %v1266
      %2094 = vmatpush1.msra.mxu0 %v1265
      %2095 = vmatprep.subr.mxu0 %v1262
      %2096 = vmatpush1.msra.mxu0 %v1261
      %2097 = vmatprep.subr.mxu0 %v1258
      %2098 = vmatpush1.msra.mxu0 %v1257
      %2099 = vmatprep.subr.mxu0 %v1254
      %2100 = vmatpush1.msra.mxu0 %v1253
      %2101 = vmatprep.subr.mxu0 %v1378
      %2102 = vmatpush2.msra.mxu0 %v1377
      %2103 = vmatprep.subr.mxu0 %v1374
      %2104 = vmatpush2.msra.mxu0 %v1373
      %2105 = vmatprep.subr.mxu0 %v1370
      %2106 = vmatpush2.msra.mxu0 %v1369
      %2107 = vmatprep.subr.mxu0 %v1366
      %2108 = vmatpush2.msra.mxu0 %v1365
      %2109 = vmatprep.subr.mxu0 %v1362
      %2110 = vmatpush2.msra.mxu0 %v1361
      %2111 = vmatprep.subr.mxu0 %v1358
      %2112 = vmatpush2.msra.mxu0 %v1357
      %2113 = vmatprep.subr.mxu0 %v1354
      %2114 = vmatpush2.msra.mxu0 %v1353
      %2115 = vmatprep.subr.mxu0 %v1350
      %2116 = vmatpush2.msra.mxu0 %v1349
      %2117 = vmatprep.subr.mxu0 %v1346
      %2118 = vmatpush2.msra.mxu0 %v1345
      %2119 = vmatprep.subr.mxu0 %v1342
      %2120 = vmatpush2.msra.mxu0 %v1341
      %2121 = vmatprep.subr.mxu0 %v1338
      %2122 = vmatpush2.msra.mxu0 %v1337
      %2123 = vmatprep.subr.mxu0 %v1334
      %2124 = vmatpush2.msra.mxu0 %v1333
      %2125 = vmatprep.subr.mxu0 %v1330
      %2126 = vmatpush2.msra.mxu0 %v1329
      %2127 = vmatprep.subr.mxu0 %v1326
      %2128 = vmatpush2.msra.mxu0 %v1325
      %2129 = vmatprep.subr.mxu0 %v1322
      %2130 = vmatpush2.msra.mxu0 %v1321
      %2131 = vmatprep.subr.mxu0 %v1318
      %2132 = vmatpush2.msra.mxu0 %v1317
      %2133 = vmatprep.mubr.f32.mxu0 %v1244
      %2134 = vmatmul.mubr.f32.gmra.mxu0 %v1243
      %v2135 = vpop.f32.mrf.mxu0
      %v2136 = vadd.f32 %v1776, %v2135
      %v2137 = vpop.f32.mrf.mxu0
      %v2138 = vadd.f32 %v1780, %v2137
      %2139 = vdwg.mxu0
      %2140 = vmatprep.subr.mxu0 %v1442
      %2141 = vmatpush1.msra.mxu0 %v1441
      %2142 = vmatprep.subr.mxu0 %v1438
      %2143 = vmatpush1.msra.mxu0 %v1437
      %2144 = vmatprep.subr.mxu0 %v1434
      %2145 = vmatpush1.msra.mxu0 %v1433
      %2146 = vmatprep.subr.mxu0 %v1430
      %2147 = vmatpush1.msra.mxu0 %v1429
      %2148 = vmatprep.subr.mxu0 %v1426
      %2149 = vmatpush1.msra.mxu0 %v1425
      %2150 = vmatprep.subr.mxu0 %v1422
      %2151 = vmatpush1.msra.mxu0 %v1421
      %2152 = vmatprep.subr.mxu0 %v1418
      %2153 = vmatpush1.msra.mxu0 %v1417
      %2154 = vmatprep.subr.mxu0 %v1414
      %2155 = vmatpush1.msra.mxu0 %v1413
      %2156 = vmatprep.subr.mxu0 %v1410
      %2157 = vmatpush1.msra.mxu0 %v1409
      %2158 = vmatprep.subr.mxu0 %v1406
      %2159 = vmatpush1.msra.mxu0 %v1405
      %2160 = vmatprep.subr.mxu0 %v1402
      %2161 = vmatpush1.msra.mxu0 %v1401
      %2162 = vmatprep.subr.mxu0 %v1398
      %2163 = vmatpush1.msra.mxu0 %v1397
      %2164 = vmatprep.subr.mxu0 %v1394
      %2165 = vmatpush1.msra.mxu0 %v1393
      %2166 = vmatprep.subr.mxu0 %v1390
      %2167 = vmatpush1.msra.mxu0 %v1389
      %2168 = vmatprep.subr.mxu0 %v1386
      %2169 = vmatpush1.msra.mxu0 %v1385
      %2170 = vmatprep.subr.mxu0 %v1382
      %2171 = vmatpush1.msra.mxu0 %v1381
      %2172 = vmatprep.subr.mxu0 %v1506
      %2173 = vmatpush2.msra.mxu0 %v1505
      %2174 = vmatprep.subr.mxu0 %v1502
      %2175 = vmatpush2.msra.mxu0 %v1501
      %2176 = vmatprep.subr.mxu0 %v1498
      %2177 = vmatpush2.msra.mxu0 %v1497
      %2178 = vmatprep.subr.mxu0 %v1494
      %2179 = vmatpush2.msra.mxu0 %v1493
      %2180 = vmatprep.subr.mxu0 %v1490
      %2181 = vmatpush2.msra.mxu0 %v1489
      %2182 = vmatprep.subr.mxu0 %v1486
      %2183 = vmatpush2.msra.mxu0 %v1485
      %2184 = vmatprep.subr.mxu0 %v1482
      %2185 = vmatpush2.msra.mxu0 %v1481
      %2186 = vmatprep.subr.mxu0 %v1478
      %2187 = vmatpush2.msra.mxu0 %v1477
      %2188 = vmatprep.subr.mxu0 %v1474
      %2189 = vmatpush2.msra.mxu0 %v1473
      %2190 = vmatprep.subr.mxu0 %v1470
      %2191 = vmatpush2.msra.mxu0 %v1469
      %2192 = vmatprep.subr.mxu0 %v1466
      %2193 = vmatpush2.msra.mxu0 %v1465
      %2194 = vmatprep.subr.mxu0 %v1462
      %2195 = vmatpush2.msra.mxu0 %v1461
      %2196 = vmatprep.subr.mxu0 %v1458
      %2197 = vmatpush2.msra.mxu0 %v1457
      %2198 = vmatprep.subr.mxu0 %v1454
      %2199 = vmatpush2.msra.mxu0 %v1453
      %2200 = vmatprep.subr.mxu0 %v1450
      %2201 = vmatpush2.msra.mxu0 %v1449
      %2202 = vmatprep.subr.mxu0 %v1446
      %2203 = vmatpush2.msra.mxu0 %v1445
      %2204 = vmatprep.mubr.f32.mxu0 %v1246
      %2205 = vmatmul.mubr.f32.gmra.mxu0 %v1245
      %v2206 = vpop.f32.mrf.mxu0
      %v2207 = vadd.f32 %v2136, %v2206
      %v2208 = vpop.f32.mrf.mxu0
      %v2209 = vadd.f32 %v2138, %v2208
      %2210 = vdwg.mxu0
      %2211 = vmatprep.subr.mxu0 %v1570
      %2212 = vmatpush1.msra.mxu0 %v1569
      %2213 = vmatprep.subr.mxu0 %v1566
      %2214 = vmatpush1.msra.mxu0 %v1565
      %2215 = vmatprep.subr.mxu0 %v1562
      %2216 = vmatpush1.msra.mxu0 %v1561
      %2217 = vmatprep.subr.mxu0 %v1558
      %2218 = vmatpush1.msra.mxu0 %v1557
      %2219 = vmatprep.subr.mxu0 %v1554
      %2220 = vmatpush1.msra.mxu0 %v1553
      %2221 = vmatprep.subr.mxu0 %v1550
      %2222 = vmatpush1.msra.mxu0 %v1549
      %2223 = vmatprep.subr.mxu0 %v1546
      %2224 = vmatpush1.msra.mxu0 %v1545
      %2225 = vmatprep.subr.mxu0 %v1542
      %2226 = vmatpush1.msra.mxu0 %v1541
      %2227 = vmatprep.subr.mxu0 %v1538
      %2228 = vmatpush1.msra.mxu0 %v1537
      %2229 = vmatprep.subr.mxu0 %v1534
      %2230 = vmatpush1.msra.mxu0 %v1533
      %2231 = vmatprep.subr.mxu0 %v1530
      %2232 = vmatpush1.msra.mxu0 %v1529
      %2233 = vmatprep.subr.mxu0 %v1526
      %2234 = vmatpush1.msra.mxu0 %v1525
      %2235 = vmatprep.subr.mxu0 %v1522
      %2236 = vmatpush1.msra.mxu0 %v1521
      %2237 = vmatprep.subr.mxu0 %v1518
      %2238 = vmatpush1.msra.mxu0 %v1517
      %2239 = vmatprep.subr.mxu0 %v1514
      %2240 = vmatpush1.msra.mxu0 %v1513
      %2241 = vmatprep.subr.mxu0 %v1510
      %2242 = vmatpush1.msra.mxu0 %v1509
      %2243 = vmatprep.subr.mxu0 %v1634
      %2244 = vmatpush2.msra.mxu0 %v1633
      %2245 = vmatprep.subr.mxu0 %v1630
      %2246 = vmatpush2.msra.mxu0 %v1629
      %2247 = vmatprep.subr.mxu0 %v1626
      %2248 = vmatpush2.msra.mxu0 %v1625
      %2249 = vmatprep.subr.mxu0 %v1622
      %2250 = vmatpush2.msra.mxu0 %v1621
      %2251 = vmatprep.subr.mxu0 %v1618
      %2252 = vmatpush2.msra.mxu0 %v1617
      %2253 = vmatprep.subr.mxu0 %v1614
      %2254 = vmatpush2.msra.mxu0 %v1613
      %2255 = vmatprep.subr.mxu0 %v1610
      %2256 = vmatpush2.msra.mxu0 %v1609
      %2257 = vmatprep.subr.mxu0 %v1606
      %2258 = vmatpush2.msra.mxu0 %v1605
      %2259 = vmatprep.subr.mxu0 %v1602
      %2260 = vmatpush2.msra.mxu0 %v1601
      %2261 = vmatprep.subr.mxu0 %v1598
      %2262 = vmatpush2.msra.mxu0 %v1597
      %2263 = vmatprep.subr.mxu0 %v1594
      %2264 = vmatpush2.msra.mxu0 %v1593
      %2265 = vmatprep.subr.mxu0 %v1590
      %2266 = vmatpush2.msra.mxu0 %v1589
      %2267 = vmatprep.subr.mxu0 %v1586
      %2268 = vmatpush2.msra.mxu0 %v1585
      %2269 = vmatprep.subr.mxu0 %v1582
      %2270 = vmatpush2.msra.mxu0 %v1581
      %2271 = vmatprep.subr.mxu0 %v1578
      %2272 = vmatpush2.msra.mxu0 %v1577
      %2273 = vmatprep.subr.mxu0 %v1574
      %2274 = vmatpush2.msra.mxu0 %v1573
      %2275 = vmatprep.mubr.f32.mxu0 %v1248
      %2276 = vmatmul.mubr.f32.gmra.mxu0 %v1247
      %v2277 = vpop.f32.mrf.mxu0
      %v2278 = vadd.f32 %v2207, %v2277
      %v2279 = vpop.f32.mrf.mxu0
      %v2280 = vadd.f32 %v2209, %v2279
      %2281 = vdwg.mxu0
      %2282 = vmatprep.subr.mxu0 %v1698
      %2283 = vmatpush1.msra.mxu0 %v1697
      %2284 = vmatprep.subr.mxu0 %v1694
      %2285 = vmatpush1.msra.mxu0 %v1693
      %2286 = vmatprep.subr.mxu0 %v1690
      %2287 = vmatpush1.msra.mxu0 %v1689
      %2288 = vmatprep.subr.mxu0 %v1686
      %2289 = vmatpush1.msra.mxu0 %v1685
      %2290 = vmatprep.subr.mxu0 %v1682
      %2291 = vmatpush1.msra.mxu0 %v1681
      %2292 = vmatprep.subr.mxu0 %v1678
      %2293 = vmatpush1.msra.mxu0 %v1677
      %2294 = vmatprep.subr.mxu0 %v1674
      %2295 = vmatpush1.msra.mxu0 %v1673
      %2296 = vmatprep.subr.mxu0 %v1670
      %2297 = vmatpush1.msra.mxu0 %v1669
      %2298 = vmatprep.subr.mxu0 %v1666
      %2299 = vmatpush1.msra.mxu0 %v1665
      %2300 = vmatprep.subr.mxu0 %v1662
      %2301 = vmatpush1.msra.mxu0 %v1661
      %2302 = vmatprep.subr.mxu0 %v1658
      %2303 = vmatpush1.msra.mxu0 %v1657
      %2304 = vmatprep.subr.mxu0 %v1654
      %2305 = vmatpush1.msra.mxu0 %v1653
      %2306 = vmatprep.subr.mxu0 %v1650
      %2307 = vmatpush1.msra.mxu0 %v1649
      %2308 = vmatprep.subr.mxu0 %v1646
      %2309 = vmatpush1.msra.mxu0 %v1645
      %2310 = vmatprep.subr.mxu0 %v1642
      %2311 = vmatpush1.msra.mxu0 %v1641
      %2312 = vmatprep.subr.mxu0 %v1638
      %2313 = vmatpush1.msra.mxu0 %v1637
      %2314 = vmatprep.subr.mxu0 %v1762
      %2315 = vmatpush2.msra.mxu0 %v1761
      %2316 = vmatprep.subr.mxu0 %v1758
      %2317 = vmatpush2.msra.mxu0 %v1757
      %2318 = vmatprep.subr.mxu0 %v1754
      %2319 = vmatpush2.msra.mxu0 %v1753
      %2320 = vmatprep.subr.mxu0 %v1750
      %2321 = vmatpush2.msra.mxu0 %v1749
      %2322 = vmatprep.subr.mxu0 %v1746
      %2323 = vmatpush2.msra.mxu0 %v1745
      %2324 = vmatprep.subr.mxu0 %v1742
      %2325 = vmatpush2.msra.mxu0 %v1741
      %2326 = vmatprep.subr.mxu0 %v1738
      %2327 = vmatpush2.msra.mxu0 %v1737
      %2328 = vmatprep.subr.mxu0 %v1734
      %2329 = vmatpush2.msra.mxu0 %v1733
      %2330 = vmatprep.subr.mxu0 %v1730
      %2331 = vmatpush2.msra.mxu0 %v1729
      %2332 = vmatprep.subr.mxu0 %v1726
      %2333 = vmatpush2.msra.mxu0 %v1725
      %2334 = vmatprep.subr.mxu0 %v1722
      %2335 = vmatpush2.msra.mxu0 %v1721
      %2336 = vmatprep.subr.mxu0 %v1718
      %2337 = vmatpush2.msra.mxu0 %v1717
      %2338 = vmatprep.subr.mxu0 %v1714
      %2339 = vmatpush2.msra.mxu0 %v1713
      %2340 = vmatprep.subr.mxu0 %v1710
      %2341 = vmatpush2.msra.mxu0 %v1709
      %2342 = vmatprep.subr.mxu0 %v1706
      %2343 = vmatpush2.msra.mxu0 %v1705
      %2344 = vmatprep.subr.mxu0 %v1702
      %2345 = vmatpush2.msra.mxu0 %v1701
      %2346 = vmatprep.mubr.f32.mxu0 %v1250
      %2347 = vmatmul.mubr.f32.gmra.mxu0 %v1249
      %v2348 = vpop.f32.mrf.mxu0
      %v2349 = vadd.f32 %v2278, %v2348
      %v2350 = vpop.f32.mrf.mxu0
      %v2351 = vadd.f32 %v2280, %v2350
      %2352 = vdwg.mxu0
      %v2353 = vld [vmem:[#allocation10] sm:$0xf]
      %v2354 = vld [vmem:[#allocation11] sm:$0xf]
      %v2355 = vadd.f32 %v2065, %v2067
      %v2356 = vadd.f32 %v2355, %v2349
      %v2357 = vadd.f32 %v2356, %v2351
      %2358 = vadd.xlane.f32.xlu0 %v2357
      %v2359 = vpop.xlane.xlu0 %2358
      %v2360 = vrcp.pop 512.0
      %v2361 = vmul.f32 %v2359, %v2360
      %v2362 = vsub.f32 %v2065, %v2361
      %v2363 = vsub.f32 %v2067, %v2361
      %v2364 = vsub.f32 %v2349, %v2361
      %v2365 = vsub.f32 %v2351, %v2361
      %v2366 = vmul.f32 %v2362, %v2362
      %v2367 = vmul.f32 %v2363, %v2363
      %v2368 = vmul.f32 %v2364, %v2364
      %v2369 = vmul.f32 %v2365, %v2365
      %v2370 = vadd.f32 %v2366, %v2367
      %v2371 = vadd.f32 %v2370, %v2368
      %v2372 = vadd.f32 %v2371, %v2369
      %2373 = vadd.xlane.f32.xlu0 %v2372
      %v2374 = vpop.xlane.xlu0 %2373
      %v2375 = vmul.f32 %v2374, %v2360
      %v2376 = vadd.f32 %v2375, 1e-05
      %v2377 = vrsqrt.pop %v2376
      %v2378 = vmul.f32 %v2362, %v2377
      %v2379 = vmul.f32 %v2363, %v2377
      %v2380 = vmul.f32 %v2364, %v2377
      %v2381 = vmul.f32 %v2365, %v2377
      %v2383 = vlaneseq
      %v2384 = vshrl.u32 %v2383, 7
      %v2385 = vsub.s32 0, %v2384
      %v2386 = vrot.slane %v2353, %v2385
      %v2387 = vlaneseq
      %v2388 = vshrl.u32 %v2387, 7
      %v2389 = vsub.s32 1, %v2388
      %v2390 = vrot.slane %v2353, %v2389
      %v2391 = vlaneseq
      %v2392 = vshrl.u32 %v2391, 7
      %v2393 = vsub.s32 2, %v2392
      %v2394 = vrot.slane %v2353, %v2393
      %v2395 = vlaneseq
      %v2396 = vshrl.u32 %v2395, 7
      %v2397 = vsub.s32 3, %v2396
      %v2398 = vrot.slane %v2353, %v2397
      %v2403 = vmul.f32 %v2378, %v2386
      %v2404 = vmul.f32 %v2379, %v2390
      %v2405 = vmul.f32 %v2380, %v2394
      %v2406 = vmul.f32 %v2381, %v2398
      %v2408 = vlaneseq
      %v2409 = vshrl.u32 %v2408, 7
      %v2410 = vsub.s32 0, %v2409
      %v2411 = vrot.slane %v2354, %v2410
      %v2412 = vlaneseq
      %v2413 = vshrl.u32 %v2412, 7
      %v2414 = vsub.s32 1, %v2413
      %v2415 = vrot.slane %v2354, %v2414
      %v2416 = vlaneseq
      %v2417 = vshrl.u32 %v2416, 7
      %v2418 = vsub.s32 2, %v2417
      %v2419 = vrot.slane %v2354, %v2418
      %v2420 = vlaneseq
      %v2421 = vshrl.u32 %v2420, 7
      %v2422 = vsub.s32 3, %v2421
      %v2423 = vrot.slane %v2354, %v2422
      %v2428 = vadd.f32 %v2403, %v2411
      %v2429 = vadd.f32 %v2404, %v2415
      %v2430 = vadd.f32 %v2405, %v2419
      %v2431 = vadd.f32 %v2406, %v2423
      %v2432 = vmul.f32 %v2428, 0.5
      %v2433 = vmul.f32 %v2429, 0.5
      %v2434 = vmul.f32 %v2430, 0.5
      %v2435 = vmul.f32 %v2431, 0.5
      %v2436 = vmul.f32 %v2428, 0.70710677
      %v2437 = vmul.f32 %v2429, 0.70710677
      %v2438 = vmul.f32 %v2430, 0.70710677
      %v2439 = vmul.f32 %v2431, 0.70710677
      %v2440 = verf.f32.pop %v2436
      %v2441 = verf.f32.pop %v2437
      %v2442 = verf.f32.pop %v2438
      %v2443 = verf.f32.pop %v2439
      %v2444 = vadd.f32 %v2440, 1.0
      %v2445 = vadd.f32 %v2441, 1.0
      %v2446 = vadd.f32 %v2442, 1.0
      %v2447 = vadd.f32 %v2443, 1.0
      %v2448 = vmul.f32 %v2432, %v2444
      %v2449 = vmul.f32 %v2433, %v2445
      %v2450 = vmul.f32 %v2434, %v2446
      %v2451 = vmul.f32 %v2435, %v2447
      %v2452 = vld [vmem:[#allocation13] sm:$0xff]
      %v2453 = vld [vmem:[#allocation13 + $0x8] sm:$0xff]
      %v2454 = vld [vmem:[#allocation13 + $0x10] sm:$0xff]
      %v2455 = vld [vmem:[#allocation13 + $0x18] sm:$0xff]
      %v2456 = vld [vmem:[#allocation13 + $0x20] sm:$0xff]
      %v2457 = vld [vmem:[#allocation13 + $0x28] sm:$0xff]
      %v2458 = vld [vmem:[#allocation13 + $0x30] sm:$0xff]
      %v2459 = vld [vmem:[#allocation13 + $0x38] sm:$0xff]
      %v2460 = vld [vmem:[#allocation13 + $0x40] sm:$0xff]
      %v2461 = vld [vmem:[#allocation13 + $0x48] sm:$0xff]
      %v2462 = vld [vmem:[#allocation13 + $0x50] sm:$0xff]
      %v2463 = vld [vmem:[#allocation13 + $0x58] sm:$0xff]
      %v2464 = vld [vmem:[#allocation13 + $0x60] sm:$0xff]
      %v2465 = vld [vmem:[#allocation13 + $0x68] sm:$0xff]
      %v2466 = vld [vmem:[#allocation13 + $0x70] sm:$0xff]
      %v2467 = vld [vmem:[#allocation13 + $0x78] sm:$0xff]
      %v2468 = vld [vmem:[#allocation13 + $0x80] sm:$0xff]
      %v2469 = vld [vmem:[#allocation13 + $0x88] sm:$0xff]
      %v2470 = vld [vmem:[#allocation13 + $0x90] sm:$0xff]
      %v2471 = vld [vmem:[#allocation13 + $0x98] sm:$0xff]
      %v2472 = vld [vmem:[#allocation13 + $0xa0] sm:$0xff]
      %v2473 = vld [vmem:[#allocation13 + $0xa8] sm:$0xff]
      %v2474 = vld [vmem:[#allocation13 + $0xb0] sm:$0xff]
      %v2475 = vld [vmem:[#allocation13 + $0xb8] sm:$0xff]
      %v2476 = vld [vmem:[#allocation13 + $0xc0] sm:$0xff]
      %v2477 = vld [vmem:[#allocation13 + $0xc8] sm:$0xff]
      %v2478 = vld [vmem:[#allocation13 + $0xd0] sm:$0xff]
      %v2479 = vld [vmem:[#allocation13 + $0xd8] sm:$0xff]
      %v2480 = vld [vmem:[#allocation13 + $0xe0] sm:$0xff]
      %v2481 = vld [vmem:[#allocation13 + $0xe8] sm:$0xff]
      %v2482 = vld [vmem:[#allocation13 + $0xf0] sm:$0xff]
      %v2483 = vld [vmem:[#allocation13 + $0xf8] sm:$0xff]
      %v2484 = vld [vmem:[#allocation13 + $0x100] sm:$0xff]
      %v2485 = vld [vmem:[#allocation13 + $0x108] sm:$0xff]
      %v2486 = vld [vmem:[#allocation13 + $0x110] sm:$0xff]
      %v2487 = vld [vmem:[#allocation13 + $0x118] sm:$0xff]
      %v2488 = vld [vmem:[#allocation13 + $0x120] sm:$0xff]
      %v2489 = vld [vmem:[#allocation13 + $0x128] sm:$0xff]
      %v2490 = vld [vmem:[#allocation13 + $0x130] sm:$0xff]
      %v2491 = vld [vmem:[#allocation13 + $0x138] sm:$0xff]
      %v2492 = vld [vmem:[#allocation13 + $0x140] sm:$0xff]
      %v2493 = vld [vmem:[#allocation13 + $0x148] sm:$0xff]
      %v2494 = vld [vmem:[#allocation13 + $0x150] sm:$0xff]
      %v2495 = vld [vmem:[#allocation13 + $0x158] sm:$0xff]
      %v2496 = vld [vmem:[#allocation13 + $0x160] sm:$0xff]
      %v2497 = vld [vmem:[#allocation13 + $0x168] sm:$0xff]
      %v2498 = vld [vmem:[#allocation13 + $0x170] sm:$0xff]
      %v2499 = vld [vmem:[#allocation13 + $0x178] sm:$0xff]
      %v2500 = vld [vmem:[#allocation13 + $0x180] sm:$0xff]
      %v2501 = vld [vmem:[#allocation13 + $0x188] sm:$0xff]
      %v2502 = vld [vmem:[#allocation13 + $0x190] sm:$0xff]
      %v2503 = vld [vmem:[#allocation13 + $0x198] sm:$0xff]
      %v2504 = vld [vmem:[#allocation13 + $0x1a0] sm:$0xff]
      %v2505 = vld [vmem:[#allocation13 + $0x1a8] sm:$0xff]
      %v2506 = vld [vmem:[#allocation13 + $0x1b0] sm:$0xff]
      %v2507 = vld [vmem:[#allocation13 + $0x1b8] sm:$0xff]
      %v2508 = vld [vmem:[#allocation13 + $0x1c0] sm:$0xff]
      %v2509 = vld [vmem:[#allocation13 + $0x1c8] sm:$0xff]
      %v2510 = vld [vmem:[#allocation13 + $0x1d0] sm:$0xff]
      %v2511 = vld [vmem:[#allocation13 + $0x1d8] sm:$0xff]
      %v2512 = vld [vmem:[#allocation13 + $0x1e0] sm:$0xff]
      %v2513 = vld [vmem:[#allocation13 + $0x1e8] sm:$0xff]
      %v2514 = vld [vmem:[#allocation13 + $0x1f0] sm:$0xff]
      %v2515 = vld [vmem:[#allocation13 + $0x1f8] sm:$0xff]
      %v2516 = vld [vmem:[#allocation14] sm:$0x1]
      %v2518 = vlaneseq
      %v2519 = vshrl.u32 %v2518, 7
      %v2520 = vsub.s32 0, %v2519
      %v2521 = vrot.slane %v2516, %v2520
      %2523 = vmatprep.subr.mxu0 0.0
      %2524 = vmatpush1.msra.mxu0 %v2467
      %2525 = vmatprep.subr.mxu0 0.0
      %2526 = vmatpush1.msra.mxu0 %v2466
      %2527 = vmatprep.subr.mxu0 0.0
      %2528 = vmatpush1.msra.mxu0 %v2465
      %2529 = vmatprep.subr.mxu0 0.0
      %2530 = vmatpush1.msra.mxu0 %v2464
      %2531 = vmatprep.subr.mxu0 0.0
      %2532 = vmatpush1.msra.mxu0 %v2463
      %2533 = vmatprep.subr.mxu0 0.0
      %2534 = vmatpush1.msra.mxu0 %v2462
      %2535 = vmatprep.subr.mxu0 0.0
      %2536 = vmatpush1.msra.mxu0 %v2461
      %2537 = vmatprep.subr.mxu0 0.0
      %2538 = vmatpush1.msra.mxu0 %v2460
      %2539 = vmatprep.subr.mxu0 0.0
      %2540 = vmatpush1.msra.mxu0 %v2459
      %2541 = vmatprep.subr.mxu0 0.0
      %2542 = vmatpush1.msra.mxu0 %v2458
      %2543 = vmatprep.subr.mxu0 0.0
      %2544 = vmatpush1.msra.mxu0 %v2457
      %2545 = vmatprep.subr.mxu0 0.0
      %2546 = vmatpush1.msra.mxu0 %v2456
      %2547 = vmatprep.subr.mxu0 0.0
      %2548 = vmatpush1.msra.mxu0 %v2455
      %2549 = vmatprep.subr.mxu0 0.0
      %2550 = vmatpush1.msra.mxu0 %v2454
      %2551 = vmatprep.subr.mxu0 0.0
      %2552 = vmatpush1.msra.mxu0 %v2453
      %2553 = vmatprep.subr.mxu0 0.0
      %2554 = vmatpush1.msra.mxu0 %v2452
      %2555 = vmatprep.subr.mxu0 0.0
      %2556 = vmatpush2.msra.mxu0 %v2483
      %2557 = vmatprep.subr.mxu0 0.0
      %2558 = vmatpush2.msra.mxu0 %v2482
      %2559 = vmatprep.subr.mxu0 0.0
      %2560 = vmatpush2.msra.mxu0 %v2481
      %2561 = vmatprep.subr.mxu0 0.0
      %2562 = vmatpush2.msra.mxu0 %v2480
      %2563 = vmatprep.subr.mxu0 0.0
      %2564 = vmatpush2.msra.mxu0 %v2479
      %2565 = vmatprep.subr.mxu0 0.0
      %2566 = vmatpush2.msra.mxu0 %v2478
      %2567 = vmatprep.subr.mxu0 0.0
      %2568 = vmatpush2.msra.mxu0 %v2477
      %2569 = vmatprep.subr.mxu0 0.0
      %2570 = vmatpush2.msra.mxu0 %v2476
      %2571 = vmatprep.subr.mxu0 0.0
      %2572 = vmatpush2.msra.mxu0 %v2475
      %2573 = vmatprep.subr.mxu0 0.0
      %2574 = vmatpush2.msra.mxu0 %v2474
      %2575 = vmatprep.subr.mxu0 0.0
      %2576 = vmatpush2.msra.mxu0 %v2473
      %2577 = vmatprep.subr.mxu0 0.0
      %2578 = vmatpush2.msra.mxu0 %v2472
      %2579 = vmatprep.subr.mxu0 0.0
      %2580 = vmatpush2.msra.mxu0 %v2471
      %2581 = vmatprep.subr.mxu0 0.0
      %2582 = vmatpush2.msra.mxu0 %v2470
      %2583 = vmatprep.subr.mxu0 0.0
      %2584 = vmatpush2.msra.mxu0 %v2469
      %2585 = vmatprep.subr.mxu0 0.0
      %2586 = vmatpush2.msra.mxu0 %v2468
      %2587 = vmatprep.mubr.f32.mxu0 %v2449
      %2588 = vmatmul.mubr.f32.gmra.mxu0 %v2448
      %v2589 = vpop.f32.mrf.mxu0
      %v2590 = vadd.f32 %v2521, %v2589
      %v2591 = vpop.f32.mrf.mxu0
      %2592 = vdwg.mxu0
      %2593 = vmatprep.subr.mxu0 0.0
      %2594 = vmatpush1.msra.mxu0 %v2499
      %2595 = vmatprep.subr.mxu0 0.0
      %2596 = vmatpush1.msra.mxu0 %v2498
      %2597 = vmatprep.subr.mxu0 0.0
      %2598 = vmatpush1.msra.mxu0 %v2497
      %2599 = vmatprep.subr.mxu0 0.0
      %2600 = vmatpush1.msra.mxu0 %v2496
      %2601 = vmatprep.subr.mxu0 0.0
      %2602 = vmatpush1.msra.mxu0 %v2495
      %2603 = vmatprep.subr.mxu0 0.0
      %2604 = vmatpush1.msra.mxu0 %v2494
      %2605 = vmatprep.subr.mxu0 0.0
      %2606 = vmatpush1.msra.mxu0 %v2493
      %2607 = vmatprep.subr.mxu0 0.0
      %2608 = vmatpush1.msra.mxu0 %v2492
      %2609 = vmatprep.subr.mxu0 0.0
      %2610 = vmatpush1.msra.mxu0 %v2491
      %2611 = vmatprep.subr.mxu0 0.0
      %2612 = vmatpush1.msra.mxu0 %v2490
      %2613 = vmatprep.subr.mxu0 0.0
      %2614 = vmatpush1.msra.mxu0 %v2489
      %2615 = vmatprep.subr.mxu0 0.0
      %2616 = vmatpush1.msra.mxu0 %v2488
      %2617 = vmatprep.subr.mxu0 0.0
      %2618 = vmatpush1.msra.mxu0 %v2487
      %2619 = vmatprep.subr.mxu0 0.0
      %2620 = vmatpush1.msra.mxu0 %v2486
      %2621 = vmatprep.subr.mxu0 0.0
      %2622 = vmatpush1.msra.mxu0 %v2485
      %2623 = vmatprep.subr.mxu0 0.0
      %2624 = vmatpush1.msra.mxu0 %v2484
      %2625 = vmatprep.subr.mxu0 0.0
      %2626 = vmatpush2.msra.mxu0 %v2515
      %2627 = vmatprep.subr.mxu0 0.0
      %2628 = vmatpush2.msra.mxu0 %v2514
      %2629 = vmatprep.subr.mxu0 0.0
      %2630 = vmatpush2.msra.mxu0 %v2513
      %2631 = vmatprep.subr.mxu0 0.0
      %2632 = vmatpush2.msra.mxu0 %v2512
      %2633 = vmatprep.subr.mxu0 0.0
      %2634 = vmatpush2.msra.mxu0 %v2511
      %2635 = vmatprep.subr.mxu0 0.0
      %2636 = vmatpush2.msra.mxu0 %v2510
      %2637 = vmatprep.subr.mxu0 0.0
      %2638 = vmatpush2.msra.mxu0 %v2509
      %2639 = vmatprep.subr.mxu0 0.0
      %2640 = vmatpush2.msra.mxu0 %v2508
      %2641 = vmatprep.subr.mxu0 0.0
      %2642 = vmatpush2.msra.mxu0 %v2507
      %2643 = vmatprep.subr.mxu0 0.0
      %2644 = vmatpush2.msra.mxu0 %v2506
      %2645 = vmatprep.subr.mxu0 0.0
      %2646 = vmatpush2.msra.mxu0 %v2505
      %2647 = vmatprep.subr.mxu0 0.0
      %2648 = vmatpush2.msra.mxu0 %v2504
      %2649 = vmatprep.subr.mxu0 0.0
      %2650 = vmatpush2.msra.mxu0 %v2503
      %2651 = vmatprep.subr.mxu0 0.0
      %2652 = vmatpush2.msra.mxu0 %v2502
      %2653 = vmatprep.subr.mxu0 0.0
      %2654 = vmatpush2.msra.mxu0 %v2501
      %2655 = vmatprep.subr.mxu0 0.0
      %2656 = vmatpush2.msra.mxu0 %v2500
      %2657 = vmatprep.mubr.f32.mxu0 %v2451
      %2658 = vmatmul.mubr.f32.gmra.mxu0 %v2450
      %v2659 = vpop.f32.mrf.mxu0
      %v2660 = vadd.f32 %v2590, %v2659
      %v2661 = vpop.f32.mrf.mxu0
      %2662 = vdwg.mxu0
      %v2663 = vld [vmem:[#allocation16] sm:$0x1]
      %v2664 = vld [vmem:[#allocation17] sm:$0x1]
      %2665 = vadd.xlane.f32.xlu0 %v2660
      %v2666 = vpop.xlane.xlu0 %2665
      %v2667 = vrcp.pop 128.0
      %v2668 = vmul.f32 %v2666, %v2667
      %v2669 = vsub.f32 %v2660, %v2668
      %v2670 = vmul.f32 %v2669, %v2669
      %2671 = vadd.xlane.f32.xlu0 %v2670
      %v2672 = vpop.xlane.xlu0 %2671
      %v2673 = vmul.f32 %v2672, %v2667
      %v2674 = vadd.f32 %v2673, 1e-05
      %v2675 = vrsqrt.pop %v2674
      %v2676 = vmul.f32 %v2669, %v2675
      %v2678 = vlaneseq
      %v2679 = vshrl.u32 %v2678, 7
      %v2680 = vsub.s32 0, %v2679
      %v2681 = vrot.slane %v2663, %v2680
      %v2683 = vmul.f32 %v2676, %v2681
      %v2685 = vlaneseq
      %v2686 = vshrl.u32 %v2685, 7
      %v2687 = vsub.s32 0, %v2686
      %v2688 = vrot.slane %v2664, %v2687
      %v2690 = vadd.f32 %v2683, %v2688
      %v2691 = vmul.f32 %v2690, 0.5
      %v2692 = vmul.f32 %v2690, 0.70710677
      %v2693 = verf.f32.pop %v2692
      %v2694 = vadd.f32 %v2693, 1.0
      %v2695 = vmul.f32 %v2691, %v2694
      %v2696 = vld [vmem:[#allocation19] sm:$0x1]
      %v2698 = vlaneseq
      %v2699 = vshrl.u32 %v2698, 7
      %v2700 = vsub.s32 0, %v2699
      %v2701 = vrot.slane %v2696, %v2700
      %v2703 = vmul.f32 %v2695, %v2701
      %2704 = vadd.xlane.f32.xlu0 %v2703
      %v2705 = vpop.xlane.xlu0 %2704
      %v2706 = vld [vmem:[#allocation5] sm:$0x1]
      %v2708 = vlaneseq
      %v2709 = vshrl.u32 %v2708, 7
      %v2710 = vsub.s32 0, %v2709
      %v2711 = vrot.slane %v2706, %v2710
      %v2713 = vadd.f32 %v2705, %v2711
      %v2714 = vxor.u32 %v2713, 2147483648
      %v2715 = vmul.f32 %v2714, 1.442695
      %v2716 = vpow.pop %v2715
      %v2717 = vadd.f32 %v2716, 1.0
      %v2718 = vrcp.pop %v2717
      %v2719 = vmul.f32 1.0, %v2718
      %2721 = vset.pattern.permute.xlu0 0
      %2722 = vperm.xlu0 %2721, %v2719
      %v2723 = vpop.permute.xlu0 %2722
      %2725 = vst [vmem:[%s14] sm:$0xff] %v2723
    $region101: #{_forward_impl.1} parent=1 // pred_fallthru
      _
    // Predicated region
    $region102: #{_forward_impl.1} parent=1 // pred_check
      _
    $region103: #{_forward_impl.1} parent=1 // pred_check_branch
      %2727 = sbr.rel (0) target = $region105
    $region104: #{_forward_impl.1} parent=1 // pred_region
      _
    $region105: #{_forward_impl.1} parent=1 // pred_fallthru
      _
    // Predicated region
    $region106: #{_forward_impl.1} parent=1 // pred_check
      _
    $region107: #{_forward_impl.1} parent=1 // pred_check_branch
      %2729 = sbr.rel (0) target = $region109
    $region108: #{_forward_impl.1} parent=1 // pred_region
      _
    $region109: #{_forward_impl.1} parent=1 // pred_fallthru
      _
    %2730 = vsyncpa [#allocation7], 1
    %2731 = vsyncpa [#allocation9], 1
    %2732 = vsyncpa [#allocation12], 1
    %2733 = vsyncpa [#allocation15], 1
    %2734 = vsyncpa [#allocation18], 1

</llo_original>
